<compile_context>
chip_gen: v7x
topology: tpu7x:2x2x1
jax: 0.10.0
libtpu: 0.0.40
codegen_flags: <defaults>
</compile_context>

<pallas_src>
import functools

import jax
import jax.numpy as jnp
from jax import lax
from jax.experimental import pallas as pl
from jax.experimental.pallas import tpu as pltpu

EPS = 1e-5
MXU_DT = jnp.bfloat16            # MXU operand dtype (accumulation stays f32)


@functools.lru_cache(maxsize=None)
def _vmem_limit_bytes():
    """Generation-aware scoped-VMEM limit: ~3/4 of physical VMEM, capped at 100 MiB."""
    try:
        cap = int(pltpu.get_tpu_info().vmem_capacity_bytes)
    except Exception:
        cap = 64 * 1024 * 1024
    return min(cap * 3 // 4, 100 * 1024 * 1024)


def _cparams():
    return pltpu.CompilerParams(dimension_semantics=("parallel",),
                                vmem_limit_bytes=_vmem_limit_bytes())


def _fold_bn(bn):
    gamma, beta, mean, var = bn
    scale = gamma / jnp.sqrt(var + EPS)
    return scale, beta - mean * scale


# ---------------------------------------------------------------------------
# In-kernel 3x3 conv helper (MXU taps, optionally with deepened K)
# ---------------------------------------------------------------------------
def _conv3x3_taps(x_ref, w_ref, *, stride, Ho, Wo, Cin):
    """Accumulate the 9 taps of a 3x3 conv on the MXU.

    x_ref : (stride*stride, Hpp, Wpp, Cin) bf16 — phase-decomposed zero-padded input.
    w_ref : (3, 3*Cin, Cout) bf16, laid out so K index = kj*Cin + cin for each ki.
    Returns (Ho*Wo, Cout) float32.

    When Cin is a multiple of 128 (lane-aligned), the 3 kj taps of each filter row are
    concatenated along K so each ki is ONE deep matmul (K = 3*Cin); otherwise the
    conservative 9 shallow dots are used.
    """
    deep_k = (Cin % 128 == 0)
    acc = None
    for ki in range(3):
        pi, oi = ki % stride, ki // stride
        wins = []
        for kj in range(3):
            pj, oj = kj % stride, kj // stride
            win = x_ref[pi * stride + pj, oi:oi + Ho, oj:oj + Wo, :]
            wins.append(win.reshape(Ho * Wo, Cin))
        if deep_k:
            a = jnp.concatenate(wins, axis=-1)                      # (M, 3*Cin)
            part = jnp.dot(a, w_ref[ki], preferred_element_type=jnp.float32)
            acc = part if acc is None else acc + part
        else:
            for kj in range(3):
                wk = w_ref[ki, kj * Cin:(kj + 1) * Cin, :]
                part = jnp.dot(wins[kj], wk, preferred_element_type=jnp.float32)
                acc = part if acc is None else acc + part
    return acc


# ---------------------------------------------------------------------------
# Pallas kernels
# ---------------------------------------------------------------------------
def _conv1_bn_prelu_kernel(x_ref, s1_ref, b1_ref, w1_ref, alpha_ref,
                           rpad_ref, xpad_ref, *, H, W, Cin, D):
    """BN1 (folded affine) -> zero-pad -> 3x3 conv (stride 1) -> PReLU, and write the
    result ALREADY zero-padded in bf16 so conv2 needs no further input prep."""
    # Build the padded, BN'd bf16 input in VMEM scratch.
    xpad_ref[...] = jnp.zeros_like(xpad_ref)
    xb = (x_ref[0] * s1_ref[...] + b1_ref[...]).astype(MXU_DT)      # (H, W, Cin)
    xpad_ref[0, 1:H + 1, 1:W + 1, :] = xb
    # Conv1 + PReLU.
    acc = _conv3x3_taps(xpad_ref, w1_ref, stride=1, Ho=H, Wo=W, Cin=Cin)
    r = jnp.where(acc >= 0, acc, acc * alpha_ref[...])              # (H*W, D) f32
    # Store padded bf16 output (halo zeroed).
    rpad_ref[...] = jnp.zeros_like(rpad_ref)
    rpad_ref[0, 1:H + 1, 1:W + 1, :] = r.astype(MXU_DT).reshape(H, W, D)


def _conv2_bn_add_kernel(r_ref, w2_ref, s2_ref, b2_ref, sc_ref, o_ref,
                         *, stride, Ho, Wo, D):
    """3x3 conv (given stride) + fused eval-BN + fused residual add (identity/MaxPool
    shortcut already subsampled)."""
    acc = _conv3x3_taps(r_ref, w2_ref, stride=stride, Ho=Ho, Wo=Wo, Cin=D)
    y = acc * s2_ref[...] + b2_ref[...] + sc_ref[0]
    o_ref[0] = y.astype(o_ref.dtype)


def _conv2_bn_convsc_kernel(r_ref, w2_ref, s2_ref, b2_ref,
                            xs_ref, wsc_ref, ssc_ref, bsc_ref, o_ref,
                            *, stride, Ho, Wo, D):
    """3x3 conv (given stride) + fused eval-BN + fused 1x1-conv+BN shortcut + add."""
    acc = _conv3x3_taps(r_ref, w2_ref, stride=stride, Ho=Ho, Wo=Wo, Cin=D)
    y = acc * s2_ref[...] + b2_ref[...]
    sc = jnp.dot(xs_ref[0], wsc_ref[...], preferred_element_type=jnp.float32)
    y = y + (sc * ssc_ref[...] + bsc_ref[...])
    o_ref[0] = y.astype(o_ref.dtype)


# ---------------------------------------------------------------------------
# Wrappers
# ---------------------------------------------------------------------------
def conv1_bn_prelu(x, bn1, w1, alpha):
    """x: (N,H,W,Cin) f32, w1: (3,3,Cin,D) HWIO.
    Returns (N, H+2, W+2, D) bf16, zero-padded conv1+PReLU output."""
    N, H, W, Cin = x.shape
    D = w1.shape[-1]
    s1, b1 = _fold_bn(bn1)
    w1s = jnp.asarray(w1).reshape(3, 3 * Cin, D).astype(MXU_DT)
    kern = functools.partial(_conv1_bn_prelu_kernel, H=H, W=W, Cin=Cin, D=D)
    return pl.pallas_call(
        kern,
        out_shape=jax.ShapeDtypeStruct((N, H + 2, W + 2, D), MXU_DT),
        grid=(N,),
        in_specs=[
            pl.BlockSpec((1, H, W, Cin), lambda n: (n, 0, 0, 0)),
            pl.BlockSpec((1, 1, Cin), lambda n: (0, 0, 0)),
            pl.BlockSpec((1, 1, Cin), lambda n: (0, 0, 0)),
            pl.BlockSpec((3, 3 * Cin, D), lambda n: (0, 0, 0)),   # weights stay resident
            pl.BlockSpec((1, D), lambda n: (0, 0)),
        ],
        out_specs=pl.BlockSpec((1, H + 2, W + 2, D), lambda n: (n, 0, 0, 0)),
        scratch_shapes=[pltpu.VMEM((1, H + 2, W + 2, Cin), MXU_DT)],
        compiler_params=_cparams(),
    )(x.astype(jnp.float32),
      s1.reshape(1, 1, Cin).astype(jnp.float32),
      b1.reshape(1, 1, Cin).astype(jnp.float32),
      w1s,
      jnp.asarray(alpha).reshape(1, D).astype(jnp.float32))


def _s2d_padded(rpad, stride):
    """Space-to-depth (phase decomposition) of the already-padded bf16 tensor so every
    stride-2 conv tap becomes a unit-stride window.  No-op for stride 1."""
    N, Hp, Wp, D = rpad.shape
    if stride == 1:
        return rpad, Hp, Wp
    Hpp, Wpp = Hp // stride, Wp // stride
    t = rpad.reshape(N, Hpp, stride, Wpp, stride, D)
    t = jnp.transpose(t, (0, 2, 4, 1, 3, 5))
    return t.reshape(N * stride * stride, Hpp, Wpp, D), Hpp, Wpp


def conv2_bn_shortcut(rpad, w2, bn2, stride, *, add=None, conv_sc=None):
    """3x3 conv (pad 1, given stride) + fused eval-BN + fused shortcut.

    rpad   : (N, H+2, W+2, D) bf16 padded conv1 output.
    add    : (N, Ho*Wo, D) f32 identity/MaxPool shortcut (when in_channel == depth).
    conv_sc: (xs_flat bf16 (N,Ho*Wo,Cin), w_sc bf16 (Cin,D), scale (1,D), bias (1,D)).
    """
    N, Hp, Wp, D = rpad.shape
    H, W = Hp - 2, Wp - 2
    Ho = (H - 1) // stride + 1
    Wo = (W - 1) // stride + 1
    ss = stride * stride
    phases, Hpp, Wpp = _s2d_padded(rpad, stride)
    s2, b2 = _fold_bn(bn2)
    w2s = jnp.asarray(w2).reshape(3, 3 * D, D).astype(MXU_DT)

    common_specs = [
        pl.BlockSpec((ss, Hpp, Wpp, D), lambda n: (n, 0, 0, 0)),
        pl.BlockSpec((3, 3 * D, D), lambda n: (0, 0, 0)),         # weights stay resident
        pl.BlockSpec((1, D), lambda n: (0, 0)),
        pl.BlockSpec((1, D), lambda n: (0, 0)),
    ]
    common_args = [phases, w2s,
                   s2.reshape(1, D).astype(jnp.float32),
                   b2.reshape(1, D).astype(jnp.float32)]

    if conv_sc is None:
        kern = functools.partial(_conv2_bn_add_kernel,
                                 stride=stride, Ho=Ho, Wo=Wo, D=D)
        extra_specs = [pl.BlockSpec((1, Ho * Wo, D), lambda n: (n, 0, 0))]
        extra_args = [add]
    else:
        xs, wsc, ssc, bsc = conv_sc
        Cin = xs.shape[-1]
        kern = functools.partial(_conv2_bn_convsc_kernel,
                                 stride=stride, Ho=Ho, Wo=Wo, D=D)
        extra_specs = [pl.BlockSpec((1, Ho * Wo, Cin), lambda n: (n, 0, 0)),
                       pl.BlockSpec((Cin, D), lambda n: (0, 0)),
                       pl.BlockSpec((1, D), lambda n: (0, 0)),
                       pl.BlockSpec((1, D), lambda n: (0, 0))]
        extra_args = [xs, wsc, ssc, bsc]

    out = pl.pallas_call(
        kern,
        out_shape=jax.ShapeDtypeStruct((N, Ho * Wo, D), jnp.float32),
        grid=(N,),
        in_specs=common_specs + extra_specs,
        out_specs=pl.BlockSpec((1, Ho * Wo, D), lambda n: (n, 0, 0)),
        compiler_params=_cparams(),
    )(*common_args, *extra_args)
    return out.reshape(N, Ho, Wo, D)


# ---------------------------------------------------------------------------
# bottleneck_IR forward
# ---------------------------------------------------------------------------
def bottleneck_ir_nhwc(x, p, in_channel, depth, stride):
    """bottleneck_IR forward, NHWC activations, eval-mode (running stats) BatchNorm."""
    N, H, W, C = x.shape
    assert C == in_channel
    if stride == 2:
        assert H % 2 == 0 and W % 2 == 0, "stride-2 path assumes even spatial dims"

    # res branch: BN1 + conv1 + PReLU fused, output kept padded in bf16 for conv2.
    rpad = conv1_bn_prelu(x, p["bn1"], p["w1"], p["alpha"])

    Ho = (H - 1) // stride + 1
    Wo = (W - 1) // stride + 1
    # TODO(synk): move this subsampling into the conv2 kernel via strided ref reads.
    xs = x if stride == 1 else x[:, ::stride, ::stride, :]

    if in_channel == depth:
        sc = xs.reshape(N, Ho * Wo, depth).astype(jnp.float32)     # MaxPool2d(1, stride)
        return conv2_bn_shortcut(rpad, p["w2"], p["bn2"], stride, add=sc)

    ssc, bsc = _fold_bn(p["bn_sc"])
    conv_sc = (xs.reshape(N, Ho * Wo, in_channel).astype(MXU_DT),
               jnp.asarray(p["w_sc"]).astype(MXU_DT),
               ssc.reshape(1, depth).astype(jnp.float32),
               bsc.reshape(1, depth).astype(jnp.float32))
    return conv2_bn_shortcut(rpad, p["w2"], p["bn2"], stride, conv_sc=conv_sc)


def bottleneck_ir(x_nchw, p, in_channel, depth, stride):
    """PyTorch-interface wrapper: NCHW in / NCHW out."""
    y = bottleneck_ir_nhwc(jnp.transpose(x_nchw, (0, 2, 3, 1)).astype(jnp.float32),
                           p, in_channel, depth, stride)
    return jnp.transpose(y, (0, 3, 1, 2))


# ---------------------------------------------------------------------------
# Pure-XLA reference (same bf16-MXU / f32-accumulate precision choices)
# ---------------------------------------------------------------------------
def bottleneck_ir_reference(x_nchw, p, in_channel, depth, stride):
    x = jnp.transpose(x_nchw, (0, 2, 3, 1)).astype(jnp.float32)
    s1, b1 = _fold_bn(p["bn1"])
    t = (x * s1 + b1).astype(MXU_DT)
    r = lax.conv_general_dilated(
        t, p["w1"].astype(MXU_DT), (1, 1), ((1, 1), (1, 1)),
        dimension_numbers=("NHWC", "HWIO", "NHWC"),
        preferred_element_type=jnp.float32)
    r = jnp.where(r >= 0, r, r * p["alpha"])
    r = r.astype(MXU_DT)
    r = lax.conv_general_dilated(
        r, p["w2"].astype(MXU_DT), (stride, stride), ((1, 1), (1, 1)),
        dimension_numbers=("NHWC", "HWIO", "NHWC"),
        preferred_element_type=jnp.float32)
    s2, b2 = _fold_bn(p["bn2"])
    r = r * s2 + b2
    if in_channel == depth:
        sc = x if stride == 1 else x[:, ::stride, ::stride, :]
    else:
        xs = x[:, ::stride, ::stride, :].astype(MXU_DT)
        sc = lax.dot_general(xs, p["w_sc"].astype(MXU_DT),
                             (((3,), (0,)), ((), ())),
                             preferred_element_type=jnp.float32)
        ssc, bsc = _fold_bn(p["bn_sc"])
        sc = sc * ssc + bsc
    return jnp.transpose(r + sc, (0, 3, 1, 2))


# ---------------------------------------------------------------------------
# Deterministic parameter init
# ---------------------------------------------------------------------------
def init_params(key, in_channel, depth):
    def bn(k, c):
        k1, k2, k3, k4 = jax.random.split(k, 4)
        gamma = 1.0 + 0.1 * jax.random.normal(k1, (c,), jnp.float32)
        beta = 0.1 * jax.random.normal(k2, (c,), jnp.float32)
        mean = 0.1 * jax.random.normal(k3, (c,), jnp.float32)
        var = 0.5 + jax.random.uniform(k4, (c,), jnp.float32)
        return (gamma, beta, mean, var)

    ks = jax.random.split(key, 8)
    # Conv weights are stored HWIO (kh, kw, Cin, Cout); a PyTorch (Cout, Cin, kh, kw)
    # checkpoint maps via w.transpose(2, 3, 1, 0).  1x1 weight is (Cin, Cout).
    p = {
        "bn1": bn(ks[0], in_channel),
        "w1": jax.random.normal(ks[1], (3, 3, in_channel, depth), jnp.float32)
              * jnp.sqrt(2.0 / (9 * depth)),
        "alpha": jnp.full((depth,), 0.25, jnp.float32)
                 + 0.05 * jax.random.normal(ks[2], (depth,), jnp.float32),
        "w2": jax.random.normal(ks[3], (3, 3, depth, depth), jnp.float32)
              * jnp.sqrt(2.0 / (9 * depth)),
        "bn2": bn(ks[4], depth),
    }
    if in_channel != depth:
        p["w_sc"] = (jax.random.normal(ks[5], (in_channel, depth), jnp.float32)
                     * jnp.sqrt(2.0 / depth))
        p["bn_sc"] = bn(ks[6], depth)
    return p


# ---------------------------------------------------------------------------
if __name__ == "__main__":
    key = jax.random.PRNGKey(0)
    N, C_IN, H, W = 2, 64, 16, 16
    x = jax.random.normal(jax.random.fold_in(key, 1), (N, C_IN, H, W), jnp.float32)

    # Exercise all bottleneck_IR variants: identity shortcut, strided MaxPool(1, s)
    # shortcut, and 1x1-conv + BN shortcut (the last also exercises the deep-K path).
    configs = [(64, 64, 1), (64, 64, 2), (64, 128, 2)]
    for idx, (in_c, depth, stride) in enumerate(configs):
        p = init_params(jax.random.fold_in(key, 100 + idx), in_c, depth)
        fwd = jax.jit(functools.partial(bottleneck_ir, in_channel=in_c,
                                        depth=depth, stride=stride))
        y = jax.block_until_ready(fwd(x, p))
        Ho = (H - 1) // stride + 1
        assert y.shape == (N, depth, Ho, Ho), y.shape
        assert bool(jnp.all(jnp.isfinite(y)))
        ref_fn = jax.jit(functools.partial(bottleneck_ir_reference,
                                           in_channel=in_c, depth=depth,
                                           stride=stride))
        y_ref = jax.block_until_ready(ref_fn(x, p))
        err = float(jnp.max(jnp.abs(y - y_ref)))
        assert err < 3e-2, err

    print("KERNEL_OK")
</pallas_src>

<mosaic_0001>
module attributes {stable_mosaic.version = 11 : i64} {
  func.func @_conv1_bn_prelu_kernel(%arg0: i32, %arg1: memref<1x16x16x64xf32, #tpu.memory_space<vmem>>, %arg2: memref<1x1x64xf32, #tpu.memory_space<vmem>>, %arg3: memref<1x1x64xf32, #tpu.memory_space<vmem>>, %arg4: memref<3x192x64xbf16, #tpu.memory_space<vmem>>, %arg5: memref<1x64xf32, #tpu.memory_space<vmem>>, %arg6: memref<1x18x18x64xbf16, #tpu.memory_space<vmem>>, %arg7: memref<1x18x18x64xbf16, #tpu.memory_space<vmem>>) attributes {dimension_semantics = [#tpu.dimension_semantics<parallel>], iteration_bounds = array<i64: 2>, scalar_prefetch = 0 : i64, scratch_operands = 1 : i64, tpu.core_type = #tpu.core_type<tc>, window_params = [{transform_indices = @transform_0, window_bounds = array<i64: 1, 16, 16, 64>}, {pipeline_mode = #tpu.pipeline_mode<synchronous>, transform_indices = @transform_1, window_bounds = array<i64: 1, 1, 64>}, {pipeline_mode = #tpu.pipeline_mode<synchronous>, transform_indices = @transform_2, window_bounds = array<i64: 1, 1, 64>}, {pipeline_mode = #tpu.pipeline_mode<synchronous>, transform_indices = @transform_3, window_bounds = array<i64: 3, 192, 64>}, {pipeline_mode = #tpu.pipeline_mode<synchronous>, transform_indices = @transform_4, window_bounds = array<i64: 1, 64>}, {transform_indices = @transform_5, window_bounds = array<i64: 1, 18, 18, 64>}]} {
    %cst = arith.constant 0.000000e+00 : bf16
    %0 = vector.broadcast %cst : bf16 to vector<1x18x18x64xbf16>
    %c0 = arith.constant 0 : index
    %c0_0 = arith.constant 0 : index
    %c0_1 = arith.constant 0 : index
    %c0_2 = arith.constant 0 : index
    %1 = vector.load %arg7[%c0, %c0_0, %c0_1, %c0_2] : memref<1x18x18x64xbf16, #tpu.memory_space<vmem>>, vector<1x18x18x64xbf16>
    tpu.vector_store %arg7[%c0, %c0_0, %c0_1, %c0_2], %0 {strides = array<i32>} : memref<1x18x18x64xbf16, #tpu.memory_space<vmem>>, vector<1x18x18x64xbf16>,
    %c0_3 = arith.constant 0 : index
    %c0_4 = arith.constant 0 : index
    %c0_5 = arith.constant 0 : index
    %c0_6 = arith.constant 0 : index
    %2 = vector.load %arg1[%c0_3, %c0_4, %c0_5, %c0_6] : memref<1x16x16x64xf32, #tpu.memory_space<vmem>>, vector<1x16x16x64xf32>
    %3 = vector.shape_cast %2 : vector<1x16x16x64xf32> to vector<16x16x64xf32>
    %c0_7 = arith.constant 0 : index
    %c0_8 = arith.constant 0 : index
    %c0_9 = arith.constant 0 : index
    %4 = vector.load %arg2[%c0_7, %c0_8, %c0_9] : memref<1x1x64xf32, #tpu.memory_space<vmem>>, vector<1x1x64xf32>
    %5 = vector.broadcast %4 : vector<1x1x64xf32> to vector<16x16x64xf32>
    %6 = arith.mulf %3, %5 : vector<16x16x64xf32>
    %c0_10 = arith.constant 0 : index
    %c0_11 = arith.constant 0 : index
    %c0_12 = arith.constant 0 : index
    %7 = vector.load %arg3[%c0_10, %c0_11, %c0_12] : memref<1x1x64xf32, #tpu.memory_space<vmem>>, vector<1x1x64xf32>
    %8 = vector.broadcast %7 : vector<1x1x64xf32> to vector<16x16x64xf32>
    %9 = arith.addf %6, %8 : vector<16x16x64xf32>
    %10 = arith.truncf %9 : vector<16x16x64xf32> to vector<16x16x64xbf16>
    %c0_13 = arith.constant 0 : index
    %c1 = arith.constant 1 : index
    %c1_14 = arith.constant 1 : index
    %c0_15 = arith.constant 0 : index
    %11 = vector.load %arg7[%c0_13, %c1, %c1_14, %c0_15] : memref<1x18x18x64xbf16, #tpu.memory_space<vmem>>, vector<1x16x16x64xbf16>
    %12 = vector.shape_cast %11 : vector<1x16x16x64xbf16> to vector<16x16x64xbf16>
    %13 = vector.shape_cast %10 : vector<16x16x64xbf16> to vector<1x16x16x64xbf16>
    tpu.vector_store %arg7[%c0_13, %c1, %c1_14, %c0_15], %13 {strides = array<i32>} : memref<1x18x18x64xbf16, #tpu.memory_space<vmem>>, vector<1x16x16x64xbf16>,
    %c0_16 = arith.constant 0 : index
    %c0_17 = arith.constant 0 : index
    %c0_18 = arith.constant 0 : index
    %c0_19 = arith.constant 0 : index
    %14 = vector.load %arg7[%c0_16, %c0_17, %c0_18, %c0_19] : memref<1x18x18x64xbf16, #tpu.memory_space<vmem>>, vector<1x16x16x64xbf16>
    %15 = vector.shape_cast %14 : vector<1x16x16x64xbf16> to vector<16x16x64xbf16>
    %16 = vector.shape_cast %15 : vector<16x16x64xbf16> to vector<256x64xbf16>
    %c0_20 = arith.constant 0 : index
    %c0_21 = arith.constant 0 : index
    %c1_22 = arith.constant 1 : index
    %c0_23 = arith.constant 0 : index
    %17 = vector.load %arg7[%c0_20, %c0_21, %c1_22, %c0_23] : memref<1x18x18x64xbf16, #tpu.memory_space<vmem>>, vector<1x16x16x64xbf16>
    %18 = vector.shape_cast %17 : vector<1x16x16x64xbf16> to vector<16x16x64xbf16>
    %19 = vector.shape_cast %18 : vector<16x16x64xbf16> to vector<256x64xbf16>
    %c0_24 = arith.constant 0 : index
    %c0_25 = arith.constant 0 : index
    %c2 = arith.constant 2 : index
    %c0_26 = arith.constant 0 : index
    %20 = vector.load %arg7[%c0_24, %c0_25, %c2, %c0_26] : memref<1x18x18x64xbf16, #tpu.memory_space<vmem>>, vector<1x16x16x64xbf16>
    %21 = vector.shape_cast %20 : vector<1x16x16x64xbf16> to vector<16x16x64xbf16>
    %22 = vector.shape_cast %21 : vector<16x16x64xbf16> to vector<256x64xbf16>
    %c0_27 = arith.constant 0 : index
    %c0_28 = arith.constant 0 : index
    %c0_29 = arith.constant 0 : index
    %23 = vector.load %arg4[%c0_27, %c0_28, %c0_29] : memref<3x192x64xbf16, #tpu.memory_space<vmem>>, vector<1x64x64xbf16>
    %24 = vector.shape_cast %23 : vector<1x64x64xbf16> to vector<64x64xbf16>
    %cst_30 = arith.constant dense<0.000000e+00> : vector<256x64xf32>
    %25 = tpu.matmul %16, %24, %cst_30 {dimension_numbers = #tpu.dot_dimension_numbers<[1], [0], [0], [1], [0, 0, 1, 1], [], []>} : vector<256x64xbf16>, vector<64x64xbf16>, vector<256x64xf32> -> vector<256x64xf32>
    %c0_31 = arith.constant 0 : index
    %c64 = arith.constant 64 : index
    %c0_32 = arith.constant 0 : index
    %26 = vector.load %arg4[%c0_31, %c64, %c0_32] : memref<3x192x64xbf16, #tpu.memory_space<vmem>>, vector<1x64x64xbf16>
    %27 = vector.shape_cast %26 : vector<1x64x64xbf16> to vector<64x64xbf16>
    %cst_33 = arith.constant dense<0.000000e+00> : vector<256x64xf32>
    %28 = tpu.matmul %19, %27, %cst_33 {dimension_numbers = #tpu.dot_dimension_numbers<[1], [0], [0], [1], [0, 0, 1, 1], [], []>} : vector<256x64xbf16>, vector<64x64xbf16>, vector<256x64xf32> -> vector<256x64xf32>
    %29 = arith.addf %25, %28 : vector<256x64xf32>
    %c0_34 = arith.constant 0 : index
    %c128 = arith.constant 128 : index
    %c0_35 = arith.constant 0 : index
    %30 = vector.load %arg4[%c0_34, %c128, %c0_35] : memref<3x192x64xbf16, #tpu.memory_space<vmem>>, vector<1x64x64xbf16>
    %31 = vector.shape_cast %30 : vector<1x64x64xbf16> to vector<64x64xbf16>
    %cst_36 = arith.constant dense<0.000000e+00> : vector<256x64xf32>
    %32 = tpu.matmul %22, %31, %cst_36 {dimension_numbers = #tpu.dot_dimension_numbers<[1], [0], [0], [1], [0, 0, 1, 1], [], []>} : vector<256x64xbf16>, vector<64x64xbf16>, vector<256x64xf32> -> vector<256x64xf32>
    %33 = arith.addf %29, %32 : vector<256x64xf32>
    %c0_37 = arith.constant 0 : index
    %c1_38 = arith.constant 1 : index
    %c0_39 = arith.constant 0 : index
    %c0_40 = arith.constant 0 : index
    %34 = vector.load %arg7[%c0_37, %c1_38, %c0_39, %c0_40] : memref<1x18x18x64xbf16, #tpu.memory_space<vmem>>, vector<1x16x16x64xbf16>
    %35 = vector.shape_cast %34 : vector<1x16x16x64xbf16> to vector<16x16x64xbf16>
    %36 = vector.shape_cast %35 : vector<16x16x64xbf16> to vector<256x64xbf16>
    %c0_41 = arith.constant 0 : index
    %c1_42 = arith.constant 1 : index
    %c1_43 = arith.constant 1 : index
    %c0_44 = arith.constant 0 : index
    %37 = vector.load %arg7[%c0_41, %c1_42, %c1_43, %c0_44] : memref<1x18x18x64xbf16, #tpu.memory_space<vmem>>, vector<1x16x16x64xbf16>
    %38 = vector.shape_cast %37 : vector<1x16x16x64xbf16> to vector<16x16x64xbf16>
    %39 = vector.shape_cast %38 : vector<16x16x64xbf16> to vector<256x64xbf16>
    %c0_45 = arith.constant 0 : index
    %c1_46 = arith.constant 1 : index
    %c2_47 = arith.constant 2 : index
    %c0_48 = arith.constant 0 : index
    %40 = vector.load %arg7[%c0_45, %c1_46, %c2_47, %c0_48] : memref<1x18x18x64xbf16, #tpu.memory_space<vmem>>, vector<1x16x16x64xbf16>
    %41 = vector.shape_cast %40 : vector<1x16x16x64xbf16> to vector<16x16x64xbf16>
    %42 = vector.shape_cast %41 : vector<16x16x64xbf16> to vector<256x64xbf16>
    %c1_49 = arith.constant 1 : index
    %c0_50 = arith.constant 0 : index
    %c0_51 = arith.constant 0 : index
    %43 = vector.load %arg4[%c1_49, %c0_50, %c0_51] : memref<3x192x64xbf16, #tpu.memory_space<vmem>>, vector<1x64x64xbf16>
    %44 = vector.shape_cast %43 : vector<1x64x64xbf16> to vector<64x64xbf16>
    %cst_52 = arith.constant dense<0.000000e+00> : vector<256x64xf32>
    %45 = tpu.matmul %36, %44, %cst_52 {dimension_numbers = #tpu.dot_dimension_numbers<[1], [0], [0], [1], [0, 0, 1, 1], [], []>} : vector<256x64xbf16>, vector<64x64xbf16>, vector<256x64xf32> -> vector<256x64xf32>
    %46 = arith.addf %33, %45 : vector<256x64xf32>
    %c1_53 = arith.constant 1 : index
    %c64_54 = arith.constant 64 : index
    %c0_55 = arith.constant 0 : index
    %47 = vector.load %arg4[%c1_53, %c64_54, %c0_55] : memref<3x192x64xbf16, #tpu.memory_space<vmem>>, vector<1x64x64xbf16>
    %48 = vector.shape_cast %47 : vector<1x64x64xbf16> to vector<64x64xbf16>
    %cst_56 = arith.constant dense<0.000000e+00> : vector<256x64xf32>
    %49 = tpu.matmul %39, %48, %cst_56 {dimension_numbers = #tpu.dot_dimension_numbers<[1], [0], [0], [1], [0, 0, 1, 1], [], []>} : vector<256x64xbf16>, vector<64x64xbf16>, vector<256x64xf32> -> vector<256x64xf32>
    %50 = arith.addf %46, %49 : vector<256x64xf32>
    %c1_57 = arith.constant 1 : index
    %c128_58 = arith.constant 128 : index
    %c0_59 = arith.constant 0 : index
    %51 = vector.load %arg4[%c1_57, %c128_58, %c0_59] : memref<3x192x64xbf16, #tpu.memory_space<vmem>>, vector<1x64x64xbf16>
    %52 = vector.shape_cast %51 : vector<1x64x64xbf16> to vector<64x64xbf16>
    %cst_60 = arith.constant dense<0.000000e+00> : vector<256x64xf32>
    %53 = tpu.matmul %42, %52, %cst_60 {dimension_numbers = #tpu.dot_dimension_numbers<[1], [0], [0], [1], [0, 0, 1, 1], [], []>} : vector<256x64xbf16>, vector<64x64xbf16>, vector<256x64xf32> -> vector<256x64xf32>
    %54 = arith.addf %50, %53 : vector<256x64xf32>
    %c0_61 = arith.constant 0 : index
    %c2_62 = arith.constant 2 : index
    %c0_63 = arith.constant 0 : index
    %c0_64 = arith.constant 0 : index
    %55 = vector.load %arg7[%c0_61, %c2_62, %c0_63, %c0_64] : memref<1x18x18x64xbf16, #tpu.memory_space<vmem>>, vector<1x16x16x64xbf16>
    %56 = vector.shape_cast %55 : vector<1x16x16x64xbf16> to vector<16x16x64xbf16>
    %57 = vector.shape_cast %56 : vector<16x16x64xbf16> to vector<256x64xbf16>
    %c0_65 = arith.constant 0 : index
    %c2_66 = arith.constant 2 : index
    %c1_67 = arith.constant 1 : index
    %c0_68 = arith.constant 0 : index
    %58 = vector.load %arg7[%c0_65, %c2_66, %c1_67, %c0_68] : memref<1x18x18x64xbf16, #tpu.memory_space<vmem>>, vector<1x16x16x64xbf16>
    %59 = vector.shape_cast %58 : vector<1x16x16x64xbf16> to vector<16x16x64xbf16>
    %60 = vector.shape_cast %59 : vector<16x16x64xbf16> to vector<256x64xbf16>
    %c0_69 = arith.constant 0 : index
    %c2_70 = arith.constant 2 : index
    %c2_71 = arith.constant 2 : index
    %c0_72 = arith.constant 0 : index
    %61 = vector.load %arg7[%c0_69, %c2_70, %c2_71, %c0_72] : memref<1x18x18x64xbf16, #tpu.memory_space<vmem>>, vector<1x16x16x64xbf16>
    %62 = vector.shape_cast %61 : vector<1x16x16x64xbf16> to vector<16x16x64xbf16>
    %63 = vector.shape_cast %62 : vector<16x16x64xbf16> to vector<256x64xbf16>
    %c2_73 = arith.constant 2 : index
    %c0_74 = arith.constant 0 : index
    %c0_75 = arith.constant 0 : index
    %64 = vector.load %arg4[%c2_73, %c0_74, %c0_75] : memref<3x192x64xbf16, #tpu.memory_space<vmem>>, vector<1x64x64xbf16>
    %65 = vector.shape_cast %64 : vector<1x64x64xbf16> to vector<64x64xbf16>
    %cst_76 = arith.constant dense<0.000000e+00> : vector<256x64xf32>
    %66 = tpu.matmul %57, %65, %cst_76 {dimension_numbers = #tpu.dot_dimension_numbers<[1], [0], [0], [1], [0, 0, 1, 1], [], []>} : vector<256x64xbf16>, vector<64x64xbf16>, vector<256x64xf32> -> vector<256x64xf32>
    %67 = arith.addf %54, %66 : vector<256x64xf32>
    %c2_77 = arith.constant 2 : index
    %c64_78 = arith.constant 64 : index
    %c0_79 = arith.constant 0 : index
    %68 = vector.load %arg4[%c2_77, %c64_78, %c0_79] : memref<3x192x64xbf16, #tpu.memory_space<vmem>>, vector<1x64x64xbf16>
    %69 = vector.shape_cast %68 : vector<1x64x64xbf16> to vector<64x64xbf16>
    %cst_80 = arith.constant dense<0.000000e+00> : vector<256x64xf32>
    %70 = tpu.matmul %60, %69, %cst_80 {dimension_numbers = #tpu.dot_dimension_numbers<[1], [0], [0], [1], [0, 0, 1, 1], [], []>} : vector<256x64xbf16>, vector<64x64xbf16>, vector<256x64xf32> -> vector<256x64xf32>
    %71 = arith.addf %67, %70 : vector<256x64xf32>
    %c2_81 = arith.constant 2 : index
    %c128_82 = arith.constant 128 : index
    %c0_83 = arith.constant 0 : index
    %72 = vector.load %arg4[%c2_81, %c128_82, %c0_83] : memref<3x192x64xbf16, #tpu.memory_space<vmem>>, vector<1x64x64xbf16>
    %73 = vector.shape_cast %72 : vector<1x64x64xbf16> to vector<64x64xbf16>
    %cst_84 = arith.constant dense<0.000000e+00> : vector<256x64xf32>
    %74 = tpu.matmul %63, %73, %cst_84 {dimension_numbers = #tpu.dot_dimension_numbers<[1], [0], [0], [1], [0, 0, 1, 1], [], []>} : vector<256x64xbf16>, vector<64x64xbf16>, vector<256x64xf32> -> vector<256x64xf32>
    %75 = arith.addf %71, %74 : vector<256x64xf32>
    %cst_85 = arith.constant 0.000000e+00 : f32
    %76 = vector.broadcast %cst_85 : f32 to vector<256x64xf32>
    %77 = arith.cmpf oge, %75, %76 : vector<256x64xf32>
    %c0_86 = arith.constant 0 : index
    %c0_87 = arith.constant 0 : index
    %78 = vector.load %arg5[%c0_86, %c0_87] : memref<1x64xf32, #tpu.memory_space<vmem>>, vector<1x64xf32>
    %79 = vector.broadcast %78 : vector<1x64xf32> to vector<256x64xf32>
    %80 = arith.mulf %75, %79 : vector<256x64xf32>
    %81 = arith.select %77, %75, %80 : vector<256x64xi1>, vector<256x64xf32>
    %cst_88 = arith.constant 0.000000e+00 : bf16
    %82 = vector.broadcast %cst_88 : bf16 to vector<1x18x18x64xbf16>
    %c0_89 = arith.constant 0 : index
    %c0_90 = arith.constant 0 : index
    %c0_91 = arith.constant 0 : index
    %c0_92 = arith.constant 0 : index
    %83 = vector.load %arg6[%c0_89, %c0_90, %c0_91, %c0_92] : memref<1x18x18x64xbf16, #tpu.memory_space<vmem>>, vector<1x18x18x64xbf16>
    tpu.vector_store %arg6[%c0_89, %c0_90, %c0_91, %c0_92], %82 {strides = array<i32>} : memref<1x18x18x64xbf16, #tpu.memory_space<vmem>>, vector<1x18x18x64xbf16>,
    %84 = arith.truncf %81 : vector<256x64xf32> to vector<256x64xbf16>
    %85 = vector.shape_cast %84 : vector<256x64xbf16> to vector<16x16x64xbf16>
    %c0_93 = arith.constant 0 : index
    %c1_94 = arith.constant 1 : index
    %c1_95 = arith.constant 1 : index
    %c0_96 = arith.constant 0 : index
    %86 = vector.load %arg6[%c0_93, %c1_94, %c1_95, %c0_96] : memref<1x18x18x64xbf16, #tpu.memory_space<vmem>>, vector<1x16x16x64xbf16>
    %87 = vector.shape_cast %86 : vector<1x16x16x64xbf16> to vector<16x16x64xbf16>
    %88 = vector.shape_cast %85 : vector<16x16x64xbf16> to vector<1x16x16x64xbf16>
    tpu.vector_store %arg6[%c0_93, %c1_94, %c1_95, %c0_96], %88 {strides = array<i32>} : memref<1x18x18x64xbf16, #tpu.memory_space<vmem>>, vector<1x16x16x64xbf16>,
    return
  }
  func.func @transform_0(%arg0: i32) -> (i32, i32, i32, i32) {
    %c0_i32 = arith.constant 0 : i32
    %c0_i32_0 = arith.constant 0 : i32
    %c0_i32_1 = arith.constant 0 : i32
    %c0_i32_2 = arith.constant 0 : i32
    return %arg0, %c0_i32, %c0_i32_0, %c0_i32_1 : i32, i32, i32, i32
  }
  func.func @transform_1(%arg0: i32) -> (i32, i32, i32) {
    %c0_i32 = arith.constant 0 : i32
    %c0_i32_0 = arith.constant 0 : i32
    %c0_i32_1 = arith.constant 0 : i32
    %c0_i32_2 = arith.constant 0 : i32
    return %c0_i32, %c0_i32_0, %c0_i32_1 : i32, i32, i32
  }
  func.func @transform_2(%arg0: i32) -> (i32, i32, i32) {
    %c0_i32 = arith.constant 0 : i32
    %c0_i32_0 = arith.constant 0 : i32
    %c0_i32_1 = arith.constant 0 : i32
    %c0_i32_2 = arith.constant 0 : i32
    return %c0_i32, %c0_i32_0, %c0_i32_1 : i32, i32, i32
  }
  func.func @transform_3(%arg0: i32) -> (i32, i32, i32) {
    %c0_i32 = arith.constant 0 : i32
    %c0_i32_0 = arith.constant 0 : i32
    %c0_i32_1 = arith.constant 0 : i32
    %c0_i32_2 = arith.constant 0 : i32
    return %c0_i32, %c0_i32_0, %c0_i32_1 : i32, i32, i32
  }
  func.func @transform_4(%arg0: i32) -> (i32, i32) {
    %c0_i32 = arith.constant 0 : i32
    %c0_i32_0 = arith.constant 0 : i32
    %c0_i32_1 = arith.constant 0 : i32
    return %c0_i32, %c0_i32_0 : i32, i32
  }
  func.func @transform_5(%arg0: i32) -> (i32, i32, i32, i32) {
    %c0_i32 = arith.constant 0 : i32
    %c0_i32_0 = arith.constant 0 : i32
    %c0_i32_1 = arith.constant 0 : i32
    %c0_i32_2 = arith.constant 0 : i32
    return %arg0, %c0_i32, %c0_i32_0, %c0_i32_1 : i32, i32, i32, i32
  }
}

module attributes {stable_mosaic.version = 11 : i64} {
  func.func @_conv2_bn_add_kernel(%arg0: i32, %arg1: memref<1x18x18x64xbf16, #tpu.memory_space<vmem>>, %arg2: memref<3x192x64xbf16, #tpu.memory_space<vmem>>, %arg3: memref<1x64xf32, #tpu.memory_space<vmem>>, %arg4: memref<1x64xf32, #tpu.memory_space<vmem>>, %arg5: memref<1x256x64xf32, #tpu.memory_space<vmem>>, %arg6: memref<1x256x64xf32, #tpu.memory_space<vmem>>) attributes {dimension_semantics = [#tpu.dimension_semantics<parallel>], iteration_bounds = array<i64: 2>, scalar_prefetch = 0 : i64, scratch_operands = 0 : i64, tpu.core_type = #tpu.core_type<tc>, window_params = [{transform_indices = @transform_0, window_bounds = array<i64: 1, 18, 18, 64>}, {pipeline_mode = #tpu.pipeline_mode<synchronous>, transform_indices = @transform_1, window_bounds = array<i64: 3, 192, 64>}, {pipeline_mode = #tpu.pipeline_mode<synchronous>, transform_indices = @transform_2, window_bounds = array<i64: 1, 64>}, {pipeline_mode = #tpu.pipeline_mode<synchronous>, transform_indices = @transform_3, window_bounds = array<i64: 1, 64>}, {transform_indices = @transform_4, window_bounds = array<i64: 1, 256, 64>}, {transform_indices = @transform_5, window_bounds = array<i64: 1, 256, 64>}]} {
    %c0 = arith.constant 0 : index
    %c0_0 = arith.constant 0 : index
    %c0_1 = arith.constant 0 : index
    %c0_2 = arith.constant 0 : index
    %0 = vector.load %arg1[%c0, %c0_0, %c0_1, %c0_2] : memref<1x18x18x64xbf16, #tpu.memory_space<vmem>>, vector<1x16x16x64xbf16>
    %1 = vector.shape_cast %0 : vector<1x16x16x64xbf16> to vector<16x16x64xbf16>
    %2 = vector.shape_cast %1 : vector<16x16x64xbf16> to vector<256x64xbf16>
    %c0_3 = arith.constant 0 : index
    %c0_4 = arith.constant 0 : index
    %c1 = arith.constant 1 : index
    %c0_5 = arith.constant 0 : index
    %3 = vector.load %arg1[%c0_3, %c0_4, %c1, %c0_5] : memref<1x18x18x64xbf16, #tpu.memory_space<vmem>>, vector<1x16x16x64xbf16>
    %4 = vector.shape_cast %3 : vector<1x16x16x64xbf16> to vector<16x16x64xbf16>
    %5 = vector.shape_cast %4 : vector<16x16x64xbf16> to vector<256x64xbf16>
    %c0_6 = arith.constant 0 : index
    %c0_7 = arith.constant 0 : index
    %c2 = arith.constant 2 : index
    %c0_8 = arith.constant 0 : index
    %6 = vector.load %arg1[%c0_6, %c0_7, %c2, %c0_8] : memref<1x18x18x64xbf16, #tpu.memory_space<vmem>>, vector<1x16x16x64xbf16>
    %7 = vector.shape_cast %6 : vector<1x16x16x64xbf16> to vector<16x16x64xbf16>
    %8 = vector.shape_cast %7 : vector<16x16x64xbf16> to vector<256x64xbf16>
    %c0_9 = arith.constant 0 : index
    %c0_10 = arith.constant 0 : index
    %c0_11 = arith.constant 0 : index
    %9 = vector.load %arg2[%c0_9, %c0_10, %c0_11] : memref<3x192x64xbf16, #tpu.memory_space<vmem>>, vector<1x64x64xbf16>
    %10 = vector.shape_cast %9 : vector<1x64x64xbf16> to vector<64x64xbf16>
    %cst = arith.constant dense<0.000000e+00> : vector<256x64xf32>
    %11 = tpu.matmul %2, %10, %cst {dimension_numbers = #tpu.dot_dimension_numbers<[1], [0], [0], [1], [0, 0, 1, 1], [], []>} : vector<256x64xbf16>, vector<64x64xbf16>, vector<256x64xf32> -> vector<256x64xf32>
    %c0_12 = arith.constant 0 : index
    %c64 = arith.constant 64 : index
    %c0_13 = arith.constant 0 : index
    %12 = vector.load %arg2[%c0_12, %c64, %c0_13] : memref<3x192x64xbf16, #tpu.memory_space<vmem>>, vector<1x64x64xbf16>
    %13 = vector.shape_cast %12 : vector<1x64x64xbf16> to vector<64x64xbf16>
    %cst_14 = arith.constant dense<0.000000e+00> : vector<256x64xf32>
    %14 = tpu.matmul %5, %13, %cst_14 {dimension_numbers = #tpu.dot_dimension_numbers<[1], [0], [0], [1], [0, 0, 1, 1], [], []>} : vector<256x64xbf16>, vector<64x64xbf16>, vector<256x64xf32> -> vector<256x64xf32>
    %15 = arith.addf %11, %14 : vector<256x64xf32>
    %c0_15 = arith.constant 0 : index
    %c128 = arith.constant 128 : index
    %c0_16 = arith.constant 0 : index
    %16 = vector.load %arg2[%c0_15, %c128, %c0_16] : memref<3x192x64xbf16, #tpu.memory_space<vmem>>, vector<1x64x64xbf16>
    %17 = vector.shape_cast %16 : vector<1x64x64xbf16> to vector<64x64xbf16>
    %cst_17 = arith.constant dense<0.000000e+00> : vector<256x64xf32>
    %18 = tpu.matmul %8, %17, %cst_17 {dimension_numbers = #tpu.dot_dimension_numbers<[1], [0], [0], [1], [0, 0, 1, 1], [], []>} : vector<256x64xbf16>, vector<64x64xbf16>, vector<256x64xf32> -> vector<256x64xf32>
    %19 = arith.addf %15, %18 : vector<256x64xf32>
    %c0_18 = arith.constant 0 : index
    %c1_19 = arith.constant 1 : index
    %c0_20 = arith.constant 0 : index
    %c0_21 = arith.constant 0 : index
    %20 = vector.load %arg1[%c0_18, %c1_19, %c0_20, %c0_21] : memref<1x18x18x64xbf16, #tpu.memory_space<vmem>>, vector<1x16x16x64xbf16>
    %21 = vector.shape_cast %20 : vector<1x16x16x64xbf16> to vector<16x16x64xbf16>
    %22 = vector.shape_cast %21 : vector<16x16x64xbf16> to vector<256x64xbf16>
    %c0_22 = arith.constant 0 : index
    %c1_23 = arith.constant 1 : index
    %c1_24 = arith.constant 1 : index
    %c0_25 = arith.constant 0 : index
    %23 = vector.load %arg1[%c0_22, %c1_23, %c1_24, %c0_25] : memref<1x18x18x64xbf16, #tpu.memory_space<vmem>>, vector<1x16x16x64xbf16>
    %24 = vector.shape_cast %23 : vector<1x16x16x64xbf16> to vector<16x16x64xbf16>
    %25 = vector.shape_cast %24 : vector<16x16x64xbf16> to vector<256x64xbf16>
    %c0_26 = arith.constant 0 : index
    %c1_27 = arith.constant 1 : index
    %c2_28 = arith.constant 2 : index
    %c0_29 = arith.constant 0 : index
    %26 = vector.load %arg1[%c0_26, %c1_27, %c2_28, %c0_29] : memref<1x18x18x64xbf16, #tpu.memory_space<vmem>>, vector<1x16x16x64xbf16>
    %27 = vector.shape_cast %26 : vector<1x16x16x64xbf16> to vector<16x16x64xbf16>
    %28 = vector.shape_cast %27 : vector<16x16x64xbf16> to vector<256x64xbf16>
    %c1_30 = arith.constant 1 : index
    %c0_31 = arith.constant 0 : index
    %c0_32 = arith.constant 0 : index
    %29 = vector.load %arg2[%c1_30, %c0_31, %c0_32] : memref<3x192x64xbf16, #tpu.memory_space<vmem>>, vector<1x64x64xbf16>
    %30 = vector.shape_cast %29 : vector<1x64x64xbf16> to vector<64x64xbf16>
    %cst_33 = arith.constant dense<0.000000e+00> : vector<256x64xf32>
    %31 = tpu.matmul %22, %30, %cst_33 {dimension_numbers = #tpu.dot_dimension_numbers<[1], [0], [0], [1], [0, 0, 1, 1], [], []>} : vector<256x64xbf16>, vector<64x64xbf16>, vector<256x64xf32> -> vector<256x64xf32>
    %32 = arith.addf %19, %31 : vector<256x64xf32>
    %c1_34 = arith.constant 1 : index
    %c64_35 = arith.constant 64 : index
    %c0_36 = arith.constant 0 : index
    %33 = vector.load %arg2[%c1_34, %c64_35, %c0_36] : memref<3x192x64xbf16, #tpu.memory_space<vmem>>, vector<1x64x64xbf16>
    %34 = vector.shape_cast %33 : vector<1x64x64xbf16> to vector<64x64xbf16>
    %cst_37 = arith.constant dense<0.000000e+00> : vector<256x64xf32>
    %35 = tpu.matmul %25, %34, %cst_37 {dimension_numbers = #tpu.dot_dimension_numbers<[1], [0], [0], [1], [0, 0, 1, 1], [], []>} : vector<256x64xbf16>, vector<64x64xbf16>, vector<256x64xf32> -> vector<256x64xf32>
    %36 = arith.addf %32, %35 : vector<256x64xf32>
    %c1_38 = arith.constant 1 : index
    %c128_39 = arith.constant 128 : index
    %c0_40 = arith.constant 0 : index
    %37 = vector.load %arg2[%c1_38, %c128_39, %c0_40] : memref<3x192x64xbf16, #tpu.memory_space<vmem>>, vector<1x64x64xbf16>
    %38 = vector.shape_cast %37 : vector<1x64x64xbf16> to vector<64x64xbf16>
    %cst_41 = arith.constant dense<0.000000e+00> : vector<256x64xf32>
    %39 = tpu.matmul %28, %38, %cst_41 {dimension_numbers = #tpu.dot_dimension_numbers<[1], [0], [0], [1], [0, 0, 1, 1], [], []>} : vector<256x64xbf16>, vector<64x64xbf16>, vector<256x64xf32> -> vector<256x64xf32>
    %40 = arith.addf %36, %39 : vector<256x64xf32>
    %c0_42 = arith.constant 0 : index
    %c2_43 = arith.constant 2 : index
    %c0_44 = arith.constant 0 : index
    %c0_45 = arith.constant 0 : index
    %41 = vector.load %arg1[%c0_42, %c2_43, %c0_44, %c0_45] : memref<1x18x18x64xbf16, #tpu.memory_space<vmem>>, vector<1x16x16x64xbf16>
    %42 = vector.shape_cast %41 : vector<1x16x16x64xbf16> to vector<16x16x64xbf16>
    %43 = vector.shape_cast %42 : vector<16x16x64xbf16> to vector<256x64xbf16>
    %c0_46 = arith.constant 0 : index
    %c2_47 = arith.constant 2 : index
    %c1_48 = arith.constant 1 : index
    %c0_49 = arith.constant 0 : index
    %44 = vector.load %arg1[%c0_46, %c2_47, %c1_48, %c0_49] : memref<1x18x18x64xbf16, #tpu.memory_space<vmem>>, vector<1x16x16x64xbf16>
    %45 = vector.shape_cast %44 : vector<1x16x16x64xbf16> to vector<16x16x64xbf16>
    %46 = vector.shape_cast %45 : vector<16x16x64xbf16> to vector<256x64xbf16>
    %c0_50 = arith.constant 0 : index
    %c2_51 = arith.constant 2 : index
    %c2_52 = arith.constant 2 : index
    %c0_53 = arith.constant 0 : index
    %47 = vector.load %arg1[%c0_50, %c2_51, %c2_52, %c0_53] : memref<1x18x18x64xbf16, #tpu.memory_space<vmem>>, vector<1x16x16x64xbf16>
    %48 = vector.shape_cast %47 : vector<1x16x16x64xbf16> to vector<16x16x64xbf16>
    %49 = vector.shape_cast %48 : vector<16x16x64xbf16> to vector<256x64xbf16>
    %c2_54 = arith.constant 2 : index
    %c0_55 = arith.constant 0 : index
    %c0_56 = arith.constant 0 : index
    %50 = vector.load %arg2[%c2_54, %c0_55, %c0_56] : memref<3x192x64xbf16, #tpu.memory_space<vmem>>, vector<1x64x64xbf16>
    %51 = vector.shape_cast %50 : vector<1x64x64xbf16> to vector<64x64xbf16>
    %cst_57 = arith.constant dense<0.000000e+00> : vector<256x64xf32>
    %52 = tpu.matmul %43, %51, %cst_57 {dimension_numbers = #tpu.dot_dimension_numbers<[1], [0], [0], [1], [0, 0, 1, 1], [], []>} : vector<256x64xbf16>, vector<64x64xbf16>, vector<256x64xf32> -> vector<256x64xf32>
    %53 = arith.addf %40, %52 : vector<256x64xf32>
    %c2_58 = arith.constant 2 : index
    %c64_59 = arith.constant 64 : index
    %c0_60 = arith.constant 0 : index
    %54 = vector.load %arg2[%c2_58, %c64_59, %c0_60] : memref<3x192x64xbf16, #tpu.memory_space<vmem>>, vector<1x64x64xbf16>
    %55 = vector.shape_cast %54 : vector<1x64x64xbf16> to vector<64x64xbf16>
    %cst_61 = arith.constant dense<0.000000e+00> : vector<256x64xf32>
    %56 = tpu.matmul %46, %55, %cst_61 {dimension_numbers = #tpu.dot_dimension_numbers<[1], [0], [0], [1], [0, 0, 1, 1], [], []>} : vector<256x64xbf16>, vector<64x64xbf16>, vector<256x64xf32> -> vector<256x64xf32>
    %57 = arith.addf %53, %56 : vector<256x64xf32>
    %c2_62 = arith.constant 2 : index
    %c128_63 = arith.constant 128 : index
    %c0_64 = arith.constant 0 : index
    %58 = vector.load %arg2[%c2_62, %c128_63, %c0_64] : memref<3x192x64xbf16, #tpu.memory_space<vmem>>, vector<1x64x64xbf16>
    %59 = vector.shape_cast %58 : vector<1x64x64xbf16> to vector<64x64xbf16>
    %cst_65 = arith.constant dense<0.000000e+00> : vector<256x64xf32>
    %60 = tpu.matmul %49, %59, %cst_65 {dimension_numbers = #tpu.dot_dimension_numbers<[1], [0], [0], [1], [0, 0, 1, 1], [], []>} : vector<256x64xbf16>, vector<64x64xbf16>, vector<256x64xf32> -> vector<256x64xf32>
    %61 = arith.addf %57, %60 : vector<256x64xf32>
    %c0_66 = arith.constant 0 : index
    %c0_67 = arith.constant 0 : index
    %62 = vector.load %arg3[%c0_66, %c0_67] : memref<1x64xf32, #tpu.memory_space<vmem>>, vector<1x64xf32>
    %63 = vector.broadcast %62 : vector<1x64xf32> to vector<256x64xf32>
    %64 = arith.mulf %61, %63 : vector<256x64xf32>
    %c0_68 = arith.constant 0 : index
    %c0_69 = arith.constant 0 : index
    %65 = vector.load %arg4[%c0_68, %c0_69] : memref<1x64xf32, #tpu.memory_space<vmem>>, vector<1x64xf32>
    %66 = vector.broadcast %65 : vector<1x64xf32> to vector<256x64xf32>
    %67 = arith.addf %64, %66 : vector<256x64xf32>
    %c0_70 = arith.constant 0 : index
    %c0_71 = arith.constant 0 : index
    %c0_72 = arith.constant 0 : index
    %68 = vector.load %arg5[%c0_70, %c0_71, %c0_72] : memref<1x256x64xf32, #tpu.memory_space<vmem>>, vector<1x256x64xf32>
    %69 = vector.shape_cast %68 : vector<1x256x64xf32> to vector<256x64xf32>
    %70 = arith.addf %67, %69 : vector<256x64xf32>
    %c0_73 = arith.constant 0 : index
    %c0_74 = arith.constant 0 : index
    %c0_75 = arith.constant 0 : index
    %71 = vector.load %arg6[%c0_73, %c0_74, %c0_75] : memref<1x256x64xf32, #tpu.memory_space<vmem>>, vector<1x256x64xf32>
    %72 = vector.shape_cast %71 : vector<1x256x64xf32> to vector<256x64xf32>
    %73 = vector.shape_cast %70 : vector<256x64xf32> to vector<1x256x64xf32>
    tpu.vector_store %arg6[%c0_73, %c0_74, %c0_75], %73 {strides = array<i32>} : memref<1x256x64xf32, #tpu.memory_space<vmem>>, vector<1x256x64xf32>,
    return
  }
  func.func @transform_0(%arg0: i32) -> (i32, i32, i32, i32) {
    %c0_i32 = arith.constant 0 : i32
    %c0_i32_0 = arith.constant 0 : i32
    %c0_i32_1 = arith.constant 0 : i32
    %c0_i32_2 = arith.constant 0 : i32
    return %arg0, %c0_i32, %c0_i32_0, %c0_i32_1 : i32, i32, i32, i32
  }
  func.func @transform_1(%arg0: i32) -> (i32, i32, i32) {
    %c0_i32 = arith.constant 0 : i32
    %c0_i32_0 = arith.constant 0 : i32
    %c0_i32_1 = arith.constant 0 : i32
    %c0_i32_2 = arith.constant 0 : i32
    return %c0_i32, %c0_i32_0, %c0_i32_1 : i32, i32, i32
  }
  func.func @transform_2(%arg0: i32) -> (i32, i32) {
    %c0_i32 = arith.constant 0 : i32
    %c0_i32_0 = arith.constant 0 : i32
    %c0_i32_1 = arith.constant 0 : i32
    return %c0_i32, %c0_i32_0 : i32, i32
  }
  func.func @transform_3(%arg0: i32) -> (i32, i32) {
    %c0_i32 = arith.constant 0 : i32
    %c0_i32_0 = arith.constant 0 : i32
    %c0_i32_1 = arith.constant 0 : i32
    return %c0_i32, %c0_i32_0 : i32, i32
  }
  func.func @transform_4(%arg0: i32) -> (i32, i32, i32) {
    %c0_i32 = arith.constant 0 : i32
    %c0_i32_0 = arith.constant 0 : i32
    %c0_i32_1 = arith.constant 0 : i32
    return %arg0, %c0_i32, %c0_i32_0 : i32, i32, i32
  }
  func.func @transform_5(%arg0: i32) -> (i32, i32, i32) {
    %c0_i32 = arith.constant 0 : i32
    %c0_i32_0 = arith.constant 0 : i32
    %c0_i32_1 = arith.constant 0 : i32
    return %arg0, %c0_i32, %c0_i32_0 : i32, i32, i32
  }
}

</mosaic_0001>

<llo_original>
// kernel: bottleneck_ir.3
$region0: #{bottleneck_ir.3}
  #allocation0 [shape = 'u32[]', space=smem, size = 0x4, offset = 0x4, fixed_abs, tag = 'smem constant byte address 0x4 - core index']
  #allocation1 [shape = 'u32[144,128]{1,0:T(1,128)}', space=vmem, size = 0x12000, scoped, tag = 'internal scratch']
  %s0 = inlined_call_operand.vmem [shape: bf16[2,18,18,64], index: 0, kind: input, shape index: {}]
  %s1 = inlined_call_operand.vmem [shape: bf16[3,192,64], index: 1, kind: input, shape index: {}]
  %s2 = inlined_call_operand.vmem [shape: f32[1,64], index: 2, kind: input, shape index: {}]
  %s3 = inlined_call_operand.vmem [shape: f32[1,64], index: 3, kind: input, shape index: {}]
  %s4 = inlined_call_operand.vmem [shape: f32[2,256,64], index: 4, kind: input, shape index: {}]
  %s5 = inlined_call_operand.hbm [shape: f32[2,256,64], index: 5, kind: output, shape index: {}]
  %s6 = sld [smem:[#allocation0]]
  $region53: #{bottleneck_ir.3} parent=0
    _
  %s8 = ssub.s32 1, %s6
  %s9 = scalar_select 0, %s8, %s6
  $region1: #{bottleneck_ir.3} parent=0
    #allocation2 [shape = 'u8[262144]{0}', space=vmem, size = 0x40000, scoped, tag = 'output window, operand 0']
    #allocation3 [shape = 's32[2]{0}', space=sflag, size = 0x8, scoped, tag = 'scoped memory for bottleneck_ir.3']
    %10 = vsyncpa [#allocation3], 0
    %s11 = scalar_lea.sflag [#allocation3], 1
    %12 = vsyncpa %s11, 0
    loop: start=0, step=1, limit=4
    $region2: #{bottleneck_ir.3} parent=1 // loop_pre_header
      _
    $region3: #{bottleneck_ir.3} parent=1 // loop_header
      %s14 = sphi 0, %s18
      %p15 = scmp.ge.s32.totalorder %s14, 4
      %s24 = sphi 0, %s26
      %s27 = sphi 0, %s24
      %s28 = sphi 0, %s27
      %s44 = sphi 0, %s28
      %s48 = sphi 0, %s48
      %s50 = sphi 0, %s48
      %s51 = sphi 0, %s50
      %s65 = sphi 0, %s51
      %s69 = sphi 0, %s69
      %s71 = sphi 0, %s69
      %s72 = sphi 0, %s71
      %s86 = sphi 0, %s72
      %s90 = sphi 0, %s90
      %s92 = sphi 0, %s90
      %s93 = sphi 0, %s92
      %s107 = sphi 0, %s93
      %s113 = sphi 0, %s115
      %s116 = sphi 0, %s113
      %s117 = sphi 0, %s116
      %s133 = sphi 0, %s117
      %s139 = sphi 0, %s141
      %s142 = sphi 0, %s139
      %s143 = sphi 0, %s142
      %s159 = sphi 0, %s143
    $region4: #{bottleneck_ir.3} parent=1 // loop_header_branch
      %17 = sbr.rel (%p15) target = $region8
    $region5: #{bottleneck_ir.3} parent=1 // loop_body
      %s19 = ssub.s32 %s14, 1
      %s20 = ssub.s32 %s14, 2
      %s21 = sadd.s32 %s14, 1
      %s22 = ssub.s32 %s14, %s21
      %p23 = scmp.eq.s32.totalorder %s22, 0
      %s25 = sadd.s32 %s24, 1
      %s26 = scalar_select %p23, %s24, %s25
      %p29 = pneg %p23
      %p30 = scmp.eq.s32.totalorder %s14, 1
      %p31 = por %p29, %p30
      %p32 = scmp.ne.s32.totalorder %s24, %s27
      %p33 = scmp.eq.s32.totalorder %s14, 0
      %p34 = por %p32, %p33
      %p35 = scmp.ne.s32.totalorder %s24, %s27
      %p36 = scmp.eq.s32.totalorder %s19, 1
      %p37 = por %p35, %p36
      %p38 = scmp.ne.s32.totalorder %s27, %s28
      %p39 = scmp.eq.s32.totalorder %s19, 0
      %p40 = por %p38, %p39
      %p41 = scmp.ne.s32.totalorder %s27, %s28
      %p42 = scmp.eq.s32.totalorder %s20, 1
      %p43 = por %p41, %p42
      %p45 = scmp.ne.s32.totalorder %s28, %s44
      %p46 = scmp.eq.s32.totalorder %s20, 0
      %p47 = por %p45, %p46
      %s49 = sadd.s32 %s48, 1
      %p52 = scmp.eq.s32.totalorder %s14, 1
      %p53 = scmp.ne.s32.totalorder %s48, %s50
      %p54 = scmp.eq.s32.totalorder %s14, 0
      %p55 = por %p53, %p54
      %p56 = scmp.ne.s32.totalorder %s48, %s50
      %p57 = scmp.eq.s32.totalorder %s19, 1
      %p58 = por %p56, %p57
      %p59 = scmp.ne.s32.totalorder %s50, %s51
      %p60 = scmp.eq.s32.totalorder %s19, 0
      %p61 = por %p59, %p60
      %p62 = scmp.ne.s32.totalorder %s50, %s51
      %p63 = scmp.eq.s32.totalorder %s20, 1
      %p64 = por %p62, %p63
      %p66 = scmp.ne.s32.totalorder %s51, %s65
      %p67 = scmp.eq.s32.totalorder %s20, 0
      %p68 = por %p66, %p67
      %s70 = sadd.s32 %s69, 1
      %p73 = scmp.eq.s32.totalorder %s14, 1
      %p74 = scmp.ne.s32.totalorder %s69, %s71
      %p75 = scmp.eq.s32.totalorder %s14, 0
      %p76 = por %p74, %p75
      %p77 = scmp.ne.s32.totalorder %s69, %s71
      %p78 = scmp.eq.s32.totalorder %s19, 1
      %p79 = por %p77, %p78
      %p80 = scmp.ne.s32.totalorder %s71, %s72
      %p81 = scmp.eq.s32.totalorder %s19, 0
      %p82 = por %p80, %p81
      %p83 = scmp.ne.s32.totalorder %s71, %s72
      %p84 = scmp.eq.s32.totalorder %s20, 1
      %p85 = por %p83, %p84
      %p87 = scmp.ne.s32.totalorder %s72, %s86
      %p88 = scmp.eq.s32.totalorder %s20, 0
      %p89 = por %p87, %p88
      %s91 = sadd.s32 %s90, 1
      %p94 = scmp.eq.s32.totalorder %s14, 1
      %p95 = scmp.ne.s32.totalorder %s90, %s92
      %p96 = scmp.eq.s32.totalorder %s14, 0
      %p97 = por %p95, %p96
      %p98 = scmp.ne.s32.totalorder %s90, %s92
      %p99 = scmp.eq.s32.totalorder %s19, 1
      %p100 = por %p98, %p99
      %p101 = scmp.ne.s32.totalorder %s92, %s93
      %p102 = scmp.eq.s32.totalorder %s19, 0
      %p103 = por %p101, %p102
      %p104 = scmp.ne.s32.totalorder %s92, %s93
      %p105 = scmp.eq.s32.totalorder %s20, 1
      %p106 = por %p104, %p105
      %p108 = scmp.ne.s32.totalorder %s93, %s107
      %p109 = scmp.eq.s32.totalorder %s20, 0
      %p110 = por %p108, %p109
      %s111 = ssub.s32 %s14, %s21
      %p112 = scmp.eq.s32.totalorder %s111, 0
      %s114 = sadd.s32 %s113, 1
      %s115 = scalar_select %p112, %s113, %s114
      %p118 = pneg %p112
      %p119 = scmp.eq.s32.totalorder %s14, 1
      %p120 = por %p118, %p119
      %p121 = scmp.ne.s32.totalorder %s113, %s116
      %p122 = scmp.eq.s32.totalorder %s14, 0
      %p123 = por %p121, %p122
      %p124 = scmp.ne.s32.totalorder %s113, %s116
      %p125 = scmp.eq.s32.totalorder %s19, 1
      %p126 = por %p124, %p125
      %p127 = scmp.ne.s32.totalorder %s116, %s117
      %p128 = scmp.eq.s32.totalorder %s19, 0
      %p129 = por %p127, %p128
      %p130 = scmp.ne.s32.totalorder %s116, %s117
      %p131 = scmp.eq.s32.totalorder %s20, 1
      %p132 = por %p130, %p131
      %p134 = scmp.ne.s32.totalorder %s117, %s133
      %p135 = scmp.eq.s32.totalorder %s20, 0
      %p136 = por %p134, %p135
      %s137 = ssub.s32 %s14, %s21
      %p138 = scmp.eq.s32.totalorder %s137, 0
      %s140 = sadd.s32 %s139, 1
      %s141 = scalar_select %p138, %s139, %s140
      %p144 = pneg %p138
      %p145 = scmp.eq.s32.totalorder %s14, 1
      %p146 = por %p144, %p145
      %p147 = scmp.ne.s32.totalorder %s139, %s142
      %p148 = scmp.eq.s32.totalorder %s14, 0
      %p149 = por %p147, %p148
      %p150 = scmp.ne.s32.totalorder %s139, %s142
      %p151 = scmp.eq.s32.totalorder %s19, 1
      %p152 = por %p150, %p151
      %p153 = scmp.ne.s32.totalorder %s142, %s143
      %p154 = scmp.eq.s32.totalorder %s19, 0
      %p155 = por %p153, %p154
      %p156 = scmp.ne.s32.totalorder %s142, %s143
      %p157 = scmp.eq.s32.totalorder %s20, 1
      %p158 = por %p156, %p157
      %p160 = scmp.ne.s32.totalorder %s143, %s159
      %p161 = scmp.eq.s32.totalorder %s20, 0
      %p162 = por %p160, %p161
      %p163 = scmp.le.s32.totalorder 1, %s14
      %p164 = scmp.lt.s32.totalorder %s14, 3
      %p165 = pnand %p163, %p164
      %p166 = pneg %p165
      // Predicated region
      $region9: #{bottleneck_ir.3} parent=5 // pred_check
        _
      $region10: #{bottleneck_ir.3} parent=5 // pred_check_branch
        %168 = sbr.rel (%p165) target = $region12
      $region11: #{bottleneck_ir.3} parent=5 // pred_region
        %s169 = ssub.s32 %s14, 1
        // Predicated region
        $region13: #{bottleneck_ir.3} parent=11 // pred_check
          %p170 = pneg %p61
        $region14: #{bottleneck_ir.3} parent=11 // pred_check_branch
          %172 = sbr.rel (%p170) target = $region16
        $region15: #{bottleneck_ir.3} parent=11 // pred_region
          _
        $region16: #{bottleneck_ir.3} parent=11 // pred_fallthru
          _
        // Predicated region
        $region17: #{bottleneck_ir.3} parent=11 // pred_check
          %p173 = pneg %p82
        $region18: #{bottleneck_ir.3} parent=11 // pred_check_branch
          %175 = sbr.rel (%p173) target = $region20
        $region19: #{bottleneck_ir.3} parent=11 // pred_region
          _
        $region20: #{bottleneck_ir.3} parent=11 // pred_fallthru
          _
        // Predicated region
        $region21: #{bottleneck_ir.3} parent=11 // pred_check
          %p176 = pneg %p103
        $region22: #{bottleneck_ir.3} parent=11 // pred_check_branch
          %178 = sbr.rel (%p176) target = $region24
        $region23: #{bottleneck_ir.3} parent=11 // pred_region
          _
        $region24: #{bottleneck_ir.3} parent=11 // pred_fallthru
          _
      $region12: #{bottleneck_ir.3} parent=5 // pred_fallthru
        _
      %p179 = scmp.lt.s32.totalorder %s14, 2
      // Predicated region
      $region25: #{bottleneck_ir.3} parent=5 // pred_check
        %p180 = pneg %p179
      $region26: #{bottleneck_ir.3} parent=5 // pred_check_branch
        %182 = sbr.rel (%p180) target = $region28
      $region27: #{bottleneck_ir.3} parent=5 // pred_region
        // Predicated region
        $region29: #{bottleneck_ir.3} parent=27 // pred_check
          %p183 = pneg %p34
        $region30: #{bottleneck_ir.3} parent=27 // pred_check_branch
          %185 = sbr.rel (%p183) target = $region32
        $region31: #{bottleneck_ir.3} parent=27 // pred_region
          %p186 = scmp.lt.s32.totalorder %s14, 1
          %s187 = scalar_select %p186, %s14, 1
          %s188 = smul.addr %s187, 54
          %s189 = smul.addr %s188, 4
          %s190 = scalar_lea.vmem %s0, %s189
        $region32: #{bottleneck_ir.3} parent=27 // pred_fallthru
          _
        // Predicated region
        $region33: #{bottleneck_ir.3} parent=27 // pred_check
          %p191 = pneg %p123
        $region34: #{bottleneck_ir.3} parent=27 // pred_check_branch
          %193 = sbr.rel (%p191) target = $region36
        $region35: #{bottleneck_ir.3} parent=27 // pred_region
          %p194 = scmp.lt.s32.totalorder %s14, 1
          %s195 = scalar_select %p194, %s14, 1
          %s196 = smul.addr %s195, 32
          %s197 = smul.addr %s196, 8
          %s198 = scalar_lea.vmem %s4, %s197
        $region36: #{bottleneck_ir.3} parent=27 // pred_fallthru
          _
      $region28: #{bottleneck_ir.3} parent=5 // pred_fallthru
        _
      %p199 = scmp.le.s32.totalorder 1, %s14
      %p200 = scmp.lt.s32.totalorder %s14, 3
      %p201 = pnand %p199, %p200
      %p202 = pneg %p201
      // Predicated region
      $region37: #{bottleneck_ir.3} parent=5 // pred_check
        _
      $region38: #{bottleneck_ir.3} parent=5 // pred_check_branch
        %204 = sbr.rel (%p201) target = $region40
      $region39: #{bottleneck_ir.3} parent=5 // pred_region
        %s205 = ssub.s32 %s14, 1
        %p206 = scmp.lt.s32.totalorder %s19, 1
        %s207 = scalar_select %p206, %s19, 1
        %s208 = smul.addr %s207, 54
        %s209 = smul.addr %s208, 4
        %s210 = scalar_lea.vmem %s0, %s209
        %p211 = pneg %p40
        %p212 = pneg %p37
        %p213 = pneg %p61
        %p214 = pneg %p58
        %p215 = pneg %p82
        %p216 = pneg %p79
        %p217 = pneg %p103
        %p218 = pneg %p100
        %p219 = scmp.lt.s32.totalorder %s19, 1
        %s220 = scalar_select %p219, %s19, 1
        %s221 = smul.addr %s220, 32
        %s222 = smul.addr %s221, 8
        %s223 = scalar_lea.vmem %s4, %s222
        %p224 = pneg %p129
        %p225 = pneg %p126
        %p226 = pneg %p155
        %p227 = pneg %p152
        %s228 = sand.u32 %s142, 1
        %s229 = scalar_lea.sflag [#allocation3], %s228
        %s230 = sand.u32 %s142, 1
        %s231 = smul.addr %s230, 256
        %s232 = scalar_lea.vmem [#allocation2], %s231
        %p233 = scmp.lt.s32.totalorder %s19, 1
        %s234 = scalar_select %p233, %s19, 1
        %s235 = smul.addr %s234, 54
        %s236 = smul.addr %s235, 4
        %s237 = scalar_lea.vmem %s0, %s236
        %p238 = scmp.lt.s32.totalorder %s19, 1
        %s239 = scalar_select %p238, %s19, 1
        %s240 = smul.addr %s239, 32
        %s241 = smul.addr %s240, 8
        %s242 = scalar_lea.vmem %s4, %s241
        %v244 = vld [vmem:[%s237] sm:$0xf]
        %v245 = vld [vmem:[%s237 + $0x4] sm:$0xf]
        %v246 = vld [vmem:[%s237 + $0xc] sm:$0xf]
        %v247 = vld [vmem:[%s237 + $0x10] sm:$0xf]
        %v248 = vld [vmem:[%s237 + $0x18] sm:$0xf]
        %v249 = vld [vmem:[%s237 + $0x1c] sm:$0xf]
        %v250 = vld [vmem:[%s237 + $0x24] sm:$0xf]
        %v251 = vld [vmem:[%s237 + $0x28] sm:$0xf]
        %v252 = vld [vmem:[%s237 + $0x30] sm:$0xf]
        %v253 = vld [vmem:[%s237 + $0x34] sm:$0xf]
        %v254 = vld [vmem:[%s237 + $0x3c] sm:$0xf]
        %v255 = vld [vmem:[%s237 + $0x40] sm:$0xf]
        %v256 = vld [vmem:[%s237 + $0x48] sm:$0xf]
        %v257 = vld [vmem:[%s237 + $0x4c] sm:$0xf]
        %v258 = vld [vmem:[%s237 + $0x54] sm:$0xf]
        %v259 = vld [vmem:[%s237 + $0x58] sm:$0xf]
        %v260 = vld [vmem:[%s237 + $0x60] sm:$0xf]
        %v261 = vld [vmem:[%s237 + $0x64] sm:$0xf]
        %v262 = vld [vmem:[%s237 + $0x6c] sm:$0xf]
        %v263 = vld [vmem:[%s237 + $0x70] sm:$0xf]
        %v264 = vld [vmem:[%s237 + $0x78] sm:$0xf]
        %v265 = vld [vmem:[%s237 + $0x7c] sm:$0xf]
        %v266 = vld [vmem:[%s237 + $0x84] sm:$0xf]
        %v267 = vld [vmem:[%s237 + $0x88] sm:$0xf]
        %v268 = vld [vmem:[%s237 + $0x90] sm:$0xf]
        %v269 = vld [vmem:[%s237 + $0x94] sm:$0xf]
        %v270 = vld [vmem:[%s237 + $0x9c] sm:$0xf]
        %v271 = vld [vmem:[%s237 + $0xa0] sm:$0xf]
        %v272 = vld [vmem:[%s237 + $0xa8] sm:$0xf]
        %v273 = vld [vmem:[%s237 + $0xac] sm:$0xf]
        %v274 = vld [vmem:[%s237 + $0xb4] sm:$0xf]
        %v275 = vld [vmem:[%s237 + $0xb8] sm:$0xf]
        %v276 = vld [vmem:[%s237 + $0x8] sm:$0x1]
        %v277 = vld [vmem:[%s237 + $0x14] sm:$0x1]
        %v278 = vld [vmem:[%s237 + $0x20] sm:$0x1]
        %v279 = vld [vmem:[%s237 + $0x2c] sm:$0x1]
        %v280 = vld [vmem:[%s237 + $0x38] sm:$0x1]
        %v281 = vld [vmem:[%s237 + $0x44] sm:$0x1]
        %v282 = vld [vmem:[%s237 + $0x50] sm:$0x1]
        %v283 = vld [vmem:[%s237 + $0x5c] sm:$0x1]
        %v284 = vld [vmem:[%s237 + $0x68] sm:$0x1]
        %v285 = vld [vmem:[%s237 + $0x74] sm:$0x1]
        %v286 = vld [vmem:[%s237 + $0x80] sm:$0x1]
        %v287 = vld [vmem:[%s237 + $0x8c] sm:$0x1]
        %v288 = vld [vmem:[%s237 + $0x98] sm:$0x1]
        %v289 = vld [vmem:[%s237 + $0xa4] sm:$0x1]
        %v290 = vld [vmem:[%s237 + $0xb0] sm:$0x1]
        %v291 = vld [vmem:[%s237 + $0xbc] sm:$0x1]
        %vm292 = vsmask.f32 3328
        %vm293 = vsmask.f32 7440
        %vm294 = vmor %vm292, %vm293
        %v296 = vshrl.u32 %v244, 16
        %v298 = vrot.slane %v296, 4
        %v299 = vshll.u32 %v244, 16
        %v301 = vrot.slane %v299, 5
        %v302 = vor.u32 %v298, %v301
        %v303 = vrot.slane %v302, 4
        %v305 = vshll.u32 %v245, 16
        %v307 = vrot.slane %v305, 5
        %v308 = vsel %vm294, %v303, %v307
        %v309 = vshrl.u32 %v245, 16
        %v311 = vrot.slane %v309, 4
        %v312 = vor.u32 %v311, %v307
        %v313 = vrot.slane %v312, 4
        %v315 = vshll.u32 %v276, 16
        %v317 = vrot.slane %v315, 5
        %v318 = vsel %vm294, %v313, %v317
        %v320 = vshrl.u32 %v246, 16
        %v322 = vrot.slane %v320, 4
        %v323 = vshll.u32 %v246, 16
        %v325 = vrot.slane %v323, 5
        %v326 = vor.u32 %v322, %v325
        %v327 = vrot.slane %v326, 4
        %v329 = vshll.u32 %v247, 16
        %v331 = vrot.slane %v329, 5
        %v332 = vsel %vm294, %v327, %v331
        %v333 = vshrl.u32 %v247, 16
        %v335 = vrot.slane %v333, 4
        %v336 = vor.u32 %v335, %v331
        %v337 = vrot.slane %v336, 4
        %v339 = vshll.u32 %v277, 16
        %v341 = vrot.slane %v339, 5
        %v342 = vsel %vm294, %v337, %v341
        %v344 = vshrl.u32 %v248, 16
        %v346 = vrot.slane %v344, 4
        %v347 = vshll.u32 %v248, 16
        %v349 = vrot.slane %v347, 5
        %v350 = vor.u32 %v346, %v349
        %v351 = vrot.slane %v350, 4
        %v353 = vshll.u32 %v249, 16
        %v355 = vrot.slane %v353, 5
        %v356 = vsel %vm294, %v351, %v355
        %v357 = vshrl.u32 %v249, 16
        %v359 = vrot.slane %v357, 4
        %v360 = vor.u32 %v359, %v355
        %v361 = vrot.slane %v360, 4
        %v363 = vshll.u32 %v278, 16
        %v365 = vrot.slane %v363, 5
        %v366 = vsel %vm294, %v361, %v365
        %v368 = vshrl.u32 %v250, 16
        %v370 = vrot.slane %v368, 4
        %v371 = vshll.u32 %v250, 16
        %v373 = vrot.slane %v371, 5
        %v374 = vor.u32 %v370, %v373
        %v375 = vrot.slane %v374, 4
        %v377 = vshll.u32 %v251, 16
        %v379 = vrot.slane %v377, 5
        %v380 = vsel %vm294, %v375, %v379
        %v381 = vshrl.u32 %v251, 16
        %v383 = vrot.slane %v381, 4
        %v384 = vor.u32 %v383, %v379
        %v385 = vrot.slane %v384, 4
        %v387 = vshll.u32 %v279, 16
        %v389 = vrot.slane %v387, 5
        %v390 = vsel %vm294, %v385, %v389
        %v392 = vshrl.u32 %v252, 16
        %v394 = vrot.slane %v392, 4
        %v395 = vshll.u32 %v252, 16
        %v397 = vrot.slane %v395, 5
        %v398 = vor.u32 %v394, %v397
        %v399 = vrot.slane %v398, 4
        %v401 = vshll.u32 %v253, 16
        %v403 = vrot.slane %v401, 5
        %v404 = vsel %vm294, %v399, %v403
        %v405 = vshrl.u32 %v253, 16
        %v407 = vrot.slane %v405, 4
        %v408 = vor.u32 %v407, %v403
        %v409 = vrot.slane %v408, 4
        %v411 = vshll.u32 %v280, 16
        %v413 = vrot.slane %v411, 5
        %v414 = vsel %vm294, %v409, %v413
        %v416 = vshrl.u32 %v254, 16
        %v418 = vrot.slane %v416, 4
        %v419 = vshll.u32 %v254, 16
        %v421 = vrot.slane %v419, 5
        %v422 = vor.u32 %v418, %v421
        %v423 = vrot.slane %v422, 4
        %v425 = vshll.u32 %v255, 16
        %v427 = vrot.slane %v425, 5
        %v428 = vsel %vm294, %v423, %v427
        %v429 = vshrl.u32 %v255, 16
        %v431 = vrot.slane %v429, 4
        %v432 = vor.u32 %v431, %v427
        %v433 = vrot.slane %v432, 4
        %v435 = vshll.u32 %v281, 16
        %v437 = vrot.slane %v435, 5
        %v438 = vsel %vm294, %v433, %v437
        %v440 = vshrl.u32 %v256, 16
        %v442 = vrot.slane %v440, 4
        %v443 = vshll.u32 %v256, 16
        %v445 = vrot.slane %v443, 5
        %v446 = vor.u32 %v442, %v445
        %v447 = vrot.slane %v446, 4
        %v449 = vshll.u32 %v257, 16
        %v451 = vrot.slane %v449, 5
        %v452 = vsel %vm294, %v447, %v451
        %v453 = vshrl.u32 %v257, 16
        %v455 = vrot.slane %v453, 4
        %v456 = vor.u32 %v455, %v451
        %v457 = vrot.slane %v456, 4
        %v459 = vshll.u32 %v282, 16
        %v461 = vrot.slane %v459, 5
        %v462 = vsel %vm294, %v457, %v461
        %v464 = vshrl.u32 %v258, 16
        %v466 = vrot.slane %v464, 4
        %v467 = vshll.u32 %v258, 16
        %v469 = vrot.slane %v467, 5
        %v470 = vor.u32 %v466, %v469
        %v471 = vrot.slane %v470, 4
        %v473 = vshll.u32 %v259, 16
        %v475 = vrot.slane %v473, 5
        %v476 = vsel %vm294, %v471, %v475
        %v477 = vshrl.u32 %v259, 16
        %v479 = vrot.slane %v477, 4
        %v480 = vor.u32 %v479, %v475
        %v481 = vrot.slane %v480, 4
        %v483 = vshll.u32 %v283, 16
        %v485 = vrot.slane %v483, 5
        %v486 = vsel %vm294, %v481, %v485
        %v488 = vshrl.u32 %v260, 16
        %v490 = vrot.slane %v488, 4
        %v491 = vshll.u32 %v260, 16
        %v493 = vrot.slane %v491, 5
        %v494 = vor.u32 %v490, %v493
        %v495 = vrot.slane %v494, 4
        %v497 = vshll.u32 %v261, 16
        %v499 = vrot.slane %v497, 5
        %v500 = vsel %vm294, %v495, %v499
        %v501 = vshrl.u32 %v261, 16
        %v503 = vrot.slane %v501, 4
        %v504 = vor.u32 %v503, %v499
        %v505 = vrot.slane %v504, 4
        %v507 = vshll.u32 %v284, 16
        %v509 = vrot.slane %v507, 5
        %v510 = vsel %vm294, %v505, %v509
        %v512 = vshrl.u32 %v262, 16
        %v514 = vrot.slane %v512, 4
        %v515 = vshll.u32 %v262, 16
        %v517 = vrot.slane %v515, 5
        %v518 = vor.u32 %v514, %v517
        %v519 = vrot.slane %v518, 4
        %v521 = vshll.u32 %v263, 16
        %v523 = vrot.slane %v521, 5
        %v524 = vsel %vm294, %v519, %v523
        %v525 = vshrl.u32 %v263, 16
        %v527 = vrot.slane %v525, 4
        %v528 = vor.u32 %v527, %v523
        %v529 = vrot.slane %v528, 4
        %v531 = vshll.u32 %v285, 16
        %v533 = vrot.slane %v531, 5
        %v534 = vsel %vm294, %v529, %v533
        %v536 = vshrl.u32 %v264, 16
        %v538 = vrot.slane %v536, 4
        %v539 = vshll.u32 %v264, 16
        %v541 = vrot.slane %v539, 5
        %v542 = vor.u32 %v538, %v541
        %v543 = vrot.slane %v542, 4
        %v545 = vshll.u32 %v265, 16
        %v547 = vrot.slane %v545, 5
        %v548 = vsel %vm294, %v543, %v547
        %v549 = vshrl.u32 %v265, 16
        %v551 = vrot.slane %v549, 4
        %v552 = vor.u32 %v551, %v547
        %v553 = vrot.slane %v552, 4
        %v555 = vshll.u32 %v286, 16
        %v557 = vrot.slane %v555, 5
        %v558 = vsel %vm294, %v553, %v557
        %v560 = vshrl.u32 %v266, 16
        %v562 = vrot.slane %v560, 4
        %v563 = vshll.u32 %v266, 16
        %v565 = vrot.slane %v563, 5
        %v566 = vor.u32 %v562, %v565
        %v567 = vrot.slane %v566, 4
        %v569 = vshll.u32 %v267, 16
        %v571 = vrot.slane %v569, 5
        %v572 = vsel %vm294, %v567, %v571
        %v573 = vshrl.u32 %v267, 16
        %v575 = vrot.slane %v573, 4
        %v576 = vor.u32 %v575, %v571
        %v577 = vrot.slane %v576, 4
        %v579 = vshll.u32 %v287, 16
        %v581 = vrot.slane %v579, 5
        %v582 = vsel %vm294, %v577, %v581
        %v584 = vshrl.u32 %v268, 16
        %v586 = vrot.slane %v584, 4
        %v587 = vshll.u32 %v268, 16
        %v589 = vrot.slane %v587, 5
        %v590 = vor.u32 %v586, %v589
        %v591 = vrot.slane %v590, 4
        %v593 = vshll.u32 %v269, 16
        %v595 = vrot.slane %v593, 5
        %v596 = vsel %vm294, %v591, %v595
        %v597 = vshrl.u32 %v269, 16
        %v599 = vrot.slane %v597, 4
        %v600 = vor.u32 %v599, %v595
        %v601 = vrot.slane %v600, 4
        %v603 = vshll.u32 %v288, 16
        %v605 = vrot.slane %v603, 5
        %v606 = vsel %vm294, %v601, %v605
        %v608 = vshrl.u32 %v270, 16
        %v610 = vrot.slane %v608, 4
        %v611 = vshll.u32 %v270, 16
        %v613 = vrot.slane %v611, 5
        %v614 = vor.u32 %v610, %v613
        %v615 = vrot.slane %v614, 4
        %v617 = vshll.u32 %v271, 16
        %v619 = vrot.slane %v617, 5
        %v620 = vsel %vm294, %v615, %v619
        %v621 = vshrl.u32 %v271, 16
        %v623 = vrot.slane %v621, 4
        %v624 = vor.u32 %v623, %v619
        %v625 = vrot.slane %v624, 4
        %v627 = vshll.u32 %v289, 16
        %v629 = vrot.slane %v627, 5
        %v630 = vsel %vm294, %v625, %v629
        %v632 = vshrl.u32 %v272, 16
        %v634 = vrot.slane %v632, 4
        %v635 = vshll.u32 %v272, 16
        %v637 = vrot.slane %v635, 5
        %v638 = vor.u32 %v634, %v637
        %v639 = vrot.slane %v638, 4
        %v641 = vshll.u32 %v273, 16
        %v643 = vrot.slane %v641, 5
        %v644 = vsel %vm294, %v639, %v643
        %v645 = vshrl.u32 %v273, 16
        %v647 = vrot.slane %v645, 4
        %v648 = vor.u32 %v647, %v643
        %v649 = vrot.slane %v648, 4
        %v651 = vshll.u32 %v290, 16
        %v653 = vrot.slane %v651, 5
        %v654 = vsel %vm294, %v649, %v653
        %v656 = vshrl.u32 %v274, 16
        %v658 = vrot.slane %v656, 4
        %v659 = vshll.u32 %v274, 16
        %v661 = vrot.slane %v659, 5
        %v662 = vor.u32 %v658, %v661
        %v663 = vrot.slane %v662, 4
        %v665 = vshll.u32 %v275, 16
        %v667 = vrot.slane %v665, 5
        %v668 = vsel %vm294, %v663, %v667
        %v669 = vshrl.u32 %v275, 16
        %v671 = vrot.slane %v669, 4
        %v672 = vor.u32 %v671, %v667
        %v673 = vrot.slane %v672, 4
        %v675 = vshll.u32 %v291, 16
        %v677 = vrot.slane %v675, 5
        %v678 = vsel %vm294, %v673, %v677
        %v679 = vld [vmem:[%s237] sm:$0xe]
        %v680 = vld [vmem:[%s237 + $0xc] sm:$0xe]
        %v681 = vld [vmem:[%s237 + $0x18] sm:$0xe]
        %v682 = vld [vmem:[%s237 + $0x24] sm:$0xe]
        %v683 = vld [vmem:[%s237 + $0x30] sm:$0xe]
        %v684 = vld [vmem:[%s237 + $0x3c] sm:$0xe]
        %v685 = vld [vmem:[%s237 + $0x48] sm:$0xe]
        %v686 = vld [vmem:[%s237 + $0x54] sm:$0xe]
        %v687 = vld [vmem:[%s237 + $0x60] sm:$0xe]
        %v688 = vld [vmem:[%s237 + $0x6c] sm:$0xe]
        %v689 = vld [vmem:[%s237 + $0x78] sm:$0xe]
        %v690 = vld [vmem:[%s237 + $0x84] sm:$0xe]
        %v691 = vld [vmem:[%s237 + $0x90] sm:$0xe]
        %v692 = vld [vmem:[%s237 + $0x9c] sm:$0xe]
        %v693 = vld [vmem:[%s237 + $0xa8] sm:$0xe]
        %v694 = vld [vmem:[%s237 + $0xb4] sm:$0xe]
        %vm743 = vcmask 1042432
        %vm744 = vcmask 1046532
        %vm745 = vmor %vm743, %vm744
        %v746 = vrot.slane %v679, 5
        %v747 = vrot.slane %v746, 4
        %v748 = vrot.slane %v245, 5
        %v749 = vsel %vm745, %v747, %v748
        %v750 = vrot.slane %v748, 4
        %v751 = vrot.slane %v276, 5
        %v752 = vsel %vm745, %v750, %v751
        %v753 = vrot.slane %v680, 5
        %v754 = vrot.slane %v753, 4
        %v755 = vrot.slane %v247, 5
        %v756 = vsel %vm745, %v754, %v755
        %v757 = vrot.slane %v755, 4
        %v758 = vrot.slane %v277, 5
        %v759 = vsel %vm745, %v757, %v758
        %v760 = vrot.slane %v681, 5
        %v761 = vrot.slane %v760, 4
        %v762 = vrot.slane %v249, 5
        %v763 = vsel %vm745, %v761, %v762
        %v764 = vrot.slane %v762, 4
        %v765 = vrot.slane %v278, 5
        %v766 = vsel %vm745, %v764, %v765
        %v767 = vrot.slane %v682, 5
        %v768 = vrot.slane %v767, 4
        %v769 = vrot.slane %v251, 5
        %v770 = vsel %vm745, %v768, %v769
        %v771 = vrot.slane %v769, 4
        %v772 = vrot.slane %v279, 5
        %v773 = vsel %vm745, %v771, %v772
        %v774 = vrot.slane %v683, 5
        %v775 = vrot.slane %v774, 4
        %v776 = vrot.slane %v253, 5
        %v777 = vsel %vm745, %v775, %v776
        %v778 = vrot.slane %v776, 4
        %v779 = vrot.slane %v280, 5
        %v780 = vsel %vm745, %v778, %v779
        %v781 = vrot.slane %v684, 5
        %v782 = vrot.slane %v781, 4
        %v783 = vrot.slane %v255, 5
        %v784 = vsel %vm745, %v782, %v783
        %v785 = vrot.slane %v783, 4
        %v786 = vrot.slane %v281, 5
        %v787 = vsel %vm745, %v785, %v786
        %v788 = vrot.slane %v685, 5
        %v789 = vrot.slane %v788, 4
        %v790 = vrot.slane %v257, 5
        %v791 = vsel %vm745, %v789, %v790
        %v792 = vrot.slane %v790, 4
        %v793 = vrot.slane %v282, 5
        %v794 = vsel %vm745, %v792, %v793
        %v795 = vrot.slane %v686, 5
        %v796 = vrot.slane %v795, 4
        %v797 = vrot.slane %v259, 5
        %v798 = vsel %vm745, %v796, %v797
        %v799 = vrot.slane %v797, 4
        %v800 = vrot.slane %v283, 5
        %v801 = vsel %vm745, %v799, %v800
        %v802 = vrot.slane %v687, 5
        %v803 = vrot.slane %v802, 4
        %v804 = vrot.slane %v261, 5
        %v805 = vsel %vm745, %v803, %v804
        %v806 = vrot.slane %v804, 4
        %v807 = vrot.slane %v284, 5
        %v808 = vsel %vm745, %v806, %v807
        %v809 = vrot.slane %v688, 5
        %v810 = vrot.slane %v809, 4
        %v811 = vrot.slane %v263, 5
        %v812 = vsel %vm745, %v810, %v811
        %v813 = vrot.slane %v811, 4
        %v814 = vrot.slane %v285, 5
        %v815 = vsel %vm745, %v813, %v814
        %v816 = vrot.slane %v689, 5
        %v817 = vrot.slane %v816, 4
        %v818 = vrot.slane %v265, 5
        %v819 = vsel %vm745, %v817, %v818
        %v820 = vrot.slane %v818, 4
        %v821 = vrot.slane %v286, 5
        %v822 = vsel %vm745, %v820, %v821
        %v823 = vrot.slane %v690, 5
        %v824 = vrot.slane %v823, 4
        %v825 = vrot.slane %v267, 5
        %v826 = vsel %vm745, %v824, %v825
        %v827 = vrot.slane %v825, 4
        %v828 = vrot.slane %v287, 5
        %v829 = vsel %vm745, %v827, %v828
        %v830 = vrot.slane %v691, 5
        %v831 = vrot.slane %v830, 4
        %v832 = vrot.slane %v269, 5
        %v833 = vsel %vm745, %v831, %v832
        %v834 = vrot.slane %v832, 4
        %v835 = vrot.slane %v288, 5
        %v836 = vsel %vm745, %v834, %v835
        %v837 = vrot.slane %v692, 5
        %v838 = vrot.slane %v837, 4
        %v839 = vrot.slane %v271, 5
        %v840 = vsel %vm745, %v838, %v839
        %v841 = vrot.slane %v839, 4
        %v842 = vrot.slane %v289, 5
        %v843 = vsel %vm745, %v841, %v842
        %v844 = vrot.slane %v693, 5
        %v845 = vrot.slane %v844, 4
        %v846 = vrot.slane %v273, 5
        %v847 = vsel %vm745, %v845, %v846
        %v848 = vrot.slane %v846, 4
        %v849 = vrot.slane %v290, 5
        %v850 = vsel %vm745, %v848, %v849
        %v851 = vrot.slane %v694, 5
        %v852 = vrot.slane %v851, 4
        %v853 = vrot.slane %v275, 5
        %v854 = vsel %vm745, %v852, %v853
        %v855 = vrot.slane %v853, 4
        %v856 = vrot.slane %v291, 5
        %v857 = vsel %vm745, %v855, %v856
        %v858 = vld [vmem:[%s1] sm:$0xf]
        %v859 = vld [vmem:[%s1 + $0x4] sm:$0xf]
        %v860 = vld [vmem:[%s1 + $0x8] sm:$0xf]
        %v861 = vld [vmem:[%s1 + $0xc] sm:$0xf]
        %v862 = vld [vmem:[%s1 + $0x10] sm:$0xf]
        %v863 = vld [vmem:[%s1 + $0x14] sm:$0xf]
        %v864 = vld [vmem:[%s1 + $0x18] sm:$0xf]
        %v865 = vld [vmem:[%s1 + $0x1c] sm:$0xf]
        %v866 = vld [vmem:[%s1 + $0x20] sm:$0xf]
        %v867 = vld [vmem:[%s1 + $0x24] sm:$0xf]
        %v868 = vld [vmem:[%s1 + $0x28] sm:$0xf]
        %v869 = vld [vmem:[%s1 + $0x2c] sm:$0xf]
        %v870 = vld [vmem:[%s1 + $0x30] sm:$0xf]
        %v871 = vld [vmem:[%s1 + $0x34] sm:$0xf]
        %v872 = vld [vmem:[%s1 + $0x38] sm:$0xf]
        %v873 = vld [vmem:[%s1 + $0x3c] sm:$0xf]
        %v874 = vunpack.c.l.b16 %v308
        %v875 = vunpack.c.l.b16 %v318
        %v876 = vunpack.c.l.b16 %v332
        %v877 = vunpack.c.l.b16 %v342
        %v878 = vunpack.c.l.b16 %v356
        %v879 = vunpack.c.l.b16 %v366
        %v880 = vunpack.c.l.b16 %v380
        %v881 = vunpack.c.l.b16 %v390
        %v882 = vunpack.c.l.b16 %v404
        %v883 = vunpack.c.l.b16 %v414
        %v884 = vunpack.c.l.b16 %v428
        %v885 = vunpack.c.l.b16 %v438
        %v886 = vunpack.c.l.b16 %v452
        %v887 = vunpack.c.l.b16 %v462
        %v888 = vunpack.c.l.b16 %v476
        %v889 = vunpack.c.l.b16 %v486
        %v890 = vunpack.c.l.b16 %v500
        %v891 = vunpack.c.l.b16 %v510
        %v892 = vunpack.c.l.b16 %v524
        %v893 = vunpack.c.l.b16 %v534
        %v894 = vunpack.c.l.b16 %v548
        %v895 = vunpack.c.l.b16 %v558
        %v896 = vunpack.c.l.b16 %v572
        %v897 = vunpack.c.l.b16 %v582
        %v898 = vunpack.c.l.b16 %v596
        %v899 = vunpack.c.l.b16 %v606
        %v900 = vunpack.c.l.b16 %v620
        %v901 = vunpack.c.l.b16 %v630
        %v902 = vunpack.c.l.b16 %v644
        %v903 = vunpack.c.l.b16 %v654
        %v904 = vunpack.c.l.b16 %v668
        %v905 = vunpack.c.l.b16 %v678
        %v906 = vpack.c.b16 %v875, %v874
        %v907 = vpack.c.b16 %v877, %v876
        %v908 = vpack.c.b16 %v879, %v878
        %v909 = vpack.c.b16 %v881, %v880
        %v910 = vpack.c.b16 %v883, %v882
        %v911 = vpack.c.b16 %v885, %v884
        %v912 = vpack.c.b16 %v887, %v886
        %v913 = vpack.c.b16 %v889, %v888
        %v914 = vpack.c.b16 %v891, %v890
        %v915 = vpack.c.b16 %v893, %v892
        %v916 = vpack.c.b16 %v895, %v894
        %v917 = vpack.c.b16 %v897, %v896
        %v918 = vpack.c.b16 %v899, %v898
        %v919 = vpack.c.b16 %v901, %v900
        %v920 = vpack.c.b16 %v903, %v902
        %v921 = vpack.c.b16 %v905, %v904
        %v930 = vunpack.c.l.b16 %v866
        %v931 = vunpack.c.l.b16 %v867
        %v932 = vunpack.c.l.b16 %v868
        %v933 = vunpack.c.l.b16 %v869
        %v934 = vunpack.c.l.b16 %v870
        %v935 = vunpack.c.l.b16 %v871
        %v936 = vunpack.c.l.b16 %v872
        %v937 = vunpack.c.l.b16 %v873
        %v938 = vpack.c.b16 %v931, %v930
        %v939 = vpack.c.b16 %v933, %v932
        %v940 = vpack.c.b16 %v935, %v934
        %v941 = vpack.c.b16 %v937, %v936
        %vm946 = vcmask 523264
        %v948 = vsel %vm946, %v906, 0
        %v951 = vsel %vm946, %v907, 0
        %v954 = vsel %vm946, %v908, 0
        %v957 = vsel %vm946, %v909, 0
        %v960 = vsel %vm946, %v910, 0
        %v963 = vsel %vm946, %v911, 0
        %v966 = vsel %vm946, %v912, 0
        %v969 = vsel %vm946, %v913, 0
        %v972 = vsel %vm946, %v914, 0
        %v975 = vsel %vm946, %v915, 0
        %v978 = vsel %vm946, %v916, 0
        %v981 = vsel %vm946, %v917, 0
        %v984 = vsel %vm946, %v918, 0
        %v987 = vsel %vm946, %v919, 0
        %v990 = vsel %vm946, %v920, 0
        %v993 = vsel %vm946, %v921, 0
        %995 = vmatprep.subr.bf16.mxu0 0
        %996 = vmatpush1.bf16.msra.mxu0 %v938
        %997 = vmatprep.subr.bf16.mxu0 0
        %998 = vmatpush1.bf16.msra.mxu0 %v939
        %999 = vmatprep.subr.bf16.mxu0 0
        %1000 = vmatpush1.bf16.msra.mxu0 %v940
        %1001 = vmatprep.subr.bf16.mxu0 0
        %1002 = vmatpush1.bf16.msra.mxu0 %v941
        %1003 = vmatprep.subr.bf16.mxu0 0
        %1004 = vmatpush1.bf16.msra.mxu0 0
        %1005 = vmatprep.subr.bf16.mxu0 0
        %1006 = vmatpush1.bf16.msra.mxu0 0
        %1007 = vmatprep.subr.bf16.mxu0 0
        %1008 = vmatpush1.bf16.msra.mxu0 0
        %1009 = vmatprep.subr.bf16.mxu0 0
        %1010 = vmatpush1.bf16.msra.mxu0 0
        %1011 = vmatprep.subr.bf16.mxu0 0
        %1012 = vmatpush1.bf16.msra.mxu0 0
        %1013 = vmatprep.subr.bf16.mxu0 0
        %1014 = vmatpush1.bf16.msra.mxu0 0
        %1015 = vmatprep.subr.bf16.mxu0 0
        %1016 = vmatpush1.bf16.msra.mxu0 0
        %1017 = vmatprep.subr.bf16.mxu0 0
        %1018 = vmatpush1.bf16.msra.mxu0 0
        %1019 = vmatprep.subr.bf16.mxu0 0
        %1020 = vmatpush1.bf16.msra.mxu0 0
        %1021 = vmatprep.subr.bf16.mxu0 0
        %1022 = vmatpush1.bf16.msra.mxu0 0
        %1023 = vmatprep.subr.bf16.mxu0 0
        %1024 = vmatpush1.bf16.msra.mxu0 0
        %1025 = vmatprep.subr.bf16.mxu0 0
        %1026 = vmatpush1.bf16.msra.mxu0 0
        %1027 = vmatprep.mubr.bf16.mxu0 0
        %1028 = vmatmul.mubr.bf16.gmra.mrb[0].mxu0 %v948
        %v1029 = vpop.f32.mrb[0].mxu0
        %v1030 = vadd.f32 0.0, %v1029
        %v1031 = vpop.f32.mrb[0].mxu0
        %v1032 = vpop.f32.mrb[0].mxu0
        %v1033 = vadd.f32 0.0, %v1032
        %v1034 = vpop.f32.mrb[0].mxu0
        %1035 = vmatprep.mubr.bf16.mxu0 0
        %1036 = vmatmul.mubr.bf16.gmra.mrb[0].mxu0 %v951
        %v1037 = vpop.f32.mrb[0].mxu0
        %v1038 = vadd.f32 0.0, %v1037
        %v1039 = vpop.f32.mrb[0].mxu0
        %v1040 = vpop.f32.mrb[0].mxu0
        %v1041 = vadd.f32 0.0, %v1040
        %v1042 = vpop.f32.mrb[0].mxu0
        %1043 = vmatprep.mubr.bf16.mxu0 0
        %1044 = vmatmul.mubr.bf16.gmra.mrb[0].mxu0 %v954
        %v1045 = vpop.f32.mrb[0].mxu0
        %v1046 = vadd.f32 0.0, %v1045
        %v1047 = vpop.f32.mrb[0].mxu0
        %v1048 = vpop.f32.mrb[0].mxu0
        %v1049 = vadd.f32 0.0, %v1048
        %v1050 = vpop.f32.mrb[0].mxu0
        %1051 = vmatprep.mubr.bf16.mxu0 0
        %1052 = vmatmul.mubr.bf16.gmra.mrb[0].mxu0 %v957
        %v1053 = vpop.f32.mrb[0].mxu0
        %v1054 = vadd.f32 0.0, %v1053
        %v1055 = vpop.f32.mrb[0].mxu0
        %v1056 = vpop.f32.mrb[0].mxu0
        %v1057 = vadd.f32 0.0, %v1056
        %v1058 = vpop.f32.mrb[0].mxu0
        %1059 = vmatprep.mubr.bf16.mxu0 0
        %1060 = vmatmul.mubr.bf16.gmra.mrb[0].mxu0 %v960
        %v1061 = vpop.f32.mrb[0].mxu0
        %v1062 = vadd.f32 0.0, %v1061
        %v1063 = vpop.f32.mrb[0].mxu0
        %v1064 = vpop.f32.mrb[0].mxu0
        %v1065 = vadd.f32 0.0, %v1064
        %v1066 = vpop.f32.mrb[0].mxu0
        %1067 = vmatprep.mubr.bf16.mxu0 0
        %1068 = vmatmul.mubr.bf16.gmra.mrb[0].mxu0 %v963
        %v1069 = vpop.f32.mrb[0].mxu0
        %v1070 = vadd.f32 0.0, %v1069
        %v1071 = vpop.f32.mrb[0].mxu0
        %v1072 = vpop.f32.mrb[0].mxu0
        %v1073 = vadd.f32 0.0, %v1072
        %v1074 = vpop.f32.mrb[0].mxu0
        %1075 = vmatprep.mubr.bf16.mxu0 0
        %1076 = vmatmul.mubr.bf16.gmra.mrb[0].mxu0 %v966
        %v1077 = vpop.f32.mrb[0].mxu0
        %v1078 = vadd.f32 0.0, %v1077
        %v1079 = vpop.f32.mrb[0].mxu0
        %v1080 = vpop.f32.mrb[0].mxu0
        %v1081 = vadd.f32 0.0, %v1080
        %v1082 = vpop.f32.mrb[0].mxu0
        %1083 = vmatprep.mubr.bf16.mxu0 0
        %1084 = vmatmul.mubr.bf16.gmra.mrb[0].mxu0 %v969
        %v1085 = vpop.f32.mrb[0].mxu0
        %v1086 = vadd.f32 0.0, %v1085
        %v1087 = vpop.f32.mrb[0].mxu0
        %v1088 = vpop.f32.mrb[0].mxu0
        %v1089 = vadd.f32 0.0, %v1088
        %v1090 = vpop.f32.mrb[0].mxu0
        %1091 = vmatprep.mubr.bf16.mxu0 0
        %1092 = vmatmul.mubr.bf16.gmra.mrb[0].mxu0 %v972
        %v1093 = vpop.f32.mrb[0].mxu0
        %v1094 = vadd.f32 0.0, %v1093
        %v1095 = vpop.f32.mrb[0].mxu0
        %v1096 = vpop.f32.mrb[0].mxu0
        %v1097 = vadd.f32 0.0, %v1096
        %v1098 = vpop.f32.mrb[0].mxu0
        %1099 = vmatprep.mubr.bf16.mxu0 0
        %1100 = vmatmul.mubr.bf16.gmra.mrb[0].mxu0 %v975
        %v1101 = vpop.f32.mrb[0].mxu0
        %v1102 = vadd.f32 0.0, %v1101
        %v1103 = vpop.f32.mrb[0].mxu0
        %v1104 = vpop.f32.mrb[0].mxu0
        %v1105 = vadd.f32 0.0, %v1104
        %v1106 = vpop.f32.mrb[0].mxu0
        %1107 = vmatprep.mubr.bf16.mxu0 0
        %1108 = vmatmul.mubr.bf16.gmra.mrb[0].mxu0 %v978
        %v1109 = vpop.f32.mrb[0].mxu0
        %v1110 = vadd.f32 0.0, %v1109
        %v1111 = vpop.f32.mrb[0].mxu0
        %v1112 = vpop.f32.mrb[0].mxu0
        %v1113 = vadd.f32 0.0, %v1112
        %v1114 = vpop.f32.mrb[0].mxu0
        %1115 = vmatprep.mubr.bf16.mxu0 0
        %1116 = vmatmul.mubr.bf16.gmra.mrb[0].mxu0 %v981
        %v1117 = vpop.f32.mrb[0].mxu0
        %v1118 = vadd.f32 0.0, %v1117
        %v1119 = vpop.f32.mrb[0].mxu0
        %v1120 = vpop.f32.mrb[0].mxu0
        %v1121 = vadd.f32 0.0, %v1120
        %v1122 = vpop.f32.mrb[0].mxu0
        %1123 = vmatprep.mubr.bf16.mxu0 0
        %1124 = vmatmul.mubr.bf16.gmra.mrb[0].mxu0 %v984
        %v1125 = vpop.f32.mrb[0].mxu0
        %v1126 = vadd.f32 0.0, %v1125
        %v1127 = vpop.f32.mrb[0].mxu0
        %v1128 = vpop.f32.mrb[0].mxu0
        %v1129 = vadd.f32 0.0, %v1128
        %v1130 = vpop.f32.mrb[0].mxu0
        %1131 = vmatprep.mubr.bf16.mxu0 0
        %1132 = vmatmul.mubr.bf16.gmra.mrb[0].mxu0 %v987
        %v1133 = vpop.f32.mrb[0].mxu0
        %v1134 = vadd.f32 0.0, %v1133
        %v1135 = vpop.f32.mrb[0].mxu0
        %v1136 = vpop.f32.mrb[0].mxu0
        %v1137 = vadd.f32 0.0, %v1136
        %v1138 = vpop.f32.mrb[0].mxu0
        %1139 = vmatprep.mubr.bf16.mxu0 0
        %1140 = vmatmul.mubr.bf16.gmra.mrb[0].mxu0 %v990
        %v1141 = vpop.f32.mrb[0].mxu0
        %v1142 = vadd.f32 0.0, %v1141
        %v1143 = vpop.f32.mrb[0].mxu0
        %v1144 = vpop.f32.mrb[0].mxu0
        %v1145 = vadd.f32 0.0, %v1144
        %v1146 = vpop.f32.mrb[0].mxu0
        %1147 = vmatprep.mubr.bf16.mxu0 0
        %1148 = vmatmul.mubr.bf16.gmra.mrb[0].mxu0 %v993
        %v1149 = vpop.f32.mrb[0].mxu0
        %v1150 = vadd.f32 0.0, %v1149
        %v1151 = vpop.f32.mrb[0].mxu0
        %v1152 = vpop.f32.mrb[0].mxu0
        %v1153 = vadd.f32 0.0, %v1152
        %v1154 = vpop.f32.mrb[0].mxu0
        %1155 = vdwg.mxu0
        %v1172 = vunpack.c.l.b16 %v244
        %v1173 = vunpack.c.l.b16 %v245
        %v1174 = vunpack.c.l.b16 %v246
        %v1175 = vunpack.c.l.b16 %v247
        %v1176 = vunpack.c.l.b16 %v248
        %v1177 = vunpack.c.l.b16 %v249
        %v1178 = vunpack.c.l.b16 %v250
        %v1179 = vunpack.c.l.b16 %v251
        %v1180 = vunpack.c.l.b16 %v252
        %v1181 = vunpack.c.l.b16 %v253
        %v1182 = vunpack.c.l.b16 %v254
        %v1183 = vunpack.c.l.b16 %v255
        %v1184 = vunpack.c.l.b16 %v256
        %v1185 = vunpack.c.l.b16 %v257
        %v1186 = vunpack.c.l.b16 %v258
        %v1187 = vunpack.c.l.b16 %v259
        %v1188 = vunpack.c.l.b16 %v260
        %v1189 = vunpack.c.l.b16 %v261
        %v1190 = vunpack.c.l.b16 %v262
        %v1191 = vunpack.c.l.b16 %v263
        %v1192 = vunpack.c.l.b16 %v264
        %v1193 = vunpack.c.l.b16 %v265
        %v1194 = vunpack.c.l.b16 %v266
        %v1195 = vunpack.c.l.b16 %v267
        %v1196 = vunpack.c.l.b16 %v268
        %v1197 = vunpack.c.l.b16 %v269
        %v1198 = vunpack.c.l.b16 %v270
        %v1199 = vunpack.c.l.b16 %v271
        %v1200 = vunpack.c.l.b16 %v272
        %v1201 = vunpack.c.l.b16 %v273
        %v1202 = vunpack.c.l.b16 %v274
        %v1203 = vunpack.c.l.b16 %v275
        %v1204 = vpack.c.b16 %v1173, %v1172
        %v1205 = vpack.c.b16 %v1175, %v1174
        %v1206 = vpack.c.b16 %v1177, %v1176
        %v1207 = vpack.c.b16 %v1179, %v1178
        %v1208 = vpack.c.b16 %v1181, %v1180
        %v1209 = vpack.c.b16 %v1183, %v1182
        %v1210 = vpack.c.b16 %v1185, %v1184
        %v1211 = vpack.c.b16 %v1187, %v1186
        %v1212 = vpack.c.b16 %v1189, %v1188
        %v1213 = vpack.c.b16 %v1191, %v1190
        %v1214 = vpack.c.b16 %v1193, %v1192
        %v1215 = vpack.c.b16 %v1195, %v1194
        %v1216 = vpack.c.b16 %v1197, %v1196
        %v1217 = vpack.c.b16 %v1199, %v1198
        %v1218 = vpack.c.b16 %v1201, %v1200
        %v1219 = vpack.c.b16 %v1203, %v1202
        %v1228 = vunpack.c.l.b16 %v858
        %v1229 = vunpack.c.l.b16 %v859
        %v1230 = vunpack.c.l.b16 %v860
        %v1231 = vunpack.c.l.b16 %v861
        %v1232 = vunpack.c.l.b16 %v862
        %v1233 = vunpack.c.l.b16 %v863
        %v1234 = vunpack.c.l.b16 %v864
        %v1235 = vunpack.c.l.b16 %v865
        %v1236 = vpack.c.b16 %v1229, %v1228
        %v1237 = vpack.c.b16 %v1231, %v1230
        %v1238 = vpack.c.b16 %v1233, %v1232
        %v1239 = vpack.c.b16 %v1235, %v1234
        %v1245 = vsel %vm946, %v1204, 0
        %v1248 = vsel %vm946, %v1205, 0
        %v1251 = vsel %vm946, %v1206, 0
        %v1254 = vsel %vm946, %v1207, 0
        %v1257 = vsel %vm946, %v1208, 0
        %v1260 = vsel %vm946, %v1209, 0
        %v1263 = vsel %vm946, %v1210, 0
        %v1266 = vsel %vm946, %v1211, 0
        %v1269 = vsel %vm946, %v1212, 0
        %v1272 = vsel %vm946, %v1213, 0
        %v1275 = vsel %vm946, %v1214, 0
        %v1278 = vsel %vm946, %v1215, 0
        %v1281 = vsel %vm946, %v1216, 0
        %v1284 = vsel %vm946, %v1217, 0
        %v1287 = vsel %vm946, %v1218, 0
        %v1290 = vsel %vm946, %v1219, 0
        %1292 = vmatprep.subr.bf16.mxu0 0
        %1293 = vmatpush1.bf16.msra.mxu0 %v1236
        %1294 = vmatprep.subr.bf16.mxu0 0
        %1295 = vmatpush1.bf16.msra.mxu0 %v1237
        %1296 = vmatprep.subr.bf16.mxu0 0
        %1297 = vmatpush1.bf16.msra.mxu0 %v1238
        %1298 = vmatprep.subr.bf16.mxu0 0
        %1299 = vmatpush1.bf16.msra.mxu0 %v1239
        %1300 = vmatprep.subr.bf16.mxu0 0
        %1301 = vmatpush1.bf16.msra.mxu0 0
        %1302 = vmatprep.subr.bf16.mxu0 0
        %1303 = vmatpush1.bf16.msra.mxu0 0
        %1304 = vmatprep.subr.bf16.mxu0 0
        %1305 = vmatpush1.bf16.msra.mxu0 0
        %1306 = vmatprep.subr.bf16.mxu0 0
        %1307 = vmatpush1.bf16.msra.mxu0 0
        %1308 = vmatprep.subr.bf16.mxu0 0
        %1309 = vmatpush1.bf16.msra.mxu0 0
        %1310 = vmatprep.subr.bf16.mxu0 0
        %1311 = vmatpush1.bf16.msra.mxu0 0
        %1312 = vmatprep.subr.bf16.mxu0 0
        %1313 = vmatpush1.bf16.msra.mxu0 0
        %1314 = vmatprep.subr.bf16.mxu0 0
        %1315 = vmatpush1.bf16.msra.mxu0 0
        %1316 = vmatprep.subr.bf16.mxu0 0
        %1317 = vmatpush1.bf16.msra.mxu0 0
        %1318 = vmatprep.subr.bf16.mxu0 0
        %1319 = vmatpush1.bf16.msra.mxu0 0
        %1320 = vmatprep.subr.bf16.mxu0 0
        %1321 = vmatpush1.bf16.msra.mxu0 0
        %1322 = vmatprep.subr.bf16.mxu0 0
        %1323 = vmatpush1.bf16.msra.mxu0 0
        %1324 = vmatprep.mubr.bf16.mxu0 0
        %1325 = vmatmul.mubr.bf16.gmra.mrb[0].mxu0 %v1245
        %v1326 = vpop.f32.mrb[0].mxu0
        %v1327 = vadd.f32 %v1030, %v1326
        %v1328 = vpop.f32.mrb[0].mxu0
        %v1329 = vpop.f32.mrb[0].mxu0
        %v1330 = vadd.f32 %v1033, %v1329
        %v1331 = vpop.f32.mrb[0].mxu0
        %1332 = vmatprep.mubr.bf16.mxu0 0
        %1333 = vmatmul.mubr.bf16.gmra.mrb[0].mxu0 %v1248
        %v1334 = vpop.f32.mrb[0].mxu0
        %v1335 = vadd.f32 %v1038, %v1334
        %v1336 = vpop.f32.mrb[0].mxu0
        %v1337 = vpop.f32.mrb[0].mxu0
        %v1338 = vadd.f32 %v1041, %v1337
        %v1339 = vpop.f32.mrb[0].mxu0
        %1340 = vmatprep.mubr.bf16.mxu0 0
        %1341 = vmatmul.mubr.bf16.gmra.mrb[0].mxu0 %v1251
        %v1342 = vpop.f32.mrb[0].mxu0
        %v1343 = vadd.f32 %v1046, %v1342
        %v1344 = vpop.f32.mrb[0].mxu0
        %v1345 = vpop.f32.mrb[0].mxu0
        %v1346 = vadd.f32 %v1049, %v1345
        %v1347 = vpop.f32.mrb[0].mxu0
        %1348 = vmatprep.mubr.bf16.mxu0 0
        %1349 = vmatmul.mubr.bf16.gmra.mrb[0].mxu0 %v1254
        %v1350 = vpop.f32.mrb[0].mxu0
        %v1351 = vadd.f32 %v1054, %v1350
        %v1352 = vpop.f32.mrb[0].mxu0
        %v1353 = vpop.f32.mrb[0].mxu0
        %v1354 = vadd.f32 %v1057, %v1353
        %v1355 = vpop.f32.mrb[0].mxu0
        %1356 = vmatprep.mubr.bf16.mxu0 0
        %1357 = vmatmul.mubr.bf16.gmra.mrb[0].mxu0 %v1257
        %v1358 = vpop.f32.mrb[0].mxu0
        %v1359 = vadd.f32 %v1062, %v1358
        %v1360 = vpop.f32.mrb[0].mxu0
        %v1361 = vpop.f32.mrb[0].mxu0
        %v1362 = vadd.f32 %v1065, %v1361
        %v1363 = vpop.f32.mrb[0].mxu0
        %1364 = vmatprep.mubr.bf16.mxu0 0
        %1365 = vmatmul.mubr.bf16.gmra.mrb[0].mxu0 %v1260
        %v1366 = vpop.f32.mrb[0].mxu0
        %v1367 = vadd.f32 %v1070, %v1366
        %v1368 = vpop.f32.mrb[0].mxu0
        %v1369 = vpop.f32.mrb[0].mxu0
        %v1370 = vadd.f32 %v1073, %v1369
        %v1371 = vpop.f32.mrb[0].mxu0
        %1372 = vmatprep.mubr.bf16.mxu0 0
        %1373 = vmatmul.mubr.bf16.gmra.mrb[0].mxu0 %v1263
        %v1374 = vpop.f32.mrb[0].mxu0
        %v1375 = vadd.f32 %v1078, %v1374
        %v1376 = vpop.f32.mrb[0].mxu0
        %v1377 = vpop.f32.mrb[0].mxu0
        %v1378 = vadd.f32 %v1081, %v1377
        %v1379 = vpop.f32.mrb[0].mxu0
        %1380 = vmatprep.mubr.bf16.mxu0 0
        %1381 = vmatmul.mubr.bf16.gmra.mrb[0].mxu0 %v1266
        %v1382 = vpop.f32.mrb[0].mxu0
        %v1383 = vadd.f32 %v1086, %v1382
        %v1384 = vpop.f32.mrb[0].mxu0
        %v1385 = vpop.f32.mrb[0].mxu0
        %v1386 = vadd.f32 %v1089, %v1385
        %v1387 = vpop.f32.mrb[0].mxu0
        %1388 = vmatprep.mubr.bf16.mxu0 0
        %1389 = vmatmul.mubr.bf16.gmra.mrb[0].mxu0 %v1269
        %v1390 = vpop.f32.mrb[0].mxu0
        %v1391 = vadd.f32 %v1094, %v1390
        %v1392 = vpop.f32.mrb[0].mxu0
        %v1393 = vpop.f32.mrb[0].mxu0
        %v1394 = vadd.f32 %v1097, %v1393
        %v1395 = vpop.f32.mrb[0].mxu0
        %1396 = vmatprep.mubr.bf16.mxu0 0
        %1397 = vmatmul.mubr.bf16.gmra.mrb[0].mxu0 %v1272
        %v1398 = vpop.f32.mrb[0].mxu0
        %v1399 = vadd.f32 %v1102, %v1398
        %v1400 = vpop.f32.mrb[0].mxu0
        %v1401 = vpop.f32.mrb[0].mxu0
        %v1402 = vadd.f32 %v1105, %v1401
        %v1403 = vpop.f32.mrb[0].mxu0
        %1404 = vmatprep.mubr.bf16.mxu0 0
        %1405 = vmatmul.mubr.bf16.gmra.mrb[0].mxu0 %v1275
        %v1406 = vpop.f32.mrb[0].mxu0
        %v1407 = vadd.f32 %v1110, %v1406
        %v1408 = vpop.f32.mrb[0].mxu0
        %v1409 = vpop.f32.mrb[0].mxu0
        %v1410 = vadd.f32 %v1113, %v1409
        %v1411 = vpop.f32.mrb[0].mxu0
        %1412 = vmatprep.mubr.bf16.mxu0 0
        %1413 = vmatmul.mubr.bf16.gmra.mrb[0].mxu0 %v1278
        %v1414 = vpop.f32.mrb[0].mxu0
        %v1415 = vadd.f32 %v1118, %v1414
        %v1416 = vpop.f32.mrb[0].mxu0
        %v1417 = vpop.f32.mrb[0].mxu0
        %v1418 = vadd.f32 %v1121, %v1417
        %v1419 = vpop.f32.mrb[0].mxu0
        %1420 = vmatprep.mubr.bf16.mxu0 0
        %1421 = vmatmul.mubr.bf16.gmra.mrb[0].mxu0 %v1281
        %v1422 = vpop.f32.mrb[0].mxu0
        %v1423 = vadd.f32 %v1126, %v1422
        %v1424 = vpop.f32.mrb[0].mxu0
        %v1425 = vpop.f32.mrb[0].mxu0
        %v1426 = vadd.f32 %v1129, %v1425
        %v1427 = vpop.f32.mrb[0].mxu0
        %1428 = vmatprep.mubr.bf16.mxu0 0
        %1429 = vmatmul.mubr.bf16.gmra.mrb[0].mxu0 %v1284
        %v1430 = vpop.f32.mrb[0].mxu0
        %v1431 = vadd.f32 %v1134, %v1430
        %v1432 = vpop.f32.mrb[0].mxu0
        %v1433 = vpop.f32.mrb[0].mxu0
        %v1434 = vadd.f32 %v1137, %v1433
        %v1435 = vpop.f32.mrb[0].mxu0
        %1436 = vmatprep.mubr.bf16.mxu0 0
        %1437 = vmatmul.mubr.bf16.gmra.mrb[0].mxu0 %v1287
        %v1438 = vpop.f32.mrb[0].mxu0
        %v1439 = vadd.f32 %v1142, %v1438
        %v1440 = vpop.f32.mrb[0].mxu0
        %v1441 = vpop.f32.mrb[0].mxu0
        %v1442 = vadd.f32 %v1145, %v1441
        %v1443 = vpop.f32.mrb[0].mxu0
        %1444 = vmatprep.mubr.bf16.mxu0 0
        %1445 = vmatmul.mubr.bf16.gmra.mrb[0].mxu0 %v1290
        %v1446 = vpop.f32.mrb[0].mxu0
        %v1447 = vadd.f32 %v1150, %v1446
        %v1448 = vpop.f32.mrb[0].mxu0
        %v1449 = vpop.f32.mrb[0].mxu0
        %v1450 = vadd.f32 %v1153, %v1449
        %v1451 = vpop.f32.mrb[0].mxu0
        %1452 = vdwg.mxu0
        %v1453 = vld [vmem:[%s1 + $0x40] sm:$0xf]
        %v1454 = vld [vmem:[%s1 + $0x44] sm:$0xf]
        %v1455 = vld [vmem:[%s1 + $0x48] sm:$0xf]
        %v1456 = vld [vmem:[%s1 + $0x4c] sm:$0xf]
        %v1457 = vld [vmem:[%s1 + $0x50] sm:$0xf]
        %v1458 = vld [vmem:[%s1 + $0x54] sm:$0xf]
        %v1459 = vld [vmem:[%s1 + $0x58] sm:$0xf]
        %v1460 = vld [vmem:[%s1 + $0x5c] sm:$0xf]
        %v1461 = vunpack.c.l.b16 %v749
        %v1462 = vunpack.c.l.b16 %v752
        %v1463 = vunpack.c.l.b16 %v756
        %v1464 = vunpack.c.l.b16 %v759
        %v1465 = vunpack.c.l.b16 %v763
        %v1466 = vunpack.c.l.b16 %v766
        %v1467 = vunpack.c.l.b16 %v770
        %v1468 = vunpack.c.l.b16 %v773
        %v1469 = vunpack.c.l.b16 %v777
        %v1470 = vunpack.c.l.b16 %v780
        %v1471 = vunpack.c.l.b16 %v784
        %v1472 = vunpack.c.l.b16 %v787
        %v1473 = vunpack.c.l.b16 %v791
        %v1474 = vunpack.c.l.b16 %v794
        %v1475 = vunpack.c.l.b16 %v798
        %v1476 = vunpack.c.l.b16 %v801
        %v1477 = vunpack.c.l.b16 %v805
        %v1478 = vunpack.c.l.b16 %v808
        %v1479 = vunpack.c.l.b16 %v812
        %v1480 = vunpack.c.l.b16 %v815
        %v1481 = vunpack.c.l.b16 %v819
        %v1482 = vunpack.c.l.b16 %v822
        %v1483 = vunpack.c.l.b16 %v826
        %v1484 = vunpack.c.l.b16 %v829
        %v1485 = vunpack.c.l.b16 %v833
        %v1486 = vunpack.c.l.b16 %v836
        %v1487 = vunpack.c.l.b16 %v840
        %v1488 = vunpack.c.l.b16 %v843
        %v1489 = vunpack.c.l.b16 %v847
        %v1490 = vunpack.c.l.b16 %v850
        %v1491 = vunpack.c.l.b16 %v854
        %v1492 = vunpack.c.l.b16 %v857
        %v1493 = vpack.c.b16 %v1462, %v1461
        %v1494 = vpack.c.b16 %v1464, %v1463
        %v1495 = vpack.c.b16 %v1466, %v1465
        %v1496 = vpack.c.b16 %v1468, %v1467
        %v1497 = vpack.c.b16 %v1470, %v1469
        %v1498 = vpack.c.b16 %v1472, %v1471
        %v1499 = vpack.c.b16 %v1474, %v1473
        %v1500 = vpack.c.b16 %v1476, %v1475
        %v1501 = vpack.c.b16 %v1478, %v1477
        %v1502 = vpack.c.b16 %v1480, %v1479
        %v1503 = vpack.c.b16 %v1482, %v1481
        %v1504 = vpack.c.b16 %v1484, %v1483
        %v1505 = vpack.c.b16 %v1486, %v1485
        %v1506 = vpack.c.b16 %v1488, %v1487
        %v1507 = vpack.c.b16 %v1490, %v1489
        %v1508 = vpack.c.b16 %v1492, %v1491
        %v1517 = vunpack.c.l.b16 %v1453
        %v1518 = vunpack.c.l.b16 %v1454
        %v1519 = vunpack.c.l.b16 %v1455
        %v1520 = vunpack.c.l.b16 %v1456
        %v1521 = vunpack.c.l.b16 %v1457
        %v1522 = vunpack.c.l.b16 %v1458
        %v1523 = vunpack.c.l.b16 %v1459
        %v1524 = vunpack.c.l.b16 %v1460
        %v1525 = vpack.c.b16 %v1518, %v1517
        %v1526 = vpack.c.b16 %v1520, %v1519
        %v1527 = vpack.c.b16 %v1522, %v1521
        %v1528 = vpack.c.b16 %v1524, %v1523
        %v1534 = vsel %vm946, %v1493, 0
        %v1537 = vsel %vm946, %v1494, 0
        %v1540 = vsel %vm946, %v1495, 0
        %v1543 = vsel %vm946, %v1496, 0
        %v1546 = vsel %vm946, %v1497, 0
        %v1549 = vsel %vm946, %v1498, 0
        %v1552 = vsel %vm946, %v1499, 0
        %v1555 = vsel %vm946, %v1500, 0
        %v1558 = vsel %vm946, %v1501, 0
        %v1561 = vsel %vm946, %v1502, 0
        %v1564 = vsel %vm946, %v1503, 0
        %v1567 = vsel %vm946, %v1504, 0
        %v1570 = vsel %vm946, %v1505, 0
        %v1573 = vsel %vm946, %v1506, 0
        %v1576 = vsel %vm946, %v1507, 0
        %v1579 = vsel %vm946, %v1508, 0
        %1581 = vmatprep.subr.bf16.mxu0 0
        %1582 = vmatpush1.bf16.msra.mxu0 %v1525
        %1583 = vmatprep.subr.bf16.mxu0 0
        %1584 = vmatpush1.bf16.msra.mxu0 %v1526
        %1585 = vmatprep.subr.bf16.mxu0 0
        %1586 = vmatpush1.bf16.msra.mxu0 %v1527
        %1587 = vmatprep.subr.bf16.mxu0 0
        %1588 = vmatpush1.bf16.msra.mxu0 %v1528
        %1589 = vmatprep.subr.bf16.mxu0 0
        %1590 = vmatpush1.bf16.msra.mxu0 0
        %1591 = vmatprep.subr.bf16.mxu0 0
        %1592 = vmatpush1.bf16.msra.mxu0 0
        %1593 = vmatprep.subr.bf16.mxu0 0
        %1594 = vmatpush1.bf16.msra.mxu0 0
        %1595 = vmatprep.subr.bf16.mxu0 0
        %1596 = vmatpush1.bf16.msra.mxu0 0
        %1597 = vmatprep.subr.bf16.mxu0 0
        %1598 = vmatpush1.bf16.msra.mxu0 0
        %1599 = vmatprep.subr.bf16.mxu0 0
        %1600 = vmatpush1.bf16.msra.mxu0 0
        %1601 = vmatprep.subr.bf16.mxu0 0
        %1602 = vmatpush1.bf16.msra.mxu0 0
        %1603 = vmatprep.subr.bf16.mxu0 0
        %1604 = vmatpush1.bf16.msra.mxu0 0
        %1605 = vmatprep.subr.bf16.mxu0 0
        %1606 = vmatpush1.bf16.msra.mxu0 0
        %1607 = vmatprep.subr.bf16.mxu0 0
        %1608 = vmatpush1.bf16.msra.mxu0 0
        %1609 = vmatprep.subr.bf16.mxu0 0
        %1610 = vmatpush1.bf16.msra.mxu0 0
        %1611 = vmatprep.subr.bf16.mxu0 0
        %1612 = vmatpush1.bf16.msra.mxu0 0
        %1613 = vmatprep.mubr.bf16.mxu0 0
        %1614 = vmatmul.mubr.bf16.gmra.mrb[0].mxu0 %v1534
        %v1615 = vpop.f32.mrb[0].mxu0
        %v1616 = vadd.f32 0.0, %v1615
        %v1617 = vpop.f32.mrb[0].mxu0
        %v1618 = vpop.f32.mrb[0].mxu0
        %v1619 = vadd.f32 0.0, %v1618
        %v1620 = vpop.f32.mrb[0].mxu0
        %1621 = vmatprep.mubr.bf16.mxu0 0
        %1622 = vmatmul.mubr.bf16.gmra.mrb[0].mxu0 %v1537
        %v1623 = vpop.f32.mrb[0].mxu0
        %v1624 = vadd.f32 0.0, %v1623
        %v1625 = vpop.f32.mrb[0].mxu0
        %v1626 = vpop.f32.mrb[0].mxu0
        %v1627 = vadd.f32 0.0, %v1626
        %v1628 = vpop.f32.mrb[0].mxu0
        %1629 = vmatprep.mubr.bf16.mxu0 0
        %1630 = vmatmul.mubr.bf16.gmra.mrb[0].mxu0 %v1540
        %v1631 = vpop.f32.mrb[0].mxu0
        %v1632 = vadd.f32 0.0, %v1631
        %v1633 = vpop.f32.mrb[0].mxu0
        %v1634 = vpop.f32.mrb[0].mxu0
        %v1635 = vadd.f32 0.0, %v1634
        %v1636 = vpop.f32.mrb[0].mxu0
        %1637 = vmatprep.mubr.bf16.mxu0 0
        %1638 = vmatmul.mubr.bf16.gmra.mrb[0].mxu0 %v1543
        %v1639 = vpop.f32.mrb[0].mxu0
        %v1640 = vadd.f32 0.0, %v1639
        %v1641 = vpop.f32.mrb[0].mxu0
        %v1642 = vpop.f32.mrb[0].mxu0
        %v1643 = vadd.f32 0.0, %v1642
        %v1644 = vpop.f32.mrb[0].mxu0
        %1645 = vmatprep.mubr.bf16.mxu0 0
        %1646 = vmatmul.mubr.bf16.gmra.mrb[0].mxu0 %v1546
        %v1647 = vpop.f32.mrb[0].mxu0
        %v1648 = vadd.f32 0.0, %v1647
        %v1649 = vpop.f32.mrb[0].mxu0
        %v1650 = vpop.f32.mrb[0].mxu0
        %v1651 = vadd.f32 0.0, %v1650
        %v1652 = vpop.f32.mrb[0].mxu0
        %1653 = vmatprep.mubr.bf16.mxu0 0
        %1654 = vmatmul.mubr.bf16.gmra.mrb[0].mxu0 %v1549
        %v1655 = vpop.f32.mrb[0].mxu0
        %v1656 = vadd.f32 0.0, %v1655
        %v1657 = vpop.f32.mrb[0].mxu0
        %v1658 = vpop.f32.mrb[0].mxu0
        %v1659 = vadd.f32 0.0, %v1658
        %v1660 = vpop.f32.mrb[0].mxu0
        %1661 = vmatprep.mubr.bf16.mxu0 0
        %1662 = vmatmul.mubr.bf16.gmra.mrb[0].mxu0 %v1552
        %v1663 = vpop.f32.mrb[0].mxu0
        %v1664 = vadd.f32 0.0, %v1663
        %v1665 = vpop.f32.mrb[0].mxu0
        %v1666 = vpop.f32.mrb[0].mxu0
        %v1667 = vadd.f32 0.0, %v1666
        %v1668 = vpop.f32.mrb[0].mxu0
        %1669 = vmatprep.mubr.bf16.mxu0 0
        %1670 = vmatmul.mubr.bf16.gmra.mrb[0].mxu0 %v1555
        %v1671 = vpop.f32.mrb[0].mxu0
        %v1672 = vadd.f32 0.0, %v1671
        %v1673 = vpop.f32.mrb[0].mxu0
        %v1674 = vpop.f32.mrb[0].mxu0
        %v1675 = vadd.f32 0.0, %v1674
        %v1676 = vpop.f32.mrb[0].mxu0
        %1677 = vmatprep.mubr.bf16.mxu0 0
        %1678 = vmatmul.mubr.bf16.gmra.mrb[0].mxu0 %v1558
        %v1679 = vpop.f32.mrb[0].mxu0
        %v1680 = vadd.f32 0.0, %v1679
        %v1681 = vpop.f32.mrb[0].mxu0
        %v1682 = vpop.f32.mrb[0].mxu0
        %v1683 = vadd.f32 0.0, %v1682
        %v1684 = vpop.f32.mrb[0].mxu0
        %1685 = vmatprep.mubr.bf16.mxu0 0
        %1686 = vmatmul.mubr.bf16.gmra.mrb[0].mxu0 %v1561
        %v1687 = vpop.f32.mrb[0].mxu0
        %v1688 = vadd.f32 0.0, %v1687
        %v1689 = vpop.f32.mrb[0].mxu0
        %v1690 = vpop.f32.mrb[0].mxu0
        %v1691 = vadd.f32 0.0, %v1690
        %v1692 = vpop.f32.mrb[0].mxu0
        %1693 = vmatprep.mubr.bf16.mxu0 0
        %1694 = vmatmul.mubr.bf16.gmra.mrb[0].mxu0 %v1564
        %v1695 = vpop.f32.mrb[0].mxu0
        %v1696 = vadd.f32 0.0, %v1695
        %v1697 = vpop.f32.mrb[0].mxu0
        %v1698 = vpop.f32.mrb[0].mxu0
        %v1699 = vadd.f32 0.0, %v1698
        %v1700 = vpop.f32.mrb[0].mxu0
        %1701 = vmatprep.mubr.bf16.mxu0 0
        %1702 = vmatmul.mubr.bf16.gmra.mrb[0].mxu0 %v1567
        %v1703 = vpop.f32.mrb[0].mxu0
        %v1704 = vadd.f32 0.0, %v1703
        %v1705 = vpop.f32.mrb[0].mxu0
        %v1706 = vpop.f32.mrb[0].mxu0
        %v1707 = vadd.f32 0.0, %v1706
        %v1708 = vpop.f32.mrb[0].mxu0
        %1709 = vmatprep.mubr.bf16.mxu0 0
        %1710 = vmatmul.mubr.bf16.gmra.mrb[0].mxu0 %v1570
        %v1711 = vpop.f32.mrb[0].mxu0
        %v1712 = vadd.f32 0.0, %v1711
        %v1713 = vpop.f32.mrb[0].mxu0
        %v1714 = vpop.f32.mrb[0].mxu0
        %v1715 = vadd.f32 0.0, %v1714
        %v1716 = vpop.f32.mrb[0].mxu0
        %1717 = vmatprep.mubr.bf16.mxu0 0
        %1718 = vmatmul.mubr.bf16.gmra.mrb[0].mxu0 %v1573
        %v1719 = vpop.f32.mrb[0].mxu0
        %v1720 = vadd.f32 0.0, %v1719
        %v1721 = vpop.f32.mrb[0].mxu0
        %v1722 = vpop.f32.mrb[0].mxu0
        %v1723 = vadd.f32 0.0, %v1722
        %v1724 = vpop.f32.mrb[0].mxu0
        %1725 = vmatprep.mubr.bf16.mxu0 0
        %1726 = vmatmul.mubr.bf16.gmra.mrb[0].mxu0 %v1576
        %v1727 = vpop.f32.mrb[0].mxu0
        %v1728 = vadd.f32 0.0, %v1727
        %v1729 = vpop.f32.mrb[0].mxu0
        %v1730 = vpop.f32.mrb[0].mxu0
        %v1731 = vadd.f32 0.0, %v1730
        %v1732 = vpop.f32.mrb[0].mxu0
        %1733 = vmatprep.mubr.bf16.mxu0 0
        %1734 = vmatmul.mubr.bf16.gmra.mrb[0].mxu0 %v1579
        %v1735 = vpop.f32.mrb[0].mxu0
        %v1736 = vadd.f32 0.0, %v1735
        %v1737 = vpop.f32.mrb[0].mxu0
        %v1738 = vpop.f32.mrb[0].mxu0
        %v1739 = vadd.f32 0.0, %v1738
        %v1740 = vpop.f32.mrb[0].mxu0
        %1741 = vdwg.mxu0
        %v1742 = vadd.f32 %v1327, %v1616
        %v1743 = vadd.f32 %v1330, %v1619
        %v1744 = vadd.f32 %v1335, %v1624
        %v1745 = vadd.f32 %v1338, %v1627
        %v1746 = vadd.f32 %v1343, %v1632
        %v1747 = vadd.f32 %v1346, %v1635
        %v1748 = vadd.f32 %v1351, %v1640
        %v1749 = vadd.f32 %v1354, %v1643
        %v1750 = vadd.f32 %v1359, %v1648
        %v1751 = vadd.f32 %v1362, %v1651
        %v1752 = vadd.f32 %v1367, %v1656
        %v1753 = vadd.f32 %v1370, %v1659
        %v1754 = vadd.f32 %v1375, %v1664
        %v1755 = vadd.f32 %v1378, %v1667
        %v1756 = vadd.f32 %v1383, %v1672
        %v1757 = vadd.f32 %v1386, %v1675
        %v1758 = vadd.f32 %v1391, %v1680
        %v1759 = vadd.f32 %v1394, %v1683
        %v1760 = vadd.f32 %v1399, %v1688
        %v1761 = vadd.f32 %v1402, %v1691
        %v1762 = vadd.f32 %v1407, %v1696
        %v1763 = vadd.f32 %v1410, %v1699
        %v1764 = vadd.f32 %v1415, %v1704
        %v1765 = vadd.f32 %v1418, %v1707
        %v1766 = vadd.f32 %v1423, %v1712
        %v1767 = vadd.f32 %v1426, %v1715
        %v1768 = vadd.f32 %v1431, %v1720
        %v1769 = vadd.f32 %v1434, %v1723
        %v1770 = vadd.f32 %v1439, %v1728
        %v1771 = vadd.f32 %v1442, %v1731
        %v1772 = vadd.f32 %v1447, %v1736
        %v1773 = vadd.f32 %v1450, %v1739
        %s1774 = scalar_lea.vmem %s237, 12
        %v1775 = vld [vmem:[%s1774] sm:$0xf]
        %v1776 = vld [vmem:[%s1774 + $0x4] sm:$0xf]
        %v1777 = vld [vmem:[%s1774 + $0xc] sm:$0xf]
        %v1778 = vld [vmem:[%s1774 + $0x10] sm:$0xf]
        %v1779 = vld [vmem:[%s1774 + $0x18] sm:$0xf]
        %v1780 = vld [vmem:[%s1774 + $0x1c] sm:$0xf]
        %v1781 = vld [vmem:[%s1774 + $0x24] sm:$0xf]
        %v1782 = vld [vmem:[%s1774 + $0x28] sm:$0xf]
        %v1783 = vld [vmem:[%s1774 + $0x30] sm:$0xf]
        %v1784 = vld [vmem:[%s1774 + $0x34] sm:$0xf]
        %v1785 = vld [vmem:[%s1774 + $0x3c] sm:$0xf]
        %v1786 = vld [vmem:[%s1774 + $0x40] sm:$0xf]
        %v1787 = vld [vmem:[%s1774 + $0x48] sm:$0xf]
        %v1788 = vld [vmem:[%s1774 + $0x4c] sm:$0xf]
        %v1789 = vld [vmem:[%s1774 + $0x54] sm:$0xf]
        %v1790 = vld [vmem:[%s1774 + $0x58] sm:$0xf]
        %v1791 = vld [vmem:[%s1774 + $0x60] sm:$0xf]
        %v1792 = vld [vmem:[%s1774 + $0x64] sm:$0xf]
        %v1793 = vld [vmem:[%s1774 + $0x6c] sm:$0xf]
        %v1794 = vld [vmem:[%s1774 + $0x70] sm:$0xf]
        %v1795 = vld [vmem:[%s1774 + $0x78] sm:$0xf]
        %v1796 = vld [vmem:[%s1774 + $0x7c] sm:$0xf]
        %v1797 = vld [vmem:[%s1774 + $0x84] sm:$0xf]
        %v1798 = vld [vmem:[%s1774 + $0x88] sm:$0xf]
        %v1799 = vld [vmem:[%s1774 + $0x90] sm:$0xf]
        %v1800 = vld [vmem:[%s1774 + $0x94] sm:$0xf]
        %v1801 = vld [vmem:[%s1774 + $0x9c] sm:$0xf]
        %v1802 = vld [vmem:[%s1774 + $0xa0] sm:$0xf]
        %v1803 = vld [vmem:[%s1774 + $0xa8] sm:$0xf]
        %v1804 = vld [vmem:[%s1774 + $0xac] sm:$0xf]
        %v1805 = vld [vmem:[%s1774 + $0xb4] sm:$0xf]
        %v1806 = vld [vmem:[%s1774 + $0xb8] sm:$0xf]
        %v1807 = vld [vmem:[%s1774 + $0x8] sm:$0x1]
        %v1808 = vld [vmem:[%s1774 + $0x14] sm:$0x1]
        %v1809 = vld [vmem:[%s1774 + $0x20] sm:$0x1]
        %v1810 = vld [vmem:[%s1774 + $0x2c] sm:$0x1]
        %v1811 = vld [vmem:[%s1774 + $0x38] sm:$0x1]
        %v1812 = vld [vmem:[%s1774 + $0x44] sm:$0x1]
        %v1813 = vld [vmem:[%s1774 + $0x50] sm:$0x1]
        %v1814 = vld [vmem:[%s1774 + $0x5c] sm:$0x1]
        %v1815 = vld [vmem:[%s1774 + $0x68] sm:$0x1]
        %v1816 = vld [vmem:[%s1774 + $0x74] sm:$0x1]
        %v1817 = vld [vmem:[%s1774 + $0x80] sm:$0x1]
        %v1818 = vld [vmem:[%s1774 + $0x8c] sm:$0x1]
        %v1819 = vld [vmem:[%s1774 + $0x98] sm:$0x1]
        %v1820 = vld [vmem:[%s1774 + $0xa4] sm:$0x1]
        %v1821 = vld [vmem:[%s1774 + $0xb0] sm:$0x1]
        %v1822 = vld [vmem:[%s1774 + $0xbc] sm:$0x1]
        %v1824 = vshrl.u32 %v1775, 16
        %v1826 = vrot.slane %v1824, 4
        %v1827 = vshll.u32 %v1775, 16
        %v1829 = vrot.slane %v1827, 5
        %v1830 = vor.u32 %v1826, %v1829
        %v1831 = vrot.slane %v1830, 4
        %v1833 = vshll.u32 %v1776, 16
        %v1835 = vrot.slane %v1833, 5
        %v1836 = vsel %vm294, %v1831, %v1835
        %v1837 = vshrl.u32 %v1776, 16
        %v1839 = vrot.slane %v1837, 4
        %v1840 = vor.u32 %v1839, %v1835
        %v1841 = vrot.slane %v1840, 4
        %v1843 = vshll.u32 %v1807, 16
        %v1845 = vrot.slane %v1843, 5
        %v1846 = vsel %vm294, %v1841, %v1845
        %v1848 = vshrl.u32 %v1777, 16
        %v1850 = vrot.slane %v1848, 4
        %v1851 = vshll.u32 %v1777, 16
        %v1853 = vrot.slane %v1851, 5
        %v1854 = vor.u32 %v1850, %v1853
        %v1855 = vrot.slane %v1854, 4
        %v1857 = vshll.u32 %v1778, 16
        %v1859 = vrot.slane %v1857, 5
        %v1860 = vsel %vm294, %v1855, %v1859
        %v1861 = vshrl.u32 %v1778, 16
        %v1863 = vrot.slane %v1861, 4
        %v1864 = vor.u32 %v1863, %v1859
        %v1865 = vrot.slane %v1864, 4
        %v1867 = vshll.u32 %v1808, 16
        %v1869 = vrot.slane %v1867, 5
        %v1870 = vsel %vm294, %v1865, %v1869
        %v1872 = vshrl.u32 %v1779, 16
        %v1874 = vrot.slane %v1872, 4
        %v1875 = vshll.u32 %v1779, 16
        %v1877 = vrot.slane %v1875, 5
        %v1878 = vor.u32 %v1874, %v1877
        %v1879 = vrot.slane %v1878, 4
        %v1881 = vshll.u32 %v1780, 16
        %v1883 = vrot.slane %v1881, 5
        %v1884 = vsel %vm294, %v1879, %v1883
        %v1885 = vshrl.u32 %v1780, 16
        %v1887 = vrot.slane %v1885, 4
        %v1888 = vor.u32 %v1887, %v1883
        %v1889 = vrot.slane %v1888, 4
        %v1891 = vshll.u32 %v1809, 16
        %v1893 = vrot.slane %v1891, 5
        %v1894 = vsel %vm294, %v1889, %v1893
        %v1896 = vshrl.u32 %v1781, 16
        %v1898 = vrot.slane %v1896, 4
        %v1899 = vshll.u32 %v1781, 16
        %v1901 = vrot.slane %v1899, 5
        %v1902 = vor.u32 %v1898, %v1901
        %v1903 = vrot.slane %v1902, 4
        %v1905 = vshll.u32 %v1782, 16
        %v1907 = vrot.slane %v1905, 5
        %v1908 = vsel %vm294, %v1903, %v1907
        %v1909 = vshrl.u32 %v1782, 16
        %v1911 = vrot.slane %v1909, 4
        %v1912 = vor.u32 %v1911, %v1907
        %v1913 = vrot.slane %v1912, 4
        %v1915 = vshll.u32 %v1810, 16
        %v1917 = vrot.slane %v1915, 5
        %v1918 = vsel %vm294, %v1913, %v1917
        %v1920 = vshrl.u32 %v1783, 16
        %v1922 = vrot.slane %v1920, 4
        %v1923 = vshll.u32 %v1783, 16
        %v1925 = vrot.slane %v1923, 5
        %v1926 = vor.u32 %v1922, %v1925
        %v1927 = vrot.slane %v1926, 4
        %v1929 = vshll.u32 %v1784, 16
        %v1931 = vrot.slane %v1929, 5
        %v1932 = vsel %vm294, %v1927, %v1931
        %v1933 = vshrl.u32 %v1784, 16
        %v1935 = vrot.slane %v1933, 4
        %v1936 = vor.u32 %v1935, %v1931
        %v1937 = vrot.slane %v1936, 4
        %v1939 = vshll.u32 %v1811, 16
        %v1941 = vrot.slane %v1939, 5
        %v1942 = vsel %vm294, %v1937, %v1941
        %v1944 = vshrl.u32 %v1785, 16
        %v1946 = vrot.slane %v1944, 4
        %v1947 = vshll.u32 %v1785, 16
        %v1949 = vrot.slane %v1947, 5
        %v1950 = vor.u32 %v1946, %v1949
        %v1951 = vrot.slane %v1950, 4
        %v1953 = vshll.u32 %v1786, 16
        %v1955 = vrot.slane %v1953, 5
        %v1956 = vsel %vm294, %v1951, %v1955
        %v1957 = vshrl.u32 %v1786, 16
        %v1959 = vrot.slane %v1957, 4
        %v1960 = vor.u32 %v1959, %v1955
        %v1961 = vrot.slane %v1960, 4
        %v1963 = vshll.u32 %v1812, 16
        %v1965 = vrot.slane %v1963, 5
        %v1966 = vsel %vm294, %v1961, %v1965
        %v1968 = vshrl.u32 %v1787, 16
        %v1970 = vrot.slane %v1968, 4
        %v1971 = vshll.u32 %v1787, 16
        %v1973 = vrot.slane %v1971, 5
        %v1974 = vor.u32 %v1970, %v1973
        %v1975 = vrot.slane %v1974, 4
        %v1977 = vshll.u32 %v1788, 16
        %v1979 = vrot.slane %v1977, 5
        %v1980 = vsel %vm294, %v1975, %v1979
        %v1981 = vshrl.u32 %v1788, 16
        %v1983 = vrot.slane %v1981, 4
        %v1984 = vor.u32 %v1983, %v1979
        %v1985 = vrot.slane %v1984, 4
        %v1987 = vshll.u32 %v1813, 16
        %v1989 = vrot.slane %v1987, 5
        %v1990 = vsel %vm294, %v1985, %v1989
        %v1992 = vshrl.u32 %v1789, 16
        %v1994 = vrot.slane %v1992, 4
        %v1995 = vshll.u32 %v1789, 16
        %v1997 = vrot.slane %v1995, 5
        %v1998 = vor.u32 %v1994, %v1997
        %v1999 = vrot.slane %v1998, 4
        %v2001 = vshll.u32 %v1790, 16
        %v2003 = vrot.slane %v2001, 5
        %v2004 = vsel %vm294, %v1999, %v2003
        %v2005 = vshrl.u32 %v1790, 16
        %v2007 = vrot.slane %v2005, 4
        %v2008 = vor.u32 %v2007, %v2003
        %v2009 = vrot.slane %v2008, 4
        %v2011 = vshll.u32 %v1814, 16
        %v2013 = vrot.slane %v2011, 5
        %v2014 = vsel %vm294, %v2009, %v2013
        %v2016 = vshrl.u32 %v1791, 16
        %v2018 = vrot.slane %v2016, 4
        %v2019 = vshll.u32 %v1791, 16
        %v2021 = vrot.slane %v2019, 5
        %v2022 = vor.u32 %v2018, %v2021
        %v2023 = vrot.slane %v2022, 4
        %v2025 = vshll.u32 %v1792, 16
        %v2027 = vrot.slane %v2025, 5
        %v2028 = vsel %vm294, %v2023, %v2027
        %v2029 = vshrl.u32 %v1792, 16
        %v2031 = vrot.slane %v2029, 4
        %v2032 = vor.u32 %v2031, %v2027
        %v2033 = vrot.slane %v2032, 4
        %v2035 = vshll.u32 %v1815, 16
        %v2037 = vrot.slane %v2035, 5
        %v2038 = vsel %vm294, %v2033, %v2037
        %v2040 = vshrl.u32 %v1793, 16
        %v2042 = vrot.slane %v2040, 4
        %v2043 = vshll.u32 %v1793, 16
        %v2045 = vrot.slane %v2043, 5
        %v2046 = vor.u32 %v2042, %v2045
        %v2047 = vrot.slane %v2046, 4
        %v2049 = vshll.u32 %v1794, 16
        %v2051 = vrot.slane %v2049, 5
        %v2052 = vsel %vm294, %v2047, %v2051
        %v2053 = vshrl.u32 %v1794, 16
        %v2055 = vrot.slane %v2053, 4
        %v2056 = vor.u32 %v2055, %v2051
        %v2057 = vrot.slane %v2056, 4
        %v2059 = vshll.u32 %v1816, 16
        %v2061 = vrot.slane %v2059, 5
        %v2062 = vsel %vm294, %v2057, %v2061
        %v2064 = vshrl.u32 %v1795, 16
        %v2066 = vrot.slane %v2064, 4
        %v2067 = vshll.u32 %v1795, 16
        %v2069 = vrot.slane %v2067, 5
        %v2070 = vor.u32 %v2066, %v2069
        %v2071 = vrot.slane %v2070, 4
        %v2073 = vshll.u32 %v1796, 16
        %v2075 = vrot.slane %v2073, 5
        %v2076 = vsel %vm294, %v2071, %v2075
        %v2077 = vshrl.u32 %v1796, 16
        %v2079 = vrot.slane %v2077, 4
        %v2080 = vor.u32 %v2079, %v2075
        %v2081 = vrot.slane %v2080, 4
        %v2083 = vshll.u32 %v1817, 16
        %v2085 = vrot.slane %v2083, 5
        %v2086 = vsel %vm294, %v2081, %v2085
        %v2088 = vshrl.u32 %v1797, 16
        %v2090 = vrot.slane %v2088, 4
        %v2091 = vshll.u32 %v1797, 16
        %v2093 = vrot.slane %v2091, 5
        %v2094 = vor.u32 %v2090, %v2093
        %v2095 = vrot.slane %v2094, 4
        %v2097 = vshll.u32 %v1798, 16
        %v2099 = vrot.slane %v2097, 5
        %v2100 = vsel %vm294, %v2095, %v2099
        %v2101 = vshrl.u32 %v1798, 16
        %v2103 = vrot.slane %v2101, 4
        %v2104 = vor.u32 %v2103, %v2099
        %v2105 = vrot.slane %v2104, 4
        %v2107 = vshll.u32 %v1818, 16
        %v2109 = vrot.slane %v2107, 5
        %v2110 = vsel %vm294, %v2105, %v2109
        %v2112 = vshrl.u32 %v1799, 16
        %v2114 = vrot.slane %v2112, 4
        %v2115 = vshll.u32 %v1799, 16
        %v2117 = vrot.slane %v2115, 5
        %v2118 = vor.u32 %v2114, %v2117
        %v2119 = vrot.slane %v2118, 4
        %v2121 = vshll.u32 %v1800, 16
        %v2123 = vrot.slane %v2121, 5
        %v2124 = vsel %vm294, %v2119, %v2123
        %v2125 = vshrl.u32 %v1800, 16
        %v2127 = vrot.slane %v2125, 4
        %v2128 = vor.u32 %v2127, %v2123
        %v2129 = vrot.slane %v2128, 4
        %v2131 = vshll.u32 %v1819, 16
        %v2133 = vrot.slane %v2131, 5
        %v2134 = vsel %vm294, %v2129, %v2133
        %v2136 = vshrl.u32 %v1801, 16
        %v2138 = vrot.slane %v2136, 4
        %v2139 = vshll.u32 %v1801, 16
        %v2141 = vrot.slane %v2139, 5
        %v2142 = vor.u32 %v2138, %v2141
        %v2143 = vrot.slane %v2142, 4
        %v2145 = vshll.u32 %v1802, 16
        %v2147 = vrot.slane %v2145, 5
        %v2148 = vsel %vm294, %v2143, %v2147
        %v2149 = vshrl.u32 %v1802, 16
        %v2151 = vrot.slane %v2149, 4
        %v2152 = vor.u32 %v2151, %v2147
        %v2153 = vrot.slane %v2152, 4
        %v2155 = vshll.u32 %v1820, 16
        %v2157 = vrot.slane %v2155, 5
        %v2158 = vsel %vm294, %v2153, %v2157
        %v2160 = vshrl.u32 %v1803, 16
        %v2162 = vrot.slane %v2160, 4
        %v2163 = vshll.u32 %v1803, 16
        %v2165 = vrot.slane %v2163, 5
        %v2166 = vor.u32 %v2162, %v2165
        %v2167 = vrot.slane %v2166, 4
        %v2169 = vshll.u32 %v1804, 16
        %v2171 = vrot.slane %v2169, 5
        %v2172 = vsel %vm294, %v2167, %v2171
        %v2173 = vshrl.u32 %v1804, 16
        %v2175 = vrot.slane %v2173, 4
        %v2176 = vor.u32 %v2175, %v2171
        %v2177 = vrot.slane %v2176, 4
        %v2179 = vshll.u32 %v1821, 16
        %v2181 = vrot.slane %v2179, 5
        %v2182 = vsel %vm294, %v2177, %v2181
        %v2184 = vshrl.u32 %v1805, 16
        %v2186 = vrot.slane %v2184, 4
        %v2187 = vshll.u32 %v1805, 16
        %v2189 = vrot.slane %v2187, 5
        %v2190 = vor.u32 %v2186, %v2189
        %v2191 = vrot.slane %v2190, 4
        %v2193 = vshll.u32 %v1806, 16
        %v2195 = vrot.slane %v2193, 5
        %v2196 = vsel %vm294, %v2191, %v2195
        %v2197 = vshrl.u32 %v1806, 16
        %v2199 = vrot.slane %v2197, 4
        %v2200 = vor.u32 %v2199, %v2195
        %v2201 = vrot.slane %v2200, 4
        %v2203 = vshll.u32 %v1822, 16
        %v2205 = vrot.slane %v2203, 5
        %v2206 = vsel %vm294, %v2201, %v2205
        %v2207 = vld [vmem:[%s1774] sm:$0xe]
        %v2208 = vld [vmem:[%s1774 + $0xc] sm:$0xe]
        %v2209 = vld [vmem:[%s1774 + $0x18] sm:$0xe]
        %v2210 = vld [vmem:[%s1774 + $0x24] sm:$0xe]
        %v2211 = vld [vmem:[%s1774 + $0x30] sm:$0xe]
        %v2212 = vld [vmem:[%s1774 + $0x3c] sm:$0xe]
        %v2213 = vld [vmem:[%s1774 + $0x48] sm:$0xe]
        %v2214 = vld [vmem:[%s1774 + $0x54] sm:$0xe]
        %v2215 = vld [vmem:[%s1774 + $0x60] sm:$0xe]
        %v2216 = vld [vmem:[%s1774 + $0x6c] sm:$0xe]
        %v2217 = vld [vmem:[%s1774 + $0x78] sm:$0xe]
        %v2218 = vld [vmem:[%s1774 + $0x84] sm:$0xe]
        %v2219 = vld [vmem:[%s1774 + $0x90] sm:$0xe]
        %v2220 = vld [vmem:[%s1774 + $0x9c] sm:$0xe]
        %v2221 = vld [vmem:[%s1774 + $0xa8] sm:$0xe]
        %v2222 = vld [vmem:[%s1774 + $0xb4] sm:$0xe]
        %v2271 = vrot.slane %v2207, 5
        %v2272 = vrot.slane %v2271, 4
        %v2273 = vrot.slane %v1776, 5
        %v2274 = vsel %vm745, %v2272, %v2273
        %v2275 = vrot.slane %v2273, 4
        %v2276 = vrot.slane %v1807, 5
        %v2277 = vsel %vm745, %v2275, %v2276
        %v2278 = vrot.slane %v2208, 5
        %v2279 = vrot.slane %v2278, 4
        %v2280 = vrot.slane %v1778, 5
        %v2281 = vsel %vm745, %v2279, %v2280
        %v2282 = vrot.slane %v2280, 4
        %v2283 = vrot.slane %v1808, 5
        %v2284 = vsel %vm745, %v2282, %v2283
        %v2285 = vrot.slane %v2209, 5
        %v2286 = vrot.slane %v2285, 4
        %v2287 = vrot.slane %v1780, 5
        %v2288 = vsel %vm745, %v2286, %v2287
        %v2289 = vrot.slane %v2287, 4
        %v2290 = vrot.slane %v1809, 5
        %v2291 = vsel %vm745, %v2289, %v2290
        %v2292 = vrot.slane %v2210, 5
        %v2293 = vrot.slane %v2292, 4
        %v2294 = vrot.slane %v1782, 5
        %v2295 = vsel %vm745, %v2293, %v2294
        %v2296 = vrot.slane %v2294, 4
        %v2297 = vrot.slane %v1810, 5
        %v2298 = vsel %vm745, %v2296, %v2297
        %v2299 = vrot.slane %v2211, 5
        %v2300 = vrot.slane %v2299, 4
        %v2301 = vrot.slane %v1784, 5
        %v2302 = vsel %vm745, %v2300, %v2301
        %v2303 = vrot.slane %v2301, 4
        %v2304 = vrot.slane %v1811, 5
        %v2305 = vsel %vm745, %v2303, %v2304
        %v2306 = vrot.slane %v2212, 5
        %v2307 = vrot.slane %v2306, 4
        %v2308 = vrot.slane %v1786, 5
        %v2309 = vsel %vm745, %v2307, %v2308
        %v2310 = vrot.slane %v2308, 4
        %v2311 = vrot.slane %v1812, 5
        %v2312 = vsel %vm745, %v2310, %v2311
        %v2313 = vrot.slane %v2213, 5
        %v2314 = vrot.slane %v2313, 4
        %v2315 = vrot.slane %v1788, 5
        %v2316 = vsel %vm745, %v2314, %v2315
        %v2317 = vrot.slane %v2315, 4
        %v2318 = vrot.slane %v1813, 5
        %v2319 = vsel %vm745, %v2317, %v2318
        %v2320 = vrot.slane %v2214, 5
        %v2321 = vrot.slane %v2320, 4
        %v2322 = vrot.slane %v1790, 5
        %v2323 = vsel %vm745, %v2321, %v2322
        %v2324 = vrot.slane %v2322, 4
        %v2325 = vrot.slane %v1814, 5
        %v2326 = vsel %vm745, %v2324, %v2325
        %v2327 = vrot.slane %v2215, 5
        %v2328 = vrot.slane %v2327, 4
        %v2329 = vrot.slane %v1792, 5
        %v2330 = vsel %vm745, %v2328, %v2329
        %v2331 = vrot.slane %v2329, 4
        %v2332 = vrot.slane %v1815, 5
        %v2333 = vsel %vm745, %v2331, %v2332
        %v2334 = vrot.slane %v2216, 5
        %v2335 = vrot.slane %v2334, 4
        %v2336 = vrot.slane %v1794, 5
        %v2337 = vsel %vm745, %v2335, %v2336
        %v2338 = vrot.slane %v2336, 4
        %v2339 = vrot.slane %v1816, 5
        %v2340 = vsel %vm745, %v2338, %v2339
        %v2341 = vrot.slane %v2217, 5
        %v2342 = vrot.slane %v2341, 4
        %v2343 = vrot.slane %v1796, 5
        %v2344 = vsel %vm745, %v2342, %v2343
        %v2345 = vrot.slane %v2343, 4
        %v2346 = vrot.slane %v1817, 5
        %v2347 = vsel %vm745, %v2345, %v2346
        %v2348 = vrot.slane %v2218, 5
        %v2349 = vrot.slane %v2348, 4
        %v2350 = vrot.slane %v1798, 5
        %v2351 = vsel %vm745, %v2349, %v2350
        %v2352 = vrot.slane %v2350, 4
        %v2353 = vrot.slane %v1818, 5
        %v2354 = vsel %vm745, %v2352, %v2353
        %v2355 = vrot.slane %v2219, 5
        %v2356 = vrot.slane %v2355, 4
        %v2357 = vrot.slane %v1800, 5
        %v2358 = vsel %vm745, %v2356, %v2357
        %v2359 = vrot.slane %v2357, 4
        %v2360 = vrot.slane %v1819, 5
        %v2361 = vsel %vm745, %v2359, %v2360
        %v2362 = vrot.slane %v2220, 5
        %v2363 = vrot.slane %v2362, 4
        %v2364 = vrot.slane %v1802, 5
        %v2365 = vsel %vm745, %v2363, %v2364
        %v2366 = vrot.slane %v2364, 4
        %v2367 = vrot.slane %v1820, 5
        %v2368 = vsel %vm745, %v2366, %v2367
        %v2369 = vrot.slane %v2221, 5
        %v2370 = vrot.slane %v2369, 4
        %v2371 = vrot.slane %v1804, 5
        %v2372 = vsel %vm745, %v2370, %v2371
        %v2373 = vrot.slane %v2371, 4
        %v2374 = vrot.slane %v1821, 5
        %v2375 = vsel %vm745, %v2373, %v2374
        %v2376 = vrot.slane %v2222, 5
        %v2377 = vrot.slane %v2376, 4
        %v2378 = vrot.slane %v1806, 5
        %v2379 = vsel %vm745, %v2377, %v2378
        %v2380 = vrot.slane %v2378, 4
        %v2381 = vrot.slane %v1822, 5
        %v2382 = vsel %vm745, %v2380, %v2381
        %s2383 = scalar_lea.vmem %s1, 96
        %v2384 = vld [vmem:[%s2383] sm:$0xf]
        %v2385 = vld [vmem:[%s2383 + $0x4] sm:$0xf]
        %v2386 = vld [vmem:[%s2383 + $0x8] sm:$0xf]
        %v2387 = vld [vmem:[%s2383 + $0xc] sm:$0xf]
        %v2388 = vld [vmem:[%s2383 + $0x10] sm:$0xf]
        %v2389 = vld [vmem:[%s2383 + $0x14] sm:$0xf]
        %v2390 = vld [vmem:[%s2383 + $0x18] sm:$0xf]
        %v2391 = vld [vmem:[%s2383 + $0x1c] sm:$0xf]
        %v2408 = vunpack.c.l.b16 %v1775
        %v2409 = vunpack.c.l.b16 %v1776
        %v2410 = vunpack.c.l.b16 %v1777
        %v2411 = vunpack.c.l.b16 %v1778
        %v2412 = vunpack.c.l.b16 %v1779
        %v2413 = vunpack.c.l.b16 %v1780
        %v2414 = vunpack.c.l.b16 %v1781
        %v2415 = vunpack.c.l.b16 %v1782
        %v2416 = vunpack.c.l.b16 %v1783
        %v2417 = vunpack.c.l.b16 %v1784
        %v2418 = vunpack.c.l.b16 %v1785
        %v2419 = vunpack.c.l.b16 %v1786
        %v2420 = vunpack.c.l.b16 %v1787
        %v2421 = vunpack.c.l.b16 %v1788
        %v2422 = vunpack.c.l.b16 %v1789
        %v2423 = vunpack.c.l.b16 %v1790
        %v2424 = vunpack.c.l.b16 %v1791
        %v2425 = vunpack.c.l.b16 %v1792
        %v2426 = vunpack.c.l.b16 %v1793
        %v2427 = vunpack.c.l.b16 %v1794
        %v2428 = vunpack.c.l.b16 %v1795
        %v2429 = vunpack.c.l.b16 %v1796
        %v2430 = vunpack.c.l.b16 %v1797
        %v2431 = vunpack.c.l.b16 %v1798
        %v2432 = vunpack.c.l.b16 %v1799
        %v2433 = vunpack.c.l.b16 %v1800
        %v2434 = vunpack.c.l.b16 %v1801
        %v2435 = vunpack.c.l.b16 %v1802
        %v2436 = vunpack.c.l.b16 %v1803
        %v2437 = vunpack.c.l.b16 %v1804
        %v2438 = vunpack.c.l.b16 %v1805
        %v2439 = vunpack.c.l.b16 %v1806
        %v2440 = vpack.c.b16 %v2409, %v2408
        %v2441 = vpack.c.b16 %v2411, %v2410
        %v2442 = vpack.c.b16 %v2413, %v2412
        %v2443 = vpack.c.b16 %v2415, %v2414
        %v2444 = vpack.c.b16 %v2417, %v2416
        %v2445 = vpack.c.b16 %v2419, %v2418
        %v2446 = vpack.c.b16 %v2421, %v2420
        %v2447 = vpack.c.b16 %v2423, %v2422
        %v2448 = vpack.c.b16 %v2425, %v2424
        %v2449 = vpack.c.b16 %v2427, %v2426
        %v2450 = vpack.c.b16 %v2429, %v2428
        %v2451 = vpack.c.b16 %v2431, %v2430
        %v2452 = vpack.c.b16 %v2433, %v2432
        %v2453 = vpack.c.b16 %v2435, %v2434
        %v2454 = vpack.c.b16 %v2437, %v2436
        %v2455 = vpack.c.b16 %v2439, %v2438
        %v2464 = vunpack.c.l.b16 %v2384
        %v2465 = vunpack.c.l.b16 %v2385
        %v2466 = vunpack.c.l.b16 %v2386
        %v2467 = vunpack.c.l.b16 %v2387
        %v2468 = vunpack.c.l.b16 %v2388
        %v2469 = vunpack.c.l.b16 %v2389
        %v2470 = vunpack.c.l.b16 %v2390
        %v2471 = vunpack.c.l.b16 %v2391
        %v2472 = vpack.c.b16 %v2465, %v2464
        %v2473 = vpack.c.b16 %v2467, %v2466
        %v2474 = vpack.c.b16 %v2469, %v2468
        %v2475 = vpack.c.b16 %v2471, %v2470
        %v2481 = vsel %vm946, %v2440, 0
        %v2484 = vsel %vm946, %v2441, 0
        %v2487 = vsel %vm946, %v2442, 0
        %v2490 = vsel %vm946, %v2443, 0
        %v2493 = vsel %vm946, %v2444, 0
        %v2496 = vsel %vm946, %v2445, 0
        %v2499 = vsel %vm946, %v2446, 0
        %v2502 = vsel %vm946, %v2447, 0
        %v2505 = vsel %vm946, %v2448, 0
        %v2508 = vsel %vm946, %v2449, 0
        %v2511 = vsel %vm946, %v2450, 0
        %v2514 = vsel %vm946, %v2451, 0
        %v2517 = vsel %vm946, %v2452, 0
        %v2520 = vsel %vm946, %v2453, 0
        %v2523 = vsel %vm946, %v2454, 0
        %v2526 = vsel %vm946, %v2455, 0
        %2528 = vmatprep.subr.bf16.mxu0 0
        %2529 = vmatpush1.bf16.msra.mxu0 %v2472
        %2530 = vmatprep.subr.bf16.mxu0 0
        %2531 = vmatpush1.bf16.msra.mxu0 %v2473
        %2532 = vmatprep.subr.bf16.mxu0 0
        %2533 = vmatpush1.bf16.msra.mxu0 %v2474
        %2534 = vmatprep.subr.bf16.mxu0 0
        %2535 = vmatpush1.bf16.msra.mxu0 %v2475
        %2536 = vmatprep.subr.bf16.mxu0 0
        %2537 = vmatpush1.bf16.msra.mxu0 0
        %2538 = vmatprep.subr.bf16.mxu0 0
        %2539 = vmatpush1.bf16.msra.mxu0 0
        %2540 = vmatprep.subr.bf16.mxu0 0
        %2541 = vmatpush1.bf16.msra.mxu0 0
        %2542 = vmatprep.subr.bf16.mxu0 0
        %2543 = vmatpush1.bf16.msra.mxu0 0
        %2544 = vmatprep.subr.bf16.mxu0 0
        %2545 = vmatpush1.bf16.msra.mxu0 0
        %2546 = vmatprep.subr.bf16.mxu0 0
        %2547 = vmatpush1.bf16.msra.mxu0 0
        %2548 = vmatprep.subr.bf16.mxu0 0
        %2549 = vmatpush1.bf16.msra.mxu0 0
        %2550 = vmatprep.subr.bf16.mxu0 0
        %2551 = vmatpush1.bf16.msra.mxu0 0
        %2552 = vmatprep.subr.bf16.mxu0 0
        %2553 = vmatpush1.bf16.msra.mxu0 0
        %2554 = vmatprep.subr.bf16.mxu0 0
        %2555 = vmatpush1.bf16.msra.mxu0 0
        %2556 = vmatprep.subr.bf16.mxu0 0
        %2557 = vmatpush1.bf16.msra.mxu0 0
        %2558 = vmatprep.subr.bf16.mxu0 0
        %2559 = vmatpush1.bf16.msra.mxu0 0
        %2560 = vmatprep.mubr.bf16.mxu0 0
        %2561 = vmatmul.mubr.bf16.gmra.mrb[0].mxu0 %v2481
        %v2562 = vpop.f32.mrb[0].mxu0
        %v2563 = vadd.f32 0.0, %v2562
        %v2564 = vpop.f32.mrb[0].mxu0
        %v2565 = vpop.f32.mrb[0].mxu0
        %v2566 = vadd.f32 0.0, %v2565
        %v2567 = vpop.f32.mrb[0].mxu0
        %2568 = vmatprep.mubr.bf16.mxu0 0
        %2569 = vmatmul.mubr.bf16.gmra.mrb[0].mxu0 %v2484
        %v2570 = vpop.f32.mrb[0].mxu0
        %v2571 = vadd.f32 0.0, %v2570
        %v2572 = vpop.f32.mrb[0].mxu0
        %v2573 = vpop.f32.mrb[0].mxu0
        %v2574 = vadd.f32 0.0, %v2573
        %v2575 = vpop.f32.mrb[0].mxu0
        %2576 = vmatprep.mubr.bf16.mxu0 0
        %2577 = vmatmul.mubr.bf16.gmra.mrb[0].mxu0 %v2487
        %v2578 = vpop.f32.mrb[0].mxu0
        %v2579 = vadd.f32 0.0, %v2578
        %v2580 = vpop.f32.mrb[0].mxu0
        %v2581 = vpop.f32.mrb[0].mxu0
        %v2582 = vadd.f32 0.0, %v2581
        %v2583 = vpop.f32.mrb[0].mxu0
        %2584 = vmatprep.mubr.bf16.mxu0 0
        %2585 = vmatmul.mubr.bf16.gmra.mrb[0].mxu0 %v2490
        %v2586 = vpop.f32.mrb[0].mxu0
        %v2587 = vadd.f32 0.0, %v2586
        %v2588 = vpop.f32.mrb[0].mxu0
        %v2589 = vpop.f32.mrb[0].mxu0
        %v2590 = vadd.f32 0.0, %v2589
        %v2591 = vpop.f32.mrb[0].mxu0
        %2592 = vmatprep.mubr.bf16.mxu0 0
        %2593 = vmatmul.mubr.bf16.gmra.mrb[0].mxu0 %v2493
        %v2594 = vpop.f32.mrb[0].mxu0
        %v2595 = vadd.f32 0.0, %v2594
        %v2596 = vpop.f32.mrb[0].mxu0
        %v2597 = vpop.f32.mrb[0].mxu0
        %v2598 = vadd.f32 0.0, %v2597
        %v2599 = vpop.f32.mrb[0].mxu0
        %2600 = vmatprep.mubr.bf16.mxu0 0
        %2601 = vmatmul.mubr.bf16.gmra.mrb[0].mxu0 %v2496
        %v2602 = vpop.f32.mrb[0].mxu0
        %v2603 = vadd.f32 0.0, %v2602
        %v2604 = vpop.f32.mrb[0].mxu0
        %v2605 = vpop.f32.mrb[0].mxu0
        %v2606 = vadd.f32 0.0, %v2605
        %v2607 = vpop.f32.mrb[0].mxu0
        %2608 = vmatprep.mubr.bf16.mxu0 0
        %2609 = vmatmul.mubr.bf16.gmra.mrb[0].mxu0 %v2499
        %v2610 = vpop.f32.mrb[0].mxu0
        %v2611 = vadd.f32 0.0, %v2610
        %v2612 = vpop.f32.mrb[0].mxu0
        %v2613 = vpop.f32.mrb[0].mxu0
        %v2614 = vadd.f32 0.0, %v2613
        %v2615 = vpop.f32.mrb[0].mxu0
        %2616 = vmatprep.mubr.bf16.mxu0 0
        %2617 = vmatmul.mubr.bf16.gmra.mrb[0].mxu0 %v2502
        %v2618 = vpop.f32.mrb[0].mxu0
        %v2619 = vadd.f32 0.0, %v2618
        %v2620 = vpop.f32.mrb[0].mxu0
        %v2621 = vpop.f32.mrb[0].mxu0
        %v2622 = vadd.f32 0.0, %v2621
        %v2623 = vpop.f32.mrb[0].mxu0
        %2624 = vmatprep.mubr.bf16.mxu0 0
        %2625 = vmatmul.mubr.bf16.gmra.mrb[0].mxu0 %v2505
        %v2626 = vpop.f32.mrb[0].mxu0
        %v2627 = vadd.f32 0.0, %v2626
        %v2628 = vpop.f32.mrb[0].mxu0
        %v2629 = vpop.f32.mrb[0].mxu0
        %v2630 = vadd.f32 0.0, %v2629
        %v2631 = vpop.f32.mrb[0].mxu0
        %2632 = vmatprep.mubr.bf16.mxu0 0
        %2633 = vmatmul.mubr.bf16.gmra.mrb[0].mxu0 %v2508
        %v2634 = vpop.f32.mrb[0].mxu0
        %v2635 = vadd.f32 0.0, %v2634
        %v2636 = vpop.f32.mrb[0].mxu0
        %v2637 = vpop.f32.mrb[0].mxu0
        %v2638 = vadd.f32 0.0, %v2637
        %v2639 = vpop.f32.mrb[0].mxu0
        %2640 = vmatprep.mubr.bf16.mxu0 0
        %2641 = vmatmul.mubr.bf16.gmra.mrb[0].mxu0 %v2511
        %v2642 = vpop.f32.mrb[0].mxu0
        %v2643 = vadd.f32 0.0, %v2642
        %v2644 = vpop.f32.mrb[0].mxu0
        %v2645 = vpop.f32.mrb[0].mxu0
        %v2646 = vadd.f32 0.0, %v2645
        %v2647 = vpop.f32.mrb[0].mxu0
        %2648 = vmatprep.mubr.bf16.mxu0 0
        %2649 = vmatmul.mubr.bf16.gmra.mrb[0].mxu0 %v2514
        %v2650 = vpop.f32.mrb[0].mxu0
        %v2651 = vadd.f32 0.0, %v2650
        %v2652 = vpop.f32.mrb[0].mxu0
        %v2653 = vpop.f32.mrb[0].mxu0
        %v2654 = vadd.f32 0.0, %v2653
        %v2655 = vpop.f32.mrb[0].mxu0
        %2656 = vmatprep.mubr.bf16.mxu0 0
        %2657 = vmatmul.mubr.bf16.gmra.mrb[0].mxu0 %v2517
        %v2658 = vpop.f32.mrb[0].mxu0
        %v2659 = vadd.f32 0.0, %v2658
        %v2660 = vpop.f32.mrb[0].mxu0
        %v2661 = vpop.f32.mrb[0].mxu0
        %v2662 = vadd.f32 0.0, %v2661
        %v2663 = vpop.f32.mrb[0].mxu0
        %2664 = vmatprep.mubr.bf16.mxu0 0
        %2665 = vmatmul.mubr.bf16.gmra.mrb[0].mxu0 %v2520
        %v2666 = vpop.f32.mrb[0].mxu0
        %v2667 = vadd.f32 0.0, %v2666
        %v2668 = vpop.f32.mrb[0].mxu0
        %v2669 = vpop.f32.mrb[0].mxu0
        %v2670 = vadd.f32 0.0, %v2669
        %v2671 = vpop.f32.mrb[0].mxu0
        %2672 = vmatprep.mubr.bf16.mxu0 0
        %2673 = vmatmul.mubr.bf16.gmra.mrb[0].mxu0 %v2523
        %v2674 = vpop.f32.mrb[0].mxu0
        %v2675 = vadd.f32 0.0, %v2674
        %v2676 = vpop.f32.mrb[0].mxu0
        %v2677 = vpop.f32.mrb[0].mxu0
        %v2678 = vadd.f32 0.0, %v2677
        %v2679 = vpop.f32.mrb[0].mxu0
        %2680 = vmatprep.mubr.bf16.mxu0 0
        %2681 = vmatmul.mubr.bf16.gmra.mrb[0].mxu0 %v2526
        %v2682 = vpop.f32.mrb[0].mxu0
        %v2683 = vadd.f32 0.0, %v2682
        %v2684 = vpop.f32.mrb[0].mxu0
        %v2685 = vpop.f32.mrb[0].mxu0
        %v2686 = vadd.f32 0.0, %v2685
        %v2687 = vpop.f32.mrb[0].mxu0
        %2688 = vdwg.mxu0
        %v2689 = vadd.f32 %v1742, %v2563
        %v2690 = vadd.f32 %v1743, %v2566
        %v2691 = vadd.f32 %v1744, %v2571
        %v2692 = vadd.f32 %v1745, %v2574
        %v2693 = vadd.f32 %v1746, %v2579
        %v2694 = vadd.f32 %v1747, %v2582
        %v2695 = vadd.f32 %v1748, %v2587
        %v2696 = vadd.f32 %v1749, %v2590
        %v2697 = vadd.f32 %v1750, %v2595
        %v2698 = vadd.f32 %v1751, %v2598
        %v2699 = vadd.f32 %v1752, %v2603
        %v2700 = vadd.f32 %v1753, %v2606
        %v2701 = vadd.f32 %v1754, %v2611
        %v2702 = vadd.f32 %v1755, %v2614
        %v2703 = vadd.f32 %v1756, %v2619
        %v2704 = vadd.f32 %v1757, %v2622
        %v2705 = vadd.f32 %v1758, %v2627
        %v2706 = vadd.f32 %v1759, %v2630
        %v2707 = vadd.f32 %v1760, %v2635
        %v2708 = vadd.f32 %v1761, %v2638
        %v2709 = vadd.f32 %v1762, %v2643
        %v2710 = vadd.f32 %v1763, %v2646
        %v2711 = vadd.f32 %v1764, %v2651
        %v2712 = vadd.f32 %v1765, %v2654
        %v2713 = vadd.f32 %v1766, %v2659
        %v2714 = vadd.f32 %v1767, %v2662
        %v2715 = vadd.f32 %v1768, %v2667
        %v2716 = vadd.f32 %v1769, %v2670
        %v2717 = vadd.f32 %v1770, %v2675
        %v2718 = vadd.f32 %v1771, %v2678
        %v2719 = vadd.f32 %v1772, %v2683
        %v2720 = vadd.f32 %v1773, %v2686
        %v2721 = vld [vmem:[%s2383 + $0x20] sm:$0xf]
        %v2722 = vld [vmem:[%s2383 + $0x24] sm:$0xf]
        %v2723 = vld [vmem:[%s2383 + $0x28] sm:$0xf]
        %v2724 = vld [vmem:[%s2383 + $0x2c] sm:$0xf]
        %v2725 = vld [vmem:[%s2383 + $0x30] sm:$0xf]
        %v2726 = vld [vmem:[%s2383 + $0x34] sm:$0xf]
        %v2727 = vld [vmem:[%s2383 + $0x38] sm:$0xf]
        %v2728 = vld [vmem:[%s2383 + $0x3c] sm:$0xf]
        %v2729 = vunpack.c.l.b16 %v1836
        %v2730 = vunpack.c.l.b16 %v1846
        %v2731 = vunpack.c.l.b16 %v1860
        %v2732 = vunpack.c.l.b16 %v1870
        %v2733 = vunpack.c.l.b16 %v1884
        %v2734 = vunpack.c.l.b16 %v1894
        %v2735 = vunpack.c.l.b16 %v1908
        %v2736 = vunpack.c.l.b16 %v1918
        %v2737 = vunpack.c.l.b16 %v1932
        %v2738 = vunpack.c.l.b16 %v1942
        %v2739 = vunpack.c.l.b16 %v1956
        %v2740 = vunpack.c.l.b16 %v1966
        %v2741 = vunpack.c.l.b16 %v1980
        %v2742 = vunpack.c.l.b16 %v1990
        %v2743 = vunpack.c.l.b16 %v2004
        %v2744 = vunpack.c.l.b16 %v2014
        %v2745 = vunpack.c.l.b16 %v2028
        %v2746 = vunpack.c.l.b16 %v2038
        %v2747 = vunpack.c.l.b16 %v2052
        %v2748 = vunpack.c.l.b16 %v2062
        %v2749 = vunpack.c.l.b16 %v2076
        %v2750 = vunpack.c.l.b16 %v2086
        %v2751 = vunpack.c.l.b16 %v2100
        %v2752 = vunpack.c.l.b16 %v2110
        %v2753 = vunpack.c.l.b16 %v2124
        %v2754 = vunpack.c.l.b16 %v2134
        %v2755 = vunpack.c.l.b16 %v2148
        %v2756 = vunpack.c.l.b16 %v2158
        %v2757 = vunpack.c.l.b16 %v2172
        %v2758 = vunpack.c.l.b16 %v2182
        %v2759 = vunpack.c.l.b16 %v2196
        %v2760 = vunpack.c.l.b16 %v2206
        %v2761 = vpack.c.b16 %v2730, %v2729
        %v2762 = vpack.c.b16 %v2732, %v2731
        %v2763 = vpack.c.b16 %v2734, %v2733
        %v2764 = vpack.c.b16 %v2736, %v2735
        %v2765 = vpack.c.b16 %v2738, %v2737
        %v2766 = vpack.c.b16 %v2740, %v2739
        %v2767 = vpack.c.b16 %v2742, %v2741
        %v2768 = vpack.c.b16 %v2744, %v2743
        %v2769 = vpack.c.b16 %v2746, %v2745
        %v2770 = vpack.c.b16 %v2748, %v2747
        %v2771 = vpack.c.b16 %v2750, %v2749
        %v2772 = vpack.c.b16 %v2752, %v2751
        %v2773 = vpack.c.b16 %v2754, %v2753
        %v2774 = vpack.c.b16 %v2756, %v2755
        %v2775 = vpack.c.b16 %v2758, %v2757
        %v2776 = vpack.c.b16 %v2760, %v2759
        %v2785 = vunpack.c.l.b16 %v2721
        %v2786 = vunpack.c.l.b16 %v2722
        %v2787 = vunpack.c.l.b16 %v2723
        %v2788 = vunpack.c.l.b16 %v2724
        %v2789 = vunpack.c.l.b16 %v2725
        %v2790 = vunpack.c.l.b16 %v2726
        %v2791 = vunpack.c.l.b16 %v2727
        %v2792 = vunpack.c.l.b16 %v2728
        %v2793 = vpack.c.b16 %v2786, %v2785
        %v2794 = vpack.c.b16 %v2788, %v2787
        %v2795 = vpack.c.b16 %v2790, %v2789
        %v2796 = vpack.c.b16 %v2792, %v2791
        %v2802 = vsel %vm946, %v2761, 0
        %v2805 = vsel %vm946, %v2762, 0
        %v2808 = vsel %vm946, %v2763, 0
        %v2811 = vsel %vm946, %v2764, 0
        %v2814 = vsel %vm946, %v2765, 0
        %v2817 = vsel %vm946, %v2766, 0
        %v2820 = vsel %vm946, %v2767, 0
        %v2823 = vsel %vm946, %v2768, 0
        %v2826 = vsel %vm946, %v2769, 0
        %v2829 = vsel %vm946, %v2770, 0
        %v2832 = vsel %vm946, %v2771, 0
        %v2835 = vsel %vm946, %v2772, 0
        %v2838 = vsel %vm946, %v2773, 0
        %v2841 = vsel %vm946, %v2774, 0
        %v2844 = vsel %vm946, %v2775, 0
        %v2847 = vsel %vm946, %v2776, 0
        %2849 = vmatprep.subr.bf16.mxu0 0
        %2850 = vmatpush1.bf16.msra.mxu0 %v2793
        %2851 = vmatprep.subr.bf16.mxu0 0
        %2852 = vmatpush1.bf16.msra.mxu0 %v2794
        %2853 = vmatprep.subr.bf16.mxu0 0
        %2854 = vmatpush1.bf16.msra.mxu0 %v2795
        %2855 = vmatprep.subr.bf16.mxu0 0
        %2856 = vmatpush1.bf16.msra.mxu0 %v2796
        %2857 = vmatprep.subr.bf16.mxu0 0
        %2858 = vmatpush1.bf16.msra.mxu0 0
        %2859 = vmatprep.subr.bf16.mxu0 0
        %2860 = vmatpush1.bf16.msra.mxu0 0
        %2861 = vmatprep.subr.bf16.mxu0 0
        %2862 = vmatpush1.bf16.msra.mxu0 0
        %2863 = vmatprep.subr.bf16.mxu0 0
        %2864 = vmatpush1.bf16.msra.mxu0 0
        %2865 = vmatprep.subr.bf16.mxu0 0
        %2866 = vmatpush1.bf16.msra.mxu0 0
        %2867 = vmatprep.subr.bf16.mxu0 0
        %2868 = vmatpush1.bf16.msra.mxu0 0
        %2869 = vmatprep.subr.bf16.mxu0 0
        %2870 = vmatpush1.bf16.msra.mxu0 0
        %2871 = vmatprep.subr.bf16.mxu0 0
        %2872 = vmatpush1.bf16.msra.mxu0 0
        %2873 = vmatprep.subr.bf16.mxu0 0
        %2874 = vmatpush1.bf16.msra.mxu0 0
        %2875 = vmatprep.subr.bf16.mxu0 0
        %2876 = vmatpush1.bf16.msra.mxu0 0
        %2877 = vmatprep.subr.bf16.mxu0 0
        %2878 = vmatpush1.bf16.msra.mxu0 0
        %2879 = vmatprep.subr.bf16.mxu0 0
        %2880 = vmatpush1.bf16.msra.mxu0 0
        %2881 = vmatprep.mubr.bf16.mxu0 0
        %2882 = vmatmul.mubr.bf16.gmra.mrb[0].mxu0 %v2802
        %v2883 = vpop.f32.mrb[0].mxu0
        %v2884 = vadd.f32 0.0, %v2883
        %v2885 = vpop.f32.mrb[0].mxu0
        %v2886 = vpop.f32.mrb[0].mxu0
        %v2887 = vadd.f32 0.0, %v2886
        %v2888 = vpop.f32.mrb[0].mxu0
        %2889 = vmatprep.mubr.bf16.mxu0 0
        %2890 = vmatmul.mubr.bf16.gmra.mrb[0].mxu0 %v2805
        %v2891 = vpop.f32.mrb[0].mxu0
        %v2892 = vadd.f32 0.0, %v2891
        %v2893 = vpop.f32.mrb[0].mxu0
        %v2894 = vpop.f32.mrb[0].mxu0
        %v2895 = vadd.f32 0.0, %v2894
        %v2896 = vpop.f32.mrb[0].mxu0
        %2897 = vmatprep.mubr.bf16.mxu0 0
        %2898 = vmatmul.mubr.bf16.gmra.mrb[0].mxu0 %v2808
        %v2899 = vpop.f32.mrb[0].mxu0
        %v2900 = vadd.f32 0.0, %v2899
        %v2901 = vpop.f32.mrb[0].mxu0
        %v2902 = vpop.f32.mrb[0].mxu0
        %v2903 = vadd.f32 0.0, %v2902
        %v2904 = vpop.f32.mrb[0].mxu0
        %2905 = vmatprep.mubr.bf16.mxu0 0
        %2906 = vmatmul.mubr.bf16.gmra.mrb[0].mxu0 %v2811
        %v2907 = vpop.f32.mrb[0].mxu0
        %v2908 = vadd.f32 0.0, %v2907
        %v2909 = vpop.f32.mrb[0].mxu0
        %v2910 = vpop.f32.mrb[0].mxu0
        %v2911 = vadd.f32 0.0, %v2910
        %v2912 = vpop.f32.mrb[0].mxu0
        %2913 = vmatprep.mubr.bf16.mxu0 0
        %2914 = vmatmul.mubr.bf16.gmra.mrb[0].mxu0 %v2814
        %v2915 = vpop.f32.mrb[0].mxu0
        %v2916 = vadd.f32 0.0, %v2915
        %v2917 = vpop.f32.mrb[0].mxu0
        %v2918 = vpop.f32.mrb[0].mxu0
        %v2919 = vadd.f32 0.0, %v2918
        %v2920 = vpop.f32.mrb[0].mxu0
        %2921 = vmatprep.mubr.bf16.mxu0 0
        %2922 = vmatmul.mubr.bf16.gmra.mrb[0].mxu0 %v2817
        %v2923 = vpop.f32.mrb[0].mxu0
        %v2924 = vadd.f32 0.0, %v2923
        %v2925 = vpop.f32.mrb[0].mxu0
        %v2926 = vpop.f32.mrb[0].mxu0
        %v2927 = vadd.f32 0.0, %v2926
        %v2928 = vpop.f32.mrb[0].mxu0
        %2929 = vmatprep.mubr.bf16.mxu0 0
        %2930 = vmatmul.mubr.bf16.gmra.mrb[0].mxu0 %v2820
        %v2931 = vpop.f32.mrb[0].mxu0
        %v2932 = vadd.f32 0.0, %v2931
        %v2933 = vpop.f32.mrb[0].mxu0
        %v2934 = vpop.f32.mrb[0].mxu0
        %v2935 = vadd.f32 0.0, %v2934
        %v2936 = vpop.f32.mrb[0].mxu0
        %2937 = vmatprep.mubr.bf16.mxu0 0
        %2938 = vmatmul.mubr.bf16.gmra.mrb[0].mxu0 %v2823
        %v2939 = vpop.f32.mrb[0].mxu0
        %v2940 = vadd.f32 0.0, %v2939
        %v2941 = vpop.f32.mrb[0].mxu0
        %v2942 = vpop.f32.mrb[0].mxu0
        %v2943 = vadd.f32 0.0, %v2942
        %v2944 = vpop.f32.mrb[0].mxu0
        %2945 = vmatprep.mubr.bf16.mxu0 0
        %2946 = vmatmul.mubr.bf16.gmra.mrb[0].mxu0 %v2826
        %v2947 = vpop.f32.mrb[0].mxu0
        %v2948 = vadd.f32 0.0, %v2947
        %v2949 = vpop.f32.mrb[0].mxu0
        %v2950 = vpop.f32.mrb[0].mxu0
        %v2951 = vadd.f32 0.0, %v2950
        %v2952 = vpop.f32.mrb[0].mxu0
        %2953 = vmatprep.mubr.bf16.mxu0 0
        %2954 = vmatmul.mubr.bf16.gmra.mrb[0].mxu0 %v2829
        %v2955 = vpop.f32.mrb[0].mxu0
        %v2956 = vadd.f32 0.0, %v2955
        %v2957 = vpop.f32.mrb[0].mxu0
        %v2958 = vpop.f32.mrb[0].mxu0
        %v2959 = vadd.f32 0.0, %v2958
        %v2960 = vpop.f32.mrb[0].mxu0
        %2961 = vmatprep.mubr.bf16.mxu0 0
        %2962 = vmatmul.mubr.bf16.gmra.mrb[0].mxu0 %v2832
        %v2963 = vpop.f32.mrb[0].mxu0
        %v2964 = vadd.f32 0.0, %v2963
        %v2965 = vpop.f32.mrb[0].mxu0
        %v2966 = vpop.f32.mrb[0].mxu0
        %v2967 = vadd.f32 0.0, %v2966
        %v2968 = vpop.f32.mrb[0].mxu0
        %2969 = vmatprep.mubr.bf16.mxu0 0
        %2970 = vmatmul.mubr.bf16.gmra.mrb[0].mxu0 %v2835
        %v2971 = vpop.f32.mrb[0].mxu0
        %v2972 = vadd.f32 0.0, %v2971
        %v2973 = vpop.f32.mrb[0].mxu0
        %v2974 = vpop.f32.mrb[0].mxu0
        %v2975 = vadd.f32 0.0, %v2974
        %v2976 = vpop.f32.mrb[0].mxu0
        %2977 = vmatprep.mubr.bf16.mxu0 0
        %2978 = vmatmul.mubr.bf16.gmra.mrb[0].mxu0 %v2838
        %v2979 = vpop.f32.mrb[0].mxu0
        %v2980 = vadd.f32 0.0, %v2979
        %v2981 = vpop.f32.mrb[0].mxu0
        %v2982 = vpop.f32.mrb[0].mxu0
        %v2983 = vadd.f32 0.0, %v2982
        %v2984 = vpop.f32.mrb[0].mxu0
        %2985 = vmatprep.mubr.bf16.mxu0 0
        %2986 = vmatmul.mubr.bf16.gmra.mrb[0].mxu0 %v2841
        %v2987 = vpop.f32.mrb[0].mxu0
        %v2988 = vadd.f32 0.0, %v2987
        %v2989 = vpop.f32.mrb[0].mxu0
        %v2990 = vpop.f32.mrb[0].mxu0
        %v2991 = vadd.f32 0.0, %v2990
        %v2992 = vpop.f32.mrb[0].mxu0
        %2993 = vmatprep.mubr.bf16.mxu0 0
        %2994 = vmatmul.mubr.bf16.gmra.mrb[0].mxu0 %v2844
        %v2995 = vpop.f32.mrb[0].mxu0
        %v2996 = vadd.f32 0.0, %v2995
        %v2997 = vpop.f32.mrb[0].mxu0
        %v2998 = vpop.f32.mrb[0].mxu0
        %v2999 = vadd.f32 0.0, %v2998
        %v3000 = vpop.f32.mrb[0].mxu0
        %3001 = vmatprep.mubr.bf16.mxu0 0
        %3002 = vmatmul.mubr.bf16.gmra.mrb[0].mxu0 %v2847
        %v3003 = vpop.f32.mrb[0].mxu0
        %v3004 = vadd.f32 0.0, %v3003
        %v3005 = vpop.f32.mrb[0].mxu0
        %v3006 = vpop.f32.mrb[0].mxu0
        %v3007 = vadd.f32 0.0, %v3006
        %v3008 = vpop.f32.mrb[0].mxu0
        %3009 = vdwg.mxu0
        %v3010 = vadd.f32 %v2689, %v2884
        %v3011 = vadd.f32 %v2690, %v2887
        %v3012 = vadd.f32 %v2691, %v2892
        %v3013 = vadd.f32 %v2692, %v2895
        %v3014 = vadd.f32 %v2693, %v2900
        %v3015 = vadd.f32 %v2694, %v2903
        %v3016 = vadd.f32 %v2695, %v2908
        %v3017 = vadd.f32 %v2696, %v2911
        %v3018 = vadd.f32 %v2697, %v2916
        %v3019 = vadd.f32 %v2698, %v2919
        %v3020 = vadd.f32 %v2699, %v2924
        %v3021 = vadd.f32 %v2700, %v2927
        %v3022 = vadd.f32 %v2701, %v2932
        %v3023 = vadd.f32 %v2702, %v2935
        %v3024 = vadd.f32 %v2703, %v2940
        %v3025 = vadd.f32 %v2704, %v2943
        %v3026 = vadd.f32 %v2705, %v2948
        %v3027 = vadd.f32 %v2706, %v2951
        %v3028 = vadd.f32 %v2707, %v2956
        %v3029 = vadd.f32 %v2708, %v2959
        %v3030 = vadd.f32 %v2709, %v2964
        %v3031 = vadd.f32 %v2710, %v2967
        %v3032 = vadd.f32 %v2711, %v2972
        %v3033 = vadd.f32 %v2712, %v2975
        %v3034 = vadd.f32 %v2713, %v2980
        %v3035 = vadd.f32 %v2714, %v2983
        %v3036 = vadd.f32 %v2715, %v2988
        %v3037 = vadd.f32 %v2716, %v2991
        %v3038 = vadd.f32 %v2717, %v2996
        %v3039 = vadd.f32 %v2718, %v2999
        %v3040 = vadd.f32 %v2719, %v3004
        %v3041 = vadd.f32 %v2720, %v3007
        %v3042 = vld [vmem:[%s2383 + $0x40] sm:$0xf]
        %v3043 = vld [vmem:[%s2383 + $0x44] sm:$0xf]
        %v3044 = vld [vmem:[%s2383 + $0x48] sm:$0xf]
        %v3045 = vld [vmem:[%s2383 + $0x4c] sm:$0xf]
        %v3046 = vld [vmem:[%s2383 + $0x50] sm:$0xf]
        %v3047 = vld [vmem:[%s2383 + $0x54] sm:$0xf]
        %v3048 = vld [vmem:[%s2383 + $0x58] sm:$0xf]
        %v3049 = vld [vmem:[%s2383 + $0x5c] sm:$0xf]
        %v3050 = vunpack.c.l.b16 %v2274
        %v3051 = vunpack.c.l.b16 %v2277
        %v3052 = vunpack.c.l.b16 %v2281
        %v3053 = vunpack.c.l.b16 %v2284
        %v3054 = vunpack.c.l.b16 %v2288
        %v3055 = vunpack.c.l.b16 %v2291
        %v3056 = vunpack.c.l.b16 %v2295
        %v3057 = vunpack.c.l.b16 %v2298
        %v3058 = vunpack.c.l.b16 %v2302
        %v3059 = vunpack.c.l.b16 %v2305
        %v3060 = vunpack.c.l.b16 %v2309
        %v3061 = vunpack.c.l.b16 %v2312
        %v3062 = vunpack.c.l.b16 %v2316
        %v3063 = vunpack.c.l.b16 %v2319
        %v3064 = vunpack.c.l.b16 %v2323
        %v3065 = vunpack.c.l.b16 %v2326
        %v3066 = vunpack.c.l.b16 %v2330
        %v3067 = vunpack.c.l.b16 %v2333
        %v3068 = vunpack.c.l.b16 %v2337
        %v3069 = vunpack.c.l.b16 %v2340
        %v3070 = vunpack.c.l.b16 %v2344
        %v3071 = vunpack.c.l.b16 %v2347
        %v3072 = vunpack.c.l.b16 %v2351
        %v3073 = vunpack.c.l.b16 %v2354
        %v3074 = vunpack.c.l.b16 %v2358
        %v3075 = vunpack.c.l.b16 %v2361
        %v3076 = vunpack.c.l.b16 %v2365
        %v3077 = vunpack.c.l.b16 %v2368
        %v3078 = vunpack.c.l.b16 %v2372
        %v3079 = vunpack.c.l.b16 %v2375
        %v3080 = vunpack.c.l.b16 %v2379
        %v3081 = vunpack.c.l.b16 %v2382
        %v3082 = vpack.c.b16 %v3051, %v3050
        %v3083 = vpack.c.b16 %v3053, %v3052
        %v3084 = vpack.c.b16 %v3055, %v3054
        %v3085 = vpack.c.b16 %v3057, %v3056
        %v3086 = vpack.c.b16 %v3059, %v3058
        %v3087 = vpack.c.b16 %v3061, %v3060
        %v3088 = vpack.c.b16 %v3063, %v3062
        %v3089 = vpack.c.b16 %v3065, %v3064
        %v3090 = vpack.c.b16 %v3067, %v3066
        %v3091 = vpack.c.b16 %v3069, %v3068
        %v3092 = vpack.c.b16 %v3071, %v3070
        %v3093 = vpack.c.b16 %v3073, %v3072
        %v3094 = vpack.c.b16 %v3075, %v3074
        %v3095 = vpack.c.b16 %v3077, %v3076
        %v3096 = vpack.c.b16 %v3079, %v3078
        %v3097 = vpack.c.b16 %v3081, %v3080
        %v3106 = vunpack.c.l.b16 %v3042
        %v3107 = vunpack.c.l.b16 %v3043
        %v3108 = vunpack.c.l.b16 %v3044
        %v3109 = vunpack.c.l.b16 %v3045
        %v3110 = vunpack.c.l.b16 %v3046
        %v3111 = vunpack.c.l.b16 %v3047
        %v3112 = vunpack.c.l.b16 %v3048
        %v3113 = vunpack.c.l.b16 %v3049
        %v3114 = vpack.c.b16 %v3107, %v3106
        %v3115 = vpack.c.b16 %v3109, %v3108
        %v3116 = vpack.c.b16 %v3111, %v3110
        %v3117 = vpack.c.b16 %v3113, %v3112
        %v3123 = vsel %vm946, %v3082, 0
        %v3126 = vsel %vm946, %v3083, 0
        %v3129 = vsel %vm946, %v3084, 0
        %v3132 = vsel %vm946, %v3085, 0
        %v3135 = vsel %vm946, %v3086, 0
        %v3138 = vsel %vm946, %v3087, 0
        %v3141 = vsel %vm946, %v3088, 0
        %v3144 = vsel %vm946, %v3089, 0
        %v3147 = vsel %vm946, %v3090, 0
        %v3150 = vsel %vm946, %v3091, 0
        %v3153 = vsel %vm946, %v3092, 0
        %v3156 = vsel %vm946, %v3093, 0
        %v3159 = vsel %vm946, %v3094, 0
        %v3162 = vsel %vm946, %v3095, 0
        %v3165 = vsel %vm946, %v3096, 0
        %v3168 = vsel %vm946, %v3097, 0
        %3170 = vmatprep.subr.bf16.mxu0 0
        %3171 = vmatpush1.bf16.msra.mxu0 %v3114
        %3172 = vmatprep.subr.bf16.mxu0 0
        %3173 = vmatpush1.bf16.msra.mxu0 %v3115
        %3174 = vmatprep.subr.bf16.mxu0 0
        %3175 = vmatpush1.bf16.msra.mxu0 %v3116
        %3176 = vmatprep.subr.bf16.mxu0 0
        %3177 = vmatpush1.bf16.msra.mxu0 %v3117
        %3178 = vmatprep.subr.bf16.mxu0 0
        %3179 = vmatpush1.bf16.msra.mxu0 0
        %3180 = vmatprep.subr.bf16.mxu0 0
        %3181 = vmatpush1.bf16.msra.mxu0 0
        %3182 = vmatprep.subr.bf16.mxu0 0
        %3183 = vmatpush1.bf16.msra.mxu0 0
        %3184 = vmatprep.subr.bf16.mxu0 0
        %3185 = vmatpush1.bf16.msra.mxu0 0
        %3186 = vmatprep.subr.bf16.mxu0 0
        %3187 = vmatpush1.bf16.msra.mxu0 0
        %3188 = vmatprep.subr.bf16.mxu0 0
        %3189 = vmatpush1.bf16.msra.mxu0 0
        %3190 = vmatprep.subr.bf16.mxu0 0
        %3191 = vmatpush1.bf16.msra.mxu0 0
        %3192 = vmatprep.subr.bf16.mxu0 0
        %3193 = vmatpush1.bf16.msra.mxu0 0
        %3194 = vmatprep.subr.bf16.mxu0 0
        %3195 = vmatpush1.bf16.msra.mxu0 0
        %3196 = vmatprep.subr.bf16.mxu0 0
        %3197 = vmatpush1.bf16.msra.mxu0 0
        %3198 = vmatprep.subr.bf16.mxu0 0
        %3199 = vmatpush1.bf16.msra.mxu0 0
        %3200 = vmatprep.subr.bf16.mxu0 0
        %3201 = vmatpush1.bf16.msra.mxu0 0
        %3202 = vmatprep.mubr.bf16.mxu0 0
        %3203 = vmatmul.mubr.bf16.gmra.mrb[0].mxu0 %v3123
        %v3204 = vpop.f32.mrb[0].mxu0
        %v3205 = vadd.f32 0.0, %v3204
        %v3206 = vpop.f32.mrb[0].mxu0
        %v3207 = vpop.f32.mrb[0].mxu0
        %v3208 = vadd.f32 0.0, %v3207
        %v3209 = vpop.f32.mrb[0].mxu0
        %3210 = vmatprep.mubr.bf16.mxu0 0
        %3211 = vmatmul.mubr.bf16.gmra.mrb[0].mxu0 %v3126
        %v3212 = vpop.f32.mrb[0].mxu0
        %v3213 = vadd.f32 0.0, %v3212
        %v3214 = vpop.f32.mrb[0].mxu0
        %v3215 = vpop.f32.mrb[0].mxu0
        %v3216 = vadd.f32 0.0, %v3215
        %v3217 = vpop.f32.mrb[0].mxu0
        %3218 = vmatprep.mubr.bf16.mxu0 0
        %3219 = vmatmul.mubr.bf16.gmra.mrb[0].mxu0 %v3129
        %v3220 = vpop.f32.mrb[0].mxu0
        %v3221 = vadd.f32 0.0, %v3220
        %v3222 = vpop.f32.mrb[0].mxu0
        %v3223 = vpop.f32.mrb[0].mxu0
        %v3224 = vadd.f32 0.0, %v3223
        %v3225 = vpop.f32.mrb[0].mxu0
        %3226 = vmatprep.mubr.bf16.mxu0 0
        %3227 = vmatmul.mubr.bf16.gmra.mrb[0].mxu0 %v3132
        %v3228 = vpop.f32.mrb[0].mxu0
        %v3229 = vadd.f32 0.0, %v3228
        %v3230 = vpop.f32.mrb[0].mxu0
        %v3231 = vpop.f32.mrb[0].mxu0
        %v3232 = vadd.f32 0.0, %v3231
        %v3233 = vpop.f32.mrb[0].mxu0
        %3234 = vmatprep.mubr.bf16.mxu0 0
        %3235 = vmatmul.mubr.bf16.gmra.mrb[0].mxu0 %v3135
        %v3236 = vpop.f32.mrb[0].mxu0
        %v3237 = vadd.f32 0.0, %v3236
        %v3238 = vpop.f32.mrb[0].mxu0
        %v3239 = vpop.f32.mrb[0].mxu0
        %v3240 = vadd.f32 0.0, %v3239
        %v3241 = vpop.f32.mrb[0].mxu0
        %3242 = vmatprep.mubr.bf16.mxu0 0
        %3243 = vmatmul.mubr.bf16.gmra.mrb[0].mxu0 %v3138
        %v3244 = vpop.f32.mrb[0].mxu0
        %v3245 = vadd.f32 0.0, %v3244
        %v3246 = vpop.f32.mrb[0].mxu0
        %v3247 = vpop.f32.mrb[0].mxu0
        %v3248 = vadd.f32 0.0, %v3247
        %v3249 = vpop.f32.mrb[0].mxu0
        %3250 = vmatprep.mubr.bf16.mxu0 0
        %3251 = vmatmul.mubr.bf16.gmra.mrb[0].mxu0 %v3141
        %v3252 = vpop.f32.mrb[0].mxu0
        %v3253 = vadd.f32 0.0, %v3252
        %v3254 = vpop.f32.mrb[0].mxu0
        %v3255 = vpop.f32.mrb[0].mxu0
        %v3256 = vadd.f32 0.0, %v3255
        %v3257 = vpop.f32.mrb[0].mxu0
        %3258 = vmatprep.mubr.bf16.mxu0 0
        %3259 = vmatmul.mubr.bf16.gmra.mrb[0].mxu0 %v3144
        %v3260 = vpop.f32.mrb[0].mxu0
        %v3261 = vadd.f32 0.0, %v3260
        %v3262 = vpop.f32.mrb[0].mxu0
        %v3263 = vpop.f32.mrb[0].mxu0
        %v3264 = vadd.f32 0.0, %v3263
        %v3265 = vpop.f32.mrb[0].mxu0
        %3266 = vmatprep.mubr.bf16.mxu0 0
        %3267 = vmatmul.mubr.bf16.gmra.mrb[0].mxu0 %v3147
        %v3268 = vpop.f32.mrb[0].mxu0
        %v3269 = vadd.f32 0.0, %v3268
        %v3270 = vpop.f32.mrb[0].mxu0
        %v3271 = vpop.f32.mrb[0].mxu0
        %v3272 = vadd.f32 0.0, %v3271
        %v3273 = vpop.f32.mrb[0].mxu0
        %3274 = vmatprep.mubr.bf16.mxu0 0
        %3275 = vmatmul.mubr.bf16.gmra.mrb[0].mxu0 %v3150
        %v3276 = vpop.f32.mrb[0].mxu0
        %v3277 = vadd.f32 0.0, %v3276
        %v3278 = vpop.f32.mrb[0].mxu0
        %v3279 = vpop.f32.mrb[0].mxu0
        %v3280 = vadd.f32 0.0, %v3279
        %v3281 = vpop.f32.mrb[0].mxu0
        %3282 = vmatprep.mubr.bf16.mxu0 0
        %3283 = vmatmul.mubr.bf16.gmra.mrb[0].mxu0 %v3153
        %v3284 = vpop.f32.mrb[0].mxu0
        %v3285 = vadd.f32 0.0, %v3284
        %v3286 = vpop.f32.mrb[0].mxu0
        %v3287 = vpop.f32.mrb[0].mxu0
        %v3288 = vadd.f32 0.0, %v3287
        %v3289 = vpop.f32.mrb[0].mxu0
        %3290 = vmatprep.mubr.bf16.mxu0 0
        %3291 = vmatmul.mubr.bf16.gmra.mrb[0].mxu0 %v3156
        %v3292 = vpop.f32.mrb[0].mxu0
        %v3293 = vadd.f32 0.0, %v3292
        %v3294 = vpop.f32.mrb[0].mxu0
        %v3295 = vpop.f32.mrb[0].mxu0
        %v3296 = vadd.f32 0.0, %v3295
        %v3297 = vpop.f32.mrb[0].mxu0
        %3298 = vmatprep.mubr.bf16.mxu0 0
        %3299 = vmatmul.mubr.bf16.gmra.mrb[0].mxu0 %v3159
        %v3300 = vpop.f32.mrb[0].mxu0
        %v3301 = vadd.f32 0.0, %v3300
        %v3302 = vpop.f32.mrb[0].mxu0
        %v3303 = vpop.f32.mrb[0].mxu0
        %v3304 = vadd.f32 0.0, %v3303
        %v3305 = vpop.f32.mrb[0].mxu0
        %3306 = vmatprep.mubr.bf16.mxu0 0
        %3307 = vmatmul.mubr.bf16.gmra.mrb[0].mxu0 %v3162
        %v3308 = vpop.f32.mrb[0].mxu0
        %v3309 = vadd.f32 0.0, %v3308
        %v3310 = vpop.f32.mrb[0].mxu0
        %v3311 = vpop.f32.mrb[0].mxu0
        %v3312 = vadd.f32 0.0, %v3311
        %v3313 = vpop.f32.mrb[0].mxu0
        %3314 = vmatprep.mubr.bf16.mxu0 0
        %3315 = vmatmul.mubr.bf16.gmra.mrb[0].mxu0 %v3165
        %v3316 = vpop.f32.mrb[0].mxu0
        %v3317 = vadd.f32 0.0, %v3316
        %v3318 = vpop.f32.mrb[0].mxu0
        %v3319 = vpop.f32.mrb[0].mxu0
        %v3320 = vadd.f32 0.0, %v3319
        %v3321 = vpop.f32.mrb[0].mxu0
        %3322 = vmatprep.mubr.bf16.mxu0 0
        %3323 = vmatmul.mubr.bf16.gmra.mrb[0].mxu0 %v3168
        %v3324 = vpop.f32.mrb[0].mxu0
        %v3325 = vadd.f32 0.0, %v3324
        %v3326 = vpop.f32.mrb[0].mxu0
        %v3327 = vpop.f32.mrb[0].mxu0
        %v3328 = vadd.f32 0.0, %v3327
        %v3329 = vpop.f32.mrb[0].mxu0
        %3330 = vdwg.mxu0
        %v3331 = vadd.f32 %v3010, %v3205
        %v3332 = vadd.f32 %v3011, %v3208
        %v3333 = vadd.f32 %v3012, %v3213
        %v3334 = vadd.f32 %v3013, %v3216
        %v3335 = vadd.f32 %v3014, %v3221
        %v3336 = vadd.f32 %v3015, %v3224
        %v3337 = vadd.f32 %v3016, %v3229
        %v3338 = vadd.f32 %v3017, %v3232
        %v3339 = vadd.f32 %v3018, %v3237
        %v3340 = vadd.f32 %v3019, %v3240
        %v3341 = vadd.f32 %v3020, %v3245
        %v3342 = vadd.f32 %v3021, %v3248
        %v3343 = vadd.f32 %v3022, %v3253
        %v3344 = vadd.f32 %v3023, %v3256
        %v3345 = vadd.f32 %v3024, %v3261
        %v3346 = vadd.f32 %v3025, %v3264
        %v3347 = vadd.f32 %v3026, %v3269
        %v3348 = vadd.f32 %v3027, %v3272
        %v3349 = vadd.f32 %v3028, %v3277
        %v3350 = vadd.f32 %v3029, %v3280
        %v3351 = vadd.f32 %v3030, %v3285
        %v3352 = vadd.f32 %v3031, %v3288
        %v3353 = vadd.f32 %v3032, %v3293
        %v3354 = vadd.f32 %v3033, %v3296
        %v3355 = vadd.f32 %v3034, %v3301
        %v3356 = vadd.f32 %v3035, %v3304
        %v3357 = vadd.f32 %v3036, %v3309
        %v3358 = vadd.f32 %v3037, %v3312
        %v3359 = vadd.f32 %v3038, %v3317
        %v3360 = vadd.f32 %v3039, %v3320
        %v3361 = vadd.f32 %v3040, %v3325
        %v3362 = vadd.f32 %v3041, %v3328
        %s3363 = scalar_lea.vmem %s237, 24
        %v3364 = vld [vmem:[%s3363] sm:$0xf]
        %v3365 = vld [vmem:[%s3363 + $0x4] sm:$0xf]
        %v3366 = vld [vmem:[%s3363 + $0xc] sm:$0xf]
        %v3367 = vld [vmem:[%s3363 + $0x10] sm:$0xf]
        %v3368 = vld [vmem:[%s3363 + $0x18] sm:$0xf]
        %v3369 = vld [vmem:[%s3363 + $0x1c] sm:$0xf]
        %v3370 = vld [vmem:[%s3363 + $0x24] sm:$0xf]
        %v3371 = vld [vmem:[%s3363 + $0x28] sm:$0xf]
        %v3372 = vld [vmem:[%s3363 + $0x30] sm:$0xf]
        %v3373 = vld [vmem:[%s3363 + $0x34] sm:$0xf]
        %v3374 = vld [vmem:[%s3363 + $0x3c] sm:$0xf]
        %v3375 = vld [vmem:[%s3363 + $0x40] sm:$0xf]
        %v3376 = vld [vmem:[%s3363 + $0x48] sm:$0xf]
        %v3377 = vld [vmem:[%s3363 + $0x4c] sm:$0xf]
        %v3378 = vld [vmem:[%s3363 + $0x54] sm:$0xf]
        %v3379 = vld [vmem:[%s3363 + $0x58] sm:$0xf]
        %v3380 = vld [vmem:[%s3363 + $0x60] sm:$0xf]
        %v3381 = vld [vmem:[%s3363 + $0x64] sm:$0xf]
        %v3382 = vld [vmem:[%s3363 + $0x6c] sm:$0xf]
        %v3383 = vld [vmem:[%s3363 + $0x70] sm:$0xf]
        %v3384 = vld [vmem:[%s3363 + $0x78] sm:$0xf]
        %v3385 = vld [vmem:[%s3363 + $0x7c] sm:$0xf]
        %v3386 = vld [vmem:[%s3363 + $0x84] sm:$0xf]
        %v3387 = vld [vmem:[%s3363 + $0x88] sm:$0xf]
        %v3388 = vld [vmem:[%s3363 + $0x90] sm:$0xf]
        %v3389 = vld [vmem:[%s3363 + $0x94] sm:$0xf]
        %v3390 = vld [vmem:[%s3363 + $0x9c] sm:$0xf]
        %v3391 = vld [vmem:[%s3363 + $0xa0] sm:$0xf]
        %v3392 = vld [vmem:[%s3363 + $0xa8] sm:$0xf]
        %v3393 = vld [vmem:[%s3363 + $0xac] sm:$0xf]
        %v3394 = vld [vmem:[%s3363 + $0xb4] sm:$0xf]
        %v3395 = vld [vmem:[%s3363 + $0xb8] sm:$0xf]
        %v3396 = vld [vmem:[%s3363 + $0x8] sm:$0x1]
        %v3397 = vld [vmem:[%s3363 + $0x14] sm:$0x1]
        %v3398 = vld [vmem:[%s3363 + $0x20] sm:$0x1]
        %v3399 = vld [vmem:[%s3363 + $0x2c] sm:$0x1]
        %v3400 = vld [vmem:[%s3363 + $0x38] sm:$0x1]
        %v3401 = vld [vmem:[%s3363 + $0x44] sm:$0x1]
        %v3402 = vld [vmem:[%s3363 + $0x50] sm:$0x1]
        %v3403 = vld [vmem:[%s3363 + $0x5c] sm:$0x1]
        %v3404 = vld [vmem:[%s3363 + $0x68] sm:$0x1]
        %v3405 = vld [vmem:[%s3363 + $0x74] sm:$0x1]
        %v3406 = vld [vmem:[%s3363 + $0x80] sm:$0x1]
        %v3407 = vld [vmem:[%s3363 + $0x8c] sm:$0x1]
        %v3408 = vld [vmem:[%s3363 + $0x98] sm:$0x1]
        %v3409 = vld [vmem:[%s3363 + $0xa4] sm:$0x1]
        %v3410 = vld [vmem:[%s3363 + $0xb0] sm:$0x1]
        %v3411 = vld [vmem:[%s3363 + $0xbc] sm:$0x1]
        %v3413 = vshrl.u32 %v3364, 16
        %v3415 = vrot.slane %v3413, 4
        %v3416 = vshll.u32 %v3364, 16
        %v3418 = vrot.slane %v3416, 5
        %v3419 = vor.u32 %v3415, %v3418
        %v3420 = vrot.slane %v3419, 4
        %v3422 = vshll.u32 %v3365, 16
        %v3424 = vrot.slane %v3422, 5
        %v3425 = vsel %vm294, %v3420, %v3424
        %v3426 = vshrl.u32 %v3365, 16
        %v3428 = vrot.slane %v3426, 4
        %v3429 = vor.u32 %v3428, %v3424
        %v3430 = vrot.slane %v3429, 4
        %v3432 = vshll.u32 %v3396, 16
        %v3434 = vrot.slane %v3432, 5
        %v3435 = vsel %vm294, %v3430, %v3434
        %v3437 = vshrl.u32 %v3366, 16
        %v3439 = vrot.slane %v3437, 4
        %v3440 = vshll.u32 %v3366, 16
        %v3442 = vrot.slane %v3440, 5
        %v3443 = vor.u32 %v3439, %v3442
        %v3444 = vrot.slane %v3443, 4
        %v3446 = vshll.u32 %v3367, 16
        %v3448 = vrot.slane %v3446, 5
        %v3449 = vsel %vm294, %v3444, %v3448
        %v3450 = vshrl.u32 %v3367, 16
        %v3452 = vrot.slane %v3450, 4
        %v3453 = vor.u32 %v3452, %v3448
        %v3454 = vrot.slane %v3453, 4
        %v3456 = vshll.u32 %v3397, 16
        %v3458 = vrot.slane %v3456, 5
        %v3459 = vsel %vm294, %v3454, %v3458
        %v3461 = vshrl.u32 %v3368, 16
        %v3463 = vrot.slane %v3461, 4
        %v3464 = vshll.u32 %v3368, 16
        %v3466 = vrot.slane %v3464, 5
        %v3467 = vor.u32 %v3463, %v3466
        %v3468 = vrot.slane %v3467, 4
        %v3470 = vshll.u32 %v3369, 16
        %v3472 = vrot.slane %v3470, 5
        %v3473 = vsel %vm294, %v3468, %v3472
        %v3474 = vshrl.u32 %v3369, 16
        %v3476 = vrot.slane %v3474, 4
        %v3477 = vor.u32 %v3476, %v3472
        %v3478 = vrot.slane %v3477, 4
        %v3480 = vshll.u32 %v3398, 16
        %v3482 = vrot.slane %v3480, 5
        %v3483 = vsel %vm294, %v3478, %v3482
        %v3485 = vshrl.u32 %v3370, 16
        %v3487 = vrot.slane %v3485, 4
        %v3488 = vshll.u32 %v3370, 16
        %v3490 = vrot.slane %v3488, 5
        %v3491 = vor.u32 %v3487, %v3490
        %v3492 = vrot.slane %v3491, 4
        %v3494 = vshll.u32 %v3371, 16
        %v3496 = vrot.slane %v3494, 5
        %v3497 = vsel %vm294, %v3492, %v3496
        %v3498 = vshrl.u32 %v3371, 16
        %v3500 = vrot.slane %v3498, 4
        %v3501 = vor.u32 %v3500, %v3496
        %v3502 = vrot.slane %v3501, 4
        %v3504 = vshll.u32 %v3399, 16
        %v3506 = vrot.slane %v3504, 5
        %v3507 = vsel %vm294, %v3502, %v3506
        %v3509 = vshrl.u32 %v3372, 16
        %v3511 = vrot.slane %v3509, 4
        %v3512 = vshll.u32 %v3372, 16
        %v3514 = vrot.slane %v3512, 5
        %v3515 = vor.u32 %v3511, %v3514
        %v3516 = vrot.slane %v3515, 4
        %v3518 = vshll.u32 %v3373, 16
        %v3520 = vrot.slane %v3518, 5
        %v3521 = vsel %vm294, %v3516, %v3520
        %v3522 = vshrl.u32 %v3373, 16
        %v3524 = vrot.slane %v3522, 4
        %v3525 = vor.u32 %v3524, %v3520
        %v3526 = vrot.slane %v3525, 4
        %v3528 = vshll.u32 %v3400, 16
        %v3530 = vrot.slane %v3528, 5
        %v3531 = vsel %vm294, %v3526, %v3530
        %v3533 = vshrl.u32 %v3374, 16
        %v3535 = vrot.slane %v3533, 4
        %v3536 = vshll.u32 %v3374, 16
        %v3538 = vrot.slane %v3536, 5
        %v3539 = vor.u32 %v3535, %v3538
        %v3540 = vrot.slane %v3539, 4
        %v3542 = vshll.u32 %v3375, 16
        %v3544 = vrot.slane %v3542, 5
        %v3545 = vsel %vm294, %v3540, %v3544
        %v3546 = vshrl.u32 %v3375, 16
        %v3548 = vrot.slane %v3546, 4
        %v3549 = vor.u32 %v3548, %v3544
        %v3550 = vrot.slane %v3549, 4
        %v3552 = vshll.u32 %v3401, 16
        %v3554 = vrot.slane %v3552, 5
        %v3555 = vsel %vm294, %v3550, %v3554
        %v3557 = vshrl.u32 %v3376, 16
        %v3559 = vrot.slane %v3557, 4
        %v3560 = vshll.u32 %v3376, 16
        %v3562 = vrot.slane %v3560, 5
        %v3563 = vor.u32 %v3559, %v3562
        %v3564 = vrot.slane %v3563, 4
        %v3566 = vshll.u32 %v3377, 16
        %v3568 = vrot.slane %v3566, 5
        %v3569 = vsel %vm294, %v3564, %v3568
        %v3570 = vshrl.u32 %v3377, 16
        %v3572 = vrot.slane %v3570, 4
        %v3573 = vor.u32 %v3572, %v3568
        %v3574 = vrot.slane %v3573, 4
        %v3576 = vshll.u32 %v3402, 16
        %v3578 = vrot.slane %v3576, 5
        %v3579 = vsel %vm294, %v3574, %v3578
        %v3581 = vshrl.u32 %v3378, 16
        %v3583 = vrot.slane %v3581, 4
        %v3584 = vshll.u32 %v3378, 16
        %v3586 = vrot.slane %v3584, 5
        %v3587 = vor.u32 %v3583, %v3586
        %v3588 = vrot.slane %v3587, 4
        %v3590 = vshll.u32 %v3379, 16
        %v3592 = vrot.slane %v3590, 5
        %v3593 = vsel %vm294, %v3588, %v3592
        %v3594 = vshrl.u32 %v3379, 16
        %v3596 = vrot.slane %v3594, 4
        %v3597 = vor.u32 %v3596, %v3592
        %v3598 = vrot.slane %v3597, 4
        %v3600 = vshll.u32 %v3403, 16
        %v3602 = vrot.slane %v3600, 5
        %v3603 = vsel %vm294, %v3598, %v3602
        %v3605 = vshrl.u32 %v3380, 16
        %v3607 = vrot.slane %v3605, 4
        %v3608 = vshll.u32 %v3380, 16
        %v3610 = vrot.slane %v3608, 5
        %v3611 = vor.u32 %v3607, %v3610
        %v3612 = vrot.slane %v3611, 4
        %v3614 = vshll.u32 %v3381, 16
        %v3616 = vrot.slane %v3614, 5
        %v3617 = vsel %vm294, %v3612, %v3616
        %v3618 = vshrl.u32 %v3381, 16
        %v3620 = vrot.slane %v3618, 4
        %v3621 = vor.u32 %v3620, %v3616
        %v3622 = vrot.slane %v3621, 4
        %v3624 = vshll.u32 %v3404, 16
        %v3626 = vrot.slane %v3624, 5
        %v3627 = vsel %vm294, %v3622, %v3626
        %v3629 = vshrl.u32 %v3382, 16
        %v3631 = vrot.slane %v3629, 4
        %v3632 = vshll.u32 %v3382, 16
        %v3634 = vrot.slane %v3632, 5
        %v3635 = vor.u32 %v3631, %v3634
        %v3636 = vrot.slane %v3635, 4
        %v3638 = vshll.u32 %v3383, 16
        %v3640 = vrot.slane %v3638, 5
        %v3641 = vsel %vm294, %v3636, %v3640
        %v3642 = vshrl.u32 %v3383, 16
        %v3644 = vrot.slane %v3642, 4
        %v3645 = vor.u32 %v3644, %v3640
        %v3646 = vrot.slane %v3645, 4
        %v3648 = vshll.u32 %v3405, 16
        %v3650 = vrot.slane %v3648, 5
        %v3651 = vsel %vm294, %v3646, %v3650
        %v3653 = vshrl.u32 %v3384, 16
        %v3655 = vrot.slane %v3653, 4
        %v3656 = vshll.u32 %v3384, 16
        %v3658 = vrot.slane %v3656, 5
        %v3659 = vor.u32 %v3655, %v3658
        %v3660 = vrot.slane %v3659, 4
        %v3662 = vshll.u32 %v3385, 16
        %v3664 = vrot.slane %v3662, 5
        %v3665 = vsel %vm294, %v3660, %v3664
        %v3666 = vshrl.u32 %v3385, 16
        %v3668 = vrot.slane %v3666, 4
        %v3669 = vor.u32 %v3668, %v3664
        %v3670 = vrot.slane %v3669, 4
        %v3672 = vshll.u32 %v3406, 16
        %v3674 = vrot.slane %v3672, 5
        %v3675 = vsel %vm294, %v3670, %v3674
        %v3677 = vshrl.u32 %v3386, 16
        %v3679 = vrot.slane %v3677, 4
        %v3680 = vshll.u32 %v3386, 16
        %v3682 = vrot.slane %v3680, 5
        %v3683 = vor.u32 %v3679, %v3682
        %v3684 = vrot.slane %v3683, 4
        %v3686 = vshll.u32 %v3387, 16
        %v3688 = vrot.slane %v3686, 5
        %v3689 = vsel %vm294, %v3684, %v3688
        %v3690 = vshrl.u32 %v3387, 16
        %v3692 = vrot.slane %v3690, 4
        %v3693 = vor.u32 %v3692, %v3688
        %v3694 = vrot.slane %v3693, 4
        %v3696 = vshll.u32 %v3407, 16
        %v3698 = vrot.slane %v3696, 5
        %v3699 = vsel %vm294, %v3694, %v3698
        %v3701 = vshrl.u32 %v3388, 16
        %v3703 = vrot.slane %v3701, 4
        %v3704 = vshll.u32 %v3388, 16
        %v3706 = vrot.slane %v3704, 5
        %v3707 = vor.u32 %v3703, %v3706
        %v3708 = vrot.slane %v3707, 4
        %v3710 = vshll.u32 %v3389, 16
        %v3712 = vrot.slane %v3710, 5
        %v3713 = vsel %vm294, %v3708, %v3712
        %v3714 = vshrl.u32 %v3389, 16
        %v3716 = vrot.slane %v3714, 4
        %v3717 = vor.u32 %v3716, %v3712
        %v3718 = vrot.slane %v3717, 4
        %v3720 = vshll.u32 %v3408, 16
        %v3722 = vrot.slane %v3720, 5
        %v3723 = vsel %vm294, %v3718, %v3722
        %v3725 = vshrl.u32 %v3390, 16
        %v3727 = vrot.slane %v3725, 4
        %v3728 = vshll.u32 %v3390, 16
        %v3730 = vrot.slane %v3728, 5
        %v3731 = vor.u32 %v3727, %v3730
        %v3732 = vrot.slane %v3731, 4
        %v3734 = vshll.u32 %v3391, 16
        %v3736 = vrot.slane %v3734, 5
        %v3737 = vsel %vm294, %v3732, %v3736
        %v3738 = vshrl.u32 %v3391, 16
        %v3740 = vrot.slane %v3738, 4
        %v3741 = vor.u32 %v3740, %v3736
        %v3742 = vrot.slane %v3741, 4
        %v3744 = vshll.u32 %v3409, 16
        %v3746 = vrot.slane %v3744, 5
        %v3747 = vsel %vm294, %v3742, %v3746
        %v3749 = vshrl.u32 %v3392, 16
        %v3751 = vrot.slane %v3749, 4
        %v3752 = vshll.u32 %v3392, 16
        %v3754 = vrot.slane %v3752, 5
        %v3755 = vor.u32 %v3751, %v3754
        %v3756 = vrot.slane %v3755, 4
        %v3758 = vshll.u32 %v3393, 16
        %v3760 = vrot.slane %v3758, 5
        %v3761 = vsel %vm294, %v3756, %v3760
        %v3762 = vshrl.u32 %v3393, 16
        %v3764 = vrot.slane %v3762, 4
        %v3765 = vor.u32 %v3764, %v3760
        %v3766 = vrot.slane %v3765, 4
        %v3768 = vshll.u32 %v3410, 16
        %v3770 = vrot.slane %v3768, 5
        %v3771 = vsel %vm294, %v3766, %v3770
        %v3773 = vshrl.u32 %v3394, 16
        %v3775 = vrot.slane %v3773, 4
        %v3776 = vshll.u32 %v3394, 16
        %v3778 = vrot.slane %v3776, 5
        %v3779 = vor.u32 %v3775, %v3778
        %v3780 = vrot.slane %v3779, 4
        %v3782 = vshll.u32 %v3395, 16
        %v3784 = vrot.slane %v3782, 5
        %v3785 = vsel %vm294, %v3780, %v3784
        %v3786 = vshrl.u32 %v3395, 16
        %v3788 = vrot.slane %v3786, 4
        %v3789 = vor.u32 %v3788, %v3784
        %v3790 = vrot.slane %v3789, 4
        %v3792 = vshll.u32 %v3411, 16
        %v3794 = vrot.slane %v3792, 5
        %v3795 = vsel %vm294, %v3790, %v3794
        %v3796 = vld [vmem:[%s3363] sm:$0xe]
        %v3797 = vld [vmem:[%s3363 + $0xc] sm:$0xe]
        %v3798 = vld [vmem:[%s3363 + $0x18] sm:$0xe]
        %v3799 = vld [vmem:[%s3363 + $0x24] sm:$0xe]
        %v3800 = vld [vmem:[%s3363 + $0x30] sm:$0xe]
        %v3801 = vld [vmem:[%s3363 + $0x3c] sm:$0xe]
        %v3802 = vld [vmem:[%s3363 + $0x48] sm:$0xe]
        %v3803 = vld [vmem:[%s3363 + $0x54] sm:$0xe]
        %v3804 = vld [vmem:[%s3363 + $0x60] sm:$0xe]
        %v3805 = vld [vmem:[%s3363 + $0x6c] sm:$0xe]
        %v3806 = vld [vmem:[%s3363 + $0x78] sm:$0xe]
        %v3807 = vld [vmem:[%s3363 + $0x84] sm:$0xe]
        %v3808 = vld [vmem:[%s3363 + $0x90] sm:$0xe]
        %v3809 = vld [vmem:[%s3363 + $0x9c] sm:$0xe]
        %v3810 = vld [vmem:[%s3363 + $0xa8] sm:$0xe]
        %v3811 = vld [vmem:[%s3363 + $0xb4] sm:$0xe]
        %v3860 = vrot.slane %v3796, 5
        %v3861 = vrot.slane %v3860, 4
        %v3862 = vrot.slane %v3365, 5
        %v3863 = vsel %vm745, %v3861, %v3862
        %v3864 = vrot.slane %v3862, 4
        %v3865 = vrot.slane %v3396, 5
        %v3866 = vsel %vm745, %v3864, %v3865
        %v3867 = vrot.slane %v3797, 5
        %v3868 = vrot.slane %v3867, 4
        %v3869 = vrot.slane %v3367, 5
        %v3870 = vsel %vm745, %v3868, %v3869
        %v3871 = vrot.slane %v3869, 4
        %v3872 = vrot.slane %v3397, 5
        %v3873 = vsel %vm745, %v3871, %v3872
        %v3874 = vrot.slane %v3798, 5
        %v3875 = vrot.slane %v3874, 4
        %v3876 = vrot.slane %v3369, 5
        %v3877 = vsel %vm745, %v3875, %v3876
        %v3878 = vrot.slane %v3876, 4
        %v3879 = vrot.slane %v3398, 5
        %v3880 = vsel %vm745, %v3878, %v3879
        %v3881 = vrot.slane %v3799, 5
        %v3882 = vrot.slane %v3881, 4
        %v3883 = vrot.slane %v3371, 5
        %v3884 = vsel %vm745, %v3882, %v3883
        %v3885 = vrot.slane %v3883, 4
        %v3886 = vrot.slane %v3399, 5
        %v3887 = vsel %vm745, %v3885, %v3886
        %v3888 = vrot.slane %v3800, 5
        %v3889 = vrot.slane %v3888, 4
        %v3890 = vrot.slane %v3373, 5
        %v3891 = vsel %vm745, %v3889, %v3890
        %v3892 = vrot.slane %v3890, 4
        %v3893 = vrot.slane %v3400, 5
        %v3894 = vsel %vm745, %v3892, %v3893
        %v3895 = vrot.slane %v3801, 5
        %v3896 = vrot.slane %v3895, 4
        %v3897 = vrot.slane %v3375, 5
        %v3898 = vsel %vm745, %v3896, %v3897
        %v3899 = vrot.slane %v3897, 4
        %v3900 = vrot.slane %v3401, 5
        %v3901 = vsel %vm745, %v3899, %v3900
        %v3902 = vrot.slane %v3802, 5
        %v3903 = vrot.slane %v3902, 4
        %v3904 = vrot.slane %v3377, 5
        %v3905 = vsel %vm745, %v3903, %v3904
        %v3906 = vrot.slane %v3904, 4
        %v3907 = vrot.slane %v3402, 5
        %v3908 = vsel %vm745, %v3906, %v3907
        %v3909 = vrot.slane %v3803, 5
        %v3910 = vrot.slane %v3909, 4
        %v3911 = vrot.slane %v3379, 5
        %v3912 = vsel %vm745, %v3910, %v3911
        %v3913 = vrot.slane %v3911, 4
        %v3914 = vrot.slane %v3403, 5
        %v3915 = vsel %vm745, %v3913, %v3914
        %v3916 = vrot.slane %v3804, 5
        %v3917 = vrot.slane %v3916, 4
        %v3918 = vrot.slane %v3381, 5
        %v3919 = vsel %vm745, %v3917, %v3918
        %v3920 = vrot.slane %v3918, 4
        %v3921 = vrot.slane %v3404, 5
        %v3922 = vsel %vm745, %v3920, %v3921
        %v3923 = vrot.slane %v3805, 5
        %v3924 = vrot.slane %v3923, 4
        %v3925 = vrot.slane %v3383, 5
        %v3926 = vsel %vm745, %v3924, %v3925
        %v3927 = vrot.slane %v3925, 4
        %v3928 = vrot.slane %v3405, 5
        %v3929 = vsel %vm745, %v3927, %v3928
        %v3930 = vrot.slane %v3806, 5
        %v3931 = vrot.slane %v3930, 4
        %v3932 = vrot.slane %v3385, 5
        %v3933 = vsel %vm745, %v3931, %v3932
        %v3934 = vrot.slane %v3932, 4
        %v3935 = vrot.slane %v3406, 5
        %v3936 = vsel %vm745, %v3934, %v3935
        %v3937 = vrot.slane %v3807, 5
        %v3938 = vrot.slane %v3937, 4
        %v3939 = vrot.slane %v3387, 5
        %v3940 = vsel %vm745, %v3938, %v3939
        %v3941 = vrot.slane %v3939, 4
        %v3942 = vrot.slane %v3407, 5
        %v3943 = vsel %vm745, %v3941, %v3942
        %v3944 = vrot.slane %v3808, 5
        %v3945 = vrot.slane %v3944, 4
        %v3946 = vrot.slane %v3389, 5
        %v3947 = vsel %vm745, %v3945, %v3946
        %v3948 = vrot.slane %v3946, 4
        %v3949 = vrot.slane %v3408, 5
        %v3950 = vsel %vm745, %v3948, %v3949
        %v3951 = vrot.slane %v3809, 5
        %v3952 = vrot.slane %v3951, 4
        %v3953 = vrot.slane %v3391, 5
        %v3954 = vsel %vm745, %v3952, %v3953
        %v3955 = vrot.slane %v3953, 4
        %v3956 = vrot.slane %v3409, 5
        %v3957 = vsel %vm745, %v3955, %v3956
        %v3958 = vrot.slane %v3810, 5
        %v3959 = vrot.slane %v3958, 4
        %v3960 = vrot.slane %v3393, 5
        %v3961 = vsel %vm745, %v3959, %v3960
        %v3962 = vrot.slane %v3960, 4
        %v3963 = vrot.slane %v3410, 5
        %v3964 = vsel %vm745, %v3962, %v3963
        %v3965 = vrot.slane %v3811, 5
        %v3966 = vrot.slane %v3965, 4
        %v3967 = vrot.slane %v3395, 5
        %v3968 = vsel %vm745, %v3966, %v3967
        %v3969 = vrot.slane %v3967, 4
        %v3970 = vrot.slane %v3411, 5
        %v3971 = vsel %vm745, %v3969, %v3970
        %s3972 = scalar_lea.vmem %s1, 192
        %v3973 = vld [vmem:[%s3972] sm:$0xf]
        %v3974 = vld [vmem:[%s3972 + $0x4] sm:$0xf]
        %v3975 = vld [vmem:[%s3972 + $0x8] sm:$0xf]
        %v3976 = vld [vmem:[%s3972 + $0xc] sm:$0xf]
        %v3977 = vld [vmem:[%s3972 + $0x10] sm:$0xf]
        %v3978 = vld [vmem:[%s3972 + $0x14] sm:$0xf]
        %v3979 = vld [vmem:[%s3972 + $0x18] sm:$0xf]
        %v3980 = vld [vmem:[%s3972 + $0x1c] sm:$0xf]
        %v3997 = vunpack.c.l.b16 %v3364
        %v3998 = vunpack.c.l.b16 %v3365
        %v3999 = vunpack.c.l.b16 %v3366
        %v4000 = vunpack.c.l.b16 %v3367
        %v4001 = vunpack.c.l.b16 %v3368
        %v4002 = vunpack.c.l.b16 %v3369
        %v4003 = vunpack.c.l.b16 %v3370
        %v4004 = vunpack.c.l.b16 %v3371
        %v4005 = vunpack.c.l.b16 %v3372
        %v4006 = vunpack.c.l.b16 %v3373
        %v4007 = vunpack.c.l.b16 %v3374
        %v4008 = vunpack.c.l.b16 %v3375
        %v4009 = vunpack.c.l.b16 %v3376
        %v4010 = vunpack.c.l.b16 %v3377
        %v4011 = vunpack.c.l.b16 %v3378
        %v4012 = vunpack.c.l.b16 %v3379
        %v4013 = vunpack.c.l.b16 %v3380
        %v4014 = vunpack.c.l.b16 %v3381
        %v4015 = vunpack.c.l.b16 %v3382
        %v4016 = vunpack.c.l.b16 %v3383
        %v4017 = vunpack.c.l.b16 %v3384
        %v4018 = vunpack.c.l.b16 %v3385
        %v4019 = vunpack.c.l.b16 %v3386
        %v4020 = vunpack.c.l.b16 %v3387
        %v4021 = vunpack.c.l.b16 %v3388
        %v4022 = vunpack.c.l.b16 %v3389
        %v4023 = vunpack.c.l.b16 %v3390
        %v4024 = vunpack.c.l.b16 %v3391
        %v4025 = vunpack.c.l.b16 %v3392
        %v4026 = vunpack.c.l.b16 %v3393
        %v4027 = vunpack.c.l.b16 %v3394
        %v4028 = vunpack.c.l.b16 %v3395
        %v4029 = vpack.c.b16 %v3998, %v3997
        %v4030 = vpack.c.b16 %v4000, %v3999
        %v4031 = vpack.c.b16 %v4002, %v4001
        %v4032 = vpack.c.b16 %v4004, %v4003
        %v4033 = vpack.c.b16 %v4006, %v4005
        %v4034 = vpack.c.b16 %v4008, %v4007
        %v4035 = vpack.c.b16 %v4010, %v4009
        %v4036 = vpack.c.b16 %v4012, %v4011
        %v4037 = vpack.c.b16 %v4014, %v4013
        %v4038 = vpack.c.b16 %v4016, %v4015
        %v4039 = vpack.c.b16 %v4018, %v4017
        %v4040 = vpack.c.b16 %v4020, %v4019
        %v4041 = vpack.c.b16 %v4022, %v4021
        %v4042 = vpack.c.b16 %v4024, %v4023
        %v4043 = vpack.c.b16 %v4026, %v4025
        %v4044 = vpack.c.b16 %v4028, %v4027
        %v4053 = vunpack.c.l.b16 %v3973
        %v4054 = vunpack.c.l.b16 %v3974
        %v4055 = vunpack.c.l.b16 %v3975
        %v4056 = vunpack.c.l.b16 %v3976
        %v4057 = vunpack.c.l.b16 %v3977
        %v4058 = vunpack.c.l.b16 %v3978
        %v4059 = vunpack.c.l.b16 %v3979
        %v4060 = vunpack.c.l.b16 %v3980
        %v4061 = vpack.c.b16 %v4054, %v4053
        %v4062 = vpack.c.b16 %v4056, %v4055
        %v4063 = vpack.c.b16 %v4058, %v4057
        %v4064 = vpack.c.b16 %v4060, %v4059
        %v4070 = vsel %vm946, %v4029, 0
        %v4073 = vsel %vm946, %v4030, 0
        %v4076 = vsel %vm946, %v4031, 0
        %v4079 = vsel %vm946, %v4032, 0
        %v4082 = vsel %vm946, %v4033, 0
        %v4085 = vsel %vm946, %v4034, 0
        %v4088 = vsel %vm946, %v4035, 0
        %v4091 = vsel %vm946, %v4036, 0
        %v4094 = vsel %vm946, %v4037, 0
        %v4097 = vsel %vm946, %v4038, 0
        %v4100 = vsel %vm946, %v4039, 0
        %v4103 = vsel %vm946, %v4040, 0
        %v4106 = vsel %vm946, %v4041, 0
        %v4109 = vsel %vm946, %v4042, 0
        %v4112 = vsel %vm946, %v4043, 0
        %v4115 = vsel %vm946, %v4044, 0
        %4117 = vmatprep.subr.bf16.mxu0 0
        %4118 = vmatpush1.bf16.msra.mxu0 %v4061
        %4119 = vmatprep.subr.bf16.mxu0 0
        %4120 = vmatpush1.bf16.msra.mxu0 %v4062
        %4121 = vmatprep.subr.bf16.mxu0 0
        %4122 = vmatpush1.bf16.msra.mxu0 %v4063
        %4123 = vmatprep.subr.bf16.mxu0 0
        %4124 = vmatpush1.bf16.msra.mxu0 %v4064
        %4125 = vmatprep.subr.bf16.mxu0 0
        %4126 = vmatpush1.bf16.msra.mxu0 0
        %4127 = vmatprep.subr.bf16.mxu0 0
        %4128 = vmatpush1.bf16.msra.mxu0 0
        %4129 = vmatprep.subr.bf16.mxu0 0
        %4130 = vmatpush1.bf16.msra.mxu0 0
        %4131 = vmatprep.subr.bf16.mxu0 0
        %4132 = vmatpush1.bf16.msra.mxu0 0
        %4133 = vmatprep.subr.bf16.mxu0 0
        %4134 = vmatpush1.bf16.msra.mxu0 0
        %4135 = vmatprep.subr.bf16.mxu0 0
        %4136 = vmatpush1.bf16.msra.mxu0 0
        %4137 = vmatprep.subr.bf16.mxu0 0
        %4138 = vmatpush1.bf16.msra.mxu0 0
        %4139 = vmatprep.subr.bf16.mxu0 0
        %4140 = vmatpush1.bf16.msra.mxu0 0
        %4141 = vmatprep.subr.bf16.mxu0 0
        %4142 = vmatpush1.bf16.msra.mxu0 0
        %4143 = vmatprep.subr.bf16.mxu0 0
        %4144 = vmatpush1.bf16.msra.mxu0 0
        %4145 = vmatprep.subr.bf16.mxu0 0
        %4146 = vmatpush1.bf16.msra.mxu0 0
        %4147 = vmatprep.subr.bf16.mxu0 0
        %4148 = vmatpush1.bf16.msra.mxu0 0
        %4149 = vmatprep.mubr.bf16.mxu0 0
        %4150 = vmatmul.mubr.bf16.gmra.mrb[0].mxu0 %v4070
        %v4151 = vpop.f32.mrb[0].mxu0
        %v4152 = vadd.f32 0.0, %v4151
        %v4153 = vpop.f32.mrb[0].mxu0
        %v4154 = vpop.f32.mrb[0].mxu0
        %v4155 = vadd.f32 0.0, %v4154
        %v4156 = vpop.f32.mrb[0].mxu0
        %4157 = vmatprep.mubr.bf16.mxu0 0
        %4158 = vmatmul.mubr.bf16.gmra.mrb[0].mxu0 %v4073
        %v4159 = vpop.f32.mrb[0].mxu0
        %v4160 = vadd.f32 0.0, %v4159
        %v4161 = vpop.f32.mrb[0].mxu0
        %v4162 = vpop.f32.mrb[0].mxu0
        %v4163 = vadd.f32 0.0, %v4162
        %v4164 = vpop.f32.mrb[0].mxu0
        %4165 = vmatprep.mubr.bf16.mxu0 0
        %4166 = vmatmul.mubr.bf16.gmra.mrb[0].mxu0 %v4076
        %v4167 = vpop.f32.mrb[0].mxu0
        %v4168 = vadd.f32 0.0, %v4167
        %v4169 = vpop.f32.mrb[0].mxu0
        %v4170 = vpop.f32.mrb[0].mxu0
        %v4171 = vadd.f32 0.0, %v4170
        %v4172 = vpop.f32.mrb[0].mxu0
        %4173 = vmatprep.mubr.bf16.mxu0 0
        %4174 = vmatmul.mubr.bf16.gmra.mrb[0].mxu0 %v4079
        %v4175 = vpop.f32.mrb[0].mxu0
        %v4176 = vadd.f32 0.0, %v4175
        %v4177 = vpop.f32.mrb[0].mxu0
        %v4178 = vpop.f32.mrb[0].mxu0
        %v4179 = vadd.f32 0.0, %v4178
        %v4180 = vpop.f32.mrb[0].mxu0
        %4181 = vmatprep.mubr.bf16.mxu0 0
        %4182 = vmatmul.mubr.bf16.gmra.mrb[0].mxu0 %v4082
        %v4183 = vpop.f32.mrb[0].mxu0
        %v4184 = vadd.f32 0.0, %v4183
        %v4185 = vpop.f32.mrb[0].mxu0
        %v4186 = vpop.f32.mrb[0].mxu0
        %v4187 = vadd.f32 0.0, %v4186
        %v4188 = vpop.f32.mrb[0].mxu0
        %4189 = vmatprep.mubr.bf16.mxu0 0
        %4190 = vmatmul.mubr.bf16.gmra.mrb[0].mxu0 %v4085
        %v4191 = vpop.f32.mrb[0].mxu0
        %v4192 = vadd.f32 0.0, %v4191
        %v4193 = vpop.f32.mrb[0].mxu0
        %v4194 = vpop.f32.mrb[0].mxu0
        %v4195 = vadd.f32 0.0, %v4194
        %v4196 = vpop.f32.mrb[0].mxu0
        %4197 = vmatprep.mubr.bf16.mxu0 0
        %4198 = vmatmul.mubr.bf16.gmra.mrb[0].mxu0 %v4088
        %v4199 = vpop.f32.mrb[0].mxu0
        %v4200 = vadd.f32 0.0, %v4199
        %v4201 = vpop.f32.mrb[0].mxu0
        %v4202 = vpop.f32.mrb[0].mxu0
        %v4203 = vadd.f32 0.0, %v4202
        %v4204 = vpop.f32.mrb[0].mxu0
        %4205 = vmatprep.mubr.bf16.mxu0 0
        %4206 = vmatmul.mubr.bf16.gmra.mrb[0].mxu0 %v4091
        %v4207 = vpop.f32.mrb[0].mxu0
        %v4208 = vadd.f32 0.0, %v4207
        %v4209 = vpop.f32.mrb[0].mxu0
        %v4210 = vpop.f32.mrb[0].mxu0
        %v4211 = vadd.f32 0.0, %v4210
        %v4212 = vpop.f32.mrb[0].mxu0
        %4213 = vmatprep.mubr.bf16.mxu0 0
        %4214 = vmatmul.mubr.bf16.gmra.mrb[0].mxu0 %v4094
        %v4215 = vpop.f32.mrb[0].mxu0
        %v4216 = vadd.f32 0.0, %v4215
        %v4217 = vpop.f32.mrb[0].mxu0
        %v4218 = vpop.f32.mrb[0].mxu0
        %v4219 = vadd.f32 0.0, %v4218
        %v4220 = vpop.f32.mrb[0].mxu0
        %4221 = vmatprep.mubr.bf16.mxu0 0
        %4222 = vmatmul.mubr.bf16.gmra.mrb[0].mxu0 %v4097
        %v4223 = vpop.f32.mrb[0].mxu0
        %v4224 = vadd.f32 0.0, %v4223
        %v4225 = vpop.f32.mrb[0].mxu0
        %v4226 = vpop.f32.mrb[0].mxu0
        %v4227 = vadd.f32 0.0, %v4226
        %v4228 = vpop.f32.mrb[0].mxu0
        %4229 = vmatprep.mubr.bf16.mxu0 0
        %4230 = vmatmul.mubr.bf16.gmra.mrb[0].mxu0 %v4100
        %v4231 = vpop.f32.mrb[0].mxu0
        %v4232 = vadd.f32 0.0, %v4231
        %v4233 = vpop.f32.mrb[0].mxu0
        %v4234 = vpop.f32.mrb[0].mxu0
        %v4235 = vadd.f32 0.0, %v4234
        %v4236 = vpop.f32.mrb[0].mxu0
        %4237 = vmatprep.mubr.bf16.mxu0 0
        %4238 = vmatmul.mubr.bf16.gmra.mrb[0].mxu0 %v4103
        %v4239 = vpop.f32.mrb[0].mxu0
        %v4240 = vadd.f32 0.0, %v4239
        %v4241 = vpop.f32.mrb[0].mxu0
        %v4242 = vpop.f32.mrb[0].mxu0
        %v4243 = vadd.f32 0.0, %v4242
        %v4244 = vpop.f32.mrb[0].mxu0
        %4245 = vmatprep.mubr.bf16.mxu0 0
        %4246 = vmatmul.mubr.bf16.gmra.mrb[0].mxu0 %v4106
        %v4247 = vpop.f32.mrb[0].mxu0
        %v4248 = vadd.f32 0.0, %v4247
        %v4249 = vpop.f32.mrb[0].mxu0
        %v4250 = vpop.f32.mrb[0].mxu0
        %v4251 = vadd.f32 0.0, %v4250
        %v4252 = vpop.f32.mrb[0].mxu0
        %4253 = vmatprep.mubr.bf16.mxu0 0
        %4254 = vmatmul.mubr.bf16.gmra.mrb[0].mxu0 %v4109
        %v4255 = vpop.f32.mrb[0].mxu0
        %v4256 = vadd.f32 0.0, %v4255
        %v4257 = vpop.f32.mrb[0].mxu0
        %v4258 = vpop.f32.mrb[0].mxu0
        %v4259 = vadd.f32 0.0, %v4258
        %v4260 = vpop.f32.mrb[0].mxu0
        %4261 = vmatprep.mubr.bf16.mxu0 0
        %4262 = vmatmul.mubr.bf16.gmra.mrb[0].mxu0 %v4112
        %v4263 = vpop.f32.mrb[0].mxu0
        %v4264 = vadd.f32 0.0, %v4263
        %v4265 = vpop.f32.mrb[0].mxu0
        %v4266 = vpop.f32.mrb[0].mxu0
        %v4267 = vadd.f32 0.0, %v4266
        %v4268 = vpop.f32.mrb[0].mxu0
        %4269 = vmatprep.mubr.bf16.mxu0 0
        %4270 = vmatmul.mubr.bf16.gmra.mrb[0].mxu0 %v4115
        %v4271 = vpop.f32.mrb[0].mxu0
        %v4272 = vadd.f32 0.0, %v4271
        %v4273 = vpop.f32.mrb[0].mxu0
        %v4274 = vpop.f32.mrb[0].mxu0
        %v4275 = vadd.f32 0.0, %v4274
        %v4276 = vpop.f32.mrb[0].mxu0
        %4277 = vdwg.mxu0
        %v4278 = vadd.f32 %v3331, %v4152
        %v4279 = vadd.f32 %v3332, %v4155
        %v4280 = vadd.f32 %v3333, %v4160
        %v4281 = vadd.f32 %v3334, %v4163
        %v4282 = vadd.f32 %v3335, %v4168
        %v4283 = vadd.f32 %v3336, %v4171
        %v4284 = vadd.f32 %v3337, %v4176
        %v4285 = vadd.f32 %v3338, %v4179
        %v4286 = vadd.f32 %v3339, %v4184
        %v4287 = vadd.f32 %v3340, %v4187
        %v4288 = vadd.f32 %v3341, %v4192
        %v4289 = vadd.f32 %v3342, %v4195
        %v4290 = vadd.f32 %v3343, %v4200
        %v4291 = vadd.f32 %v3344, %v4203
        %v4292 = vadd.f32 %v3345, %v4208
        %v4293 = vadd.f32 %v3346, %v4211
        %v4294 = vadd.f32 %v3347, %v4216
        %v4295 = vadd.f32 %v3348, %v4219
        %v4296 = vadd.f32 %v3349, %v4224
        %v4297 = vadd.f32 %v3350, %v4227
        %v4298 = vadd.f32 %v3351, %v4232
        %v4299 = vadd.f32 %v3352, %v4235
        %v4300 = vadd.f32 %v3353, %v4240
        %v4301 = vadd.f32 %v3354, %v4243
        %v4302 = vadd.f32 %v3355, %v4248
        %v4303 = vadd.f32 %v3356, %v4251
        %v4304 = vadd.f32 %v3357, %v4256
        %v4305 = vadd.f32 %v3358, %v4259
        %v4306 = vadd.f32 %v3359, %v4264
        %v4307 = vadd.f32 %v3360, %v4267
        %v4308 = vadd.f32 %v3361, %v4272
        %v4309 = vadd.f32 %v3362, %v4275
        %v4310 = vld [vmem:[%s3972 + $0x20] sm:$0xf]
        %v4311 = vld [vmem:[%s3972 + $0x24] sm:$0xf]
        %v4312 = vld [vmem:[%s3972 + $0x28] sm:$0xf]
        %v4313 = vld [vmem:[%s3972 + $0x2c] sm:$0xf]
        %v4314 = vld [vmem:[%s3972 + $0x30] sm:$0xf]
        %v4315 = vld [vmem:[%s3972 + $0x34] sm:$0xf]
        %v4316 = vld [vmem:[%s3972 + $0x38] sm:$0xf]
        %v4317 = vld [vmem:[%s3972 + $0x3c] sm:$0xf]
        %v4318 = vunpack.c.l.b16 %v3425
        %v4319 = vunpack.c.l.b16 %v3435
        %v4320 = vunpack.c.l.b16 %v3449
        %v4321 = vunpack.c.l.b16 %v3459
        %v4322 = vunpack.c.l.b16 %v3473
        %v4323 = vunpack.c.l.b16 %v3483
        %v4324 = vunpack.c.l.b16 %v3497
        %v4325 = vunpack.c.l.b16 %v3507
        %v4326 = vunpack.c.l.b16 %v3521
        %v4327 = vunpack.c.l.b16 %v3531
        %v4328 = vunpack.c.l.b16 %v3545
        %v4329 = vunpack.c.l.b16 %v3555
        %v4330 = vunpack.c.l.b16 %v3569
        %v4331 = vunpack.c.l.b16 %v3579
        %v4332 = vunpack.c.l.b16 %v3593
        %v4333 = vunpack.c.l.b16 %v3603
        %v4334 = vunpack.c.l.b16 %v3617
        %v4335 = vunpack.c.l.b16 %v3627
        %v4336 = vunpack.c.l.b16 %v3641
        %v4337 = vunpack.c.l.b16 %v3651
        %v4338 = vunpack.c.l.b16 %v3665
        %v4339 = vunpack.c.l.b16 %v3675
        %v4340 = vunpack.c.l.b16 %v3689
        %v4341 = vunpack.c.l.b16 %v3699
        %v4342 = vunpack.c.l.b16 %v3713
        %v4343 = vunpack.c.l.b16 %v3723
        %v4344 = vunpack.c.l.b16 %v3737
        %v4345 = vunpack.c.l.b16 %v3747
        %v4346 = vunpack.c.l.b16 %v3761
        %v4347 = vunpack.c.l.b16 %v3771
        %v4348 = vunpack.c.l.b16 %v3785
        %v4349 = vunpack.c.l.b16 %v3795
        %v4350 = vpack.c.b16 %v4319, %v4318
        %v4351 = vpack.c.b16 %v4321, %v4320
        %v4352 = vpack.c.b16 %v4323, %v4322
        %v4353 = vpack.c.b16 %v4325, %v4324
        %v4354 = vpack.c.b16 %v4327, %v4326
        %v4355 = vpack.c.b16 %v4329, %v4328
        %v4356 = vpack.c.b16 %v4331, %v4330
        %v4357 = vpack.c.b16 %v4333, %v4332
        %v4358 = vpack.c.b16 %v4335, %v4334
        %v4359 = vpack.c.b16 %v4337, %v4336
        %v4360 = vpack.c.b16 %v4339, %v4338
        %v4361 = vpack.c.b16 %v4341, %v4340
        %v4362 = vpack.c.b16 %v4343, %v4342
        %v4363 = vpack.c.b16 %v4345, %v4344
        %v4364 = vpack.c.b16 %v4347, %v4346
        %v4365 = vpack.c.b16 %v4349, %v4348
        %v4374 = vunpack.c.l.b16 %v4310
        %v4375 = vunpack.c.l.b16 %v4311
        %v4376 = vunpack.c.l.b16 %v4312
        %v4377 = vunpack.c.l.b16 %v4313
        %v4378 = vunpack.c.l.b16 %v4314
        %v4379 = vunpack.c.l.b16 %v4315
        %v4380 = vunpack.c.l.b16 %v4316
        %v4381 = vunpack.c.l.b16 %v4317
        %v4382 = vpack.c.b16 %v4375, %v4374
        %v4383 = vpack.c.b16 %v4377, %v4376
        %v4384 = vpack.c.b16 %v4379, %v4378
        %v4385 = vpack.c.b16 %v4381, %v4380
        %v4391 = vsel %vm946, %v4350, 0
        %v4394 = vsel %vm946, %v4351, 0
        %v4397 = vsel %vm946, %v4352, 0
        %v4400 = vsel %vm946, %v4353, 0
        %v4403 = vsel %vm946, %v4354, 0
        %v4406 = vsel %vm946, %v4355, 0
        %v4409 = vsel %vm946, %v4356, 0
        %v4412 = vsel %vm946, %v4357, 0
        %v4415 = vsel %vm946, %v4358, 0
        %v4418 = vsel %vm946, %v4359, 0
        %v4421 = vsel %vm946, %v4360, 0
        %v4424 = vsel %vm946, %v4361, 0
        %v4427 = vsel %vm946, %v4362, 0
        %v4430 = vsel %vm946, %v4363, 0
        %v4433 = vsel %vm946, %v4364, 0
        %v4436 = vsel %vm946, %v4365, 0
        %4438 = vmatprep.subr.bf16.mxu0 0
        %4439 = vmatpush1.bf16.msra.mxu0 %v4382
        %4440 = vmatprep.subr.bf16.mxu0 0
        %4441 = vmatpush1.bf16.msra.mxu0 %v4383
        %4442 = vmatprep.subr.bf16.mxu0 0
        %4443 = vmatpush1.bf16.msra.mxu0 %v4384
        %4444 = vmatprep.subr.bf16.mxu0 0
        %4445 = vmatpush1.bf16.msra.mxu0 %v4385
        %4446 = vmatprep.subr.bf16.mxu0 0
        %4447 = vmatpush1.bf16.msra.mxu0 0
        %4448 = vmatprep.subr.bf16.mxu0 0
        %4449 = vmatpush1.bf16.msra.mxu0 0
        %4450 = vmatprep.subr.bf16.mxu0 0
        %4451 = vmatpush1.bf16.msra.mxu0 0
        %4452 = vmatprep.subr.bf16.mxu0 0
        %4453 = vmatpush1.bf16.msra.mxu0 0
        %4454 = vmatprep.subr.bf16.mxu0 0
        %4455 = vmatpush1.bf16.msra.mxu0 0
        %4456 = vmatprep.subr.bf16.mxu0 0
        %4457 = vmatpush1.bf16.msra.mxu0 0
        %4458 = vmatprep.subr.bf16.mxu0 0
        %4459 = vmatpush1.bf16.msra.mxu0 0
        %4460 = vmatprep.subr.bf16.mxu0 0
        %4461 = vmatpush1.bf16.msra.mxu0 0
        %4462 = vmatprep.subr.bf16.mxu0 0
        %4463 = vmatpush1.bf16.msra.mxu0 0
        %4464 = vmatprep.subr.bf16.mxu0 0
        %4465 = vmatpush1.bf16.msra.mxu0 0
        %4466 = vmatprep.subr.bf16.mxu0 0
        %4467 = vmatpush1.bf16.msra.mxu0 0
        %4468 = vmatprep.subr.bf16.mxu0 0
        %4469 = vmatpush1.bf16.msra.mxu0 0
        %4470 = vmatprep.mubr.bf16.mxu0 0
        %4471 = vmatmul.mubr.bf16.gmra.mrb[0].mxu0 %v4391
        %v4472 = vpop.f32.mrb[0].mxu0
        %v4473 = vadd.f32 0.0, %v4472
        %v4474 = vpop.f32.mrb[0].mxu0
        %v4475 = vpop.f32.mrb[0].mxu0
        %v4476 = vadd.f32 0.0, %v4475
        %v4477 = vpop.f32.mrb[0].mxu0
        %4478 = vmatprep.mubr.bf16.mxu0 0
        %4479 = vmatmul.mubr.bf16.gmra.mrb[0].mxu0 %v4394
        %v4480 = vpop.f32.mrb[0].mxu0
        %v4481 = vadd.f32 0.0, %v4480
        %v4482 = vpop.f32.mrb[0].mxu0
        %v4483 = vpop.f32.mrb[0].mxu0
        %v4484 = vadd.f32 0.0, %v4483
        %v4485 = vpop.f32.mrb[0].mxu0
        %4486 = vmatprep.mubr.bf16.mxu0 0
        %4487 = vmatmul.mubr.bf16.gmra.mrb[0].mxu0 %v4397
        %v4488 = vpop.f32.mrb[0].mxu0
        %v4489 = vadd.f32 0.0, %v4488
        %v4490 = vpop.f32.mrb[0].mxu0
        %v4491 = vpop.f32.mrb[0].mxu0
        %v4492 = vadd.f32 0.0, %v4491
        %v4493 = vpop.f32.mrb[0].mxu0
        %4494 = vmatprep.mubr.bf16.mxu0 0
        %4495 = vmatmul.mubr.bf16.gmra.mrb[0].mxu0 %v4400
        %v4496 = vpop.f32.mrb[0].mxu0
        %v4497 = vadd.f32 0.0, %v4496
        %v4498 = vpop.f32.mrb[0].mxu0
        %v4499 = vpop.f32.mrb[0].mxu0
        %v4500 = vadd.f32 0.0, %v4499
        %v4501 = vpop.f32.mrb[0].mxu0
        %4502 = vmatprep.mubr.bf16.mxu0 0
        %4503 = vmatmul.mubr.bf16.gmra.mrb[0].mxu0 %v4403
        %v4504 = vpop.f32.mrb[0].mxu0
        %v4505 = vadd.f32 0.0, %v4504
        %v4506 = vpop.f32.mrb[0].mxu0
        %v4507 = vpop.f32.mrb[0].mxu0
        %v4508 = vadd.f32 0.0, %v4507
        %v4509 = vpop.f32.mrb[0].mxu0
        %4510 = vmatprep.mubr.bf16.mxu0 0
        %4511 = vmatmul.mubr.bf16.gmra.mrb[0].mxu0 %v4406
        %v4512 = vpop.f32.mrb[0].mxu0
        %v4513 = vadd.f32 0.0, %v4512
        %v4514 = vpop.f32.mrb[0].mxu0
        %v4515 = vpop.f32.mrb[0].mxu0
        %v4516 = vadd.f32 0.0, %v4515
        %v4517 = vpop.f32.mrb[0].mxu0
        %4518 = vmatprep.mubr.bf16.mxu0 0
        %4519 = vmatmul.mubr.bf16.gmra.mrb[0].mxu0 %v4409
        %v4520 = vpop.f32.mrb[0].mxu0
        %v4521 = vadd.f32 0.0, %v4520
        %v4522 = vpop.f32.mrb[0].mxu0
        %v4523 = vpop.f32.mrb[0].mxu0
        %v4524 = vadd.f32 0.0, %v4523
        %v4525 = vpop.f32.mrb[0].mxu0
        %4526 = vmatprep.mubr.bf16.mxu0 0
        %4527 = vmatmul.mubr.bf16.gmra.mrb[0].mxu0 %v4412
        %v4528 = vpop.f32.mrb[0].mxu0
        %v4529 = vadd.f32 0.0, %v4528
        %v4530 = vpop.f32.mrb[0].mxu0
        %v4531 = vpop.f32.mrb[0].mxu0
        %v4532 = vadd.f32 0.0, %v4531
        %v4533 = vpop.f32.mrb[0].mxu0
        %4534 = vmatprep.mubr.bf16.mxu0 0
        %4535 = vmatmul.mubr.bf16.gmra.mrb[0].mxu0 %v4415
        %v4536 = vpop.f32.mrb[0].mxu0
        %v4537 = vadd.f32 0.0, %v4536
        %v4538 = vpop.f32.mrb[0].mxu0
        %v4539 = vpop.f32.mrb[0].mxu0
        %v4540 = vadd.f32 0.0, %v4539
        %v4541 = vpop.f32.mrb[0].mxu0
        %4542 = vmatprep.mubr.bf16.mxu0 0
        %4543 = vmatmul.mubr.bf16.gmra.mrb[0].mxu0 %v4418
        %v4544 = vpop.f32.mrb[0].mxu0
        %v4545 = vadd.f32 0.0, %v4544
        %v4546 = vpop.f32.mrb[0].mxu0
        %v4547 = vpop.f32.mrb[0].mxu0
        %v4548 = vadd.f32 0.0, %v4547
        %v4549 = vpop.f32.mrb[0].mxu0
        %4550 = vmatprep.mubr.bf16.mxu0 0
        %4551 = vmatmul.mubr.bf16.gmra.mrb[0].mxu0 %v4421
        %v4552 = vpop.f32.mrb[0].mxu0
        %v4553 = vadd.f32 0.0, %v4552
        %v4554 = vpop.f32.mrb[0].mxu0
        %v4555 = vpop.f32.mrb[0].mxu0
        %v4556 = vadd.f32 0.0, %v4555
        %v4557 = vpop.f32.mrb[0].mxu0
        %4558 = vmatprep.mubr.bf16.mxu0 0
        %4559 = vmatmul.mubr.bf16.gmra.mrb[0].mxu0 %v4424
        %v4560 = vpop.f32.mrb[0].mxu0
        %v4561 = vadd.f32 0.0, %v4560
        %v4562 = vpop.f32.mrb[0].mxu0
        %v4563 = vpop.f32.mrb[0].mxu0
        %v4564 = vadd.f32 0.0, %v4563
        %v4565 = vpop.f32.mrb[0].mxu0
        %4566 = vmatprep.mubr.bf16.mxu0 0
        %4567 = vmatmul.mubr.bf16.gmra.mrb[0].mxu0 %v4427
        %v4568 = vpop.f32.mrb[0].mxu0
        %v4569 = vadd.f32 0.0, %v4568
        %v4570 = vpop.f32.mrb[0].mxu0
        %v4571 = vpop.f32.mrb[0].mxu0
        %v4572 = vadd.f32 0.0, %v4571
        %v4573 = vpop.f32.mrb[0].mxu0
        %4574 = vmatprep.mubr.bf16.mxu0 0
        %4575 = vmatmul.mubr.bf16.gmra.mrb[0].mxu0 %v4430
        %v4576 = vpop.f32.mrb[0].mxu0
        %v4577 = vadd.f32 0.0, %v4576
        %v4578 = vpop.f32.mrb[0].mxu0
        %v4579 = vpop.f32.mrb[0].mxu0
        %v4580 = vadd.f32 0.0, %v4579
        %v4581 = vpop.f32.mrb[0].mxu0
        %4582 = vmatprep.mubr.bf16.mxu0 0
        %4583 = vmatmul.mubr.bf16.gmra.mrb[0].mxu0 %v4433
        %v4584 = vpop.f32.mrb[0].mxu0
        %v4585 = vadd.f32 0.0, %v4584
        %v4586 = vpop.f32.mrb[0].mxu0
        %v4587 = vpop.f32.mrb[0].mxu0
        %v4588 = vadd.f32 0.0, %v4587
        %v4589 = vpop.f32.mrb[0].mxu0
        %4590 = vmatprep.mubr.bf16.mxu0 0
        %4591 = vmatmul.mubr.bf16.gmra.mrb[0].mxu0 %v4436
        %v4592 = vpop.f32.mrb[0].mxu0
        %v4593 = vadd.f32 0.0, %v4592
        %v4594 = vpop.f32.mrb[0].mxu0
        %v4595 = vpop.f32.mrb[0].mxu0
        %v4596 = vadd.f32 0.0, %v4595
        %v4597 = vpop.f32.mrb[0].mxu0
        %4598 = vdwg.mxu0
        %v4599 = vadd.f32 %v4278, %v4473
        %v4600 = vadd.f32 %v4279, %v4476
        %v4601 = vadd.f32 %v4280, %v4481
        %v4602 = vadd.f32 %v4281, %v4484
        %v4603 = vadd.f32 %v4282, %v4489
        %v4604 = vadd.f32 %v4283, %v4492
        %v4605 = vadd.f32 %v4284, %v4497
        %v4606 = vadd.f32 %v4285, %v4500
        %v4607 = vadd.f32 %v4286, %v4505
        %v4608 = vadd.f32 %v4287, %v4508
        %v4609 = vadd.f32 %v4288, %v4513
        %v4610 = vadd.f32 %v4289, %v4516
        %v4611 = vadd.f32 %v4290, %v4521
        %v4612 = vadd.f32 %v4291, %v4524
        %v4613 = vadd.f32 %v4292, %v4529
        %v4614 = vadd.f32 %v4293, %v4532
        %v4615 = vadd.f32 %v4294, %v4537
        %v4616 = vadd.f32 %v4295, %v4540
        %v4617 = vadd.f32 %v4296, %v4545
        %v4618 = vadd.f32 %v4297, %v4548
        %v4619 = vadd.f32 %v4298, %v4553
        %v4620 = vadd.f32 %v4299, %v4556
        %v4621 = vadd.f32 %v4300, %v4561
        %v4622 = vadd.f32 %v4301, %v4564
        %v4623 = vadd.f32 %v4302, %v4569
        %v4624 = vadd.f32 %v4303, %v4572
        %v4625 = vadd.f32 %v4304, %v4577
        %v4626 = vadd.f32 %v4305, %v4580
        %v4627 = vadd.f32 %v4306, %v4585
        %v4628 = vadd.f32 %v4307, %v4588
        %v4629 = vadd.f32 %v4308, %v4593
        %v4630 = vadd.f32 %v4309, %v4596
        %v4631 = vld [vmem:[%s3972 + $0x40] sm:$0xf]
        %v4632 = vld [vmem:[%s3972 + $0x44] sm:$0xf]
        %v4633 = vld [vmem:[%s3972 + $0x48] sm:$0xf]
        %v4634 = vld [vmem:[%s3972 + $0x4c] sm:$0xf]
        %v4635 = vld [vmem:[%s3972 + $0x50] sm:$0xf]
        %v4636 = vld [vmem:[%s3972 + $0x54] sm:$0xf]
        %v4637 = vld [vmem:[%s3972 + $0x58] sm:$0xf]
        %v4638 = vld [vmem:[%s3972 + $0x5c] sm:$0xf]
        %v4639 = vunpack.c.l.b16 %v3863
        %v4640 = vunpack.c.l.b16 %v3866
        %v4641 = vunpack.c.l.b16 %v3870
        %v4642 = vunpack.c.l.b16 %v3873
        %v4643 = vunpack.c.l.b16 %v3877
        %v4644 = vunpack.c.l.b16 %v3880
        %v4645 = vunpack.c.l.b16 %v3884
        %v4646 = vunpack.c.l.b16 %v3887
        %v4647 = vunpack.c.l.b16 %v3891
        %v4648 = vunpack.c.l.b16 %v3894
        %v4649 = vunpack.c.l.b16 %v3898
        %v4650 = vunpack.c.l.b16 %v3901
        %v4651 = vunpack.c.l.b16 %v3905
        %v4652 = vunpack.c.l.b16 %v3908
        %v4653 = vunpack.c.l.b16 %v3912
        %v4654 = vunpack.c.l.b16 %v3915
        %v4655 = vunpack.c.l.b16 %v3919
        %v4656 = vunpack.c.l.b16 %v3922
        %v4657 = vunpack.c.l.b16 %v3926
        %v4658 = vunpack.c.l.b16 %v3929
        %v4659 = vunpack.c.l.b16 %v3933
        %v4660 = vunpack.c.l.b16 %v3936
        %v4661 = vunpack.c.l.b16 %v3940
        %v4662 = vunpack.c.l.b16 %v3943
        %v4663 = vunpack.c.l.b16 %v3947
        %v4664 = vunpack.c.l.b16 %v3950
        %v4665 = vunpack.c.l.b16 %v3954
        %v4666 = vunpack.c.l.b16 %v3957
        %v4667 = vunpack.c.l.b16 %v3961
        %v4668 = vunpack.c.l.b16 %v3964
        %v4669 = vunpack.c.l.b16 %v3968
        %v4670 = vunpack.c.l.b16 %v3971
        %v4671 = vpack.c.b16 %v4640, %v4639
        %v4672 = vpack.c.b16 %v4642, %v4641
        %v4673 = vpack.c.b16 %v4644, %v4643
        %v4674 = vpack.c.b16 %v4646, %v4645
        %v4675 = vpack.c.b16 %v4648, %v4647
        %v4676 = vpack.c.b16 %v4650, %v4649
        %v4677 = vpack.c.b16 %v4652, %v4651
        %v4678 = vpack.c.b16 %v4654, %v4653
        %v4679 = vpack.c.b16 %v4656, %v4655
        %v4680 = vpack.c.b16 %v4658, %v4657
        %v4681 = vpack.c.b16 %v4660, %v4659
        %v4682 = vpack.c.b16 %v4662, %v4661
        %v4683 = vpack.c.b16 %v4664, %v4663
        %v4684 = vpack.c.b16 %v4666, %v4665
        %v4685 = vpack.c.b16 %v4668, %v4667
        %v4686 = vpack.c.b16 %v4670, %v4669
        %v4695 = vunpack.c.l.b16 %v4631
        %v4696 = vunpack.c.l.b16 %v4632
        %v4697 = vunpack.c.l.b16 %v4633
        %v4698 = vunpack.c.l.b16 %v4634
        %v4699 = vunpack.c.l.b16 %v4635
        %v4700 = vunpack.c.l.b16 %v4636
        %v4701 = vunpack.c.l.b16 %v4637
        %v4702 = vunpack.c.l.b16 %v4638
        %v4703 = vpack.c.b16 %v4696, %v4695
        %v4704 = vpack.c.b16 %v4698, %v4697
        %v4705 = vpack.c.b16 %v4700, %v4699
        %v4706 = vpack.c.b16 %v4702, %v4701
        %v4712 = vsel %vm946, %v4671, 0
        %v4715 = vsel %vm946, %v4672, 0
        %v4718 = vsel %vm946, %v4673, 0
        %v4721 = vsel %vm946, %v4674, 0
        %v4724 = vsel %vm946, %v4675, 0
        %v4727 = vsel %vm946, %v4676, 0
        %v4730 = vsel %vm946, %v4677, 0
        %v4733 = vsel %vm946, %v4678, 0
        %v4736 = vsel %vm946, %v4679, 0
        %v4739 = vsel %vm946, %v4680, 0
        %v4742 = vsel %vm946, %v4681, 0
        %v4745 = vsel %vm946, %v4682, 0
        %v4748 = vsel %vm946, %v4683, 0
        %v4751 = vsel %vm946, %v4684, 0
        %v4754 = vsel %vm946, %v4685, 0
        %v4757 = vsel %vm946, %v4686, 0
        %4759 = vmatprep.subr.bf16.mxu0 0
        %4760 = vmatpush1.bf16.msra.mxu0 %v4703
        %4761 = vmatprep.subr.bf16.mxu0 0
        %4762 = vmatpush1.bf16.msra.mxu0 %v4704
        %4763 = vmatprep.subr.bf16.mxu0 0
        %4764 = vmatpush1.bf16.msra.mxu0 %v4705
        %4765 = vmatprep.subr.bf16.mxu0 0
        %4766 = vmatpush1.bf16.msra.mxu0 %v4706
        %4767 = vmatprep.subr.bf16.mxu0 0
        %4768 = vmatpush1.bf16.msra.mxu0 0
        %4769 = vmatprep.subr.bf16.mxu0 0
        %4770 = vmatpush1.bf16.msra.mxu0 0
        %4771 = vmatprep.subr.bf16.mxu0 0
        %4772 = vmatpush1.bf16.msra.mxu0 0
        %4773 = vmatprep.subr.bf16.mxu0 0
        %4774 = vmatpush1.bf16.msra.mxu0 0
        %4775 = vmatprep.subr.bf16.mxu0 0
        %4776 = vmatpush1.bf16.msra.mxu0 0
        %4777 = vmatprep.subr.bf16.mxu0 0
        %4778 = vmatpush1.bf16.msra.mxu0 0
        %4779 = vmatprep.subr.bf16.mxu0 0
        %4780 = vmatpush1.bf16.msra.mxu0 0
        %4781 = vmatprep.subr.bf16.mxu0 0
        %4782 = vmatpush1.bf16.msra.mxu0 0
        %4783 = vmatprep.subr.bf16.mxu0 0
        %4784 = vmatpush1.bf16.msra.mxu0 0
        %4785 = vmatprep.subr.bf16.mxu0 0
        %4786 = vmatpush1.bf16.msra.mxu0 0
        %4787 = vmatprep.subr.bf16.mxu0 0
        %4788 = vmatpush1.bf16.msra.mxu0 0
        %4789 = vmatprep.subr.bf16.mxu0 0
        %4790 = vmatpush1.bf16.msra.mxu0 0
        %4791 = vmatprep.mubr.bf16.mxu0 0
        %4792 = vmatmul.mubr.bf16.gmra.mrb[0].mxu0 %v4712
        %v4793 = vpop.f32.mrb[0].mxu0
        %v4794 = vadd.f32 0.0, %v4793
        %v4795 = vpop.f32.mrb[0].mxu0
        %v4796 = vpop.f32.mrb[0].mxu0
        %v4797 = vadd.f32 0.0, %v4796
        %v4798 = vpop.f32.mrb[0].mxu0
        %4799 = vmatprep.mubr.bf16.mxu0 0
        %4800 = vmatmul.mubr.bf16.gmra.mrb[0].mxu0 %v4715
        %v4801 = vpop.f32.mrb[0].mxu0
        %v4802 = vadd.f32 0.0, %v4801
        %v4803 = vpop.f32.mrb[0].mxu0
        %v4804 = vpop.f32.mrb[0].mxu0
        %v4805 = vadd.f32 0.0, %v4804
        %v4806 = vpop.f32.mrb[0].mxu0
        %4807 = vmatprep.mubr.bf16.mxu0 0
        %4808 = vmatmul.mubr.bf16.gmra.mrb[0].mxu0 %v4718
        %v4809 = vpop.f32.mrb[0].mxu0
        %v4810 = vadd.f32 0.0, %v4809
        %v4811 = vpop.f32.mrb[0].mxu0
        %v4812 = vpop.f32.mrb[0].mxu0
        %v4813 = vadd.f32 0.0, %v4812
        %v4814 = vpop.f32.mrb[0].mxu0
        %4815 = vmatprep.mubr.bf16.mxu0 0
        %4816 = vmatmul.mubr.bf16.gmra.mrb[0].mxu0 %v4721
        %v4817 = vpop.f32.mrb[0].mxu0
        %v4818 = vadd.f32 0.0, %v4817
        %v4819 = vpop.f32.mrb[0].mxu0
        %v4820 = vpop.f32.mrb[0].mxu0
        %v4821 = vadd.f32 0.0, %v4820
        %v4822 = vpop.f32.mrb[0].mxu0
        %4823 = vmatprep.mubr.bf16.mxu0 0
        %4824 = vmatmul.mubr.bf16.gmra.mrb[0].mxu0 %v4724
        %v4825 = vpop.f32.mrb[0].mxu0
        %v4826 = vadd.f32 0.0, %v4825
        %v4827 = vpop.f32.mrb[0].mxu0
        %v4828 = vpop.f32.mrb[0].mxu0
        %v4829 = vadd.f32 0.0, %v4828
        %v4830 = vpop.f32.mrb[0].mxu0
        %4831 = vmatprep.mubr.bf16.mxu0 0
        %4832 = vmatmul.mubr.bf16.gmra.mrb[0].mxu0 %v4727
        %v4833 = vpop.f32.mrb[0].mxu0
        %v4834 = vadd.f32 0.0, %v4833
        %v4835 = vpop.f32.mrb[0].mxu0
        %v4836 = vpop.f32.mrb[0].mxu0
        %v4837 = vadd.f32 0.0, %v4836
        %v4838 = vpop.f32.mrb[0].mxu0
        %4839 = vmatprep.mubr.bf16.mxu0 0
        %4840 = vmatmul.mubr.bf16.gmra.mrb[0].mxu0 %v4730
        %v4841 = vpop.f32.mrb[0].mxu0
        %v4842 = vadd.f32 0.0, %v4841
        %v4843 = vpop.f32.mrb[0].mxu0
        %v4844 = vpop.f32.mrb[0].mxu0
        %v4845 = vadd.f32 0.0, %v4844
        %v4846 = vpop.f32.mrb[0].mxu0
        %4847 = vmatprep.mubr.bf16.mxu0 0
        %4848 = vmatmul.mubr.bf16.gmra.mrb[0].mxu0 %v4733
        %v4849 = vpop.f32.mrb[0].mxu0
        %v4850 = vadd.f32 0.0, %v4849
        %v4851 = vpop.f32.mrb[0].mxu0
        %v4852 = vpop.f32.mrb[0].mxu0
        %v4853 = vadd.f32 0.0, %v4852
        %v4854 = vpop.f32.mrb[0].mxu0
        %4855 = vmatprep.mubr.bf16.mxu0 0
        %4856 = vmatmul.mubr.bf16.gmra.mrb[0].mxu0 %v4736
        %v4857 = vpop.f32.mrb[0].mxu0
        %v4858 = vadd.f32 0.0, %v4857
        %v4859 = vpop.f32.mrb[0].mxu0
        %v4860 = vpop.f32.mrb[0].mxu0
        %v4861 = vadd.f32 0.0, %v4860
        %v4862 = vpop.f32.mrb[0].mxu0
        %4863 = vmatprep.mubr.bf16.mxu0 0
        %4864 = vmatmul.mubr.bf16.gmra.mrb[0].mxu0 %v4739
        %v4865 = vpop.f32.mrb[0].mxu0
        %v4866 = vadd.f32 0.0, %v4865
        %v4867 = vpop.f32.mrb[0].mxu0
        %v4868 = vpop.f32.mrb[0].mxu0
        %v4869 = vadd.f32 0.0, %v4868
        %v4870 = vpop.f32.mrb[0].mxu0
        %4871 = vmatprep.mubr.bf16.mxu0 0
        %4872 = vmatmul.mubr.bf16.gmra.mrb[0].mxu0 %v4742
        %v4873 = vpop.f32.mrb[0].mxu0
        %v4874 = vadd.f32 0.0, %v4873
        %v4875 = vpop.f32.mrb[0].mxu0
        %v4876 = vpop.f32.mrb[0].mxu0
        %v4877 = vadd.f32 0.0, %v4876
        %v4878 = vpop.f32.mrb[0].mxu0
        %4879 = vmatprep.mubr.bf16.mxu0 0
        %4880 = vmatmul.mubr.bf16.gmra.mrb[0].mxu0 %v4745
        %v4881 = vpop.f32.mrb[0].mxu0
        %v4882 = vadd.f32 0.0, %v4881
        %v4883 = vpop.f32.mrb[0].mxu0
        %v4884 = vpop.f32.mrb[0].mxu0
        %v4885 = vadd.f32 0.0, %v4884
        %v4886 = vpop.f32.mrb[0].mxu0
        %4887 = vmatprep.mubr.bf16.mxu0 0
        %4888 = vmatmul.mubr.bf16.gmra.mrb[0].mxu0 %v4748
        %v4889 = vpop.f32.mrb[0].mxu0
        %v4890 = vadd.f32 0.0, %v4889
        %v4891 = vpop.f32.mrb[0].mxu0
        %v4892 = vpop.f32.mrb[0].mxu0
        %v4893 = vadd.f32 0.0, %v4892
        %v4894 = vpop.f32.mrb[0].mxu0
        %4895 = vmatprep.mubr.bf16.mxu0 0
        %4896 = vmatmul.mubr.bf16.gmra.mrb[0].mxu0 %v4751
        %v4897 = vpop.f32.mrb[0].mxu0
        %v4898 = vadd.f32 0.0, %v4897
        %v4899 = vpop.f32.mrb[0].mxu0
        %v4900 = vpop.f32.mrb[0].mxu0
        %v4901 = vadd.f32 0.0, %v4900
        %v4902 = vpop.f32.mrb[0].mxu0
        %4903 = vmatprep.mubr.bf16.mxu0 0
        %4904 = vmatmul.mubr.bf16.gmra.mrb[0].mxu0 %v4754
        %v4905 = vpop.f32.mrb[0].mxu0
        %v4906 = vadd.f32 0.0, %v4905
        %v4907 = vpop.f32.mrb[0].mxu0
        %v4908 = vpop.f32.mrb[0].mxu0
        %v4909 = vadd.f32 0.0, %v4908
        %v4910 = vpop.f32.mrb[0].mxu0
        %4911 = vmatprep.mubr.bf16.mxu0 0
        %4912 = vmatmul.mubr.bf16.gmra.mrb[0].mxu0 %v4757
        %v4913 = vpop.f32.mrb[0].mxu0
        %v4914 = vadd.f32 0.0, %v4913
        %v4915 = vpop.f32.mrb[0].mxu0
        %v4916 = vpop.f32.mrb[0].mxu0
        %v4917 = vadd.f32 0.0, %v4916
        %v4918 = vpop.f32.mrb[0].mxu0
        %4919 = vdwg.mxu0
        %v4920 = vadd.f32 %v4599, %v4794
        %v4921 = vadd.f32 %v4600, %v4797
        %v4922 = vadd.f32 %v4601, %v4802
        %v4923 = vadd.f32 %v4602, %v4805
        %v4924 = vadd.f32 %v4603, %v4810
        %v4925 = vadd.f32 %v4604, %v4813
        %v4926 = vadd.f32 %v4605, %v4818
        %v4927 = vadd.f32 %v4606, %v4821
        %v4928 = vadd.f32 %v4607, %v4826
        %v4929 = vadd.f32 %v4608, %v4829
        %v4930 = vadd.f32 %v4609, %v4834
        %v4931 = vadd.f32 %v4610, %v4837
        %v4932 = vadd.f32 %v4611, %v4842
        %v4933 = vadd.f32 %v4612, %v4845
        %v4934 = vadd.f32 %v4613, %v4850
        %v4935 = vadd.f32 %v4614, %v4853
        %v4936 = vadd.f32 %v4615, %v4858
        %v4937 = vadd.f32 %v4616, %v4861
        %v4938 = vadd.f32 %v4617, %v4866
        %v4939 = vadd.f32 %v4618, %v4869
        %v4940 = vadd.f32 %v4619, %v4874
        %v4941 = vadd.f32 %v4620, %v4877
        %v4942 = vadd.f32 %v4621, %v4882
        %v4943 = vadd.f32 %v4622, %v4885
        %v4944 = vadd.f32 %v4623, %v4890
        %v4945 = vadd.f32 %v4624, %v4893
        %v4946 = vadd.f32 %v4625, %v4898
        %v4947 = vadd.f32 %v4626, %v4901
        %v4948 = vadd.f32 %v4627, %v4906
        %v4949 = vadd.f32 %v4628, %v4909
        %v4950 = vadd.f32 %v4629, %v4914
        %v4951 = vadd.f32 %v4630, %v4917
        %v4952 = vld [vmem:[%s2] sm:$0x1]
        %v4954 = vlaneseq
        %v4955 = vshrl.u32 %v4954, 7
        %v4956 = vsub.s32 0, %v4955
        %v4957 = vrot.slane %v4952, %v4956
        %v4959 = vmul.f32 %v4920, %v4957
        %v4960 = vmul.f32 %v4921, %v4957
        %v4961 = vmul.f32 %v4922, %v4957
        %v4962 = vmul.f32 %v4923, %v4957
        %v4963 = vmul.f32 %v4924, %v4957
        %v4964 = vmul.f32 %v4925, %v4957
        %v4965 = vmul.f32 %v4926, %v4957
        %v4966 = vmul.f32 %v4927, %v4957
        %v4967 = vmul.f32 %v4928, %v4957
        %v4968 = vmul.f32 %v4929, %v4957
        %v4969 = vmul.f32 %v4930, %v4957
        %v4970 = vmul.f32 %v4931, %v4957
        %v4971 = vmul.f32 %v4932, %v4957
        %v4972 = vmul.f32 %v4933, %v4957
        %v4973 = vmul.f32 %v4934, %v4957
        %v4974 = vmul.f32 %v4935, %v4957
        %v4975 = vmul.f32 %v4936, %v4957
        %v4976 = vmul.f32 %v4937, %v4957
        %v4977 = vmul.f32 %v4938, %v4957
        %v4978 = vmul.f32 %v4939, %v4957
        %v4979 = vmul.f32 %v4940, %v4957
        %v4980 = vmul.f32 %v4941, %v4957
        %v4981 = vmul.f32 %v4942, %v4957
        %v4982 = vmul.f32 %v4943, %v4957
        %v4983 = vmul.f32 %v4944, %v4957
        %v4984 = vmul.f32 %v4945, %v4957
        %v4985 = vmul.f32 %v4946, %v4957
        %v4986 = vmul.f32 %v4947, %v4957
        %v4987 = vmul.f32 %v4948, %v4957
        %v4988 = vmul.f32 %v4949, %v4957
        %v4989 = vmul.f32 %v4950, %v4957
        %v4990 = vmul.f32 %v4951, %v4957
        %v4991 = vld [vmem:[%s3] sm:$0x1]
        %v4993 = vlaneseq
        %v4994 = vshrl.u32 %v4993, 7
        %v4995 = vsub.s32 0, %v4994
        %v4996 = vrot.slane %v4991, %v4995
        %v4998 = vadd.f32 %v4959, %v4996
        %v4999 = vadd.f32 %v4960, %v4996
        %v5000 = vadd.f32 %v4961, %v4996
        %v5001 = vadd.f32 %v4962, %v4996
        %v5002 = vadd.f32 %v4963, %v4996
        %v5003 = vadd.f32 %v4964, %v4996
        %v5004 = vadd.f32 %v4965, %v4996
        %v5005 = vadd.f32 %v4966, %v4996
        %v5006 = vadd.f32 %v4967, %v4996
        %v5007 = vadd.f32 %v4968, %v4996
        %v5008 = vadd.f32 %v4969, %v4996
        %v5009 = vadd.f32 %v4970, %v4996
        %v5010 = vadd.f32 %v4971, %v4996
        %v5011 = vadd.f32 %v4972, %v4996
        %v5012 = vadd.f32 %v4973, %v4996
        %v5013 = vadd.f32 %v4974, %v4996
        %v5014 = vadd.f32 %v4975, %v4996
        %v5015 = vadd.f32 %v4976, %v4996
        %v5016 = vadd.f32 %v4977, %v4996
        %v5017 = vadd.f32 %v4978, %v4996
        %v5018 = vadd.f32 %v4979, %v4996
        %v5019 = vadd.f32 %v4980, %v4996
        %v5020 = vadd.f32 %v4981, %v4996
        %v5021 = vadd.f32 %v4982, %v4996
        %v5022 = vadd.f32 %v4983, %v4996
        %v5023 = vadd.f32 %v4984, %v4996
        %v5024 = vadd.f32 %v4985, %v4996
        %v5025 = vadd.f32 %v4986, %v4996
        %v5026 = vadd.f32 %v4987, %v4996
        %v5027 = vadd.f32 %v4988, %v4996
        %v5028 = vadd.f32 %v4989, %v4996
        %v5029 = vadd.f32 %v4990, %v4996
        %v5030 = vld [vmem:[%s242] sm:$0xff]
        %v5031 = vld [vmem:[%s242 + $0x8] sm:$0xff]
        %v5032 = vld [vmem:[%s242 + $0x10] sm:$0xff]
        %v5033 = vld [vmem:[%s242 + $0x18] sm:$0xff]
        %v5034 = vld [vmem:[%s242 + $0x20] sm:$0xff]
        %v5035 = vld [vmem:[%s242 + $0x28] sm:$0xff]
        %v5036 = vld [vmem:[%s242 + $0x30] sm:$0xff]
        %v5037 = vld [vmem:[%s242 + $0x38] sm:$0xff]
        %v5038 = vld [vmem:[%s242 + $0x40] sm:$0xff]
        %v5039 = vld [vmem:[%s242 + $0x48] sm:$0xff]
        %v5040 = vld [vmem:[%s242 + $0x50] sm:$0xff]
        %v5041 = vld [vmem:[%s242 + $0x58] sm:$0xff]
        %v5042 = vld [vmem:[%s242 + $0x60] sm:$0xff]
        %v5043 = vld [vmem:[%s242 + $0x68] sm:$0xff]
        %v5044 = vld [vmem:[%s242 + $0x70] sm:$0xff]
        %v5045 = vld [vmem:[%s242 + $0x78] sm:$0xff]
        %v5046 = vld [vmem:[%s242 + $0x80] sm:$0xff]
        %v5047 = vld [vmem:[%s242 + $0x88] sm:$0xff]
        %v5048 = vld [vmem:[%s242 + $0x90] sm:$0xff]
        %v5049 = vld [vmem:[%s242 + $0x98] sm:$0xff]
        %v5050 = vld [vmem:[%s242 + $0xa0] sm:$0xff]
        %v5051 = vld [vmem:[%s242 + $0xa8] sm:$0xff]
        %v5052 = vld [vmem:[%s242 + $0xb0] sm:$0xff]
        %v5053 = vld [vmem:[%s242 + $0xb8] sm:$0xff]
        %v5054 = vld [vmem:[%s242 + $0xc0] sm:$0xff]
        %v5055 = vld [vmem:[%s242 + $0xc8] sm:$0xff]
        %v5056 = vld [vmem:[%s242 + $0xd0] sm:$0xff]
        %v5057 = vld [vmem:[%s242 + $0xd8] sm:$0xff]
        %v5058 = vld [vmem:[%s242 + $0xe0] sm:$0xff]
        %v5059 = vld [vmem:[%s242 + $0xe8] sm:$0xff]
        %v5060 = vld [vmem:[%s242 + $0xf0] sm:$0xff]
        %v5061 = vld [vmem:[%s242 + $0xf8] sm:$0xff]
        %v5062 = vadd.f32 %v4998, %v5030
        %v5063 = vadd.f32 %v4999, %v5031
        %v5064 = vadd.f32 %v5000, %v5032
        %v5065 = vadd.f32 %v5001, %v5033
        %v5066 = vadd.f32 %v5002, %v5034
        %v5067 = vadd.f32 %v5003, %v5035
        %v5068 = vadd.f32 %v5004, %v5036
        %v5069 = vadd.f32 %v5005, %v5037
        %v5070 = vadd.f32 %v5006, %v5038
        %v5071 = vadd.f32 %v5007, %v5039
        %v5072 = vadd.f32 %v5008, %v5040
        %v5073 = vadd.f32 %v5009, %v5041
        %v5074 = vadd.f32 %v5010, %v5042
        %v5075 = vadd.f32 %v5011, %v5043
        %v5076 = vadd.f32 %v5012, %v5044
        %v5077 = vadd.f32 %v5013, %v5045
        %v5078 = vadd.f32 %v5014, %v5046
        %v5079 = vadd.f32 %v5015, %v5047
        %v5080 = vadd.f32 %v5016, %v5048
        %v5081 = vadd.f32 %v5017, %v5049
        %v5082 = vadd.f32 %v5018, %v5050
        %v5083 = vadd.f32 %v5019, %v5051
        %v5084 = vadd.f32 %v5020, %v5052
        %v5085 = vadd.f32 %v5021, %v5053
        %v5086 = vadd.f32 %v5022, %v5054
        %v5087 = vadd.f32 %v5023, %v5055
        %v5088 = vadd.f32 %v5024, %v5056
        %v5089 = vadd.f32 %v5025, %v5057
        %v5090 = vadd.f32 %v5026, %v5058
        %v5091 = vadd.f32 %v5027, %v5059
        %v5092 = vadd.f32 %v5028, %v5060
        %v5093 = vadd.f32 %v5029, %v5061
        %5094 = vst.msk [vmem:[%s232] sm:$0xff] %vm946, %v5062
        %5095 = vst.msk [vmem:[%s232 + $0x8] sm:$0xff] %vm946, %v5063
        %5096 = vst.msk [vmem:[%s232 + $0x10] sm:$0xff] %vm946, %v5064
        %5097 = vst.msk [vmem:[%s232 + $0x18] sm:$0xff] %vm946, %v5065
        %5098 = vst.msk [vmem:[%s232 + $0x20] sm:$0xff] %vm946, %v5066
        %5099 = vst.msk [vmem:[%s232 + $0x28] sm:$0xff] %vm946, %v5067
        %5100 = vst.msk [vmem:[%s232 + $0x30] sm:$0xff] %vm946, %v5068
        %5101 = vst.msk [vmem:[%s232 + $0x38] sm:$0xff] %vm946, %v5069
        %5102 = vst.msk [vmem:[%s232 + $0x40] sm:$0xff] %vm946, %v5070
        %5103 = vst.msk [vmem:[%s232 + $0x48] sm:$0xff] %vm946, %v5071
        %5104 = vst.msk [vmem:[%s232 + $0x50] sm:$0xff] %vm946, %v5072
        %5105 = vst.msk [vmem:[%s232 + $0x58] sm:$0xff] %vm946, %v5073
        %5106 = vst.msk [vmem:[%s232 + $0x60] sm:$0xff] %vm946, %v5074
        %5107 = vst.msk [vmem:[%s232 + $0x68] sm:$0xff] %vm946, %v5075
        %5108 = vst.msk [vmem:[%s232 + $0x70] sm:$0xff] %vm946, %v5076
        %5109 = vst.msk [vmem:[%s232 + $0x78] sm:$0xff] %vm946, %v5077
        %5110 = vst.msk [vmem:[%s232 + $0x80] sm:$0xff] %vm946, %v5078
        %5111 = vst.msk [vmem:[%s232 + $0x88] sm:$0xff] %vm946, %v5079
        %5112 = vst.msk [vmem:[%s232 + $0x90] sm:$0xff] %vm946, %v5080
        %5113 = vst.msk [vmem:[%s232 + $0x98] sm:$0xff] %vm946, %v5081
        %5114 = vst.msk [vmem:[%s232 + $0xa0] sm:$0xff] %vm946, %v5082
        %5115 = vst.msk [vmem:[%s232 + $0xa8] sm:$0xff] %vm946, %v5083
        %5116 = vst.msk [vmem:[%s232 + $0xb0] sm:$0xff] %vm946, %v5084
        %5117 = vst.msk [vmem:[%s232 + $0xb8] sm:$0xff] %vm946, %v5085
        %5118 = vst.msk [vmem:[%s232 + $0xc0] sm:$0xff] %vm946, %v5086
        %5119 = vst.msk [vmem:[%s232 + $0xc8] sm:$0xff] %vm946, %v5087
        %5120 = vst.msk [vmem:[%s232 + $0xd0] sm:$0xff] %vm946, %v5088
        %5121 = vst.msk [vmem:[%s232 + $0xd8] sm:$0xff] %vm946, %v5089
        %5122 = vst.msk [vmem:[%s232 + $0xe0] sm:$0xff] %vm946, %v5090
        %5123 = vst.msk [vmem:[%s232 + $0xe8] sm:$0xff] %vm946, %v5091
        %5124 = vst.msk [vmem:[%s232 + $0xf0] sm:$0xff] %vm946, %v5092
        %5125 = vst.msk [vmem:[%s232 + $0xf8] sm:$0xff] %vm946, %v5093
        %s5126 = sand.u32 %s142, 1
        %s5127 = scalar_lea.sflag [#allocation3], %s5126
        %s5128 = sand.u32 %s142, 1
        %s5129 = smul.addr %s5128, 256
        %s5130 = scalar_lea.vmem [#allocation2], %s5129
        // Predicated region
        $region41: #{bottleneck_ir.3} parent=39 // pred_check
          %p5131 = pneg %p152
        $region42: #{bottleneck_ir.3} parent=39 // pred_check_branch
          %5133 = sbr.rel (%p5131) target = $region44
        $region43: #{bottleneck_ir.3} parent=39 // pred_region
          %s5135 = ssub.s32 4096, 4096
          %5136 = vsyncadd %s5127, %s5135
          %s5137 = smul.addr %s19, 32
          %s5138 = smul.addr %s5137, 128
          %s5139 = scalar_lea.hbm %s5, %s5138
          %s5140 = sshll.u32 %s5130, 4
          %s5141 = int_to_ptr.vmem [resolvable:$true] %s5140
          %5146 = dma.vmem_to_hbm [thread:$0]  %s5141, 4096, %s5139, %s5127, 128, 128, 8
        $region44: #{bottleneck_ir.3} parent=39 // pred_fallthru
          _
      $region40: #{bottleneck_ir.3} parent=5 // pred_fallthru
        _
      %p5147 = scmp.le.s32.totalorder 2, %s14
      // Predicated region
      $region45: #{bottleneck_ir.3} parent=5 // pred_check
        %p5148 = pneg %p5147
      $region46: #{bottleneck_ir.3} parent=5 // pred_check_branch
        %5150 = sbr.rel (%p5148) target = $region48
      $region47: #{bottleneck_ir.3} parent=5 // pred_region
        %s5151 = ssub.s32 %s14, 2
        // Predicated region
        $region49: #{bottleneck_ir.3} parent=47 // pred_check
          %p5152 = pneg %p158
        $region50: #{bottleneck_ir.3} parent=47 // pred_check_branch
          %5154 = sbr.rel (%p5152) target = $region52
        $region51: #{bottleneck_ir.3} parent=47 // pred_region
          %s5155 = sand.u32 %s143, 1
          %s5156 = scalar_lea.sflag [#allocation3], %s5155
          %s5157 = sand.u32 %s143, 1
          %s5158 = smul.addr %s5157, 256
          %s5159 = scalar_lea.vmem [#allocation2], %s5158
          %5160 = dma.done %s5156, 4096
        $region52: #{bottleneck_ir.3} parent=47 // pred_fallthru
          _
      $region48: #{bottleneck_ir.3} parent=5 // pred_fallthru
        _
    $region6: #{bottleneck_ir.3} parent=1 // loop_footer
      %s18 = sadd.s32 1, %s14
    $region7: #{bottleneck_ir.3} parent=1 // loop_footer_branch
      %13 = sbr.rel target = $region3
    $region8: #{bottleneck_ir.3} parent=1 // loop_exit
      _
    %5161 = vsyncpa [#allocation3], 1
    %s5162 = scalar_lea.sflag [#allocation3], 1
    %5163 = vsyncpa %s5162, 1

// kernel: bottleneck_ir.2
$region0: #{bottleneck_ir.2}
  #allocation0 [shape = 'u32[]', space=smem, size = 0x4, offset = 0x4, fixed_abs, tag = 'smem constant byte address 0x4 - core index']
  #allocation1 [shape = 'u32[144,128]{1,0:T(1,128)}', space=vmem, size = 0x12000, scoped, tag = 'internal scratch']
  #allocation2 [shape = 'bf16[1,18,18,64]{3,2,1,0:T(8,128)(2,1)}', space=vmem, size = 0x1b000, scoped, tag = 'scratch operand']
  %s0 = inlined_call_operand.vmem [shape: f32[2,16,16,64], index: 0, kind: input, shape index: {}]
  %s1 = inlined_call_operand.vmem [shape: f32[1,1,64], index: 1, kind: input, shape index: {}]
  %s2 = inlined_call_operand.vmem [shape: f32[1,1,64], index: 2, kind: input, shape index: {}]
  %s3 = inlined_call_operand.vmem [shape: bf16[3,192,64], index: 3, kind: input, shape index: {}]
  %s4 = inlined_call_operand.vmem [shape: f32[1,64], index: 4, kind: input, shape index: {}]
  %s5 = inlined_call_operand.vmem [shape: bf16[2,18,18,64], index: 5, kind: output, shape index: {}]
  %s6 = sld [smem:[#allocation0]]
  $region53: #{bottleneck_ir.2} parent=0
    _
  %s8 = ssub.s32 1, %s6
  %s9 = scalar_select 0, %s8, %s6
  loop: start=0, step=1, limit=4
  $region2: #{bottleneck_ir.2} parent=0 // loop_pre_header
    _
  $region3: #{bottleneck_ir.2} parent=0 // loop_header
    %s11 = sphi 0, %s15
    %p12 = scmp.ge.s32.totalorder %s11, 4
    %s21 = sphi 0, %s23
    %s24 = sphi 0, %s21
    %s25 = sphi 0, %s24
    %s41 = sphi 0, %s25
    %s45 = sphi 0, %s45
    %s47 = sphi 0, %s45
    %s48 = sphi 0, %s47
    %s62 = sphi 0, %s48
    %s66 = sphi 0, %s66
    %s68 = sphi 0, %s66
    %s69 = sphi 0, %s68
    %s83 = sphi 0, %s69
    %s87 = sphi 0, %s87
    %s89 = sphi 0, %s87
    %s90 = sphi 0, %s89
    %s104 = sphi 0, %s90
    %s108 = sphi 0, %s108
    %s110 = sphi 0, %s108
    %s111 = sphi 0, %s110
    %s125 = sphi 0, %s111
    %s131 = sphi 0, %s133
    %s134 = sphi 0, %s131
    %s135 = sphi 0, %s134
    %s151 = sphi 0, %s135
  $region4: #{bottleneck_ir.2} parent=0 // loop_header_branch
    %14 = sbr.rel (%p12) target = $region8
  $region5: #{bottleneck_ir.2} parent=0 // loop_body
    %s16 = ssub.s32 %s11, 1
    %s17 = ssub.s32 %s11, 2
    %s18 = sadd.s32 %s11, 1
    %s19 = ssub.s32 %s11, %s18
    %p20 = scmp.eq.s32.totalorder %s19, 0
    %s22 = sadd.s32 %s21, 1
    %s23 = scalar_select %p20, %s21, %s22
    %p26 = pneg %p20
    %p27 = scmp.eq.s32.totalorder %s11, 1
    %p28 = por %p26, %p27
    %p29 = scmp.ne.s32.totalorder %s21, %s24
    %p30 = scmp.eq.s32.totalorder %s11, 0
    %p31 = por %p29, %p30
    %p32 = scmp.ne.s32.totalorder %s21, %s24
    %p33 = scmp.eq.s32.totalorder %s16, 1
    %p34 = por %p32, %p33
    %p35 = scmp.ne.s32.totalorder %s24, %s25
    %p36 = scmp.eq.s32.totalorder %s16, 0
    %p37 = por %p35, %p36
    %p38 = scmp.ne.s32.totalorder %s24, %s25
    %p39 = scmp.eq.s32.totalorder %s17, 1
    %p40 = por %p38, %p39
    %p42 = scmp.ne.s32.totalorder %s25, %s41
    %p43 = scmp.eq.s32.totalorder %s17, 0
    %p44 = por %p42, %p43
    %s46 = sadd.s32 %s45, 1
    %p49 = scmp.eq.s32.totalorder %s11, 1
    %p50 = scmp.ne.s32.totalorder %s45, %s47
    %p51 = scmp.eq.s32.totalorder %s11, 0
    %p52 = por %p50, %p51
    %p53 = scmp.ne.s32.totalorder %s45, %s47
    %p54 = scmp.eq.s32.totalorder %s16, 1
    %p55 = por %p53, %p54
    %p56 = scmp.ne.s32.totalorder %s47, %s48
    %p57 = scmp.eq.s32.totalorder %s16, 0
    %p58 = por %p56, %p57
    %p59 = scmp.ne.s32.totalorder %s47, %s48
    %p60 = scmp.eq.s32.totalorder %s17, 1
    %p61 = por %p59, %p60
    %p63 = scmp.ne.s32.totalorder %s48, %s62
    %p64 = scmp.eq.s32.totalorder %s17, 0
    %p65 = por %p63, %p64
    %s67 = sadd.s32 %s66, 1
    %p70 = scmp.eq.s32.totalorder %s11, 1
    %p71 = scmp.ne.s32.totalorder %s66, %s68
    %p72 = scmp.eq.s32.totalorder %s11, 0
    %p73 = por %p71, %p72
    %p74 = scmp.ne.s32.totalorder %s66, %s68
    %p75 = scmp.eq.s32.totalorder %s16, 1
    %p76 = por %p74, %p75
    %p77 = scmp.ne.s32.totalorder %s68, %s69
    %p78 = scmp.eq.s32.totalorder %s16, 0
    %p79 = por %p77, %p78
    %p80 = scmp.ne.s32.totalorder %s68, %s69
    %p81 = scmp.eq.s32.totalorder %s17, 1
    %p82 = por %p80, %p81
    %p84 = scmp.ne.s32.totalorder %s69, %s83
    %p85 = scmp.eq.s32.totalorder %s17, 0
    %p86 = por %p84, %p85
    %s88 = sadd.s32 %s87, 1
    %p91 = scmp.eq.s32.totalorder %s11, 1
    %p92 = scmp.ne.s32.totalorder %s87, %s89
    %p93 = scmp.eq.s32.totalorder %s11, 0
    %p94 = por %p92, %p93
    %p95 = scmp.ne.s32.totalorder %s87, %s89
    %p96 = scmp.eq.s32.totalorder %s16, 1
    %p97 = por %p95, %p96
    %p98 = scmp.ne.s32.totalorder %s89, %s90
    %p99 = scmp.eq.s32.totalorder %s16, 0
    %p100 = por %p98, %p99
    %p101 = scmp.ne.s32.totalorder %s89, %s90
    %p102 = scmp.eq.s32.totalorder %s17, 1
    %p103 = por %p101, %p102
    %p105 = scmp.ne.s32.totalorder %s90, %s104
    %p106 = scmp.eq.s32.totalorder %s17, 0
    %p107 = por %p105, %p106
    %s109 = sadd.s32 %s108, 1
    %p112 = scmp.eq.s32.totalorder %s11, 1
    %p113 = scmp.ne.s32.totalorder %s108, %s110
    %p114 = scmp.eq.s32.totalorder %s11, 0
    %p115 = por %p113, %p114
    %p116 = scmp.ne.s32.totalorder %s108, %s110
    %p117 = scmp.eq.s32.totalorder %s16, 1
    %p118 = por %p116, %p117
    %p119 = scmp.ne.s32.totalorder %s110, %s111
    %p120 = scmp.eq.s32.totalorder %s16, 0
    %p121 = por %p119, %p120
    %p122 = scmp.ne.s32.totalorder %s110, %s111
    %p123 = scmp.eq.s32.totalorder %s17, 1
    %p124 = por %p122, %p123
    %p126 = scmp.ne.s32.totalorder %s111, %s125
    %p127 = scmp.eq.s32.totalorder %s17, 0
    %p128 = por %p126, %p127
    %s129 = ssub.s32 %s11, %s18
    %p130 = scmp.eq.s32.totalorder %s129, 0
    %s132 = sadd.s32 %s131, 1
    %s133 = scalar_select %p130, %s131, %s132
    %p136 = pneg %p130
    %p137 = scmp.eq.s32.totalorder %s11, 1
    %p138 = por %p136, %p137
    %p139 = scmp.ne.s32.totalorder %s131, %s134
    %p140 = scmp.eq.s32.totalorder %s11, 0
    %p141 = por %p139, %p140
    %p142 = scmp.ne.s32.totalorder %s131, %s134
    %p143 = scmp.eq.s32.totalorder %s16, 1
    %p144 = por %p142, %p143
    %p145 = scmp.ne.s32.totalorder %s134, %s135
    %p146 = scmp.eq.s32.totalorder %s16, 0
    %p147 = por %p145, %p146
    %p148 = scmp.ne.s32.totalorder %s134, %s135
    %p149 = scmp.eq.s32.totalorder %s17, 1
    %p150 = por %p148, %p149
    %p152 = scmp.ne.s32.totalorder %s135, %s151
    %p153 = scmp.eq.s32.totalorder %s17, 0
    %p154 = por %p152, %p153
    %p155 = scmp.le.s32.totalorder 1, %s11
    %p156 = scmp.lt.s32.totalorder %s11, 3
    %p157 = pnand %p155, %p156
    %p158 = pneg %p157
    // Predicated region
    $region9: #{bottleneck_ir.2} parent=5 // pred_check
      _
    $region10: #{bottleneck_ir.2} parent=5 // pred_check_branch
      %160 = sbr.rel (%p157) target = $region12
    $region11: #{bottleneck_ir.2} parent=5 // pred_region
      %s161 = ssub.s32 %s11, 1
      // Predicated region
      $region13: #{bottleneck_ir.2} parent=11 // pred_check
        %p162 = pneg %p58
      $region14: #{bottleneck_ir.2} parent=11 // pred_check_branch
        %164 = sbr.rel (%p162) target = $region16
      $region15: #{bottleneck_ir.2} parent=11 // pred_region
        _
      $region16: #{bottleneck_ir.2} parent=11 // pred_fallthru
        _
      // Predicated region
      $region17: #{bottleneck_ir.2} parent=11 // pred_check
        %p165 = pneg %p79
      $region18: #{bottleneck_ir.2} parent=11 // pred_check_branch
        %167 = sbr.rel (%p165) target = $region20
      $region19: #{bottleneck_ir.2} parent=11 // pred_region
        _
      $region20: #{bottleneck_ir.2} parent=11 // pred_fallthru
        _
      // Predicated region
      $region21: #{bottleneck_ir.2} parent=11 // pred_check
        %p168 = pneg %p100
      $region22: #{bottleneck_ir.2} parent=11 // pred_check_branch
        %170 = sbr.rel (%p168) target = $region24
      $region23: #{bottleneck_ir.2} parent=11 // pred_region
        _
      $region24: #{bottleneck_ir.2} parent=11 // pred_fallthru
        _
      // Predicated region
      $region25: #{bottleneck_ir.2} parent=11 // pred_check
        %p171 = pneg %p121
      $region26: #{bottleneck_ir.2} parent=11 // pred_check_branch
        %173 = sbr.rel (%p171) target = $region28
      $region27: #{bottleneck_ir.2} parent=11 // pred_region
        _
      $region28: #{bottleneck_ir.2} parent=11 // pred_fallthru
        _
    $region12: #{bottleneck_ir.2} parent=5 // pred_fallthru
      _
    %p174 = scmp.lt.s32.totalorder %s11, 2
    // Predicated region
    $region29: #{bottleneck_ir.2} parent=5 // pred_check
      %p175 = pneg %p174
    $region30: #{bottleneck_ir.2} parent=5 // pred_check_branch
      %177 = sbr.rel (%p175) target = $region32
    $region31: #{bottleneck_ir.2} parent=5 // pred_region
      // Predicated region
      $region33: #{bottleneck_ir.2} parent=31 // pred_check
        %p178 = pneg %p31
      $region34: #{bottleneck_ir.2} parent=31 // pred_check_branch
        %180 = sbr.rel (%p178) target = $region36
      $region35: #{bottleneck_ir.2} parent=31 // pred_region
        %p181 = scmp.lt.s32.totalorder %s11, 1
        %s182 = scalar_select %p181, %s11, 1
        %s183 = smul.addr %s182, 32
        %s184 = smul.addr %s183, 8
        %s185 = scalar_lea.vmem %s0, %s184
      $region36: #{bottleneck_ir.2} parent=31 // pred_fallthru
        _
    $region32: #{bottleneck_ir.2} parent=5 // pred_fallthru
      _
    %p186 = scmp.le.s32.totalorder 1, %s11
    %p187 = scmp.lt.s32.totalorder %s11, 3
    %p188 = pnand %p186, %p187
    %p189 = pneg %p188
    // Predicated region
    $region37: #{bottleneck_ir.2} parent=5 // pred_check
      _
    $region38: #{bottleneck_ir.2} parent=5 // pred_check_branch
      %191 = sbr.rel (%p188) target = $region40
    $region39: #{bottleneck_ir.2} parent=5 // pred_region
      %s192 = ssub.s32 %s11, 1
      %p193 = scmp.lt.s32.totalorder %s16, 1
      %s194 = scalar_select %p193, %s16, 1
      %s195 = smul.addr %s194, 32
      %s196 = smul.addr %s195, 8
      %s197 = scalar_lea.vmem %s0, %s196
      %p198 = pneg %p37
      %p199 = pneg %p34
      %p200 = pneg %p58
      %p201 = pneg %p55
      %p202 = pneg %p79
      %p203 = pneg %p76
      %p204 = pneg %p100
      %p205 = pneg %p97
      %p206 = pneg %p121
      %p207 = pneg %p118
      %p208 = pneg %p147
      %p209 = pneg %p144
      %p210 = scmp.lt.s32.totalorder %s16, 1
      %s211 = scalar_select %p210, %s16, 1
      %s212 = smul.addr %s211, 54
      %s213 = smul.addr %s212, 4
      %s214 = scalar_lea.vmem %s5, %s213
      %p215 = scmp.lt.s32.totalorder %s16, 1
      %s216 = scalar_select %p215, %s16, 1
      %s217 = smul.addr %s216, 32
      %s218 = smul.addr %s217, 8
      %s219 = scalar_lea.vmem %s0, %s218
      %p220 = scmp.lt.s32.totalorder %s16, 1
      %s221 = scalar_select %p220, %s16, 1
      %s222 = smul.addr %s221, 54
      %s223 = smul.addr %s222, 4
      %s224 = scalar_lea.vmem %s5, %s223
      %vm226 = vcmask 519168
      %227 = vst.msk [vmem:[#allocation2] sm:$0xf] %vm226, 0
      %228 = vst.msk [vmem:[#allocation2 + $0x4] sm:$0xf] %vm226, 0
      %vm229 = vcmask 516096
      %230 = vst.msk [vmem:[#allocation2 + $0x8] sm:$0x1] %vm229, 0
      %231 = vst.msk [vmem:[#allocation2 + $0xc] sm:$0xf] %vm226, 0
      %232 = vst.msk [vmem:[#allocation2 + $0x10] sm:$0xf] %vm226, 0
      %233 = vst.msk [vmem:[#allocation2 + $0x14] sm:$0x1] %vm229, 0
      %234 = vst.msk [vmem:[#allocation2 + $0x18] sm:$0xf] %vm226, 0
      %235 = vst.msk [vmem:[#allocation2 + $0x1c] sm:$0xf] %vm226, 0
      %236 = vst.msk [vmem:[#allocation2 + $0x20] sm:$0x1] %vm229, 0
      %237 = vst.msk [vmem:[#allocation2 + $0x24] sm:$0xf] %vm226, 0
      %238 = vst.msk [vmem:[#allocation2 + $0x28] sm:$0xf] %vm226, 0
      %239 = vst.msk [vmem:[#allocation2 + $0x2c] sm:$0x1] %vm229, 0
      %240 = vst.msk [vmem:[#allocation2 + $0x30] sm:$0xf] %vm226, 0
      %241 = vst.msk [vmem:[#allocation2 + $0x34] sm:$0xf] %vm226, 0
      %242 = vst.msk [vmem:[#allocation2 + $0x38] sm:$0x1] %vm229, 0
      %243 = vst.msk [vmem:[#allocation2 + $0x3c] sm:$0xf] %vm226, 0
      %244 = vst.msk [vmem:[#allocation2 + $0x40] sm:$0xf] %vm226, 0
      %245 = vst.msk [vmem:[#allocation2 + $0x44] sm:$0x1] %vm229, 0
      %246 = vst.msk [vmem:[#allocation2 + $0x48] sm:$0xf] %vm226, 0
      %247 = vst.msk [vmem:[#allocation2 + $0x4c] sm:$0xf] %vm226, 0
      %248 = vst.msk [vmem:[#allocation2 + $0x50] sm:$0x1] %vm229, 0
      %249 = vst.msk [vmem:[#allocation2 + $0x54] sm:$0xf] %vm226, 0
      %250 = vst.msk [vmem:[#allocation2 + $0x58] sm:$0xf] %vm226, 0
      %251 = vst.msk [vmem:[#allocation2 + $0x5c] sm:$0x1] %vm229, 0
      %252 = vst.msk [vmem:[#allocation2 + $0x60] sm:$0xf] %vm226, 0
      %253 = vst.msk [vmem:[#allocation2 + $0x64] sm:$0xf] %vm226, 0
      %254 = vst.msk [vmem:[#allocation2 + $0x68] sm:$0x1] %vm229, 0
      %255 = vst.msk [vmem:[#allocation2 + $0x6c] sm:$0xf] %vm226, 0
      %256 = vst.msk [vmem:[#allocation2 + $0x70] sm:$0xf] %vm226, 0
      %257 = vst.msk [vmem:[#allocation2 + $0x74] sm:$0x1] %vm229, 0
      %258 = vst.msk [vmem:[#allocation2 + $0x78] sm:$0xf] %vm226, 0
      %259 = vst.msk [vmem:[#allocation2 + $0x7c] sm:$0xf] %vm226, 0
      %260 = vst.msk [vmem:[#allocation2 + $0x80] sm:$0x1] %vm229, 0
      %261 = vst.msk [vmem:[#allocation2 + $0x84] sm:$0xf] %vm226, 0
      %262 = vst.msk [vmem:[#allocation2 + $0x88] sm:$0xf] %vm226, 0
      %263 = vst.msk [vmem:[#allocation2 + $0x8c] sm:$0x1] %vm229, 0
      %264 = vst.msk [vmem:[#allocation2 + $0x90] sm:$0xf] %vm226, 0
      %265 = vst.msk [vmem:[#allocation2 + $0x94] sm:$0xf] %vm226, 0
      %266 = vst.msk [vmem:[#allocation2 + $0x98] sm:$0x1] %vm229, 0
      %267 = vst.msk [vmem:[#allocation2 + $0x9c] sm:$0xf] %vm226, 0
      %268 = vst.msk [vmem:[#allocation2 + $0xa0] sm:$0xf] %vm226, 0
      %269 = vst.msk [vmem:[#allocation2 + $0xa4] sm:$0x1] %vm229, 0
      %270 = vst.msk [vmem:[#allocation2 + $0xa8] sm:$0xf] %vm226, 0
      %271 = vst.msk [vmem:[#allocation2 + $0xac] sm:$0xf] %vm226, 0
      %272 = vst.msk [vmem:[#allocation2 + $0xb0] sm:$0x1] %vm229, 0
      %273 = vst.msk [vmem:[#allocation2 + $0xb4] sm:$0xf] %vm226, 0
      %274 = vst.msk [vmem:[#allocation2 + $0xb8] sm:$0xf] %vm226, 0
      %275 = vst.msk [vmem:[#allocation2 + $0xbc] sm:$0x1] %vm229, 0
      %276 = vst.msk [vmem:[#allocation2 + $0xc0] sm:$0xf] %vm226, 0
      %277 = vst.msk [vmem:[#allocation2 + $0xc4] sm:$0xf] %vm226, 0
      %278 = vst.msk [vmem:[#allocation2 + $0xc8] sm:$0x1] %vm229, 0
      %279 = vst.msk [vmem:[#allocation2 + $0xcc] sm:$0xf] %vm226, 0
      %280 = vst.msk [vmem:[#allocation2 + $0xd0] sm:$0xf] %vm226, 0
      %281 = vst.msk [vmem:[#allocation2 + $0xd4] sm:$0x1] %vm229, 0
      %v282 = vld [vmem:[%s219] sm:$0xff]
      %v283 = vld [vmem:[%s219 + $0x8] sm:$0xff]
      %v284 = vld [vmem:[%s219 + $0x10] sm:$0xff]
      %v285 = vld [vmem:[%s219 + $0x18] sm:$0xff]
      %v286 = vld [vmem:[%s219 + $0x20] sm:$0xff]
      %v287 = vld [vmem:[%s219 + $0x28] sm:$0xff]
      %v288 = vld [vmem:[%s219 + $0x30] sm:$0xff]
      %v289 = vld [vmem:[%s219 + $0x38] sm:$0xff]
      %v290 = vld [vmem:[%s219 + $0x40] sm:$0xff]
      %v291 = vld [vmem:[%s219 + $0x48] sm:$0xff]
      %v292 = vld [vmem:[%s219 + $0x50] sm:$0xff]
      %v293 = vld [vmem:[%s219 + $0x58] sm:$0xff]
      %v294 = vld [vmem:[%s219 + $0x60] sm:$0xff]
      %v295 = vld [vmem:[%s219 + $0x68] sm:$0xff]
      %v296 = vld [vmem:[%s219 + $0x70] sm:$0xff]
      %v297 = vld [vmem:[%s219 + $0x78] sm:$0xff]
      %v298 = vld [vmem:[%s219 + $0x80] sm:$0xff]
      %v299 = vld [vmem:[%s219 + $0x88] sm:$0xff]
      %v300 = vld [vmem:[%s219 + $0x90] sm:$0xff]
      %v301 = vld [vmem:[%s219 + $0x98] sm:$0xff]
      %v302 = vld [vmem:[%s219 + $0xa0] sm:$0xff]
      %v303 = vld [vmem:[%s219 + $0xa8] sm:$0xff]
      %v304 = vld [vmem:[%s219 + $0xb0] sm:$0xff]
      %v305 = vld [vmem:[%s219 + $0xb8] sm:$0xff]
      %v306 = vld [vmem:[%s219 + $0xc0] sm:$0xff]
      %v307 = vld [vmem:[%s219 + $0xc8] sm:$0xff]
      %v308 = vld [vmem:[%s219 + $0xd0] sm:$0xff]
      %v309 = vld [vmem:[%s219 + $0xd8] sm:$0xff]
      %v310 = vld [vmem:[%s219 + $0xe0] sm:$0xff]
      %v311 = vld [vmem:[%s219 + $0xe8] sm:$0xff]
      %v312 = vld [vmem:[%s219 + $0xf0] sm:$0xff]
      %v313 = vld [vmem:[%s219 + $0xf8] sm:$0xff]
      %v314 = vld [vmem:[%s1] sm:$0x1]
      %v316 = vlaneseq
      %v317 = vshrl.u32 %v316, 7
      %v318 = vsub.s32 0, %v317
      %v319 = vrot.slane %v314, %v318
      %v321 = vmul.f32 %v282, %v319
      %v322 = vmul.f32 %v283, %v319
      %v323 = vmul.f32 %v284, %v319
      %v324 = vmul.f32 %v285, %v319
      %v325 = vmul.f32 %v286, %v319
      %v326 = vmul.f32 %v287, %v319
      %v327 = vmul.f32 %v288, %v319
      %v328 = vmul.f32 %v289, %v319
      %v329 = vmul.f32 %v290, %v319
      %v330 = vmul.f32 %v291, %v319
      %v331 = vmul.f32 %v292, %v319
      %v332 = vmul.f32 %v293, %v319
      %v333 = vmul.f32 %v294, %v319
      %v334 = vmul.f32 %v295, %v319
      %v335 = vmul.f32 %v296, %v319
      %v336 = vmul.f32 %v297, %v319
      %v337 = vmul.f32 %v298, %v319
      %v338 = vmul.f32 %v299, %v319
      %v339 = vmul.f32 %v300, %v319
      %v340 = vmul.f32 %v301, %v319
      %v341 = vmul.f32 %v302, %v319
      %v342 = vmul.f32 %v303, %v319
      %v343 = vmul.f32 %v304, %v319
      %v344 = vmul.f32 %v305, %v319
      %v345 = vmul.f32 %v306, %v319
      %v346 = vmul.f32 %v307, %v319
      %v347 = vmul.f32 %v308, %v319
      %v348 = vmul.f32 %v309, %v319
      %v349 = vmul.f32 %v310, %v319
      %v350 = vmul.f32 %v311, %v319
      %v351 = vmul.f32 %v312, %v319
      %v352 = vmul.f32 %v313, %v319
      %v353 = vld [vmem:[%s2] sm:$0x1]
      %v355 = vlaneseq
      %v356 = vshrl.u32 %v355, 7
      %v357 = vsub.s32 0, %v356
      %v358 = vrot.slane %v353, %v357
      %v360 = vadd.f32 %v321, %v358
      %v361 = vadd.f32 %v322, %v358
      %v362 = vadd.f32 %v323, %v358
      %v363 = vadd.f32 %v324, %v358
      %v364 = vadd.f32 %v325, %v358
      %v365 = vadd.f32 %v326, %v358
      %v366 = vadd.f32 %v327, %v358
      %v367 = vadd.f32 %v328, %v358
      %v368 = vadd.f32 %v329, %v358
      %v369 = vadd.f32 %v330, %v358
      %v370 = vadd.f32 %v331, %v358
      %v371 = vadd.f32 %v332, %v358
      %v372 = vadd.f32 %v333, %v358
      %v373 = vadd.f32 %v334, %v358
      %v374 = vadd.f32 %v335, %v358
      %v375 = vadd.f32 %v336, %v358
      %v376 = vadd.f32 %v337, %v358
      %v377 = vadd.f32 %v338, %v358
      %v378 = vadd.f32 %v339, %v358
      %v379 = vadd.f32 %v340, %v358
      %v380 = vadd.f32 %v341, %v358
      %v381 = vadd.f32 %v342, %v358
      %v382 = vadd.f32 %v343, %v358
      %v383 = vadd.f32 %v344, %v358
      %v384 = vadd.f32 %v345, %v358
      %v385 = vadd.f32 %v346, %v358
      %v386 = vadd.f32 %v347, %v358
      %v387 = vadd.f32 %v348, %v358
      %v388 = vadd.f32 %v349, %v358
      %v389 = vadd.f32 %v350, %v358
      %v390 = vadd.f32 %v351, %v358
      %v391 = vadd.f32 %v352, %v358
      %v392 = vpack.c.bf16 %v361, %v360
      %v393 = vpack.c.bf16 %v363, %v362
      %v394 = vpack.c.bf16 %v365, %v364
      %v395 = vpack.c.bf16 %v367, %v366
      %v396 = vpack.c.bf16 %v369, %v368
      %v397 = vpack.c.bf16 %v371, %v370
      %v398 = vpack.c.bf16 %v373, %v372
      %v399 = vpack.c.bf16 %v375, %v374
      %v400 = vpack.c.bf16 %v377, %v376
      %v401 = vpack.c.bf16 %v379, %v378
      %v402 = vpack.c.bf16 %v381, %v380
      %v403 = vpack.c.bf16 %v383, %v382
      %v404 = vpack.c.bf16 %v385, %v384
      %v405 = vpack.c.bf16 %v387, %v386
      %v406 = vpack.c.bf16 %v389, %v388
      %v407 = vpack.c.bf16 %v391, %v390
      %v424 = vunpack.c.l.b16 %v392
      %v425 = vunpack.c.h.b16 %v392
      %v426 = vunpack.c.l.b16 %v393
      %v427 = vunpack.c.h.b16 %v393
      %v428 = vunpack.c.l.b16 %v394
      %v429 = vunpack.c.h.b16 %v394
      %v430 = vunpack.c.l.b16 %v395
      %v431 = vunpack.c.h.b16 %v395
      %v432 = vunpack.c.l.b16 %v396
      %v433 = vunpack.c.h.b16 %v396
      %v434 = vunpack.c.l.b16 %v397
      %v435 = vunpack.c.h.b16 %v397
      %v436 = vunpack.c.l.b16 %v398
      %v437 = vunpack.c.h.b16 %v398
      %v438 = vunpack.c.l.b16 %v399
      %v439 = vunpack.c.h.b16 %v399
      %v440 = vunpack.c.l.b16 %v400
      %v441 = vunpack.c.h.b16 %v400
      %v442 = vunpack.c.l.b16 %v401
      %v443 = vunpack.c.h.b16 %v401
      %v444 = vunpack.c.l.b16 %v402
      %v445 = vunpack.c.h.b16 %v402
      %v446 = vunpack.c.l.b16 %v403
      %v447 = vunpack.c.h.b16 %v403
      %v448 = vunpack.c.l.b16 %v404
      %v449 = vunpack.c.h.b16 %v404
      %v450 = vunpack.c.l.b16 %v405
      %v451 = vunpack.c.h.b16 %v405
      %v452 = vunpack.c.l.b16 %v406
      %v453 = vunpack.c.h.b16 %v406
      %v454 = vunpack.c.l.b16 %v407
      %v455 = vunpack.c.h.b16 %v407
      %v456 = vpack.c.b16 %v424, %v424
      %v457 = vpack.c.b16 %v425, %v425
      %v458 = vpack.c.b16 %v426, %v426
      %v459 = vpack.c.b16 %v427, %v427
      %v460 = vpack.c.b16 %v428, %v428
      %v461 = vpack.c.b16 %v429, %v429
      %v462 = vpack.c.b16 %v430, %v430
      %v463 = vpack.c.b16 %v431, %v431
      %v464 = vpack.c.b16 %v432, %v432
      %v465 = vpack.c.b16 %v433, %v433
      %v466 = vpack.c.b16 %v434, %v434
      %v467 = vpack.c.b16 %v435, %v435
      %v468 = vpack.c.b16 %v436, %v436
      %v469 = vpack.c.b16 %v437, %v437
      %v470 = vpack.c.b16 %v438, %v438
      %v471 = vpack.c.b16 %v439, %v439
      %v472 = vpack.c.b16 %v440, %v440
      %v473 = vpack.c.b16 %v441, %v441
      %v474 = vpack.c.b16 %v442, %v442
      %v475 = vpack.c.b16 %v443, %v443
      %v476 = vpack.c.b16 %v444, %v444
      %v477 = vpack.c.b16 %v445, %v445
      %v478 = vpack.c.b16 %v446, %v446
      %v479 = vpack.c.b16 %v447, %v447
      %v480 = vpack.c.b16 %v448, %v448
      %v481 = vpack.c.b16 %v449, %v449
      %v482 = vpack.c.b16 %v450, %v450
      %v483 = vpack.c.b16 %v451, %v451
      %v484 = vpack.c.b16 %v452, %v452
      %v485 = vpack.c.b16 %v453, %v453
      %v486 = vpack.c.b16 %v454, %v454
      %v487 = vpack.c.b16 %v455, %v455
      %vm488 = vsmask.f32 256
      %vm489 = vsmask.f32 4368
      %vm490 = vmor %vm488, %vm489
      %v492 = vshrl.u32 %v456, 16
      %v494 = vrot.slane %v492, 7
      %v495 = vshll.u32 %v456, 16
      %v497 = vor.u32 %v494, %v495
      %v498 = vrot.slane %v494, 4
      %v500 = vshrl.u32 %v457, 16
      %v502 = vrot.slane %v500, 7
      %v503 = vshll.u32 %v457, 16
      %v505 = vor.u32 %v502, %v503
      %v506 = vsel %vm490, %v498, %v505
      %v507 = vrot.slane %v502, 4
      %v509 = vshrl.u32 %v458, 16
      %v511 = vrot.slane %v509, 7
      %v512 = vshll.u32 %v458, 16
      %v514 = vor.u32 %v511, %v512
      %v515 = vrot.slane %v511, 4
      %v517 = vshrl.u32 %v459, 16
      %v519 = vrot.slane %v517, 7
      %v520 = vshll.u32 %v459, 16
      %v522 = vor.u32 %v519, %v520
      %v523 = vsel %vm490, %v515, %v522
      %v524 = vrot.slane %v519, 4
      %v526 = vshrl.u32 %v460, 16
      %v528 = vrot.slane %v526, 7
      %v529 = vshll.u32 %v460, 16
      %v531 = vor.u32 %v528, %v529
      %v532 = vrot.slane %v528, 4
      %v534 = vshrl.u32 %v461, 16
      %v536 = vrot.slane %v534, 7
      %v537 = vshll.u32 %v461, 16
      %v539 = vor.u32 %v536, %v537
      %v540 = vsel %vm490, %v532, %v539
      %v541 = vrot.slane %v536, 4
      %v543 = vshrl.u32 %v462, 16
      %v545 = vrot.slane %v543, 7
      %v546 = vshll.u32 %v462, 16
      %v548 = vor.u32 %v545, %v546
      %v549 = vrot.slane %v545, 4
      %v551 = vshrl.u32 %v463, 16
      %v553 = vrot.slane %v551, 7
      %v554 = vshll.u32 %v463, 16
      %v556 = vor.u32 %v553, %v554
      %v557 = vsel %vm490, %v549, %v556
      %v558 = vrot.slane %v553, 4
      %v560 = vshrl.u32 %v464, 16
      %v562 = vrot.slane %v560, 7
      %v563 = vshll.u32 %v464, 16
      %v565 = vor.u32 %v562, %v563
      %v566 = vrot.slane %v562, 4
      %v568 = vshrl.u32 %v465, 16
      %v570 = vrot.slane %v568, 7
      %v571 = vshll.u32 %v465, 16
      %v573 = vor.u32 %v570, %v571
      %v574 = vsel %vm490, %v566, %v573
      %v575 = vrot.slane %v570, 4
      %v577 = vshrl.u32 %v466, 16
      %v579 = vrot.slane %v577, 7
      %v580 = vshll.u32 %v466, 16
      %v582 = vor.u32 %v579, %v580
      %v583 = vrot.slane %v579, 4
      %v585 = vshrl.u32 %v467, 16
      %v587 = vrot.slane %v585, 7
      %v588 = vshll.u32 %v467, 16
      %v590 = vor.u32 %v587, %v588
      %v591 = vsel %vm490, %v583, %v590
      %v592 = vrot.slane %v587, 4
      %v594 = vshrl.u32 %v468, 16
      %v596 = vrot.slane %v594, 7
      %v597 = vshll.u32 %v468, 16
      %v599 = vor.u32 %v596, %v597
      %v600 = vrot.slane %v596, 4
      %v602 = vshrl.u32 %v469, 16
      %v604 = vrot.slane %v602, 7
      %v605 = vshll.u32 %v469, 16
      %v607 = vor.u32 %v604, %v605
      %v608 = vsel %vm490, %v600, %v607
      %v609 = vrot.slane %v604, 4
      %v611 = vshrl.u32 %v470, 16
      %v613 = vrot.slane %v611, 7
      %v614 = vshll.u32 %v470, 16
      %v616 = vor.u32 %v613, %v614
      %v617 = vrot.slane %v613, 4
      %v619 = vshrl.u32 %v471, 16
      %v621 = vrot.slane %v619, 7
      %v622 = vshll.u32 %v471, 16
      %v624 = vor.u32 %v621, %v622
      %v625 = vsel %vm490, %v617, %v624
      %v626 = vrot.slane %v621, 4
      %v628 = vshrl.u32 %v472, 16
      %v630 = vrot.slane %v628, 7
      %v631 = vshll.u32 %v472, 16
      %v633 = vor.u32 %v630, %v631
      %v634 = vrot.slane %v630, 4
      %v636 = vshrl.u32 %v473, 16
      %v638 = vrot.slane %v636, 7
      %v639 = vshll.u32 %v473, 16
      %v641 = vor.u32 %v638, %v639
      %v642 = vsel %vm490, %v634, %v641
      %v643 = vrot.slane %v638, 4
      %v645 = vshrl.u32 %v474, 16
      %v647 = vrot.slane %v645, 7
      %v648 = vshll.u32 %v474, 16
      %v650 = vor.u32 %v647, %v648
      %v651 = vrot.slane %v647, 4
      %v653 = vshrl.u32 %v475, 16
      %v655 = vrot.slane %v653, 7
      %v656 = vshll.u32 %v475, 16
      %v658 = vor.u32 %v655, %v656
      %v659 = vsel %vm490, %v651, %v658
      %v660 = vrot.slane %v655, 4
      %v662 = vshrl.u32 %v476, 16
      %v664 = vrot.slane %v662, 7
      %v665 = vshll.u32 %v476, 16
      %v667 = vor.u32 %v664, %v665
      %v668 = vrot.slane %v664, 4
      %v670 = vshrl.u32 %v477, 16
      %v672 = vrot.slane %v670, 7
      %v673 = vshll.u32 %v477, 16
      %v675 = vor.u32 %v672, %v673
      %v676 = vsel %vm490, %v668, %v675
      %v677 = vrot.slane %v672, 4
      %v679 = vshrl.u32 %v478, 16
      %v681 = vrot.slane %v679, 7
      %v682 = vshll.u32 %v478, 16
      %v684 = vor.u32 %v681, %v682
      %v685 = vrot.slane %v681, 4
      %v687 = vshrl.u32 %v479, 16
      %v689 = vrot.slane %v687, 7
      %v690 = vshll.u32 %v479, 16
      %v692 = vor.u32 %v689, %v690
      %v693 = vsel %vm490, %v685, %v692
      %v694 = vrot.slane %v689, 4
      %v696 = vshrl.u32 %v480, 16
      %v698 = vrot.slane %v696, 7
      %v699 = vshll.u32 %v480, 16
      %v701 = vor.u32 %v698, %v699
      %v702 = vrot.slane %v698, 4
      %v704 = vshrl.u32 %v481, 16
      %v706 = vrot.slane %v704, 7
      %v707 = vshll.u32 %v481, 16
      %v709 = vor.u32 %v706, %v707
      %v710 = vsel %vm490, %v702, %v709
      %v711 = vrot.slane %v706, 4
      %v713 = vshrl.u32 %v482, 16
      %v715 = vrot.slane %v713, 7
      %v716 = vshll.u32 %v482, 16
      %v718 = vor.u32 %v715, %v716
      %v719 = vrot.slane %v715, 4
      %v721 = vshrl.u32 %v483, 16
      %v723 = vrot.slane %v721, 7
      %v724 = vshll.u32 %v483, 16
      %v726 = vor.u32 %v723, %v724
      %v727 = vsel %vm490, %v719, %v726
      %v728 = vrot.slane %v723, 4
      %v730 = vshrl.u32 %v484, 16
      %v732 = vrot.slane %v730, 7
      %v733 = vshll.u32 %v484, 16
      %v735 = vor.u32 %v732, %v733
      %v736 = vrot.slane %v732, 4
      %v738 = vshrl.u32 %v485, 16
      %v740 = vrot.slane %v738, 7
      %v741 = vshll.u32 %v485, 16
      %v743 = vor.u32 %v740, %v741
      %v744 = vsel %vm490, %v736, %v743
      %v745 = vrot.slane %v740, 4
      %v747 = vshrl.u32 %v486, 16
      %v749 = vrot.slane %v747, 7
      %v750 = vshll.u32 %v486, 16
      %v752 = vor.u32 %v749, %v750
      %v753 = vrot.slane %v749, 4
      %v755 = vshrl.u32 %v487, 16
      %v757 = vrot.slane %v755, 7
      %v758 = vshll.u32 %v487, 16
      %v760 = vor.u32 %v757, %v758
      %v761 = vsel %vm490, %v753, %v760
      %v762 = vrot.slane %v757, 4
      %s811 = scalar_lea.vmem [#allocation2], 12
      %vm812 = vcmask 519168
      %vm813 = vsmask.f32 7938
      %vm814 = vmand %vm812, %vm813
      %v815 = vld [vmem:[%s811] sm:$0xf]
      %v816 = vsel %vm814, %v497, %v815
      %817 = vst [vmem:[%s811] sm:$0xf] %v816
      %818 = vst.msk [vmem:[%s811 + $0x4] sm:$0xf] %vm226, %v506
      %vm819 = vcmask 516096
      %vm820 = vmand %vm819, %vm488
      %v821 = vld [vmem:[%s811 + $0x8] sm:$0x1]
      %v822 = vsel %vm820, %v507, %v821
      %823 = vst [vmem:[%s811 + $0x8] sm:$0x1] %v822
      %v824 = vld [vmem:[%s811 + $0xc] sm:$0xf]
      %v825 = vsel %vm814, %v514, %v824
      %826 = vst [vmem:[%s811 + $0xc] sm:$0xf] %v825
      %827 = vst.msk [vmem:[%s811 + $0x10] sm:$0xf] %vm226, %v523
      %v828 = vld [vmem:[%s811 + $0x14] sm:$0x1]
      %v829 = vsel %vm820, %v524, %v828
      %830 = vst [vmem:[%s811 + $0x14] sm:$0x1] %v829
      %v831 = vld [vmem:[%s811 + $0x18] sm:$0xf]
      %v832 = vsel %vm814, %v531, %v831
      %833 = vst [vmem:[%s811 + $0x18] sm:$0xf] %v832
      %834 = vst.msk [vmem:[%s811 + $0x1c] sm:$0xf] %vm226, %v540
      %v835 = vld [vmem:[%s811 + $0x20] sm:$0x1]
      %v836 = vsel %vm820, %v541, %v835
      %837 = vst [vmem:[%s811 + $0x20] sm:$0x1] %v836
      %v838 = vld [vmem:[%s811 + $0x24] sm:$0xf]
      %v839 = vsel %vm814, %v548, %v838
      %840 = vst [vmem:[%s811 + $0x24] sm:$0xf] %v839
      %841 = vst.msk [vmem:[%s811 + $0x28] sm:$0xf] %vm226, %v557
      %v842 = vld [vmem:[%s811 + $0x2c] sm:$0x1]
      %v843 = vsel %vm820, %v558, %v842
      %844 = vst [vmem:[%s811 + $0x2c] sm:$0x1] %v843
      %v845 = vld [vmem:[%s811 + $0x30] sm:$0xf]
      %v846 = vsel %vm814, %v565, %v845
      %847 = vst [vmem:[%s811 + $0x30] sm:$0xf] %v846
      %848 = vst.msk [vmem:[%s811 + $0x34] sm:$0xf] %vm226, %v574
      %v849 = vld [vmem:[%s811 + $0x38] sm:$0x1]
      %v850 = vsel %vm820, %v575, %v849
      %851 = vst [vmem:[%s811 + $0x38] sm:$0x1] %v850
      %v852 = vld [vmem:[%s811 + $0x3c] sm:$0xf]
      %v853 = vsel %vm814, %v582, %v852
      %854 = vst [vmem:[%s811 + $0x3c] sm:$0xf] %v853
      %855 = vst.msk [vmem:[%s811 + $0x40] sm:$0xf] %vm226, %v591
      %v856 = vld [vmem:[%s811 + $0x44] sm:$0x1]
      %v857 = vsel %vm820, %v592, %v856
      %858 = vst [vmem:[%s811 + $0x44] sm:$0x1] %v857
      %v859 = vld [vmem:[%s811 + $0x48] sm:$0xf]
      %v860 = vsel %vm814, %v599, %v859
      %861 = vst [vmem:[%s811 + $0x48] sm:$0xf] %v860
      %862 = vst.msk [vmem:[%s811 + $0x4c] sm:$0xf] %vm226, %v608
      %v863 = vld [vmem:[%s811 + $0x50] sm:$0x1]
      %v864 = vsel %vm820, %v609, %v863
      %865 = vst [vmem:[%s811 + $0x50] sm:$0x1] %v864
      %v866 = vld [vmem:[%s811 + $0x54] sm:$0xf]
      %v867 = vsel %vm814, %v616, %v866
      %868 = vst [vmem:[%s811 + $0x54] sm:$0xf] %v867
      %869 = vst.msk [vmem:[%s811 + $0x58] sm:$0xf] %vm226, %v625
      %v870 = vld [vmem:[%s811 + $0x5c] sm:$0x1]
      %v871 = vsel %vm820, %v626, %v870
      %872 = vst [vmem:[%s811 + $0x5c] sm:$0x1] %v871
      %v873 = vld [vmem:[%s811 + $0x60] sm:$0xf]
      %v874 = vsel %vm814, %v633, %v873
      %875 = vst [vmem:[%s811 + $0x60] sm:$0xf] %v874
      %876 = vst.msk [vmem:[%s811 + $0x64] sm:$0xf] %vm226, %v642
      %v877 = vld [vmem:[%s811 + $0x68] sm:$0x1]
      %v878 = vsel %vm820, %v643, %v877
      %879 = vst [vmem:[%s811 + $0x68] sm:$0x1] %v878
      %v880 = vld [vmem:[%s811 + $0x6c] sm:$0xf]
      %v881 = vsel %vm814, %v650, %v880
      %882 = vst [vmem:[%s811 + $0x6c] sm:$0xf] %v881
      %883 = vst.msk [vmem:[%s811 + $0x70] sm:$0xf] %vm226, %v659
      %v884 = vld [vmem:[%s811 + $0x74] sm:$0x1]
      %v885 = vsel %vm820, %v660, %v884
      %886 = vst [vmem:[%s811 + $0x74] sm:$0x1] %v885
      %v887 = vld [vmem:[%s811 + $0x78] sm:$0xf]
      %v888 = vsel %vm814, %v667, %v887
      %889 = vst [vmem:[%s811 + $0x78] sm:$0xf] %v888
      %890 = vst.msk [vmem:[%s811 + $0x7c] sm:$0xf] %vm226, %v676
      %v891 = vld [vmem:[%s811 + $0x80] sm:$0x1]
      %v892 = vsel %vm820, %v677, %v891
      %893 = vst [vmem:[%s811 + $0x80] sm:$0x1] %v892
      %v894 = vld [vmem:[%s811 + $0x84] sm:$0xf]
      %v895 = vsel %vm814, %v684, %v894
      %896 = vst [vmem:[%s811 + $0x84] sm:$0xf] %v895
      %897 = vst.msk [vmem:[%s811 + $0x88] sm:$0xf] %vm226, %v693
      %v898 = vld [vmem:[%s811 + $0x8c] sm:$0x1]
      %v899 = vsel %vm820, %v694, %v898
      %900 = vst [vmem:[%s811 + $0x8c] sm:$0x1] %v899
      %v901 = vld [vmem:[%s811 + $0x90] sm:$0xf]
      %v902 = vsel %vm814, %v701, %v901
      %903 = vst [vmem:[%s811 + $0x90] sm:$0xf] %v902
      %904 = vst.msk [vmem:[%s811 + $0x94] sm:$0xf] %vm226, %v710
      %v905 = vld [vmem:[%s811 + $0x98] sm:$0x1]
      %v906 = vsel %vm820, %v711, %v905
      %907 = vst [vmem:[%s811 + $0x98] sm:$0x1] %v906
      %v908 = vld [vmem:[%s811 + $0x9c] sm:$0xf]
      %v909 = vsel %vm814, %v718, %v908
      %910 = vst [vmem:[%s811 + $0x9c] sm:$0xf] %v909
      %911 = vst.msk [vmem:[%s811 + $0xa0] sm:$0xf] %vm226, %v727
      %v912 = vld [vmem:[%s811 + $0xa4] sm:$0x1]
      %v913 = vsel %vm820, %v728, %v912
      %914 = vst [vmem:[%s811 + $0xa4] sm:$0x1] %v913
      %v915 = vld [vmem:[%s811 + $0xa8] sm:$0xf]
      %v916 = vsel %vm814, %v735, %v915
      %917 = vst [vmem:[%s811 + $0xa8] sm:$0xf] %v916
      %918 = vst.msk [vmem:[%s811 + $0xac] sm:$0xf] %vm226, %v744
      %v919 = vld [vmem:[%s811 + $0xb0] sm:$0x1]
      %v920 = vsel %vm820, %v745, %v919
      %921 = vst [vmem:[%s811 + $0xb0] sm:$0x1] %v920
      %v922 = vld [vmem:[%s811 + $0xb4] sm:$0xf]
      %v923 = vsel %vm814, %v752, %v922
      %924 = vst [vmem:[%s811 + $0xb4] sm:$0xf] %v923
      %925 = vst.msk [vmem:[%s811 + $0xb8] sm:$0xf] %vm226, %v761
      %v926 = vld [vmem:[%s811 + $0xbc] sm:$0x1]
      %v927 = vsel %vm820, %v762, %v926
      %928 = vst [vmem:[%s811 + $0xbc] sm:$0x1] %v927
      %v929 = vld [vmem:[#allocation2] sm:$0xf]
      %v930 = vld [vmem:[#allocation2 + $0x4] sm:$0xf]
      %v931 = vld [vmem:[#allocation2 + $0xc] sm:$0xf]
      %v932 = vld [vmem:[#allocation2 + $0x10] sm:$0xf]
      %v933 = vld [vmem:[#allocation2 + $0x18] sm:$0xf]
      %v934 = vld [vmem:[#allocation2 + $0x1c] sm:$0xf]
      %v935 = vld [vmem:[#allocation2 + $0x24] sm:$0xf]
      %v936 = vld [vmem:[#allocation2 + $0x28] sm:$0xf]
      %v937 = vld [vmem:[#allocation2 + $0x30] sm:$0xf]
      %v938 = vld [vmem:[#allocation2 + $0x34] sm:$0xf]
      %v939 = vld [vmem:[#allocation2 + $0x3c] sm:$0xf]
      %v940 = vld [vmem:[#allocation2 + $0x40] sm:$0xf]
      %v941 = vld [vmem:[#allocation2 + $0x48] sm:$0xf]
      %v942 = vld [vmem:[#allocation2 + $0x4c] sm:$0xf]
      %v943 = vld [vmem:[#allocation2 + $0x54] sm:$0xf]
      %v944 = vld [vmem:[#allocation2 + $0x58] sm:$0xf]
      %v945 = vld [vmem:[#allocation2 + $0x60] sm:$0xf]
      %v946 = vld [vmem:[#allocation2 + $0x64] sm:$0xf]
      %v947 = vld [vmem:[#allocation2 + $0x6c] sm:$0xf]
      %v948 = vld [vmem:[#allocation2 + $0x70] sm:$0xf]
      %v949 = vld [vmem:[#allocation2 + $0x78] sm:$0xf]
      %v950 = vld [vmem:[#allocation2 + $0x7c] sm:$0xf]
      %v951 = vld [vmem:[#allocation2 + $0x84] sm:$0xf]
      %v952 = vld [vmem:[#allocation2 + $0x88] sm:$0xf]
      %v953 = vld [vmem:[#allocation2 + $0x90] sm:$0xf]
      %v954 = vld [vmem:[#allocation2 + $0x94] sm:$0xf]
      %v955 = vld [vmem:[#allocation2 + $0x9c] sm:$0xf]
      %v956 = vld [vmem:[#allocation2 + $0xa0] sm:$0xf]
      %v957 = vld [vmem:[#allocation2 + $0xa8] sm:$0xf]
      %v958 = vld [vmem:[#allocation2 + $0xac] sm:$0xf]
      %v959 = vld [vmem:[#allocation2 + $0xb4] sm:$0xf]
      %v960 = vld [vmem:[#allocation2 + $0xb8] sm:$0xf]
      %v961 = vld [vmem:[#allocation2 + $0x8] sm:$0x1]
      %v962 = vld [vmem:[#allocation2 + $0x14] sm:$0x1]
      %v963 = vld [vmem:[#allocation2 + $0x20] sm:$0x1]
      %v964 = vld [vmem:[#allocation2 + $0x2c] sm:$0x1]
      %v965 = vld [vmem:[#allocation2 + $0x38] sm:$0x1]
      %v966 = vld [vmem:[#allocation2 + $0x44] sm:$0x1]
      %v967 = vld [vmem:[#allocation2 + $0x50] sm:$0x1]
      %v968 = vld [vmem:[#allocation2 + $0x5c] sm:$0x1]
      %v969 = vld [vmem:[#allocation2 + $0x68] sm:$0x1]
      %v970 = vld [vmem:[#allocation2 + $0x74] sm:$0x1]
      %v971 = vld [vmem:[#allocation2 + $0x80] sm:$0x1]
      %v972 = vld [vmem:[#allocation2 + $0x8c] sm:$0x1]
      %v973 = vld [vmem:[#allocation2 + $0x98] sm:$0x1]
      %v974 = vld [vmem:[#allocation2 + $0xa4] sm:$0x1]
      %v975 = vld [vmem:[#allocation2 + $0xb0] sm:$0x1]
      %v976 = vld [vmem:[#allocation2 + $0xbc] sm:$0x1]
      %vm977 = vsmask.f32 3328
      %vm978 = vsmask.f32 7440
      %vm979 = vmor %vm977, %vm978
      %v981 = vshrl.u32 %v929, 16
      %v983 = vrot.slane %v981, 4
      %v984 = vshll.u32 %v929, 16
      %v986 = vrot.slane %v984, 5
      %v987 = vor.u32 %v983, %v986
      %v988 = vrot.slane %v987, 4
      %v990 = vshll.u32 %v930, 16
      %v992 = vrot.slane %v990, 5
      %v993 = vsel %vm979, %v988, %v992
      %v994 = vshrl.u32 %v930, 16
      %v996 = vrot.slane %v994, 4
      %v997 = vor.u32 %v996, %v992
      %v998 = vrot.slane %v997, 4
      %v1000 = vshll.u32 %v961, 16
      %v1002 = vrot.slane %v1000, 5
      %v1003 = vsel %vm979, %v998, %v1002
      %v1005 = vshrl.u32 %v931, 16
      %v1007 = vrot.slane %v1005, 4
      %v1008 = vshll.u32 %v931, 16
      %v1010 = vrot.slane %v1008, 5
      %v1011 = vor.u32 %v1007, %v1010
      %v1012 = vrot.slane %v1011, 4
      %v1014 = vshll.u32 %v932, 16
      %v1016 = vrot.slane %v1014, 5
      %v1017 = vsel %vm979, %v1012, %v1016
      %v1018 = vshrl.u32 %v932, 16
      %v1020 = vrot.slane %v1018, 4
      %v1021 = vor.u32 %v1020, %v1016
      %v1022 = vrot.slane %v1021, 4
      %v1024 = vshll.u32 %v962, 16
      %v1026 = vrot.slane %v1024, 5
      %v1027 = vsel %vm979, %v1022, %v1026
      %v1029 = vshrl.u32 %v933, 16
      %v1031 = vrot.slane %v1029, 4
      %v1032 = vshll.u32 %v933, 16
      %v1034 = vrot.slane %v1032, 5
      %v1035 = vor.u32 %v1031, %v1034
      %v1036 = vrot.slane %v1035, 4
      %v1038 = vshll.u32 %v934, 16
      %v1040 = vrot.slane %v1038, 5
      %v1041 = vsel %vm979, %v1036, %v1040
      %v1042 = vshrl.u32 %v934, 16
      %v1044 = vrot.slane %v1042, 4
      %v1045 = vor.u32 %v1044, %v1040
      %v1046 = vrot.slane %v1045, 4
      %v1048 = vshll.u32 %v963, 16
      %v1050 = vrot.slane %v1048, 5
      %v1051 = vsel %vm979, %v1046, %v1050
      %v1053 = vshrl.u32 %v935, 16
      %v1055 = vrot.slane %v1053, 4
      %v1056 = vshll.u32 %v935, 16
      %v1058 = vrot.slane %v1056, 5
      %v1059 = vor.u32 %v1055, %v1058
      %v1060 = vrot.slane %v1059, 4
      %v1062 = vshll.u32 %v936, 16
      %v1064 = vrot.slane %v1062, 5
      %v1065 = vsel %vm979, %v1060, %v1064
      %v1066 = vshrl.u32 %v936, 16
      %v1068 = vrot.slane %v1066, 4
      %v1069 = vor.u32 %v1068, %v1064
      %v1070 = vrot.slane %v1069, 4
      %v1072 = vshll.u32 %v964, 16
      %v1074 = vrot.slane %v1072, 5
      %v1075 = vsel %vm979, %v1070, %v1074
      %v1077 = vshrl.u32 %v937, 16
      %v1079 = vrot.slane %v1077, 4
      %v1080 = vshll.u32 %v937, 16
      %v1082 = vrot.slane %v1080, 5
      %v1083 = vor.u32 %v1079, %v1082
      %v1084 = vrot.slane %v1083, 4
      %v1086 = vshll.u32 %v938, 16
      %v1088 = vrot.slane %v1086, 5
      %v1089 = vsel %vm979, %v1084, %v1088
      %v1090 = vshrl.u32 %v938, 16
      %v1092 = vrot.slane %v1090, 4
      %v1093 = vor.u32 %v1092, %v1088
      %v1094 = vrot.slane %v1093, 4
      %v1096 = vshll.u32 %v965, 16
      %v1098 = vrot.slane %v1096, 5
      %v1099 = vsel %vm979, %v1094, %v1098
      %v1101 = vshrl.u32 %v939, 16
      %v1103 = vrot.slane %v1101, 4
      %v1104 = vshll.u32 %v939, 16
      %v1106 = vrot.slane %v1104, 5
      %v1107 = vor.u32 %v1103, %v1106
      %v1108 = vrot.slane %v1107, 4
      %v1110 = vshll.u32 %v940, 16
      %v1112 = vrot.slane %v1110, 5
      %v1113 = vsel %vm979, %v1108, %v1112
      %v1114 = vshrl.u32 %v940, 16
      %v1116 = vrot.slane %v1114, 4
      %v1117 = vor.u32 %v1116, %v1112
      %v1118 = vrot.slane %v1117, 4
      %v1120 = vshll.u32 %v966, 16
      %v1122 = vrot.slane %v1120, 5
      %v1123 = vsel %vm979, %v1118, %v1122
      %v1125 = vshrl.u32 %v941, 16
      %v1127 = vrot.slane %v1125, 4
      %v1128 = vshll.u32 %v941, 16
      %v1130 = vrot.slane %v1128, 5
      %v1131 = vor.u32 %v1127, %v1130
      %v1132 = vrot.slane %v1131, 4
      %v1134 = vshll.u32 %v942, 16
      %v1136 = vrot.slane %v1134, 5
      %v1137 = vsel %vm979, %v1132, %v1136
      %v1138 = vshrl.u32 %v942, 16
      %v1140 = vrot.slane %v1138, 4
      %v1141 = vor.u32 %v1140, %v1136
      %v1142 = vrot.slane %v1141, 4
      %v1144 = vshll.u32 %v967, 16
      %v1146 = vrot.slane %v1144, 5
      %v1147 = vsel %vm979, %v1142, %v1146
      %v1149 = vshrl.u32 %v943, 16
      %v1151 = vrot.slane %v1149, 4
      %v1152 = vshll.u32 %v943, 16
      %v1154 = vrot.slane %v1152, 5
      %v1155 = vor.u32 %v1151, %v1154
      %v1156 = vrot.slane %v1155, 4
      %v1158 = vshll.u32 %v944, 16
      %v1160 = vrot.slane %v1158, 5
      %v1161 = vsel %vm979, %v1156, %v1160
      %v1162 = vshrl.u32 %v944, 16
      %v1164 = vrot.slane %v1162, 4
      %v1165 = vor.u32 %v1164, %v1160
      %v1166 = vrot.slane %v1165, 4
      %v1168 = vshll.u32 %v968, 16
      %v1170 = vrot.slane %v1168, 5
      %v1171 = vsel %vm979, %v1166, %v1170
      %v1173 = vshrl.u32 %v945, 16
      %v1175 = vrot.slane %v1173, 4
      %v1176 = vshll.u32 %v945, 16
      %v1178 = vrot.slane %v1176, 5
      %v1179 = vor.u32 %v1175, %v1178
      %v1180 = vrot.slane %v1179, 4
      %v1182 = vshll.u32 %v946, 16
      %v1184 = vrot.slane %v1182, 5
      %v1185 = vsel %vm979, %v1180, %v1184
      %v1186 = vshrl.u32 %v946, 16
      %v1188 = vrot.slane %v1186, 4
      %v1189 = vor.u32 %v1188, %v1184
      %v1190 = vrot.slane %v1189, 4
      %v1192 = vshll.u32 %v969, 16
      %v1194 = vrot.slane %v1192, 5
      %v1195 = vsel %vm979, %v1190, %v1194
      %v1197 = vshrl.u32 %v947, 16
      %v1199 = vrot.slane %v1197, 4
      %v1200 = vshll.u32 %v947, 16
      %v1202 = vrot.slane %v1200, 5
      %v1203 = vor.u32 %v1199, %v1202
      %v1204 = vrot.slane %v1203, 4
      %v1206 = vshll.u32 %v948, 16
      %v1208 = vrot.slane %v1206, 5
      %v1209 = vsel %vm979, %v1204, %v1208
      %v1210 = vshrl.u32 %v948, 16
      %v1212 = vrot.slane %v1210, 4
      %v1213 = vor.u32 %v1212, %v1208
      %v1214 = vrot.slane %v1213, 4
      %v1216 = vshll.u32 %v970, 16
      %v1218 = vrot.slane %v1216, 5
      %v1219 = vsel %vm979, %v1214, %v1218
      %v1221 = vshrl.u32 %v949, 16
      %v1223 = vrot.slane %v1221, 4
      %v1224 = vshll.u32 %v949, 16
      %v1226 = vrot.slane %v1224, 5
      %v1227 = vor.u32 %v1223, %v1226
      %v1228 = vrot.slane %v1227, 4
      %v1230 = vshll.u32 %v950, 16
      %v1232 = vrot.slane %v1230, 5
      %v1233 = vsel %vm979, %v1228, %v1232
      %v1234 = vshrl.u32 %v950, 16
      %v1236 = vrot.slane %v1234, 4
      %v1237 = vor.u32 %v1236, %v1232
      %v1238 = vrot.slane %v1237, 4
      %v1240 = vshll.u32 %v971, 16
      %v1242 = vrot.slane %v1240, 5
      %v1243 = vsel %vm979, %v1238, %v1242
      %v1245 = vshrl.u32 %v951, 16
      %v1247 = vrot.slane %v1245, 4
      %v1248 = vshll.u32 %v951, 16
      %v1250 = vrot.slane %v1248, 5
      %v1251 = vor.u32 %v1247, %v1250
      %v1252 = vrot.slane %v1251, 4
      %v1254 = vshll.u32 %v952, 16
      %v1256 = vrot.slane %v1254, 5
      %v1257 = vsel %vm979, %v1252, %v1256
      %v1258 = vshrl.u32 %v952, 16
      %v1260 = vrot.slane %v1258, 4
      %v1261 = vor.u32 %v1260, %v1256
      %v1262 = vrot.slane %v1261, 4
      %v1264 = vshll.u32 %v972, 16
      %v1266 = vrot.slane %v1264, 5
      %v1267 = vsel %vm979, %v1262, %v1266
      %v1269 = vshrl.u32 %v953, 16
      %v1271 = vrot.slane %v1269, 4
      %v1272 = vshll.u32 %v953, 16
      %v1274 = vrot.slane %v1272, 5
      %v1275 = vor.u32 %v1271, %v1274
      %v1276 = vrot.slane %v1275, 4
      %v1278 = vshll.u32 %v954, 16
      %v1280 = vrot.slane %v1278, 5
      %v1281 = vsel %vm979, %v1276, %v1280
      %v1282 = vshrl.u32 %v954, 16
      %v1284 = vrot.slane %v1282, 4
      %v1285 = vor.u32 %v1284, %v1280
      %v1286 = vrot.slane %v1285, 4
      %v1288 = vshll.u32 %v973, 16
      %v1290 = vrot.slane %v1288, 5
      %v1291 = vsel %vm979, %v1286, %v1290
      %v1293 = vshrl.u32 %v955, 16
      %v1295 = vrot.slane %v1293, 4
      %v1296 = vshll.u32 %v955, 16
      %v1298 = vrot.slane %v1296, 5
      %v1299 = vor.u32 %v1295, %v1298
      %v1300 = vrot.slane %v1299, 4
      %v1302 = vshll.u32 %v956, 16
      %v1304 = vrot.slane %v1302, 5
      %v1305 = vsel %vm979, %v1300, %v1304
      %v1306 = vshrl.u32 %v956, 16
      %v1308 = vrot.slane %v1306, 4
      %v1309 = vor.u32 %v1308, %v1304
      %v1310 = vrot.slane %v1309, 4
      %v1312 = vshll.u32 %v974, 16
      %v1314 = vrot.slane %v1312, 5
      %v1315 = vsel %vm979, %v1310, %v1314
      %v1317 = vshrl.u32 %v957, 16
      %v1319 = vrot.slane %v1317, 4
      %v1320 = vshll.u32 %v957, 16
      %v1322 = vrot.slane %v1320, 5
      %v1323 = vor.u32 %v1319, %v1322
      %v1324 = vrot.slane %v1323, 4
      %v1326 = vshll.u32 %v958, 16
      %v1328 = vrot.slane %v1326, 5
      %v1329 = vsel %vm979, %v1324, %v1328
      %v1330 = vshrl.u32 %v958, 16
      %v1332 = vrot.slane %v1330, 4
      %v1333 = vor.u32 %v1332, %v1328
      %v1334 = vrot.slane %v1333, 4
      %v1336 = vshll.u32 %v975, 16
      %v1338 = vrot.slane %v1336, 5
      %v1339 = vsel %vm979, %v1334, %v1338
      %v1341 = vshrl.u32 %v959, 16
      %v1343 = vrot.slane %v1341, 4
      %v1344 = vshll.u32 %v959, 16
      %v1346 = vrot.slane %v1344, 5
      %v1347 = vor.u32 %v1343, %v1346
      %v1348 = vrot.slane %v1347, 4
      %v1350 = vshll.u32 %v960, 16
      %v1352 = vrot.slane %v1350, 5
      %v1353 = vsel %vm979, %v1348, %v1352
      %v1354 = vshrl.u32 %v960, 16
      %v1356 = vrot.slane %v1354, 4
      %v1357 = vor.u32 %v1356, %v1352
      %v1358 = vrot.slane %v1357, 4
      %v1360 = vshll.u32 %v976, 16
      %v1362 = vrot.slane %v1360, 5
      %v1363 = vsel %vm979, %v1358, %v1362
      %v1364 = vld [vmem:[#allocation2] sm:$0xe]
      %v1365 = vld [vmem:[#allocation2 + $0xc] sm:$0xe]
      %v1366 = vld [vmem:[#allocation2 + $0x18] sm:$0xe]
      %v1367 = vld [vmem:[#allocation2 + $0x24] sm:$0xe]
      %v1368 = vld [vmem:[#allocation2 + $0x30] sm:$0xe]
      %v1369 = vld [vmem:[#allocation2 + $0x3c] sm:$0xe]
      %v1370 = vld [vmem:[#allocation2 + $0x48] sm:$0xe]
      %v1371 = vld [vmem:[#allocation2 + $0x54] sm:$0xe]
      %v1372 = vld [vmem:[#allocation2 + $0x60] sm:$0xe]
      %v1373 = vld [vmem:[#allocation2 + $0x6c] sm:$0xe]
      %v1374 = vld [vmem:[#allocation2 + $0x78] sm:$0xe]
      %v1375 = vld [vmem:[#allocation2 + $0x84] sm:$0xe]
      %v1376 = vld [vmem:[#allocation2 + $0x90] sm:$0xe]
      %v1377 = vld [vmem:[#allocation2 + $0x9c] sm:$0xe]
      %v1378 = vld [vmem:[#allocation2 + $0xa8] sm:$0xe]
      %v1379 = vld [vmem:[#allocation2 + $0xb4] sm:$0xe]
      %vm1428 = vcmask 1042432
      %vm1429 = vcmask 1046532
      %vm1430 = vmor %vm1428, %vm1429
      %v1431 = vrot.slane %v1364, 5
      %v1432 = vrot.slane %v1431, 4
      %v1433 = vrot.slane %v930, 5
      %v1434 = vsel %vm1430, %v1432, %v1433
      %v1435 = vrot.slane %v1433, 4
      %v1436 = vrot.slane %v961, 5
      %v1437 = vsel %vm1430, %v1435, %v1436
      %v1438 = vrot.slane %v1365, 5
      %v1439 = vrot.slane %v1438, 4
      %v1440 = vrot.slane %v932, 5
      %v1441 = vsel %vm1430, %v1439, %v1440
      %v1442 = vrot.slane %v1440, 4
      %v1443 = vrot.slane %v962, 5
      %v1444 = vsel %vm1430, %v1442, %v1443
      %v1445 = vrot.slane %v1366, 5
      %v1446 = vrot.slane %v1445, 4
      %v1447 = vrot.slane %v934, 5
      %v1448 = vsel %vm1430, %v1446, %v1447
      %v1449 = vrot.slane %v1447, 4
      %v1450 = vrot.slane %v963, 5
      %v1451 = vsel %vm1430, %v1449, %v1450
      %v1452 = vrot.slane %v1367, 5
      %v1453 = vrot.slane %v1452, 4
      %v1454 = vrot.slane %v936, 5
      %v1455 = vsel %vm1430, %v1453, %v1454
      %v1456 = vrot.slane %v1454, 4
      %v1457 = vrot.slane %v964, 5
      %v1458 = vsel %vm1430, %v1456, %v1457
      %v1459 = vrot.slane %v1368, 5
      %v1460 = vrot.slane %v1459, 4
      %v1461 = vrot.slane %v938, 5
      %v1462 = vsel %vm1430, %v1460, %v1461
      %v1463 = vrot.slane %v1461, 4
      %v1464 = vrot.slane %v965, 5
      %v1465 = vsel %vm1430, %v1463, %v1464
      %v1466 = vrot.slane %v1369, 5
      %v1467 = vrot.slane %v1466, 4
      %v1468 = vrot.slane %v940, 5
      %v1469 = vsel %vm1430, %v1467, %v1468
      %v1470 = vrot.slane %v1468, 4
      %v1471 = vrot.slane %v966, 5
      %v1472 = vsel %vm1430, %v1470, %v1471
      %v1473 = vrot.slane %v1370, 5
      %v1474 = vrot.slane %v1473, 4
      %v1475 = vrot.slane %v942, 5
      %v1476 = vsel %vm1430, %v1474, %v1475
      %v1477 = vrot.slane %v1475, 4
      %v1478 = vrot.slane %v967, 5
      %v1479 = vsel %vm1430, %v1477, %v1478
      %v1480 = vrot.slane %v1371, 5
      %v1481 = vrot.slane %v1480, 4
      %v1482 = vrot.slane %v944, 5
      %v1483 = vsel %vm1430, %v1481, %v1482
      %v1484 = vrot.slane %v1482, 4
      %v1485 = vrot.slane %v968, 5
      %v1486 = vsel %vm1430, %v1484, %v1485
      %v1487 = vrot.slane %v1372, 5
      %v1488 = vrot.slane %v1487, 4
      %v1489 = vrot.slane %v946, 5
      %v1490 = vsel %vm1430, %v1488, %v1489
      %v1491 = vrot.slane %v1489, 4
      %v1492 = vrot.slane %v969, 5
      %v1493 = vsel %vm1430, %v1491, %v1492
      %v1494 = vrot.slane %v1373, 5
      %v1495 = vrot.slane %v1494, 4
      %v1496 = vrot.slane %v948, 5
      %v1497 = vsel %vm1430, %v1495, %v1496
      %v1498 = vrot.slane %v1496, 4
      %v1499 = vrot.slane %v970, 5
      %v1500 = vsel %vm1430, %v1498, %v1499
      %v1501 = vrot.slane %v1374, 5
      %v1502 = vrot.slane %v1501, 4
      %v1503 = vrot.slane %v950, 5
      %v1504 = vsel %vm1430, %v1502, %v1503
      %v1505 = vrot.slane %v1503, 4
      %v1506 = vrot.slane %v971, 5
      %v1507 = vsel %vm1430, %v1505, %v1506
      %v1508 = vrot.slane %v1375, 5
      %v1509 = vrot.slane %v1508, 4
      %v1510 = vrot.slane %v952, 5
      %v1511 = vsel %vm1430, %v1509, %v1510
      %v1512 = vrot.slane %v1510, 4
      %v1513 = vrot.slane %v972, 5
      %v1514 = vsel %vm1430, %v1512, %v1513
      %v1515 = vrot.slane %v1376, 5
      %v1516 = vrot.slane %v1515, 4
      %v1517 = vrot.slane %v954, 5
      %v1518 = vsel %vm1430, %v1516, %v1517
      %v1519 = vrot.slane %v1517, 4
      %v1520 = vrot.slane %v973, 5
      %v1521 = vsel %vm1430, %v1519, %v1520
      %v1522 = vrot.slane %v1377, 5
      %v1523 = vrot.slane %v1522, 4
      %v1524 = vrot.slane %v956, 5
      %v1525 = vsel %vm1430, %v1523, %v1524
      %v1526 = vrot.slane %v1524, 4
      %v1527 = vrot.slane %v974, 5
      %v1528 = vsel %vm1430, %v1526, %v1527
      %v1529 = vrot.slane %v1378, 5
      %v1530 = vrot.slane %v1529, 4
      %v1531 = vrot.slane %v958, 5
      %v1532 = vsel %vm1430, %v1530, %v1531
      %v1533 = vrot.slane %v1531, 4
      %v1534 = vrot.slane %v975, 5
      %v1535 = vsel %vm1430, %v1533, %v1534
      %v1536 = vrot.slane %v1379, 5
      %v1537 = vrot.slane %v1536, 4
      %v1538 = vrot.slane %v960, 5
      %v1539 = vsel %vm1430, %v1537, %v1538
      %v1540 = vrot.slane %v1538, 4
      %v1541 = vrot.slane %v976, 5
      %v1542 = vsel %vm1430, %v1540, %v1541
      %v1543 = vld [vmem:[%s3] sm:$0xf]
      %v1544 = vld [vmem:[%s3 + $0x4] sm:$0xf]
      %v1545 = vld [vmem:[%s3 + $0x8] sm:$0xf]
      %v1546 = vld [vmem:[%s3 + $0xc] sm:$0xf]
      %v1547 = vld [vmem:[%s3 + $0x10] sm:$0xf]
      %v1548 = vld [vmem:[%s3 + $0x14] sm:$0xf]
      %v1549 = vld [vmem:[%s3 + $0x18] sm:$0xf]
      %v1550 = vld [vmem:[%s3 + $0x1c] sm:$0xf]
      %v1551 = vld [vmem:[%s3 + $0x20] sm:$0xf]
      %v1552 = vld [vmem:[%s3 + $0x24] sm:$0xf]
      %v1553 = vld [vmem:[%s3 + $0x28] sm:$0xf]
      %v1554 = vld [vmem:[%s3 + $0x2c] sm:$0xf]
      %v1555 = vld [vmem:[%s3 + $0x30] sm:$0xf]
      %v1556 = vld [vmem:[%s3 + $0x34] sm:$0xf]
      %v1557 = vld [vmem:[%s3 + $0x38] sm:$0xf]
      %v1558 = vld [vmem:[%s3 + $0x3c] sm:$0xf]
      %v1559 = vunpack.c.l.b16 %v993
      %v1560 = vunpack.c.l.b16 %v1003
      %v1561 = vunpack.c.l.b16 %v1017
      %v1562 = vunpack.c.l.b16 %v1027
      %v1563 = vunpack.c.l.b16 %v1041
      %v1564 = vunpack.c.l.b16 %v1051
      %v1565 = vunpack.c.l.b16 %v1065
      %v1566 = vunpack.c.l.b16 %v1075
      %v1567 = vunpack.c.l.b16 %v1089
      %v1568 = vunpack.c.l.b16 %v1099
      %v1569 = vunpack.c.l.b16 %v1113
      %v1570 = vunpack.c.l.b16 %v1123
      %v1571 = vunpack.c.l.b16 %v1137
      %v1572 = vunpack.c.l.b16 %v1147
      %v1573 = vunpack.c.l.b16 %v1161
      %v1574 = vunpack.c.l.b16 %v1171
      %v1575 = vunpack.c.l.b16 %v1185
      %v1576 = vunpack.c.l.b16 %v1195
      %v1577 = vunpack.c.l.b16 %v1209
      %v1578 = vunpack.c.l.b16 %v1219
      %v1579 = vunpack.c.l.b16 %v1233
      %v1580 = vunpack.c.l.b16 %v1243
      %v1581 = vunpack.c.l.b16 %v1257
      %v1582 = vunpack.c.l.b16 %v1267
      %v1583 = vunpack.c.l.b16 %v1281
      %v1584 = vunpack.c.l.b16 %v1291
      %v1585 = vunpack.c.l.b16 %v1305
      %v1586 = vunpack.c.l.b16 %v1315
      %v1587 = vunpack.c.l.b16 %v1329
      %v1588 = vunpack.c.l.b16 %v1339
      %v1589 = vunpack.c.l.b16 %v1353
      %v1590 = vunpack.c.l.b16 %v1363
      %v1591 = vpack.c.b16 %v1560, %v1559
      %v1592 = vpack.c.b16 %v1562, %v1561
      %v1593 = vpack.c.b16 %v1564, %v1563
      %v1594 = vpack.c.b16 %v1566, %v1565
      %v1595 = vpack.c.b16 %v1568, %v1567
      %v1596 = vpack.c.b16 %v1570, %v1569
      %v1597 = vpack.c.b16 %v1572, %v1571
      %v1598 = vpack.c.b16 %v1574, %v1573
      %v1599 = vpack.c.b16 %v1576, %v1575
      %v1600 = vpack.c.b16 %v1578, %v1577
      %v1601 = vpack.c.b16 %v1580, %v1579
      %v1602 = vpack.c.b16 %v1582, %v1581
      %v1603 = vpack.c.b16 %v1584, %v1583
      %v1604 = vpack.c.b16 %v1586, %v1585
      %v1605 = vpack.c.b16 %v1588, %v1587
      %v1606 = vpack.c.b16 %v1590, %v1589
      %v1615 = vunpack.c.l.b16 %v1551
      %v1616 = vunpack.c.l.b16 %v1552
      %v1617 = vunpack.c.l.b16 %v1553
      %v1618 = vunpack.c.l.b16 %v1554
      %v1619 = vunpack.c.l.b16 %v1555
      %v1620 = vunpack.c.l.b16 %v1556
      %v1621 = vunpack.c.l.b16 %v1557
      %v1622 = vunpack.c.l.b16 %v1558
      %v1623 = vpack.c.b16 %v1616, %v1615
      %v1624 = vpack.c.b16 %v1618, %v1617
      %v1625 = vpack.c.b16 %v1620, %v1619
      %v1626 = vpack.c.b16 %v1622, %v1621
      %vm1631 = vcmask 523264
      %v1633 = vsel %vm1631, %v1591, 0
      %v1636 = vsel %vm1631, %v1592, 0
      %v1639 = vsel %vm1631, %v1593, 0
      %v1642 = vsel %vm1631, %v1594, 0
      %v1645 = vsel %vm1631, %v1595, 0
      %v1648 = vsel %vm1631, %v1596, 0
      %v1651 = vsel %vm1631, %v1597, 0
      %v1654 = vsel %vm1631, %v1598, 0
      %v1657 = vsel %vm1631, %v1599, 0
      %v1660 = vsel %vm1631, %v1600, 0
      %v1663 = vsel %vm1631, %v1601, 0
      %v1666 = vsel %vm1631, %v1602, 0
      %v1669 = vsel %vm1631, %v1603, 0
      %v1672 = vsel %vm1631, %v1604, 0
      %v1675 = vsel %vm1631, %v1605, 0
      %v1678 = vsel %vm1631, %v1606, 0
      %1680 = vmatprep.subr.bf16.mxu0 0
      %1681 = vmatpush1.bf16.msra.mxu0 %v1623
      %1682 = vmatprep.subr.bf16.mxu0 0
      %1683 = vmatpush1.bf16.msra.mxu0 %v1624
      %1684 = vmatprep.subr.bf16.mxu0 0
      %1685 = vmatpush1.bf16.msra.mxu0 %v1625
      %1686 = vmatprep.subr.bf16.mxu0 0
      %1687 = vmatpush1.bf16.msra.mxu0 %v1626
      %1688 = vmatprep.subr.bf16.mxu0 0
      %1689 = vmatpush1.bf16.msra.mxu0 0
      %1690 = vmatprep.subr.bf16.mxu0 0
      %1691 = vmatpush1.bf16.msra.mxu0 0
      %1692 = vmatprep.subr.bf16.mxu0 0
      %1693 = vmatpush1.bf16.msra.mxu0 0
      %1694 = vmatprep.subr.bf16.mxu0 0
      %1695 = vmatpush1.bf16.msra.mxu0 0
      %1696 = vmatprep.subr.bf16.mxu0 0
      %1697 = vmatpush1.bf16.msra.mxu0 0
      %1698 = vmatprep.subr.bf16.mxu0 0
      %1699 = vmatpush1.bf16.msra.mxu0 0
      %1700 = vmatprep.subr.bf16.mxu0 0
      %1701 = vmatpush1.bf16.msra.mxu0 0
      %1702 = vmatprep.subr.bf16.mxu0 0
      %1703 = vmatpush1.bf16.msra.mxu0 0
      %1704 = vmatprep.subr.bf16.mxu0 0
      %1705 = vmatpush1.bf16.msra.mxu0 0
      %1706 = vmatprep.subr.bf16.mxu0 0
      %1707 = vmatpush1.bf16.msra.mxu0 0
      %1708 = vmatprep.subr.bf16.mxu0 0
      %1709 = vmatpush1.bf16.msra.mxu0 0
      %1710 = vmatprep.subr.bf16.mxu0 0
      %1711 = vmatpush1.bf16.msra.mxu0 0
      %1712 = vmatprep.mubr.bf16.mxu0 0
      %1713 = vmatmul.mubr.bf16.gmra.mrb[0].mxu0 %v1633
      %v1714 = vpop.f32.mrb[0].mxu0
      %v1715 = vadd.f32 0.0, %v1714
      %v1716 = vpop.f32.mrb[0].mxu0
      %v1717 = vpop.f32.mrb[0].mxu0
      %v1718 = vadd.f32 0.0, %v1717
      %v1719 = vpop.f32.mrb[0].mxu0
      %1720 = vmatprep.mubr.bf16.mxu0 0
      %1721 = vmatmul.mubr.bf16.gmra.mrb[0].mxu0 %v1636
      %v1722 = vpop.f32.mrb[0].mxu0
      %v1723 = vadd.f32 0.0, %v1722
      %v1724 = vpop.f32.mrb[0].mxu0
      %v1725 = vpop.f32.mrb[0].mxu0
      %v1726 = vadd.f32 0.0, %v1725
      %v1727 = vpop.f32.mrb[0].mxu0
      %1728 = vmatprep.mubr.bf16.mxu0 0
      %1729 = vmatmul.mubr.bf16.gmra.mrb[0].mxu0 %v1639
      %v1730 = vpop.f32.mrb[0].mxu0
      %v1731 = vadd.f32 0.0, %v1730
      %v1732 = vpop.f32.mrb[0].mxu0
      %v1733 = vpop.f32.mrb[0].mxu0
      %v1734 = vadd.f32 0.0, %v1733
      %v1735 = vpop.f32.mrb[0].mxu0
      %1736 = vmatprep.mubr.bf16.mxu0 0
      %1737 = vmatmul.mubr.bf16.gmra.mrb[0].mxu0 %v1642
      %v1738 = vpop.f32.mrb[0].mxu0
      %v1739 = vadd.f32 0.0, %v1738
      %v1740 = vpop.f32.mrb[0].mxu0
      %v1741 = vpop.f32.mrb[0].mxu0
      %v1742 = vadd.f32 0.0, %v1741
      %v1743 = vpop.f32.mrb[0].mxu0
      %1744 = vmatprep.mubr.bf16.mxu0 0
      %1745 = vmatmul.mubr.bf16.gmra.mrb[0].mxu0 %v1645
      %v1746 = vpop.f32.mrb[0].mxu0
      %v1747 = vadd.f32 0.0, %v1746
      %v1748 = vpop.f32.mrb[0].mxu0
      %v1749 = vpop.f32.mrb[0].mxu0
      %v1750 = vadd.f32 0.0, %v1749
      %v1751 = vpop.f32.mrb[0].mxu0
      %1752 = vmatprep.mubr.bf16.mxu0 0
      %1753 = vmatmul.mubr.bf16.gmra.mrb[0].mxu0 %v1648
      %v1754 = vpop.f32.mrb[0].mxu0
      %v1755 = vadd.f32 0.0, %v1754
      %v1756 = vpop.f32.mrb[0].mxu0
      %v1757 = vpop.f32.mrb[0].mxu0
      %v1758 = vadd.f32 0.0, %v1757
      %v1759 = vpop.f32.mrb[0].mxu0
      %1760 = vmatprep.mubr.bf16.mxu0 0
      %1761 = vmatmul.mubr.bf16.gmra.mrb[0].mxu0 %v1651
      %v1762 = vpop.f32.mrb[0].mxu0
      %v1763 = vadd.f32 0.0, %v1762
      %v1764 = vpop.f32.mrb[0].mxu0
      %v1765 = vpop.f32.mrb[0].mxu0
      %v1766 = vadd.f32 0.0, %v1765
      %v1767 = vpop.f32.mrb[0].mxu0
      %1768 = vmatprep.mubr.bf16.mxu0 0
      %1769 = vmatmul.mubr.bf16.gmra.mrb[0].mxu0 %v1654
      %v1770 = vpop.f32.mrb[0].mxu0
      %v1771 = vadd.f32 0.0, %v1770
      %v1772 = vpop.f32.mrb[0].mxu0
      %v1773 = vpop.f32.mrb[0].mxu0
      %v1774 = vadd.f32 0.0, %v1773
      %v1775 = vpop.f32.mrb[0].mxu0
      %1776 = vmatprep.mubr.bf16.mxu0 0
      %1777 = vmatmul.mubr.bf16.gmra.mrb[0].mxu0 %v1657
      %v1778 = vpop.f32.mrb[0].mxu0
      %v1779 = vadd.f32 0.0, %v1778
      %v1780 = vpop.f32.mrb[0].mxu0
      %v1781 = vpop.f32.mrb[0].mxu0
      %v1782 = vadd.f32 0.0, %v1781
      %v1783 = vpop.f32.mrb[0].mxu0
      %1784 = vmatprep.mubr.bf16.mxu0 0
      %1785 = vmatmul.mubr.bf16.gmra.mrb[0].mxu0 %v1660
      %v1786 = vpop.f32.mrb[0].mxu0
      %v1787 = vadd.f32 0.0, %v1786
      %v1788 = vpop.f32.mrb[0].mxu0
      %v1789 = vpop.f32.mrb[0].mxu0
      %v1790 = vadd.f32 0.0, %v1789
      %v1791 = vpop.f32.mrb[0].mxu0
      %1792 = vmatprep.mubr.bf16.mxu0 0
      %1793 = vmatmul.mubr.bf16.gmra.mrb[0].mxu0 %v1663
      %v1794 = vpop.f32.mrb[0].mxu0
      %v1795 = vadd.f32 0.0, %v1794
      %v1796 = vpop.f32.mrb[0].mxu0
      %v1797 = vpop.f32.mrb[0].mxu0
      %v1798 = vadd.f32 0.0, %v1797
      %v1799 = vpop.f32.mrb[0].mxu0
      %1800 = vmatprep.mubr.bf16.mxu0 0
      %1801 = vmatmul.mubr.bf16.gmra.mrb[0].mxu0 %v1666
      %v1802 = vpop.f32.mrb[0].mxu0
      %v1803 = vadd.f32 0.0, %v1802
      %v1804 = vpop.f32.mrb[0].mxu0
      %v1805 = vpop.f32.mrb[0].mxu0
      %v1806 = vadd.f32 0.0, %v1805
      %v1807 = vpop.f32.mrb[0].mxu0
      %1808 = vmatprep.mubr.bf16.mxu0 0
      %1809 = vmatmul.mubr.bf16.gmra.mrb[0].mxu0 %v1669
      %v1810 = vpop.f32.mrb[0].mxu0
      %v1811 = vadd.f32 0.0, %v1810
      %v1812 = vpop.f32.mrb[0].mxu0
      %v1813 = vpop.f32.mrb[0].mxu0
      %v1814 = vadd.f32 0.0, %v1813
      %v1815 = vpop.f32.mrb[0].mxu0
      %1816 = vmatprep.mubr.bf16.mxu0 0
      %1817 = vmatmul.mubr.bf16.gmra.mrb[0].mxu0 %v1672
      %v1818 = vpop.f32.mrb[0].mxu0
      %v1819 = vadd.f32 0.0, %v1818
      %v1820 = vpop.f32.mrb[0].mxu0
      %v1821 = vpop.f32.mrb[0].mxu0
      %v1822 = vadd.f32 0.0, %v1821
      %v1823 = vpop.f32.mrb[0].mxu0
      %1824 = vmatprep.mubr.bf16.mxu0 0
      %1825 = vmatmul.mubr.bf16.gmra.mrb[0].mxu0 %v1675
      %v1826 = vpop.f32.mrb[0].mxu0
      %v1827 = vadd.f32 0.0, %v1826
      %v1828 = vpop.f32.mrb[0].mxu0
      %v1829 = vpop.f32.mrb[0].mxu0
      %v1830 = vadd.f32 0.0, %v1829
      %v1831 = vpop.f32.mrb[0].mxu0
      %1832 = vmatprep.mubr.bf16.mxu0 0
      %1833 = vmatmul.mubr.bf16.gmra.mrb[0].mxu0 %v1678
      %v1834 = vpop.f32.mrb[0].mxu0
      %v1835 = vadd.f32 0.0, %v1834
      %v1836 = vpop.f32.mrb[0].mxu0
      %v1837 = vpop.f32.mrb[0].mxu0
      %v1838 = vadd.f32 0.0, %v1837
      %v1839 = vpop.f32.mrb[0].mxu0
      %1840 = vdwg.mxu0
      %v1857 = vunpack.c.l.b16 %v929
      %v1858 = vunpack.c.l.b16 %v930
      %v1859 = vunpack.c.l.b16 %v931
      %v1860 = vunpack.c.l.b16 %v932
      %v1861 = vunpack.c.l.b16 %v933
      %v1862 = vunpack.c.l.b16 %v934
      %v1863 = vunpack.c.l.b16 %v935
      %v1864 = vunpack.c.l.b16 %v936
      %v1865 = vunpack.c.l.b16 %v937
      %v1866 = vunpack.c.l.b16 %v938
      %v1867 = vunpack.c.l.b16 %v939
      %v1868 = vunpack.c.l.b16 %v940
      %v1869 = vunpack.c.l.b16 %v941
      %v1870 = vunpack.c.l.b16 %v942
      %v1871 = vunpack.c.l.b16 %v943
      %v1872 = vunpack.c.l.b16 %v944
      %v1873 = vunpack.c.l.b16 %v945
      %v1874 = vunpack.c.l.b16 %v946
      %v1875 = vunpack.c.l.b16 %v947
      %v1876 = vunpack.c.l.b16 %v948
      %v1877 = vunpack.c.l.b16 %v949
      %v1878 = vunpack.c.l.b16 %v950
      %v1879 = vunpack.c.l.b16 %v951
      %v1880 = vunpack.c.l.b16 %v952
      %v1881 = vunpack.c.l.b16 %v953
      %v1882 = vunpack.c.l.b16 %v954
      %v1883 = vunpack.c.l.b16 %v955
      %v1884 = vunpack.c.l.b16 %v956
      %v1885 = vunpack.c.l.b16 %v957
      %v1886 = vunpack.c.l.b16 %v958
      %v1887 = vunpack.c.l.b16 %v959
      %v1888 = vunpack.c.l.b16 %v960
      %v1889 = vpack.c.b16 %v1858, %v1857
      %v1890 = vpack.c.b16 %v1860, %v1859
      %v1891 = vpack.c.b16 %v1862, %v1861
      %v1892 = vpack.c.b16 %v1864, %v1863
      %v1893 = vpack.c.b16 %v1866, %v1865
      %v1894 = vpack.c.b16 %v1868, %v1867
      %v1895 = vpack.c.b16 %v1870, %v1869
      %v1896 = vpack.c.b16 %v1872, %v1871
      %v1897 = vpack.c.b16 %v1874, %v1873
      %v1898 = vpack.c.b16 %v1876, %v1875
      %v1899 = vpack.c.b16 %v1878, %v1877
      %v1900 = vpack.c.b16 %v1880, %v1879
      %v1901 = vpack.c.b16 %v1882, %v1881
      %v1902 = vpack.c.b16 %v1884, %v1883
      %v1903 = vpack.c.b16 %v1886, %v1885
      %v1904 = vpack.c.b16 %v1888, %v1887
      %v1913 = vunpack.c.l.b16 %v1543
      %v1914 = vunpack.c.l.b16 %v1544
      %v1915 = vunpack.c.l.b16 %v1545
      %v1916 = vunpack.c.l.b16 %v1546
      %v1917 = vunpack.c.l.b16 %v1547
      %v1918 = vunpack.c.l.b16 %v1548
      %v1919 = vunpack.c.l.b16 %v1549
      %v1920 = vunpack.c.l.b16 %v1550
      %v1921 = vpack.c.b16 %v1914, %v1913
      %v1922 = vpack.c.b16 %v1916, %v1915
      %v1923 = vpack.c.b16 %v1918, %v1917
      %v1924 = vpack.c.b16 %v1920, %v1919
      %v1930 = vsel %vm1631, %v1889, 0
      %v1933 = vsel %vm1631, %v1890, 0
      %v1936 = vsel %vm1631, %v1891, 0
      %v1939 = vsel %vm1631, %v1892, 0
      %v1942 = vsel %vm1631, %v1893, 0
      %v1945 = vsel %vm1631, %v1894, 0
      %v1948 = vsel %vm1631, %v1895, 0
      %v1951 = vsel %vm1631, %v1896, 0
      %v1954 = vsel %vm1631, %v1897, 0
      %v1957 = vsel %vm1631, %v1898, 0
      %v1960 = vsel %vm1631, %v1899, 0
      %v1963 = vsel %vm1631, %v1900, 0
      %v1966 = vsel %vm1631, %v1901, 0
      %v1969 = vsel %vm1631, %v1902, 0
      %v1972 = vsel %vm1631, %v1903, 0
      %v1975 = vsel %vm1631, %v1904, 0
      %1977 = vmatprep.subr.bf16.mxu0 0
      %1978 = vmatpush1.bf16.msra.mxu0 %v1921
      %1979 = vmatprep.subr.bf16.mxu0 0
      %1980 = vmatpush1.bf16.msra.mxu0 %v1922
      %1981 = vmatprep.subr.bf16.mxu0 0
      %1982 = vmatpush1.bf16.msra.mxu0 %v1923
      %1983 = vmatprep.subr.bf16.mxu0 0
      %1984 = vmatpush1.bf16.msra.mxu0 %v1924
      %1985 = vmatprep.subr.bf16.mxu0 0
      %1986 = vmatpush1.bf16.msra.mxu0 0
      %1987 = vmatprep.subr.bf16.mxu0 0
      %1988 = vmatpush1.bf16.msra.mxu0 0
      %1989 = vmatprep.subr.bf16.mxu0 0
      %1990 = vmatpush1.bf16.msra.mxu0 0
      %1991 = vmatprep.subr.bf16.mxu0 0
      %1992 = vmatpush1.bf16.msra.mxu0 0
      %1993 = vmatprep.subr.bf16.mxu0 0
      %1994 = vmatpush1.bf16.msra.mxu0 0
      %1995 = vmatprep.subr.bf16.mxu0 0
      %1996 = vmatpush1.bf16.msra.mxu0 0
      %1997 = vmatprep.subr.bf16.mxu0 0
      %1998 = vmatpush1.bf16.msra.mxu0 0
      %1999 = vmatprep.subr.bf16.mxu0 0
      %2000 = vmatpush1.bf16.msra.mxu0 0
      %2001 = vmatprep.subr.bf16.mxu0 0
      %2002 = vmatpush1.bf16.msra.mxu0 0
      %2003 = vmatprep.subr.bf16.mxu0 0
      %2004 = vmatpush1.bf16.msra.mxu0 0
      %2005 = vmatprep.subr.bf16.mxu0 0
      %2006 = vmatpush1.bf16.msra.mxu0 0
      %2007 = vmatprep.subr.bf16.mxu0 0
      %2008 = vmatpush1.bf16.msra.mxu0 0
      %2009 = vmatprep.mubr.bf16.mxu0 0
      %2010 = vmatmul.mubr.bf16.gmra.mrb[0].mxu0 %v1930
      %v2011 = vpop.f32.mrb[0].mxu0
      %v2012 = vadd.f32 %v1715, %v2011
      %v2013 = vpop.f32.mrb[0].mxu0
      %v2014 = vpop.f32.mrb[0].mxu0
      %v2015 = vadd.f32 %v1718, %v2014
      %v2016 = vpop.f32.mrb[0].mxu0
      %2017 = vmatprep.mubr.bf16.mxu0 0
      %2018 = vmatmul.mubr.bf16.gmra.mrb[0].mxu0 %v1933
      %v2019 = vpop.f32.mrb[0].mxu0
      %v2020 = vadd.f32 %v1723, %v2019
      %v2021 = vpop.f32.mrb[0].mxu0
      %v2022 = vpop.f32.mrb[0].mxu0
      %v2023 = vadd.f32 %v1726, %v2022
      %v2024 = vpop.f32.mrb[0].mxu0
      %2025 = vmatprep.mubr.bf16.mxu0 0
      %2026 = vmatmul.mubr.bf16.gmra.mrb[0].mxu0 %v1936
      %v2027 = vpop.f32.mrb[0].mxu0
      %v2028 = vadd.f32 %v1731, %v2027
      %v2029 = vpop.f32.mrb[0].mxu0
      %v2030 = vpop.f32.mrb[0].mxu0
      %v2031 = vadd.f32 %v1734, %v2030
      %v2032 = vpop.f32.mrb[0].mxu0
      %2033 = vmatprep.mubr.bf16.mxu0 0
      %2034 = vmatmul.mubr.bf16.gmra.mrb[0].mxu0 %v1939
      %v2035 = vpop.f32.mrb[0].mxu0
      %v2036 = vadd.f32 %v1739, %v2035
      %v2037 = vpop.f32.mrb[0].mxu0
      %v2038 = vpop.f32.mrb[0].mxu0
      %v2039 = vadd.f32 %v1742, %v2038
      %v2040 = vpop.f32.mrb[0].mxu0
      %2041 = vmatprep.mubr.bf16.mxu0 0
      %2042 = vmatmul.mubr.bf16.gmra.mrb[0].mxu0 %v1942
      %v2043 = vpop.f32.mrb[0].mxu0
      %v2044 = vadd.f32 %v1747, %v2043
      %v2045 = vpop.f32.mrb[0].mxu0
      %v2046 = vpop.f32.mrb[0].mxu0
      %v2047 = vadd.f32 %v1750, %v2046
      %v2048 = vpop.f32.mrb[0].mxu0
      %2049 = vmatprep.mubr.bf16.mxu0 0
      %2050 = vmatmul.mubr.bf16.gmra.mrb[0].mxu0 %v1945
      %v2051 = vpop.f32.mrb[0].mxu0
      %v2052 = vadd.f32 %v1755, %v2051
      %v2053 = vpop.f32.mrb[0].mxu0
      %v2054 = vpop.f32.mrb[0].mxu0
      %v2055 = vadd.f32 %v1758, %v2054
      %v2056 = vpop.f32.mrb[0].mxu0
      %2057 = vmatprep.mubr.bf16.mxu0 0
      %2058 = vmatmul.mubr.bf16.gmra.mrb[0].mxu0 %v1948
      %v2059 = vpop.f32.mrb[0].mxu0
      %v2060 = vadd.f32 %v1763, %v2059
      %v2061 = vpop.f32.mrb[0].mxu0
      %v2062 = vpop.f32.mrb[0].mxu0
      %v2063 = vadd.f32 %v1766, %v2062
      %v2064 = vpop.f32.mrb[0].mxu0
      %2065 = vmatprep.mubr.bf16.mxu0 0
      %2066 = vmatmul.mubr.bf16.gmra.mrb[0].mxu0 %v1951
      %v2067 = vpop.f32.mrb[0].mxu0
      %v2068 = vadd.f32 %v1771, %v2067
      %v2069 = vpop.f32.mrb[0].mxu0
      %v2070 = vpop.f32.mrb[0].mxu0
      %v2071 = vadd.f32 %v1774, %v2070
      %v2072 = vpop.f32.mrb[0].mxu0
      %2073 = vmatprep.mubr.bf16.mxu0 0
      %2074 = vmatmul.mubr.bf16.gmra.mrb[0].mxu0 %v1954
      %v2075 = vpop.f32.mrb[0].mxu0
      %v2076 = vadd.f32 %v1779, %v2075
      %v2077 = vpop.f32.mrb[0].mxu0
      %v2078 = vpop.f32.mrb[0].mxu0
      %v2079 = vadd.f32 %v1782, %v2078
      %v2080 = vpop.f32.mrb[0].mxu0
      %2081 = vmatprep.mubr.bf16.mxu0 0
      %2082 = vmatmul.mubr.bf16.gmra.mrb[0].mxu0 %v1957
      %v2083 = vpop.f32.mrb[0].mxu0
      %v2084 = vadd.f32 %v1787, %v2083
      %v2085 = vpop.f32.mrb[0].mxu0
      %v2086 = vpop.f32.mrb[0].mxu0
      %v2087 = vadd.f32 %v1790, %v2086
      %v2088 = vpop.f32.mrb[0].mxu0
      %2089 = vmatprep.mubr.bf16.mxu0 0
      %2090 = vmatmul.mubr.bf16.gmra.mrb[0].mxu0 %v1960
      %v2091 = vpop.f32.mrb[0].mxu0
      %v2092 = vadd.f32 %v1795, %v2091
      %v2093 = vpop.f32.mrb[0].mxu0
      %v2094 = vpop.f32.mrb[0].mxu0
      %v2095 = vadd.f32 %v1798, %v2094
      %v2096 = vpop.f32.mrb[0].mxu0
      %2097 = vmatprep.mubr.bf16.mxu0 0
      %2098 = vmatmul.mubr.bf16.gmra.mrb[0].mxu0 %v1963
      %v2099 = vpop.f32.mrb[0].mxu0
      %v2100 = vadd.f32 %v1803, %v2099
      %v2101 = vpop.f32.mrb[0].mxu0
      %v2102 = vpop.f32.mrb[0].mxu0
      %v2103 = vadd.f32 %v1806, %v2102
      %v2104 = vpop.f32.mrb[0].mxu0
      %2105 = vmatprep.mubr.bf16.mxu0 0
      %2106 = vmatmul.mubr.bf16.gmra.mrb[0].mxu0 %v1966
      %v2107 = vpop.f32.mrb[0].mxu0
      %v2108 = vadd.f32 %v1811, %v2107
      %v2109 = vpop.f32.mrb[0].mxu0
      %v2110 = vpop.f32.mrb[0].mxu0
      %v2111 = vadd.f32 %v1814, %v2110
      %v2112 = vpop.f32.mrb[0].mxu0
      %2113 = vmatprep.mubr.bf16.mxu0 0
      %2114 = vmatmul.mubr.bf16.gmra.mrb[0].mxu0 %v1969
      %v2115 = vpop.f32.mrb[0].mxu0
      %v2116 = vadd.f32 %v1819, %v2115
      %v2117 = vpop.f32.mrb[0].mxu0
      %v2118 = vpop.f32.mrb[0].mxu0
      %v2119 = vadd.f32 %v1822, %v2118
      %v2120 = vpop.f32.mrb[0].mxu0
      %2121 = vmatprep.mubr.bf16.mxu0 0
      %2122 = vmatmul.mubr.bf16.gmra.mrb[0].mxu0 %v1972
      %v2123 = vpop.f32.mrb[0].mxu0
      %v2124 = vadd.f32 %v1827, %v2123
      %v2125 = vpop.f32.mrb[0].mxu0
      %v2126 = vpop.f32.mrb[0].mxu0
      %v2127 = vadd.f32 %v1830, %v2126
      %v2128 = vpop.f32.mrb[0].mxu0
      %2129 = vmatprep.mubr.bf16.mxu0 0
      %2130 = vmatmul.mubr.bf16.gmra.mrb[0].mxu0 %v1975
      %v2131 = vpop.f32.mrb[0].mxu0
      %v2132 = vadd.f32 %v1835, %v2131
      %v2133 = vpop.f32.mrb[0].mxu0
      %v2134 = vpop.f32.mrb[0].mxu0
      %v2135 = vadd.f32 %v1838, %v2134
      %v2136 = vpop.f32.mrb[0].mxu0
      %2137 = vdwg.mxu0
      %v2138 = vld [vmem:[%s3 + $0x40] sm:$0xf]
      %v2139 = vld [vmem:[%s3 + $0x44] sm:$0xf]
      %v2140 = vld [vmem:[%s3 + $0x48] sm:$0xf]
      %v2141 = vld [vmem:[%s3 + $0x4c] sm:$0xf]
      %v2142 = vld [vmem:[%s3 + $0x50] sm:$0xf]
      %v2143 = vld [vmem:[%s3 + $0x54] sm:$0xf]
      %v2144 = vld [vmem:[%s3 + $0x58] sm:$0xf]
      %v2145 = vld [vmem:[%s3 + $0x5c] sm:$0xf]
      %v2146 = vunpack.c.l.b16 %v1434
      %v2147 = vunpack.c.l.b16 %v1437
      %v2148 = vunpack.c.l.b16 %v1441
      %v2149 = vunpack.c.l.b16 %v1444
      %v2150 = vunpack.c.l.b16 %v1448
      %v2151 = vunpack.c.l.b16 %v1451
      %v2152 = vunpack.c.l.b16 %v1455
      %v2153 = vunpack.c.l.b16 %v1458
      %v2154 = vunpack.c.l.b16 %v1462
      %v2155 = vunpack.c.l.b16 %v1465
      %v2156 = vunpack.c.l.b16 %v1469
      %v2157 = vunpack.c.l.b16 %v1472
      %v2158 = vunpack.c.l.b16 %v1476
      %v2159 = vunpack.c.l.b16 %v1479
      %v2160 = vunpack.c.l.b16 %v1483
      %v2161 = vunpack.c.l.b16 %v1486
      %v2162 = vunpack.c.l.b16 %v1490
      %v2163 = vunpack.c.l.b16 %v1493
      %v2164 = vunpack.c.l.b16 %v1497
      %v2165 = vunpack.c.l.b16 %v1500
      %v2166 = vunpack.c.l.b16 %v1504
      %v2167 = vunpack.c.l.b16 %v1507
      %v2168 = vunpack.c.l.b16 %v1511
      %v2169 = vunpack.c.l.b16 %v1514
      %v2170 = vunpack.c.l.b16 %v1518
      %v2171 = vunpack.c.l.b16 %v1521
      %v2172 = vunpack.c.l.b16 %v1525
      %v2173 = vunpack.c.l.b16 %v1528
      %v2174 = vunpack.c.l.b16 %v1532
      %v2175 = vunpack.c.l.b16 %v1535
      %v2176 = vunpack.c.l.b16 %v1539
      %v2177 = vunpack.c.l.b16 %v1542
      %v2178 = vpack.c.b16 %v2147, %v2146
      %v2179 = vpack.c.b16 %v2149, %v2148
      %v2180 = vpack.c.b16 %v2151, %v2150
      %v2181 = vpack.c.b16 %v2153, %v2152
      %v2182 = vpack.c.b16 %v2155, %v2154
      %v2183 = vpack.c.b16 %v2157, %v2156
      %v2184 = vpack.c.b16 %v2159, %v2158
      %v2185 = vpack.c.b16 %v2161, %v2160
      %v2186 = vpack.c.b16 %v2163, %v2162
      %v2187 = vpack.c.b16 %v2165, %v2164
      %v2188 = vpack.c.b16 %v2167, %v2166
      %v2189 = vpack.c.b16 %v2169, %v2168
      %v2190 = vpack.c.b16 %v2171, %v2170
      %v2191 = vpack.c.b16 %v2173, %v2172
      %v2192 = vpack.c.b16 %v2175, %v2174
      %v2193 = vpack.c.b16 %v2177, %v2176
      %v2202 = vunpack.c.l.b16 %v2138
      %v2203 = vunpack.c.l.b16 %v2139
      %v2204 = vunpack.c.l.b16 %v2140
      %v2205 = vunpack.c.l.b16 %v2141
      %v2206 = vunpack.c.l.b16 %v2142
      %v2207 = vunpack.c.l.b16 %v2143
      %v2208 = vunpack.c.l.b16 %v2144
      %v2209 = vunpack.c.l.b16 %v2145
      %v2210 = vpack.c.b16 %v2203, %v2202
      %v2211 = vpack.c.b16 %v2205, %v2204
      %v2212 = vpack.c.b16 %v2207, %v2206
      %v2213 = vpack.c.b16 %v2209, %v2208
      %v2219 = vsel %vm1631, %v2178, 0
      %v2222 = vsel %vm1631, %v2179, 0
      %v2225 = vsel %vm1631, %v2180, 0
      %v2228 = vsel %vm1631, %v2181, 0
      %v2231 = vsel %vm1631, %v2182, 0
      %v2234 = vsel %vm1631, %v2183, 0
      %v2237 = vsel %vm1631, %v2184, 0
      %v2240 = vsel %vm1631, %v2185, 0
      %v2243 = vsel %vm1631, %v2186, 0
      %v2246 = vsel %vm1631, %v2187, 0
      %v2249 = vsel %vm1631, %v2188, 0
      %v2252 = vsel %vm1631, %v2189, 0
      %v2255 = vsel %vm1631, %v2190, 0
      %v2258 = vsel %vm1631, %v2191, 0
      %v2261 = vsel %vm1631, %v2192, 0
      %v2264 = vsel %vm1631, %v2193, 0
      %2266 = vmatprep.subr.bf16.mxu0 0
      %2267 = vmatpush1.bf16.msra.mxu0 %v2210
      %2268 = vmatprep.subr.bf16.mxu0 0
      %2269 = vmatpush1.bf16.msra.mxu0 %v2211
      %2270 = vmatprep.subr.bf16.mxu0 0
      %2271 = vmatpush1.bf16.msra.mxu0 %v2212
      %2272 = vmatprep.subr.bf16.mxu0 0
      %2273 = vmatpush1.bf16.msra.mxu0 %v2213
      %2274 = vmatprep.subr.bf16.mxu0 0
      %2275 = vmatpush1.bf16.msra.mxu0 0
      %2276 = vmatprep.subr.bf16.mxu0 0
      %2277 = vmatpush1.bf16.msra.mxu0 0
      %2278 = vmatprep.subr.bf16.mxu0 0
      %2279 = vmatpush1.bf16.msra.mxu0 0
      %2280 = vmatprep.subr.bf16.mxu0 0
      %2281 = vmatpush1.bf16.msra.mxu0 0
      %2282 = vmatprep.subr.bf16.mxu0 0
      %2283 = vmatpush1.bf16.msra.mxu0 0
      %2284 = vmatprep.subr.bf16.mxu0 0
      %2285 = vmatpush1.bf16.msra.mxu0 0
      %2286 = vmatprep.subr.bf16.mxu0 0
      %2287 = vmatpush1.bf16.msra.mxu0 0
      %2288 = vmatprep.subr.bf16.mxu0 0
      %2289 = vmatpush1.bf16.msra.mxu0 0
      %2290 = vmatprep.subr.bf16.mxu0 0
      %2291 = vmatpush1.bf16.msra.mxu0 0
      %2292 = vmatprep.subr.bf16.mxu0 0
      %2293 = vmatpush1.bf16.msra.mxu0 0
      %2294 = vmatprep.subr.bf16.mxu0 0
      %2295 = vmatpush1.bf16.msra.mxu0 0
      %2296 = vmatprep.subr.bf16.mxu0 0
      %2297 = vmatpush1.bf16.msra.mxu0 0
      %2298 = vmatprep.mubr.bf16.mxu0 0
      %2299 = vmatmul.mubr.bf16.gmra.mrb[0].mxu0 %v2219
      %v2300 = vpop.f32.mrb[0].mxu0
      %v2301 = vadd.f32 0.0, %v2300
      %v2302 = vpop.f32.mrb[0].mxu0
      %v2303 = vpop.f32.mrb[0].mxu0
      %v2304 = vadd.f32 0.0, %v2303
      %v2305 = vpop.f32.mrb[0].mxu0
      %2306 = vmatprep.mubr.bf16.mxu0 0
      %2307 = vmatmul.mubr.bf16.gmra.mrb[0].mxu0 %v2222
      %v2308 = vpop.f32.mrb[0].mxu0
      %v2309 = vadd.f32 0.0, %v2308
      %v2310 = vpop.f32.mrb[0].mxu0
      %v2311 = vpop.f32.mrb[0].mxu0
      %v2312 = vadd.f32 0.0, %v2311
      %v2313 = vpop.f32.mrb[0].mxu0
      %2314 = vmatprep.mubr.bf16.mxu0 0
      %2315 = vmatmul.mubr.bf16.gmra.mrb[0].mxu0 %v2225
      %v2316 = vpop.f32.mrb[0].mxu0
      %v2317 = vadd.f32 0.0, %v2316
      %v2318 = vpop.f32.mrb[0].mxu0
      %v2319 = vpop.f32.mrb[0].mxu0
      %v2320 = vadd.f32 0.0, %v2319
      %v2321 = vpop.f32.mrb[0].mxu0
      %2322 = vmatprep.mubr.bf16.mxu0 0
      %2323 = vmatmul.mubr.bf16.gmra.mrb[0].mxu0 %v2228
      %v2324 = vpop.f32.mrb[0].mxu0
      %v2325 = vadd.f32 0.0, %v2324
      %v2326 = vpop.f32.mrb[0].mxu0
      %v2327 = vpop.f32.mrb[0].mxu0
      %v2328 = vadd.f32 0.0, %v2327
      %v2329 = vpop.f32.mrb[0].mxu0
      %2330 = vmatprep.mubr.bf16.mxu0 0
      %2331 = vmatmul.mubr.bf16.gmra.mrb[0].mxu0 %v2231
      %v2332 = vpop.f32.mrb[0].mxu0
      %v2333 = vadd.f32 0.0, %v2332
      %v2334 = vpop.f32.mrb[0].mxu0
      %v2335 = vpop.f32.mrb[0].mxu0
      %v2336 = vadd.f32 0.0, %v2335
      %v2337 = vpop.f32.mrb[0].mxu0
      %2338 = vmatprep.mubr.bf16.mxu0 0
      %2339 = vmatmul.mubr.bf16.gmra.mrb[0].mxu0 %v2234
      %v2340 = vpop.f32.mrb[0].mxu0
      %v2341 = vadd.f32 0.0, %v2340
      %v2342 = vpop.f32.mrb[0].mxu0
      %v2343 = vpop.f32.mrb[0].mxu0
      %v2344 = vadd.f32 0.0, %v2343
      %v2345 = vpop.f32.mrb[0].mxu0
      %2346 = vmatprep.mubr.bf16.mxu0 0
      %2347 = vmatmul.mubr.bf16.gmra.mrb[0].mxu0 %v2237
      %v2348 = vpop.f32.mrb[0].mxu0
      %v2349 = vadd.f32 0.0, %v2348
      %v2350 = vpop.f32.mrb[0].mxu0
      %v2351 = vpop.f32.mrb[0].mxu0
      %v2352 = vadd.f32 0.0, %v2351
      %v2353 = vpop.f32.mrb[0].mxu0
      %2354 = vmatprep.mubr.bf16.mxu0 0
      %2355 = vmatmul.mubr.bf16.gmra.mrb[0].mxu0 %v2240
      %v2356 = vpop.f32.mrb[0].mxu0
      %v2357 = vadd.f32 0.0, %v2356
      %v2358 = vpop.f32.mrb[0].mxu0
      %v2359 = vpop.f32.mrb[0].mxu0
      %v2360 = vadd.f32 0.0, %v2359
      %v2361 = vpop.f32.mrb[0].mxu0
      %2362 = vmatprep.mubr.bf16.mxu0 0
      %2363 = vmatmul.mubr.bf16.gmra.mrb[0].mxu0 %v2243
      %v2364 = vpop.f32.mrb[0].mxu0
      %v2365 = vadd.f32 0.0, %v2364
      %v2366 = vpop.f32.mrb[0].mxu0
      %v2367 = vpop.f32.mrb[0].mxu0
      %v2368 = vadd.f32 0.0, %v2367
      %v2369 = vpop.f32.mrb[0].mxu0
      %2370 = vmatprep.mubr.bf16.mxu0 0
      %2371 = vmatmul.mubr.bf16.gmra.mrb[0].mxu0 %v2246
      %v2372 = vpop.f32.mrb[0].mxu0
      %v2373 = vadd.f32 0.0, %v2372
      %v2374 = vpop.f32.mrb[0].mxu0
      %v2375 = vpop.f32.mrb[0].mxu0
      %v2376 = vadd.f32 0.0, %v2375
      %v2377 = vpop.f32.mrb[0].mxu0
      %2378 = vmatprep.mubr.bf16.mxu0 0
      %2379 = vmatmul.mubr.bf16.gmra.mrb[0].mxu0 %v2249
      %v2380 = vpop.f32.mrb[0].mxu0
      %v2381 = vadd.f32 0.0, %v2380
      %v2382 = vpop.f32.mrb[0].mxu0
      %v2383 = vpop.f32.mrb[0].mxu0
      %v2384 = vadd.f32 0.0, %v2383
      %v2385 = vpop.f32.mrb[0].mxu0
      %2386 = vmatprep.mubr.bf16.mxu0 0
      %2387 = vmatmul.mubr.bf16.gmra.mrb[0].mxu0 %v2252
      %v2388 = vpop.f32.mrb[0].mxu0
      %v2389 = vadd.f32 0.0, %v2388
      %v2390 = vpop.f32.mrb[0].mxu0
      %v2391 = vpop.f32.mrb[0].mxu0
      %v2392 = vadd.f32 0.0, %v2391
      %v2393 = vpop.f32.mrb[0].mxu0
      %2394 = vmatprep.mubr.bf16.mxu0 0
      %2395 = vmatmul.mubr.bf16.gmra.mrb[0].mxu0 %v2255
      %v2396 = vpop.f32.mrb[0].mxu0
      %v2397 = vadd.f32 0.0, %v2396
      %v2398 = vpop.f32.mrb[0].mxu0
      %v2399 = vpop.f32.mrb[0].mxu0
      %v2400 = vadd.f32 0.0, %v2399
      %v2401 = vpop.f32.mrb[0].mxu0
      %2402 = vmatprep.mubr.bf16.mxu0 0
      %2403 = vmatmul.mubr.bf16.gmra.mrb[0].mxu0 %v2258
      %v2404 = vpop.f32.mrb[0].mxu0
      %v2405 = vadd.f32 0.0, %v2404
      %v2406 = vpop.f32.mrb[0].mxu0
      %v2407 = vpop.f32.mrb[0].mxu0
      %v2408 = vadd.f32 0.0, %v2407
      %v2409 = vpop.f32.mrb[0].mxu0
      %2410 = vmatprep.mubr.bf16.mxu0 0
      %2411 = vmatmul.mubr.bf16.gmra.mrb[0].mxu0 %v2261
      %v2412 = vpop.f32.mrb[0].mxu0
      %v2413 = vadd.f32 0.0, %v2412
      %v2414 = vpop.f32.mrb[0].mxu0
      %v2415 = vpop.f32.mrb[0].mxu0
      %v2416 = vadd.f32 0.0, %v2415
      %v2417 = vpop.f32.mrb[0].mxu0
      %2418 = vmatprep.mubr.bf16.mxu0 0
      %2419 = vmatmul.mubr.bf16.gmra.mrb[0].mxu0 %v2264
      %v2420 = vpop.f32.mrb[0].mxu0
      %v2421 = vadd.f32 0.0, %v2420
      %v2422 = vpop.f32.mrb[0].mxu0
      %v2423 = vpop.f32.mrb[0].mxu0
      %v2424 = vadd.f32 0.0, %v2423
      %v2425 = vpop.f32.mrb[0].mxu0
      %2426 = vdwg.mxu0
      %v2427 = vadd.f32 %v2012, %v2301
      %v2428 = vadd.f32 %v2015, %v2304
      %v2429 = vadd.f32 %v2020, %v2309
      %v2430 = vadd.f32 %v2023, %v2312
      %v2431 = vadd.f32 %v2028, %v2317
      %v2432 = vadd.f32 %v2031, %v2320
      %v2433 = vadd.f32 %v2036, %v2325
      %v2434 = vadd.f32 %v2039, %v2328
      %v2435 = vadd.f32 %v2044, %v2333
      %v2436 = vadd.f32 %v2047, %v2336
      %v2437 = vadd.f32 %v2052, %v2341
      %v2438 = vadd.f32 %v2055, %v2344
      %v2439 = vadd.f32 %v2060, %v2349
      %v2440 = vadd.f32 %v2063, %v2352
      %v2441 = vadd.f32 %v2068, %v2357
      %v2442 = vadd.f32 %v2071, %v2360
      %v2443 = vadd.f32 %v2076, %v2365
      %v2444 = vadd.f32 %v2079, %v2368
      %v2445 = vadd.f32 %v2084, %v2373
      %v2446 = vadd.f32 %v2087, %v2376
      %v2447 = vadd.f32 %v2092, %v2381
      %v2448 = vadd.f32 %v2095, %v2384
      %v2449 = vadd.f32 %v2100, %v2389
      %v2450 = vadd.f32 %v2103, %v2392
      %v2451 = vadd.f32 %v2108, %v2397
      %v2452 = vadd.f32 %v2111, %v2400
      %v2453 = vadd.f32 %v2116, %v2405
      %v2454 = vadd.f32 %v2119, %v2408
      %v2455 = vadd.f32 %v2124, %v2413
      %v2456 = vadd.f32 %v2127, %v2416
      %v2457 = vadd.f32 %v2132, %v2421
      %v2458 = vadd.f32 %v2135, %v2424
      %v2459 = vld [vmem:[%s811] sm:$0xf]
      %v2460 = vld [vmem:[%s811 + $0x4] sm:$0xf]
      %v2461 = vld [vmem:[%s811 + $0xc] sm:$0xf]
      %v2462 = vld [vmem:[%s811 + $0x10] sm:$0xf]
      %v2463 = vld [vmem:[%s811 + $0x18] sm:$0xf]
      %v2464 = vld [vmem:[%s811 + $0x1c] sm:$0xf]
      %v2465 = vld [vmem:[%s811 + $0x24] sm:$0xf]
      %v2466 = vld [vmem:[%s811 + $0x28] sm:$0xf]
      %v2467 = vld [vmem:[%s811 + $0x30] sm:$0xf]
      %v2468 = vld [vmem:[%s811 + $0x34] sm:$0xf]
      %v2469 = vld [vmem:[%s811 + $0x3c] sm:$0xf]
      %v2470 = vld [vmem:[%s811 + $0x40] sm:$0xf]
      %v2471 = vld [vmem:[%s811 + $0x48] sm:$0xf]
      %v2472 = vld [vmem:[%s811 + $0x4c] sm:$0xf]
      %v2473 = vld [vmem:[%s811 + $0x54] sm:$0xf]
      %v2474 = vld [vmem:[%s811 + $0x58] sm:$0xf]
      %v2475 = vld [vmem:[%s811 + $0x60] sm:$0xf]
      %v2476 = vld [vmem:[%s811 + $0x64] sm:$0xf]
      %v2477 = vld [vmem:[%s811 + $0x6c] sm:$0xf]
      %v2478 = vld [vmem:[%s811 + $0x70] sm:$0xf]
      %v2479 = vld [vmem:[%s811 + $0x78] sm:$0xf]
      %v2480 = vld [vmem:[%s811 + $0x7c] sm:$0xf]
      %v2481 = vld [vmem:[%s811 + $0x84] sm:$0xf]
      %v2482 = vld [vmem:[%s811 + $0x88] sm:$0xf]
      %v2483 = vld [vmem:[%s811 + $0x90] sm:$0xf]
      %v2484 = vld [vmem:[%s811 + $0x94] sm:$0xf]
      %v2485 = vld [vmem:[%s811 + $0x9c] sm:$0xf]
      %v2486 = vld [vmem:[%s811 + $0xa0] sm:$0xf]
      %v2487 = vld [vmem:[%s811 + $0xa8] sm:$0xf]
      %v2488 = vld [vmem:[%s811 + $0xac] sm:$0xf]
      %v2489 = vld [vmem:[%s811 + $0xb4] sm:$0xf]
      %v2490 = vld [vmem:[%s811 + $0xb8] sm:$0xf]
      %v2491 = vld [vmem:[%s811 + $0x8] sm:$0x1]
      %v2492 = vld [vmem:[%s811 + $0x14] sm:$0x1]
      %v2493 = vld [vmem:[%s811 + $0x20] sm:$0x1]
      %v2494 = vld [vmem:[%s811 + $0x2c] sm:$0x1]
      %v2495 = vld [vmem:[%s811 + $0x38] sm:$0x1]
      %v2496 = vld [vmem:[%s811 + $0x44] sm:$0x1]
      %v2497 = vld [vmem:[%s811 + $0x50] sm:$0x1]
      %v2498 = vld [vmem:[%s811 + $0x5c] sm:$0x1]
      %v2499 = vld [vmem:[%s811 + $0x68] sm:$0x1]
      %v2500 = vld [vmem:[%s811 + $0x74] sm:$0x1]
      %v2501 = vld [vmem:[%s811 + $0x80] sm:$0x1]
      %v2502 = vld [vmem:[%s811 + $0x8c] sm:$0x1]
      %v2503 = vld [vmem:[%s811 + $0x98] sm:$0x1]
      %v2504 = vld [vmem:[%s811 + $0xa4] sm:$0x1]
      %v2505 = vld [vmem:[%s811 + $0xb0] sm:$0x1]
      %v2506 = vld [vmem:[%s811 + $0xbc] sm:$0x1]
      %v2508 = vshrl.u32 %v2459, 16
      %v2510 = vrot.slane %v2508, 4
      %v2511 = vshll.u32 %v2459, 16
      %v2513 = vrot.slane %v2511, 5
      %v2514 = vor.u32 %v2510, %v2513
      %v2515 = vrot.slane %v2514, 4
      %v2517 = vshll.u32 %v2460, 16
      %v2519 = vrot.slane %v2517, 5
      %v2520 = vsel %vm979, %v2515, %v2519
      %v2521 = vshrl.u32 %v2460, 16
      %v2523 = vrot.slane %v2521, 4
      %v2524 = vor.u32 %v2523, %v2519
      %v2525 = vrot.slane %v2524, 4
      %v2527 = vshll.u32 %v2491, 16
      %v2529 = vrot.slane %v2527, 5
      %v2530 = vsel %vm979, %v2525, %v2529
      %v2532 = vshrl.u32 %v2461, 16
      %v2534 = vrot.slane %v2532, 4
      %v2535 = vshll.u32 %v2461, 16
      %v2537 = vrot.slane %v2535, 5
      %v2538 = vor.u32 %v2534, %v2537
      %v2539 = vrot.slane %v2538, 4
      %v2541 = vshll.u32 %v2462, 16
      %v2543 = vrot.slane %v2541, 5
      %v2544 = vsel %vm979, %v2539, %v2543
      %v2545 = vshrl.u32 %v2462, 16
      %v2547 = vrot.slane %v2545, 4
      %v2548 = vor.u32 %v2547, %v2543
      %v2549 = vrot.slane %v2548, 4
      %v2551 = vshll.u32 %v2492, 16
      %v2553 = vrot.slane %v2551, 5
      %v2554 = vsel %vm979, %v2549, %v2553
      %v2556 = vshrl.u32 %v2463, 16
      %v2558 = vrot.slane %v2556, 4
      %v2559 = vshll.u32 %v2463, 16
      %v2561 = vrot.slane %v2559, 5
      %v2562 = vor.u32 %v2558, %v2561
      %v2563 = vrot.slane %v2562, 4
      %v2565 = vshll.u32 %v2464, 16
      %v2567 = vrot.slane %v2565, 5
      %v2568 = vsel %vm979, %v2563, %v2567
      %v2569 = vshrl.u32 %v2464, 16
      %v2571 = vrot.slane %v2569, 4
      %v2572 = vor.u32 %v2571, %v2567
      %v2573 = vrot.slane %v2572, 4
      %v2575 = vshll.u32 %v2493, 16
      %v2577 = vrot.slane %v2575, 5
      %v2578 = vsel %vm979, %v2573, %v2577
      %v2580 = vshrl.u32 %v2465, 16
      %v2582 = vrot.slane %v2580, 4
      %v2583 = vshll.u32 %v2465, 16
      %v2585 = vrot.slane %v2583, 5
      %v2586 = vor.u32 %v2582, %v2585
      %v2587 = vrot.slane %v2586, 4
      %v2589 = vshll.u32 %v2466, 16
      %v2591 = vrot.slane %v2589, 5
      %v2592 = vsel %vm979, %v2587, %v2591
      %v2593 = vshrl.u32 %v2466, 16
      %v2595 = vrot.slane %v2593, 4
      %v2596 = vor.u32 %v2595, %v2591
      %v2597 = vrot.slane %v2596, 4
      %v2599 = vshll.u32 %v2494, 16
      %v2601 = vrot.slane %v2599, 5
      %v2602 = vsel %vm979, %v2597, %v2601
      %v2604 = vshrl.u32 %v2467, 16
      %v2606 = vrot.slane %v2604, 4
      %v2607 = vshll.u32 %v2467, 16
      %v2609 = vrot.slane %v2607, 5
      %v2610 = vor.u32 %v2606, %v2609
      %v2611 = vrot.slane %v2610, 4
      %v2613 = vshll.u32 %v2468, 16
      %v2615 = vrot.slane %v2613, 5
      %v2616 = vsel %vm979, %v2611, %v2615
      %v2617 = vshrl.u32 %v2468, 16
      %v2619 = vrot.slane %v2617, 4
      %v2620 = vor.u32 %v2619, %v2615
      %v2621 = vrot.slane %v2620, 4
      %v2623 = vshll.u32 %v2495, 16
      %v2625 = vrot.slane %v2623, 5
      %v2626 = vsel %vm979, %v2621, %v2625
      %v2628 = vshrl.u32 %v2469, 16
      %v2630 = vrot.slane %v2628, 4
      %v2631 = vshll.u32 %v2469, 16
      %v2633 = vrot.slane %v2631, 5
      %v2634 = vor.u32 %v2630, %v2633
      %v2635 = vrot.slane %v2634, 4
      %v2637 = vshll.u32 %v2470, 16
      %v2639 = vrot.slane %v2637, 5
      %v2640 = vsel %vm979, %v2635, %v2639
      %v2641 = vshrl.u32 %v2470, 16
      %v2643 = vrot.slane %v2641, 4
      %v2644 = vor.u32 %v2643, %v2639
      %v2645 = vrot.slane %v2644, 4
      %v2647 = vshll.u32 %v2496, 16
      %v2649 = vrot.slane %v2647, 5
      %v2650 = vsel %vm979, %v2645, %v2649
      %v2652 = vshrl.u32 %v2471, 16
      %v2654 = vrot.slane %v2652, 4
      %v2655 = vshll.u32 %v2471, 16
      %v2657 = vrot.slane %v2655, 5
      %v2658 = vor.u32 %v2654, %v2657
      %v2659 = vrot.slane %v2658, 4
      %v2661 = vshll.u32 %v2472, 16
      %v2663 = vrot.slane %v2661, 5
      %v2664 = vsel %vm979, %v2659, %v2663
      %v2665 = vshrl.u32 %v2472, 16
      %v2667 = vrot.slane %v2665, 4
      %v2668 = vor.u32 %v2667, %v2663
      %v2669 = vrot.slane %v2668, 4
      %v2671 = vshll.u32 %v2497, 16
      %v2673 = vrot.slane %v2671, 5
      %v2674 = vsel %vm979, %v2669, %v2673
      %v2676 = vshrl.u32 %v2473, 16
      %v2678 = vrot.slane %v2676, 4
      %v2679 = vshll.u32 %v2473, 16
      %v2681 = vrot.slane %v2679, 5
      %v2682 = vor.u32 %v2678, %v2681
      %v2683 = vrot.slane %v2682, 4
      %v2685 = vshll.u32 %v2474, 16
      %v2687 = vrot.slane %v2685, 5
      %v2688 = vsel %vm979, %v2683, %v2687
      %v2689 = vshrl.u32 %v2474, 16
      %v2691 = vrot.slane %v2689, 4
      %v2692 = vor.u32 %v2691, %v2687
      %v2693 = vrot.slane %v2692, 4
      %v2695 = vshll.u32 %v2498, 16
      %v2697 = vrot.slane %v2695, 5
      %v2698 = vsel %vm979, %v2693, %v2697
      %v2700 = vshrl.u32 %v2475, 16
      %v2702 = vrot.slane %v2700, 4
      %v2703 = vshll.u32 %v2475, 16
      %v2705 = vrot.slane %v2703, 5
      %v2706 = vor.u32 %v2702, %v2705
      %v2707 = vrot.slane %v2706, 4
      %v2709 = vshll.u32 %v2476, 16
      %v2711 = vrot.slane %v2709, 5
      %v2712 = vsel %vm979, %v2707, %v2711
      %v2713 = vshrl.u32 %v2476, 16
      %v2715 = vrot.slane %v2713, 4
      %v2716 = vor.u32 %v2715, %v2711
      %v2717 = vrot.slane %v2716, 4
      %v2719 = vshll.u32 %v2499, 16
      %v2721 = vrot.slane %v2719, 5
      %v2722 = vsel %vm979, %v2717, %v2721
      %v2724 = vshrl.u32 %v2477, 16
      %v2726 = vrot.slane %v2724, 4
      %v2727 = vshll.u32 %v2477, 16
      %v2729 = vrot.slane %v2727, 5
      %v2730 = vor.u32 %v2726, %v2729
      %v2731 = vrot.slane %v2730, 4
      %v2733 = vshll.u32 %v2478, 16
      %v2735 = vrot.slane %v2733, 5
      %v2736 = vsel %vm979, %v2731, %v2735
      %v2737 = vshrl.u32 %v2478, 16
      %v2739 = vrot.slane %v2737, 4
      %v2740 = vor.u32 %v2739, %v2735
      %v2741 = vrot.slane %v2740, 4
      %v2743 = vshll.u32 %v2500, 16
      %v2745 = vrot.slane %v2743, 5
      %v2746 = vsel %vm979, %v2741, %v2745
      %v2748 = vshrl.u32 %v2479, 16
      %v2750 = vrot.slane %v2748, 4
      %v2751 = vshll.u32 %v2479, 16
      %v2753 = vrot.slane %v2751, 5
      %v2754 = vor.u32 %v2750, %v2753
      %v2755 = vrot.slane %v2754, 4
      %v2757 = vshll.u32 %v2480, 16
      %v2759 = vrot.slane %v2757, 5
      %v2760 = vsel %vm979, %v2755, %v2759
      %v2761 = vshrl.u32 %v2480, 16
      %v2763 = vrot.slane %v2761, 4
      %v2764 = vor.u32 %v2763, %v2759
      %v2765 = vrot.slane %v2764, 4
      %v2767 = vshll.u32 %v2501, 16
      %v2769 = vrot.slane %v2767, 5
      %v2770 = vsel %vm979, %v2765, %v2769
      %v2772 = vshrl.u32 %v2481, 16
      %v2774 = vrot.slane %v2772, 4
      %v2775 = vshll.u32 %v2481, 16
      %v2777 = vrot.slane %v2775, 5
      %v2778 = vor.u32 %v2774, %v2777
      %v2779 = vrot.slane %v2778, 4
      %v2781 = vshll.u32 %v2482, 16
      %v2783 = vrot.slane %v2781, 5
      %v2784 = vsel %vm979, %v2779, %v2783
      %v2785 = vshrl.u32 %v2482, 16
      %v2787 = vrot.slane %v2785, 4
      %v2788 = vor.u32 %v2787, %v2783
      %v2789 = vrot.slane %v2788, 4
      %v2791 = vshll.u32 %v2502, 16
      %v2793 = vrot.slane %v2791, 5
      %v2794 = vsel %vm979, %v2789, %v2793
      %v2796 = vshrl.u32 %v2483, 16
      %v2798 = vrot.slane %v2796, 4
      %v2799 = vshll.u32 %v2483, 16
      %v2801 = vrot.slane %v2799, 5
      %v2802 = vor.u32 %v2798, %v2801
      %v2803 = vrot.slane %v2802, 4
      %v2805 = vshll.u32 %v2484, 16
      %v2807 = vrot.slane %v2805, 5
      %v2808 = vsel %vm979, %v2803, %v2807
      %v2809 = vshrl.u32 %v2484, 16
      %v2811 = vrot.slane %v2809, 4
      %v2812 = vor.u32 %v2811, %v2807
      %v2813 = vrot.slane %v2812, 4
      %v2815 = vshll.u32 %v2503, 16
      %v2817 = vrot.slane %v2815, 5
      %v2818 = vsel %vm979, %v2813, %v2817
      %v2820 = vshrl.u32 %v2485, 16
      %v2822 = vrot.slane %v2820, 4
      %v2823 = vshll.u32 %v2485, 16
      %v2825 = vrot.slane %v2823, 5
      %v2826 = vor.u32 %v2822, %v2825
      %v2827 = vrot.slane %v2826, 4
      %v2829 = vshll.u32 %v2486, 16
      %v2831 = vrot.slane %v2829, 5
      %v2832 = vsel %vm979, %v2827, %v2831
      %v2833 = vshrl.u32 %v2486, 16
      %v2835 = vrot.slane %v2833, 4
      %v2836 = vor.u32 %v2835, %v2831
      %v2837 = vrot.slane %v2836, 4
      %v2839 = vshll.u32 %v2504, 16
      %v2841 = vrot.slane %v2839, 5
      %v2842 = vsel %vm979, %v2837, %v2841
      %v2844 = vshrl.u32 %v2487, 16
      %v2846 = vrot.slane %v2844, 4
      %v2847 = vshll.u32 %v2487, 16
      %v2849 = vrot.slane %v2847, 5
      %v2850 = vor.u32 %v2846, %v2849
      %v2851 = vrot.slane %v2850, 4
      %v2853 = vshll.u32 %v2488, 16
      %v2855 = vrot.slane %v2853, 5
      %v2856 = vsel %vm979, %v2851, %v2855
      %v2857 = vshrl.u32 %v2488, 16
      %v2859 = vrot.slane %v2857, 4
      %v2860 = vor.u32 %v2859, %v2855
      %v2861 = vrot.slane %v2860, 4
      %v2863 = vshll.u32 %v2505, 16
      %v2865 = vrot.slane %v2863, 5
      %v2866 = vsel %vm979, %v2861, %v2865
      %v2868 = vshrl.u32 %v2489, 16
      %v2870 = vrot.slane %v2868, 4
      %v2871 = vshll.u32 %v2489, 16
      %v2873 = vrot.slane %v2871, 5
      %v2874 = vor.u32 %v2870, %v2873
      %v2875 = vrot.slane %v2874, 4
      %v2877 = vshll.u32 %v2490, 16
      %v2879 = vrot.slane %v2877, 5
      %v2880 = vsel %vm979, %v2875, %v2879
      %v2881 = vshrl.u32 %v2490, 16
      %v2883 = vrot.slane %v2881, 4
      %v2884 = vor.u32 %v2883, %v2879
      %v2885 = vrot.slane %v2884, 4
      %v2887 = vshll.u32 %v2506, 16
      %v2889 = vrot.slane %v2887, 5
      %v2890 = vsel %vm979, %v2885, %v2889
      %v2891 = vld [vmem:[%s811] sm:$0xe]
      %v2892 = vld [vmem:[%s811 + $0xc] sm:$0xe]
      %v2893 = vld [vmem:[%s811 + $0x18] sm:$0xe]
      %v2894 = vld [vmem:[%s811 + $0x24] sm:$0xe]
      %v2895 = vld [vmem:[%s811 + $0x30] sm:$0xe]
      %v2896 = vld [vmem:[%s811 + $0x3c] sm:$0xe]
      %v2897 = vld [vmem:[%s811 + $0x48] sm:$0xe]
      %v2898 = vld [vmem:[%s811 + $0x54] sm:$0xe]
      %v2899 = vld [vmem:[%s811 + $0x60] sm:$0xe]
      %v2900 = vld [vmem:[%s811 + $0x6c] sm:$0xe]
      %v2901 = vld [vmem:[%s811 + $0x78] sm:$0xe]
      %v2902 = vld [vmem:[%s811 + $0x84] sm:$0xe]
      %v2903 = vld [vmem:[%s811 + $0x90] sm:$0xe]
      %v2904 = vld [vmem:[%s811 + $0x9c] sm:$0xe]
      %v2905 = vld [vmem:[%s811 + $0xa8] sm:$0xe]
      %v2906 = vld [vmem:[%s811 + $0xb4] sm:$0xe]
      %v2955 = vrot.slane %v2891, 5
      %v2956 = vrot.slane %v2955, 4
      %v2957 = vrot.slane %v2460, 5
      %v2958 = vsel %vm1430, %v2956, %v2957
      %v2959 = vrot.slane %v2957, 4
      %v2960 = vrot.slane %v2491, 5
      %v2961 = vsel %vm1430, %v2959, %v2960
      %v2962 = vrot.slane %v2892, 5
      %v2963 = vrot.slane %v2962, 4
      %v2964 = vrot.slane %v2462, 5
      %v2965 = vsel %vm1430, %v2963, %v2964
      %v2966 = vrot.slane %v2964, 4
      %v2967 = vrot.slane %v2492, 5
      %v2968 = vsel %vm1430, %v2966, %v2967
      %v2969 = vrot.slane %v2893, 5
      %v2970 = vrot.slane %v2969, 4
      %v2971 = vrot.slane %v2464, 5
      %v2972 = vsel %vm1430, %v2970, %v2971
      %v2973 = vrot.slane %v2971, 4
      %v2974 = vrot.slane %v2493, 5
      %v2975 = vsel %vm1430, %v2973, %v2974
      %v2976 = vrot.slane %v2894, 5
      %v2977 = vrot.slane %v2976, 4
      %v2978 = vrot.slane %v2466, 5
      %v2979 = vsel %vm1430, %v2977, %v2978
      %v2980 = vrot.slane %v2978, 4
      %v2981 = vrot.slane %v2494, 5
      %v2982 = vsel %vm1430, %v2980, %v2981
      %v2983 = vrot.slane %v2895, 5
      %v2984 = vrot.slane %v2983, 4
      %v2985 = vrot.slane %v2468, 5
      %v2986 = vsel %vm1430, %v2984, %v2985
      %v2987 = vrot.slane %v2985, 4
      %v2988 = vrot.slane %v2495, 5
      %v2989 = vsel %vm1430, %v2987, %v2988
      %v2990 = vrot.slane %v2896, 5
      %v2991 = vrot.slane %v2990, 4
      %v2992 = vrot.slane %v2470, 5
      %v2993 = vsel %vm1430, %v2991, %v2992
      %v2994 = vrot.slane %v2992, 4
      %v2995 = vrot.slane %v2496, 5
      %v2996 = vsel %vm1430, %v2994, %v2995
      %v2997 = vrot.slane %v2897, 5
      %v2998 = vrot.slane %v2997, 4
      %v2999 = vrot.slane %v2472, 5
      %v3000 = vsel %vm1430, %v2998, %v2999
      %v3001 = vrot.slane %v2999, 4
      %v3002 = vrot.slane %v2497, 5
      %v3003 = vsel %vm1430, %v3001, %v3002
      %v3004 = vrot.slane %v2898, 5
      %v3005 = vrot.slane %v3004, 4
      %v3006 = vrot.slane %v2474, 5
      %v3007 = vsel %vm1430, %v3005, %v3006
      %v3008 = vrot.slane %v3006, 4
      %v3009 = vrot.slane %v2498, 5
      %v3010 = vsel %vm1430, %v3008, %v3009
      %v3011 = vrot.slane %v2899, 5
      %v3012 = vrot.slane %v3011, 4
      %v3013 = vrot.slane %v2476, 5
      %v3014 = vsel %vm1430, %v3012, %v3013
      %v3015 = vrot.slane %v3013, 4
      %v3016 = vrot.slane %v2499, 5
      %v3017 = vsel %vm1430, %v3015, %v3016
      %v3018 = vrot.slane %v2900, 5
      %v3019 = vrot.slane %v3018, 4
      %v3020 = vrot.slane %v2478, 5
      %v3021 = vsel %vm1430, %v3019, %v3020
      %v3022 = vrot.slane %v3020, 4
      %v3023 = vrot.slane %v2500, 5
      %v3024 = vsel %vm1430, %v3022, %v3023
      %v3025 = vrot.slane %v2901, 5
      %v3026 = vrot.slane %v3025, 4
      %v3027 = vrot.slane %v2480, 5
      %v3028 = vsel %vm1430, %v3026, %v3027
      %v3029 = vrot.slane %v3027, 4
      %v3030 = vrot.slane %v2501, 5
      %v3031 = vsel %vm1430, %v3029, %v3030
      %v3032 = vrot.slane %v2902, 5
      %v3033 = vrot.slane %v3032, 4
      %v3034 = vrot.slane %v2482, 5
      %v3035 = vsel %vm1430, %v3033, %v3034
      %v3036 = vrot.slane %v3034, 4
      %v3037 = vrot.slane %v2502, 5
      %v3038 = vsel %vm1430, %v3036, %v3037
      %v3039 = vrot.slane %v2903, 5
      %v3040 = vrot.slane %v3039, 4
      %v3041 = vrot.slane %v2484, 5
      %v3042 = vsel %vm1430, %v3040, %v3041
      %v3043 = vrot.slane %v3041, 4
      %v3044 = vrot.slane %v2503, 5
      %v3045 = vsel %vm1430, %v3043, %v3044
      %v3046 = vrot.slane %v2904, 5
      %v3047 = vrot.slane %v3046, 4
      %v3048 = vrot.slane %v2486, 5
      %v3049 = vsel %vm1430, %v3047, %v3048
      %v3050 = vrot.slane %v3048, 4
      %v3051 = vrot.slane %v2504, 5
      %v3052 = vsel %vm1430, %v3050, %v3051
      %v3053 = vrot.slane %v2905, 5
      %v3054 = vrot.slane %v3053, 4
      %v3055 = vrot.slane %v2488, 5
      %v3056 = vsel %vm1430, %v3054, %v3055
      %v3057 = vrot.slane %v3055, 4
      %v3058 = vrot.slane %v2505, 5
      %v3059 = vsel %vm1430, %v3057, %v3058
      %v3060 = vrot.slane %v2906, 5
      %v3061 = vrot.slane %v3060, 4
      %v3062 = vrot.slane %v2490, 5
      %v3063 = vsel %vm1430, %v3061, %v3062
      %v3064 = vrot.slane %v3062, 4
      %v3065 = vrot.slane %v2506, 5
      %v3066 = vsel %vm1430, %v3064, %v3065
      %s3067 = scalar_lea.vmem %s3, 96
      %v3068 = vld [vmem:[%s3067] sm:$0xf]
      %v3069 = vld [vmem:[%s3067 + $0x4] sm:$0xf]
      %v3070 = vld [vmem:[%s3067 + $0x8] sm:$0xf]
      %v3071 = vld [vmem:[%s3067 + $0xc] sm:$0xf]
      %v3072 = vld [vmem:[%s3067 + $0x10] sm:$0xf]
      %v3073 = vld [vmem:[%s3067 + $0x14] sm:$0xf]
      %v3074 = vld [vmem:[%s3067 + $0x18] sm:$0xf]
      %v3075 = vld [vmem:[%s3067 + $0x1c] sm:$0xf]
      %v3092 = vunpack.c.l.b16 %v2459
      %v3093 = vunpack.c.l.b16 %v2460
      %v3094 = vunpack.c.l.b16 %v2461
      %v3095 = vunpack.c.l.b16 %v2462
      %v3096 = vunpack.c.l.b16 %v2463
      %v3097 = vunpack.c.l.b16 %v2464
      %v3098 = vunpack.c.l.b16 %v2465
      %v3099 = vunpack.c.l.b16 %v2466
      %v3100 = vunpack.c.l.b16 %v2467
      %v3101 = vunpack.c.l.b16 %v2468
      %v3102 = vunpack.c.l.b16 %v2469
      %v3103 = vunpack.c.l.b16 %v2470
      %v3104 = vunpack.c.l.b16 %v2471
      %v3105 = vunpack.c.l.b16 %v2472
      %v3106 = vunpack.c.l.b16 %v2473
      %v3107 = vunpack.c.l.b16 %v2474
      %v3108 = vunpack.c.l.b16 %v2475
      %v3109 = vunpack.c.l.b16 %v2476
      %v3110 = vunpack.c.l.b16 %v2477
      %v3111 = vunpack.c.l.b16 %v2478
      %v3112 = vunpack.c.l.b16 %v2479
      %v3113 = vunpack.c.l.b16 %v2480
      %v3114 = vunpack.c.l.b16 %v2481
      %v3115 = vunpack.c.l.b16 %v2482
      %v3116 = vunpack.c.l.b16 %v2483
      %v3117 = vunpack.c.l.b16 %v2484
      %v3118 = vunpack.c.l.b16 %v2485
      %v3119 = vunpack.c.l.b16 %v2486
      %v3120 = vunpack.c.l.b16 %v2487
      %v3121 = vunpack.c.l.b16 %v2488
      %v3122 = vunpack.c.l.b16 %v2489
      %v3123 = vunpack.c.l.b16 %v2490
      %v3124 = vpack.c.b16 %v3093, %v3092
      %v3125 = vpack.c.b16 %v3095, %v3094
      %v3126 = vpack.c.b16 %v3097, %v3096
      %v3127 = vpack.c.b16 %v3099, %v3098
      %v3128 = vpack.c.b16 %v3101, %v3100
      %v3129 = vpack.c.b16 %v3103, %v3102
      %v3130 = vpack.c.b16 %v3105, %v3104
      %v3131 = vpack.c.b16 %v3107, %v3106
      %v3132 = vpack.c.b16 %v3109, %v3108
      %v3133 = vpack.c.b16 %v3111, %v3110
      %v3134 = vpack.c.b16 %v3113, %v3112
      %v3135 = vpack.c.b16 %v3115, %v3114
      %v3136 = vpack.c.b16 %v3117, %v3116
      %v3137 = vpack.c.b16 %v3119, %v3118
      %v3138 = vpack.c.b16 %v3121, %v3120
      %v3139 = vpack.c.b16 %v3123, %v3122
      %v3148 = vunpack.c.l.b16 %v3068
      %v3149 = vunpack.c.l.b16 %v3069
      %v3150 = vunpack.c.l.b16 %v3070
      %v3151 = vunpack.c.l.b16 %v3071
      %v3152 = vunpack.c.l.b16 %v3072
      %v3153 = vunpack.c.l.b16 %v3073
      %v3154 = vunpack.c.l.b16 %v3074
      %v3155 = vunpack.c.l.b16 %v3075
      %v3156 = vpack.c.b16 %v3149, %v3148
      %v3157 = vpack.c.b16 %v3151, %v3150
      %v3158 = vpack.c.b16 %v3153, %v3152
      %v3159 = vpack.c.b16 %v3155, %v3154
      %v3165 = vsel %vm1631, %v3124, 0
      %v3168 = vsel %vm1631, %v3125, 0
      %v3171 = vsel %vm1631, %v3126, 0
      %v3174 = vsel %vm1631, %v3127, 0
      %v3177 = vsel %vm1631, %v3128, 0
      %v3180 = vsel %vm1631, %v3129, 0
      %v3183 = vsel %vm1631, %v3130, 0
      %v3186 = vsel %vm1631, %v3131, 0
      %v3189 = vsel %vm1631, %v3132, 0
      %v3192 = vsel %vm1631, %v3133, 0
      %v3195 = vsel %vm1631, %v3134, 0
      %v3198 = vsel %vm1631, %v3135, 0
      %v3201 = vsel %vm1631, %v3136, 0
      %v3204 = vsel %vm1631, %v3137, 0
      %v3207 = vsel %vm1631, %v3138, 0
      %v3210 = vsel %vm1631, %v3139, 0
      %3212 = vmatprep.subr.bf16.mxu0 0
      %3213 = vmatpush1.bf16.msra.mxu0 %v3156
      %3214 = vmatprep.subr.bf16.mxu0 0
      %3215 = vmatpush1.bf16.msra.mxu0 %v3157
      %3216 = vmatprep.subr.bf16.mxu0 0
      %3217 = vmatpush1.bf16.msra.mxu0 %v3158
      %3218 = vmatprep.subr.bf16.mxu0 0
      %3219 = vmatpush1.bf16.msra.mxu0 %v3159
      %3220 = vmatprep.subr.bf16.mxu0 0
      %3221 = vmatpush1.bf16.msra.mxu0 0
      %3222 = vmatprep.subr.bf16.mxu0 0
      %3223 = vmatpush1.bf16.msra.mxu0 0
      %3224 = vmatprep.subr.bf16.mxu0 0
      %3225 = vmatpush1.bf16.msra.mxu0 0
      %3226 = vmatprep.subr.bf16.mxu0 0
      %3227 = vmatpush1.bf16.msra.mxu0 0
      %3228 = vmatprep.subr.bf16.mxu0 0
      %3229 = vmatpush1.bf16.msra.mxu0 0
      %3230 = vmatprep.subr.bf16.mxu0 0
      %3231 = vmatpush1.bf16.msra.mxu0 0
      %3232 = vmatprep.subr.bf16.mxu0 0
      %3233 = vmatpush1.bf16.msra.mxu0 0
      %3234 = vmatprep.subr.bf16.mxu0 0
      %3235 = vmatpush1.bf16.msra.mxu0 0
      %3236 = vmatprep.subr.bf16.mxu0 0
      %3237 = vmatpush1.bf16.msra.mxu0 0
      %3238 = vmatprep.subr.bf16.mxu0 0
      %3239 = vmatpush1.bf16.msra.mxu0 0
      %3240 = vmatprep.subr.bf16.mxu0 0
      %3241 = vmatpush1.bf16.msra.mxu0 0
      %3242 = vmatprep.subr.bf16.mxu0 0
      %3243 = vmatpush1.bf16.msra.mxu0 0
      %3244 = vmatprep.mubr.bf16.mxu0 0
      %3245 = vmatmul.mubr.bf16.gmra.mrb[0].mxu0 %v3165
      %v3246 = vpop.f32.mrb[0].mxu0
      %v3247 = vadd.f32 0.0, %v3246
      %v3248 = vpop.f32.mrb[0].mxu0
      %v3249 = vpop.f32.mrb[0].mxu0
      %v3250 = vadd.f32 0.0, %v3249
      %v3251 = vpop.f32.mrb[0].mxu0
      %3252 = vmatprep.mubr.bf16.mxu0 0
      %3253 = vmatmul.mubr.bf16.gmra.mrb[0].mxu0 %v3168
      %v3254 = vpop.f32.mrb[0].mxu0
      %v3255 = vadd.f32 0.0, %v3254
      %v3256 = vpop.f32.mrb[0].mxu0
      %v3257 = vpop.f32.mrb[0].mxu0
      %v3258 = vadd.f32 0.0, %v3257
      %v3259 = vpop.f32.mrb[0].mxu0
      %3260 = vmatprep.mubr.bf16.mxu0 0
      %3261 = vmatmul.mubr.bf16.gmra.mrb[0].mxu0 %v3171
      %v3262 = vpop.f32.mrb[0].mxu0
      %v3263 = vadd.f32 0.0, %v3262
      %v3264 = vpop.f32.mrb[0].mxu0
      %v3265 = vpop.f32.mrb[0].mxu0
      %v3266 = vadd.f32 0.0, %v3265
      %v3267 = vpop.f32.mrb[0].mxu0
      %3268 = vmatprep.mubr.bf16.mxu0 0
      %3269 = vmatmul.mubr.bf16.gmra.mrb[0].mxu0 %v3174
      %v3270 = vpop.f32.mrb[0].mxu0
      %v3271 = vadd.f32 0.0, %v3270
      %v3272 = vpop.f32.mrb[0].mxu0
      %v3273 = vpop.f32.mrb[0].mxu0
      %v3274 = vadd.f32 0.0, %v3273
      %v3275 = vpop.f32.mrb[0].mxu0
      %3276 = vmatprep.mubr.bf16.mxu0 0
      %3277 = vmatmul.mubr.bf16.gmra.mrb[0].mxu0 %v3177
      %v3278 = vpop.f32.mrb[0].mxu0
      %v3279 = vadd.f32 0.0, %v3278
      %v3280 = vpop.f32.mrb[0].mxu0
      %v3281 = vpop.f32.mrb[0].mxu0
      %v3282 = vadd.f32 0.0, %v3281
      %v3283 = vpop.f32.mrb[0].mxu0
      %3284 = vmatprep.mubr.bf16.mxu0 0
      %3285 = vmatmul.mubr.bf16.gmra.mrb[0].mxu0 %v3180
      %v3286 = vpop.f32.mrb[0].mxu0
      %v3287 = vadd.f32 0.0, %v3286
      %v3288 = vpop.f32.mrb[0].mxu0
      %v3289 = vpop.f32.mrb[0].mxu0
      %v3290 = vadd.f32 0.0, %v3289
      %v3291 = vpop.f32.mrb[0].mxu0
      %3292 = vmatprep.mubr.bf16.mxu0 0
      %3293 = vmatmul.mubr.bf16.gmra.mrb[0].mxu0 %v3183
      %v3294 = vpop.f32.mrb[0].mxu0
      %v3295 = vadd.f32 0.0, %v3294
      %v3296 = vpop.f32.mrb[0].mxu0
      %v3297 = vpop.f32.mrb[0].mxu0
      %v3298 = vadd.f32 0.0, %v3297
      %v3299 = vpop.f32.mrb[0].mxu0
      %3300 = vmatprep.mubr.bf16.mxu0 0
      %3301 = vmatmul.mubr.bf16.gmra.mrb[0].mxu0 %v3186
      %v3302 = vpop.f32.mrb[0].mxu0
      %v3303 = vadd.f32 0.0, %v3302
      %v3304 = vpop.f32.mrb[0].mxu0
      %v3305 = vpop.f32.mrb[0].mxu0
      %v3306 = vadd.f32 0.0, %v3305
      %v3307 = vpop.f32.mrb[0].mxu0
      %3308 = vmatprep.mubr.bf16.mxu0 0
      %3309 = vmatmul.mubr.bf16.gmra.mrb[0].mxu0 %v3189
      %v3310 = vpop.f32.mrb[0].mxu0
      %v3311 = vadd.f32 0.0, %v3310
      %v3312 = vpop.f32.mrb[0].mxu0
      %v3313 = vpop.f32.mrb[0].mxu0
      %v3314 = vadd.f32 0.0, %v3313
      %v3315 = vpop.f32.mrb[0].mxu0
      %3316 = vmatprep.mubr.bf16.mxu0 0
      %3317 = vmatmul.mubr.bf16.gmra.mrb[0].mxu0 %v3192
      %v3318 = vpop.f32.mrb[0].mxu0
      %v3319 = vadd.f32 0.0, %v3318
      %v3320 = vpop.f32.mrb[0].mxu0
      %v3321 = vpop.f32.mrb[0].mxu0
      %v3322 = vadd.f32 0.0, %v3321
      %v3323 = vpop.f32.mrb[0].mxu0
      %3324 = vmatprep.mubr.bf16.mxu0 0
      %3325 = vmatmul.mubr.bf16.gmra.mrb[0].mxu0 %v3195
      %v3326 = vpop.f32.mrb[0].mxu0
      %v3327 = vadd.f32 0.0, %v3326
      %v3328 = vpop.f32.mrb[0].mxu0
      %v3329 = vpop.f32.mrb[0].mxu0
      %v3330 = vadd.f32 0.0, %v3329
      %v3331 = vpop.f32.mrb[0].mxu0
      %3332 = vmatprep.mubr.bf16.mxu0 0
      %3333 = vmatmul.mubr.bf16.gmra.mrb[0].mxu0 %v3198
      %v3334 = vpop.f32.mrb[0].mxu0
      %v3335 = vadd.f32 0.0, %v3334
      %v3336 = vpop.f32.mrb[0].mxu0
      %v3337 = vpop.f32.mrb[0].mxu0
      %v3338 = vadd.f32 0.0, %v3337
      %v3339 = vpop.f32.mrb[0].mxu0
      %3340 = vmatprep.mubr.bf16.mxu0 0
      %3341 = vmatmul.mubr.bf16.gmra.mrb[0].mxu0 %v3201
      %v3342 = vpop.f32.mrb[0].mxu0
      %v3343 = vadd.f32 0.0, %v3342
      %v3344 = vpop.f32.mrb[0].mxu0
      %v3345 = vpop.f32.mrb[0].mxu0
      %v3346 = vadd.f32 0.0, %v3345
      %v3347 = vpop.f32.mrb[0].mxu0
      %3348 = vmatprep.mubr.bf16.mxu0 0
      %3349 = vmatmul.mubr.bf16.gmra.mrb[0].mxu0 %v3204
      %v3350 = vpop.f32.mrb[0].mxu0
      %v3351 = vadd.f32 0.0, %v3350
      %v3352 = vpop.f32.mrb[0].mxu0
      %v3353 = vpop.f32.mrb[0].mxu0
      %v3354 = vadd.f32 0.0, %v3353
      %v3355 = vpop.f32.mrb[0].mxu0
      %3356 = vmatprep.mubr.bf16.mxu0 0
      %3357 = vmatmul.mubr.bf16.gmra.mrb[0].mxu0 %v3207
      %v3358 = vpop.f32.mrb[0].mxu0
      %v3359 = vadd.f32 0.0, %v3358
      %v3360 = vpop.f32.mrb[0].mxu0
      %v3361 = vpop.f32.mrb[0].mxu0
      %v3362 = vadd.f32 0.0, %v3361
      %v3363 = vpop.f32.mrb[0].mxu0
      %3364 = vmatprep.mubr.bf16.mxu0 0
      %3365 = vmatmul.mubr.bf16.gmra.mrb[0].mxu0 %v3210
      %v3366 = vpop.f32.mrb[0].mxu0
      %v3367 = vadd.f32 0.0, %v3366
      %v3368 = vpop.f32.mrb[0].mxu0
      %v3369 = vpop.f32.mrb[0].mxu0
      %v3370 = vadd.f32 0.0, %v3369
      %v3371 = vpop.f32.mrb[0].mxu0
      %3372 = vdwg.mxu0
      %v3373 = vadd.f32 %v2427, %v3247
      %v3374 = vadd.f32 %v2428, %v3250
      %v3375 = vadd.f32 %v2429, %v3255
      %v3376 = vadd.f32 %v2430, %v3258
      %v3377 = vadd.f32 %v2431, %v3263
      %v3378 = vadd.f32 %v2432, %v3266
      %v3379 = vadd.f32 %v2433, %v3271
      %v3380 = vadd.f32 %v2434, %v3274
      %v3381 = vadd.f32 %v2435, %v3279
      %v3382 = vadd.f32 %v2436, %v3282
      %v3383 = vadd.f32 %v2437, %v3287
      %v3384 = vadd.f32 %v2438, %v3290
      %v3385 = vadd.f32 %v2439, %v3295
      %v3386 = vadd.f32 %v2440, %v3298
      %v3387 = vadd.f32 %v2441, %v3303
      %v3388 = vadd.f32 %v2442, %v3306
      %v3389 = vadd.f32 %v2443, %v3311
      %v3390 = vadd.f32 %v2444, %v3314
      %v3391 = vadd.f32 %v2445, %v3319
      %v3392 = vadd.f32 %v2446, %v3322
      %v3393 = vadd.f32 %v2447, %v3327
      %v3394 = vadd.f32 %v2448, %v3330
      %v3395 = vadd.f32 %v2449, %v3335
      %v3396 = vadd.f32 %v2450, %v3338
      %v3397 = vadd.f32 %v2451, %v3343
      %v3398 = vadd.f32 %v2452, %v3346
      %v3399 = vadd.f32 %v2453, %v3351
      %v3400 = vadd.f32 %v2454, %v3354
      %v3401 = vadd.f32 %v2455, %v3359
      %v3402 = vadd.f32 %v2456, %v3362
      %v3403 = vadd.f32 %v2457, %v3367
      %v3404 = vadd.f32 %v2458, %v3370
      %v3405 = vld [vmem:[%s3067 + $0x20] sm:$0xf]
      %v3406 = vld [vmem:[%s3067 + $0x24] sm:$0xf]
      %v3407 = vld [vmem:[%s3067 + $0x28] sm:$0xf]
      %v3408 = vld [vmem:[%s3067 + $0x2c] sm:$0xf]
      %v3409 = vld [vmem:[%s3067 + $0x30] sm:$0xf]
      %v3410 = vld [vmem:[%s3067 + $0x34] sm:$0xf]
      %v3411 = vld [vmem:[%s3067 + $0x38] sm:$0xf]
      %v3412 = vld [vmem:[%s3067 + $0x3c] sm:$0xf]
      %v3413 = vunpack.c.l.b16 %v2520
      %v3414 = vunpack.c.l.b16 %v2530
      %v3415 = vunpack.c.l.b16 %v2544
      %v3416 = vunpack.c.l.b16 %v2554
      %v3417 = vunpack.c.l.b16 %v2568
      %v3418 = vunpack.c.l.b16 %v2578
      %v3419 = vunpack.c.l.b16 %v2592
      %v3420 = vunpack.c.l.b16 %v2602
      %v3421 = vunpack.c.l.b16 %v2616
      %v3422 = vunpack.c.l.b16 %v2626
      %v3423 = vunpack.c.l.b16 %v2640
      %v3424 = vunpack.c.l.b16 %v2650
      %v3425 = vunpack.c.l.b16 %v2664
      %v3426 = vunpack.c.l.b16 %v2674
      %v3427 = vunpack.c.l.b16 %v2688
      %v3428 = vunpack.c.l.b16 %v2698
      %v3429 = vunpack.c.l.b16 %v2712
      %v3430 = vunpack.c.l.b16 %v2722
      %v3431 = vunpack.c.l.b16 %v2736
      %v3432 = vunpack.c.l.b16 %v2746
      %v3433 = vunpack.c.l.b16 %v2760
      %v3434 = vunpack.c.l.b16 %v2770
      %v3435 = vunpack.c.l.b16 %v2784
      %v3436 = vunpack.c.l.b16 %v2794
      %v3437 = vunpack.c.l.b16 %v2808
      %v3438 = vunpack.c.l.b16 %v2818
      %v3439 = vunpack.c.l.b16 %v2832
      %v3440 = vunpack.c.l.b16 %v2842
      %v3441 = vunpack.c.l.b16 %v2856
      %v3442 = vunpack.c.l.b16 %v2866
      %v3443 = vunpack.c.l.b16 %v2880
      %v3444 = vunpack.c.l.b16 %v2890
      %v3445 = vpack.c.b16 %v3414, %v3413
      %v3446 = vpack.c.b16 %v3416, %v3415
      %v3447 = vpack.c.b16 %v3418, %v3417
      %v3448 = vpack.c.b16 %v3420, %v3419
      %v3449 = vpack.c.b16 %v3422, %v3421
      %v3450 = vpack.c.b16 %v3424, %v3423
      %v3451 = vpack.c.b16 %v3426, %v3425
      %v3452 = vpack.c.b16 %v3428, %v3427
      %v3453 = vpack.c.b16 %v3430, %v3429
      %v3454 = vpack.c.b16 %v3432, %v3431
      %v3455 = vpack.c.b16 %v3434, %v3433
      %v3456 = vpack.c.b16 %v3436, %v3435
      %v3457 = vpack.c.b16 %v3438, %v3437
      %v3458 = vpack.c.b16 %v3440, %v3439
      %v3459 = vpack.c.b16 %v3442, %v3441
      %v3460 = vpack.c.b16 %v3444, %v3443
      %v3469 = vunpack.c.l.b16 %v3405
      %v3470 = vunpack.c.l.b16 %v3406
      %v3471 = vunpack.c.l.b16 %v3407
      %v3472 = vunpack.c.l.b16 %v3408
      %v3473 = vunpack.c.l.b16 %v3409
      %v3474 = vunpack.c.l.b16 %v3410
      %v3475 = vunpack.c.l.b16 %v3411
      %v3476 = vunpack.c.l.b16 %v3412
      %v3477 = vpack.c.b16 %v3470, %v3469
      %v3478 = vpack.c.b16 %v3472, %v3471
      %v3479 = vpack.c.b16 %v3474, %v3473
      %v3480 = vpack.c.b16 %v3476, %v3475
      %v3486 = vsel %vm1631, %v3445, 0
      %v3489 = vsel %vm1631, %v3446, 0
      %v3492 = vsel %vm1631, %v3447, 0
      %v3495 = vsel %vm1631, %v3448, 0
      %v3498 = vsel %vm1631, %v3449, 0
      %v3501 = vsel %vm1631, %v3450, 0
      %v3504 = vsel %vm1631, %v3451, 0
      %v3507 = vsel %vm1631, %v3452, 0
      %v3510 = vsel %vm1631, %v3453, 0
      %v3513 = vsel %vm1631, %v3454, 0
      %v3516 = vsel %vm1631, %v3455, 0
      %v3519 = vsel %vm1631, %v3456, 0
      %v3522 = vsel %vm1631, %v3457, 0
      %v3525 = vsel %vm1631, %v3458, 0
      %v3528 = vsel %vm1631, %v3459, 0
      %v3531 = vsel %vm1631, %v3460, 0
      %3533 = vmatprep.subr.bf16.mxu0 0
      %3534 = vmatpush1.bf16.msra.mxu0 %v3477
      %3535 = vmatprep.subr.bf16.mxu0 0
      %3536 = vmatpush1.bf16.msra.mxu0 %v3478
      %3537 = vmatprep.subr.bf16.mxu0 0
      %3538 = vmatpush1.bf16.msra.mxu0 %v3479
      %3539 = vmatprep.subr.bf16.mxu0 0
      %3540 = vmatpush1.bf16.msra.mxu0 %v3480
      %3541 = vmatprep.subr.bf16.mxu0 0
      %3542 = vmatpush1.bf16.msra.mxu0 0
      %3543 = vmatprep.subr.bf16.mxu0 0
      %3544 = vmatpush1.bf16.msra.mxu0 0
      %3545 = vmatprep.subr.bf16.mxu0 0
      %3546 = vmatpush1.bf16.msra.mxu0 0
      %3547 = vmatprep.subr.bf16.mxu0 0
      %3548 = vmatpush1.bf16.msra.mxu0 0
      %3549 = vmatprep.subr.bf16.mxu0 0
      %3550 = vmatpush1.bf16.msra.mxu0 0
      %3551 = vmatprep.subr.bf16.mxu0 0
      %3552 = vmatpush1.bf16.msra.mxu0 0
      %3553 = vmatprep.subr.bf16.mxu0 0
      %3554 = vmatpush1.bf16.msra.mxu0 0
      %3555 = vmatprep.subr.bf16.mxu0 0
      %3556 = vmatpush1.bf16.msra.mxu0 0
      %3557 = vmatprep.subr.bf16.mxu0 0
      %3558 = vmatpush1.bf16.msra.mxu0 0
      %3559 = vmatprep.subr.bf16.mxu0 0
      %3560 = vmatpush1.bf16.msra.mxu0 0
      %3561 = vmatprep.subr.bf16.mxu0 0
      %3562 = vmatpush1.bf16.msra.mxu0 0
      %3563 = vmatprep.subr.bf16.mxu0 0
      %3564 = vmatpush1.bf16.msra.mxu0 0
      %3565 = vmatprep.mubr.bf16.mxu0 0
      %3566 = vmatmul.mubr.bf16.gmra.mrb[0].mxu0 %v3486
      %v3567 = vpop.f32.mrb[0].mxu0
      %v3568 = vadd.f32 0.0, %v3567
      %v3569 = vpop.f32.mrb[0].mxu0
      %v3570 = vpop.f32.mrb[0].mxu0
      %v3571 = vadd.f32 0.0, %v3570
      %v3572 = vpop.f32.mrb[0].mxu0
      %3573 = vmatprep.mubr.bf16.mxu0 0
      %3574 = vmatmul.mubr.bf16.gmra.mrb[0].mxu0 %v3489
      %v3575 = vpop.f32.mrb[0].mxu0
      %v3576 = vadd.f32 0.0, %v3575
      %v3577 = vpop.f32.mrb[0].mxu0
      %v3578 = vpop.f32.mrb[0].mxu0
      %v3579 = vadd.f32 0.0, %v3578
      %v3580 = vpop.f32.mrb[0].mxu0
      %3581 = vmatprep.mubr.bf16.mxu0 0
      %3582 = vmatmul.mubr.bf16.gmra.mrb[0].mxu0 %v3492
      %v3583 = vpop.f32.mrb[0].mxu0
      %v3584 = vadd.f32 0.0, %v3583
      %v3585 = vpop.f32.mrb[0].mxu0
      %v3586 = vpop.f32.mrb[0].mxu0
      %v3587 = vadd.f32 0.0, %v3586
      %v3588 = vpop.f32.mrb[0].mxu0
      %3589 = vmatprep.mubr.bf16.mxu0 0
      %3590 = vmatmul.mubr.bf16.gmra.mrb[0].mxu0 %v3495
      %v3591 = vpop.f32.mrb[0].mxu0
      %v3592 = vadd.f32 0.0, %v3591
      %v3593 = vpop.f32.mrb[0].mxu0
      %v3594 = vpop.f32.mrb[0].mxu0
      %v3595 = vadd.f32 0.0, %v3594
      %v3596 = vpop.f32.mrb[0].mxu0
      %3597 = vmatprep.mubr.bf16.mxu0 0
      %3598 = vmatmul.mubr.bf16.gmra.mrb[0].mxu0 %v3498
      %v3599 = vpop.f32.mrb[0].mxu0
      %v3600 = vadd.f32 0.0, %v3599
      %v3601 = vpop.f32.mrb[0].mxu0
      %v3602 = vpop.f32.mrb[0].mxu0
      %v3603 = vadd.f32 0.0, %v3602
      %v3604 = vpop.f32.mrb[0].mxu0
      %3605 = vmatprep.mubr.bf16.mxu0 0
      %3606 = vmatmul.mubr.bf16.gmra.mrb[0].mxu0 %v3501
      %v3607 = vpop.f32.mrb[0].mxu0
      %v3608 = vadd.f32 0.0, %v3607
      %v3609 = vpop.f32.mrb[0].mxu0
      %v3610 = vpop.f32.mrb[0].mxu0
      %v3611 = vadd.f32 0.0, %v3610
      %v3612 = vpop.f32.mrb[0].mxu0
      %3613 = vmatprep.mubr.bf16.mxu0 0
      %3614 = vmatmul.mubr.bf16.gmra.mrb[0].mxu0 %v3504
      %v3615 = vpop.f32.mrb[0].mxu0
      %v3616 = vadd.f32 0.0, %v3615
      %v3617 = vpop.f32.mrb[0].mxu0
      %v3618 = vpop.f32.mrb[0].mxu0
      %v3619 = vadd.f32 0.0, %v3618
      %v3620 = vpop.f32.mrb[0].mxu0
      %3621 = vmatprep.mubr.bf16.mxu0 0
      %3622 = vmatmul.mubr.bf16.gmra.mrb[0].mxu0 %v3507
      %v3623 = vpop.f32.mrb[0].mxu0
      %v3624 = vadd.f32 0.0, %v3623
      %v3625 = vpop.f32.mrb[0].mxu0
      %v3626 = vpop.f32.mrb[0].mxu0
      %v3627 = vadd.f32 0.0, %v3626
      %v3628 = vpop.f32.mrb[0].mxu0
      %3629 = vmatprep.mubr.bf16.mxu0 0
      %3630 = vmatmul.mubr.bf16.gmra.mrb[0].mxu0 %v3510
      %v3631 = vpop.f32.mrb[0].mxu0
      %v3632 = vadd.f32 0.0, %v3631
      %v3633 = vpop.f32.mrb[0].mxu0
      %v3634 = vpop.f32.mrb[0].mxu0
      %v3635 = vadd.f32 0.0, %v3634
      %v3636 = vpop.f32.mrb[0].mxu0
      %3637 = vmatprep.mubr.bf16.mxu0 0
      %3638 = vmatmul.mubr.bf16.gmra.mrb[0].mxu0 %v3513
      %v3639 = vpop.f32.mrb[0].mxu0
      %v3640 = vadd.f32 0.0, %v3639
      %v3641 = vpop.f32.mrb[0].mxu0
      %v3642 = vpop.f32.mrb[0].mxu0
      %v3643 = vadd.f32 0.0, %v3642
      %v3644 = vpop.f32.mrb[0].mxu0
      %3645 = vmatprep.mubr.bf16.mxu0 0
      %3646 = vmatmul.mubr.bf16.gmra.mrb[0].mxu0 %v3516
      %v3647 = vpop.f32.mrb[0].mxu0
      %v3648 = vadd.f32 0.0, %v3647
      %v3649 = vpop.f32.mrb[0].mxu0
      %v3650 = vpop.f32.mrb[0].mxu0
      %v3651 = vadd.f32 0.0, %v3650
      %v3652 = vpop.f32.mrb[0].mxu0
      %3653 = vmatprep.mubr.bf16.mxu0 0
      %3654 = vmatmul.mubr.bf16.gmra.mrb[0].mxu0 %v3519
      %v3655 = vpop.f32.mrb[0].mxu0
      %v3656 = vadd.f32 0.0, %v3655
      %v3657 = vpop.f32.mrb[0].mxu0
      %v3658 = vpop.f32.mrb[0].mxu0
      %v3659 = vadd.f32 0.0, %v3658
      %v3660 = vpop.f32.mrb[0].mxu0
      %3661 = vmatprep.mubr.bf16.mxu0 0
      %3662 = vmatmul.mubr.bf16.gmra.mrb[0].mxu0 %v3522
      %v3663 = vpop.f32.mrb[0].mxu0
      %v3664 = vadd.f32 0.0, %v3663
      %v3665 = vpop.f32.mrb[0].mxu0
      %v3666 = vpop.f32.mrb[0].mxu0
      %v3667 = vadd.f32 0.0, %v3666
      %v3668 = vpop.f32.mrb[0].mxu0
      %3669 = vmatprep.mubr.bf16.mxu0 0
      %3670 = vmatmul.mubr.bf16.gmra.mrb[0].mxu0 %v3525
      %v3671 = vpop.f32.mrb[0].mxu0
      %v3672 = vadd.f32 0.0, %v3671
      %v3673 = vpop.f32.mrb[0].mxu0
      %v3674 = vpop.f32.mrb[0].mxu0
      %v3675 = vadd.f32 0.0, %v3674
      %v3676 = vpop.f32.mrb[0].mxu0
      %3677 = vmatprep.mubr.bf16.mxu0 0
      %3678 = vmatmul.mubr.bf16.gmra.mrb[0].mxu0 %v3528
      %v3679 = vpop.f32.mrb[0].mxu0
      %v3680 = vadd.f32 0.0, %v3679
      %v3681 = vpop.f32.mrb[0].mxu0
      %v3682 = vpop.f32.mrb[0].mxu0
      %v3683 = vadd.f32 0.0, %v3682
      %v3684 = vpop.f32.mrb[0].mxu0
      %3685 = vmatprep.mubr.bf16.mxu0 0
      %3686 = vmatmul.mubr.bf16.gmra.mrb[0].mxu0 %v3531
      %v3687 = vpop.f32.mrb[0].mxu0
      %v3688 = vadd.f32 0.0, %v3687
      %v3689 = vpop.f32.mrb[0].mxu0
      %v3690 = vpop.f32.mrb[0].mxu0
      %v3691 = vadd.f32 0.0, %v3690
      %v3692 = vpop.f32.mrb[0].mxu0
      %3693 = vdwg.mxu0
      %v3694 = vadd.f32 %v3373, %v3568
      %v3695 = vadd.f32 %v3374, %v3571
      %v3696 = vadd.f32 %v3375, %v3576
      %v3697 = vadd.f32 %v3376, %v3579
      %v3698 = vadd.f32 %v3377, %v3584
      %v3699 = vadd.f32 %v3378, %v3587
      %v3700 = vadd.f32 %v3379, %v3592
      %v3701 = vadd.f32 %v3380, %v3595
      %v3702 = vadd.f32 %v3381, %v3600
      %v3703 = vadd.f32 %v3382, %v3603
      %v3704 = vadd.f32 %v3383, %v3608
      %v3705 = vadd.f32 %v3384, %v3611
      %v3706 = vadd.f32 %v3385, %v3616
      %v3707 = vadd.f32 %v3386, %v3619
      %v3708 = vadd.f32 %v3387, %v3624
      %v3709 = vadd.f32 %v3388, %v3627
      %v3710 = vadd.f32 %v3389, %v3632
      %v3711 = vadd.f32 %v3390, %v3635
      %v3712 = vadd.f32 %v3391, %v3640
      %v3713 = vadd.f32 %v3392, %v3643
      %v3714 = vadd.f32 %v3393, %v3648
      %v3715 = vadd.f32 %v3394, %v3651
      %v3716 = vadd.f32 %v3395, %v3656
      %v3717 = vadd.f32 %v3396, %v3659
      %v3718 = vadd.f32 %v3397, %v3664
      %v3719 = vadd.f32 %v3398, %v3667
      %v3720 = vadd.f32 %v3399, %v3672
      %v3721 = vadd.f32 %v3400, %v3675
      %v3722 = vadd.f32 %v3401, %v3680
      %v3723 = vadd.f32 %v3402, %v3683
      %v3724 = vadd.f32 %v3403, %v3688
      %v3725 = vadd.f32 %v3404, %v3691
      %v3726 = vld [vmem:[%s3067 + $0x40] sm:$0xf]
      %v3727 = vld [vmem:[%s3067 + $0x44] sm:$0xf]
      %v3728 = vld [vmem:[%s3067 + $0x48] sm:$0xf]
      %v3729 = vld [vmem:[%s3067 + $0x4c] sm:$0xf]
      %v3730 = vld [vmem:[%s3067 + $0x50] sm:$0xf]
      %v3731 = vld [vmem:[%s3067 + $0x54] sm:$0xf]
      %v3732 = vld [vmem:[%s3067 + $0x58] sm:$0xf]
      %v3733 = vld [vmem:[%s3067 + $0x5c] sm:$0xf]
      %v3734 = vunpack.c.l.b16 %v2958
      %v3735 = vunpack.c.l.b16 %v2961
      %v3736 = vunpack.c.l.b16 %v2965
      %v3737 = vunpack.c.l.b16 %v2968
      %v3738 = vunpack.c.l.b16 %v2972
      %v3739 = vunpack.c.l.b16 %v2975
      %v3740 = vunpack.c.l.b16 %v2979
      %v3741 = vunpack.c.l.b16 %v2982
      %v3742 = vunpack.c.l.b16 %v2986
      %v3743 = vunpack.c.l.b16 %v2989
      %v3744 = vunpack.c.l.b16 %v2993
      %v3745 = vunpack.c.l.b16 %v2996
      %v3746 = vunpack.c.l.b16 %v3000
      %v3747 = vunpack.c.l.b16 %v3003
      %v3748 = vunpack.c.l.b16 %v3007
      %v3749 = vunpack.c.l.b16 %v3010
      %v3750 = vunpack.c.l.b16 %v3014
      %v3751 = vunpack.c.l.b16 %v3017
      %v3752 = vunpack.c.l.b16 %v3021
      %v3753 = vunpack.c.l.b16 %v3024
      %v3754 = vunpack.c.l.b16 %v3028
      %v3755 = vunpack.c.l.b16 %v3031
      %v3756 = vunpack.c.l.b16 %v3035
      %v3757 = vunpack.c.l.b16 %v3038
      %v3758 = vunpack.c.l.b16 %v3042
      %v3759 = vunpack.c.l.b16 %v3045
      %v3760 = vunpack.c.l.b16 %v3049
      %v3761 = vunpack.c.l.b16 %v3052
      %v3762 = vunpack.c.l.b16 %v3056
      %v3763 = vunpack.c.l.b16 %v3059
      %v3764 = vunpack.c.l.b16 %v3063
      %v3765 = vunpack.c.l.b16 %v3066
      %v3766 = vpack.c.b16 %v3735, %v3734
      %v3767 = vpack.c.b16 %v3737, %v3736
      %v3768 = vpack.c.b16 %v3739, %v3738
      %v3769 = vpack.c.b16 %v3741, %v3740
      %v3770 = vpack.c.b16 %v3743, %v3742
      %v3771 = vpack.c.b16 %v3745, %v3744
      %v3772 = vpack.c.b16 %v3747, %v3746
      %v3773 = vpack.c.b16 %v3749, %v3748
      %v3774 = vpack.c.b16 %v3751, %v3750
      %v3775 = vpack.c.b16 %v3753, %v3752
      %v3776 = vpack.c.b16 %v3755, %v3754
      %v3777 = vpack.c.b16 %v3757, %v3756
      %v3778 = vpack.c.b16 %v3759, %v3758
      %v3779 = vpack.c.b16 %v3761, %v3760
      %v3780 = vpack.c.b16 %v3763, %v3762
      %v3781 = vpack.c.b16 %v3765, %v3764
      %v3790 = vunpack.c.l.b16 %v3726
      %v3791 = vunpack.c.l.b16 %v3727
      %v3792 = vunpack.c.l.b16 %v3728
      %v3793 = vunpack.c.l.b16 %v3729
      %v3794 = vunpack.c.l.b16 %v3730
      %v3795 = vunpack.c.l.b16 %v3731
      %v3796 = vunpack.c.l.b16 %v3732
      %v3797 = vunpack.c.l.b16 %v3733
      %v3798 = vpack.c.b16 %v3791, %v3790
      %v3799 = vpack.c.b16 %v3793, %v3792
      %v3800 = vpack.c.b16 %v3795, %v3794
      %v3801 = vpack.c.b16 %v3797, %v3796
      %v3807 = vsel %vm1631, %v3766, 0
      %v3810 = vsel %vm1631, %v3767, 0
      %v3813 = vsel %vm1631, %v3768, 0
      %v3816 = vsel %vm1631, %v3769, 0
      %v3819 = vsel %vm1631, %v3770, 0
      %v3822 = vsel %vm1631, %v3771, 0
      %v3825 = vsel %vm1631, %v3772, 0
      %v3828 = vsel %vm1631, %v3773, 0
      %v3831 = vsel %vm1631, %v3774, 0
      %v3834 = vsel %vm1631, %v3775, 0
      %v3837 = vsel %vm1631, %v3776, 0
      %v3840 = vsel %vm1631, %v3777, 0
      %v3843 = vsel %vm1631, %v3778, 0
      %v3846 = vsel %vm1631, %v3779, 0
      %v3849 = vsel %vm1631, %v3780, 0
      %v3852 = vsel %vm1631, %v3781, 0
      %3854 = vmatprep.subr.bf16.mxu0 0
      %3855 = vmatpush1.bf16.msra.mxu0 %v3798
      %3856 = vmatprep.subr.bf16.mxu0 0
      %3857 = vmatpush1.bf16.msra.mxu0 %v3799
      %3858 = vmatprep.subr.bf16.mxu0 0
      %3859 = vmatpush1.bf16.msra.mxu0 %v3800
      %3860 = vmatprep.subr.bf16.mxu0 0
      %3861 = vmatpush1.bf16.msra.mxu0 %v3801
      %3862 = vmatprep.subr.bf16.mxu0 0
      %3863 = vmatpush1.bf16.msra.mxu0 0
      %3864 = vmatprep.subr.bf16.mxu0 0
      %3865 = vmatpush1.bf16.msra.mxu0 0
      %3866 = vmatprep.subr.bf16.mxu0 0
      %3867 = vmatpush1.bf16.msra.mxu0 0
      %3868 = vmatprep.subr.bf16.mxu0 0
      %3869 = vmatpush1.bf16.msra.mxu0 0
      %3870 = vmatprep.subr.bf16.mxu0 0
      %3871 = vmatpush1.bf16.msra.mxu0 0
      %3872 = vmatprep.subr.bf16.mxu0 0
      %3873 = vmatpush1.bf16.msra.mxu0 0
      %3874 = vmatprep.subr.bf16.mxu0 0
      %3875 = vmatpush1.bf16.msra.mxu0 0
      %3876 = vmatprep.subr.bf16.mxu0 0
      %3877 = vmatpush1.bf16.msra.mxu0 0
      %3878 = vmatprep.subr.bf16.mxu0 0
      %3879 = vmatpush1.bf16.msra.mxu0 0
      %3880 = vmatprep.subr.bf16.mxu0 0
      %3881 = vmatpush1.bf16.msra.mxu0 0
      %3882 = vmatprep.subr.bf16.mxu0 0
      %3883 = vmatpush1.bf16.msra.mxu0 0
      %3884 = vmatprep.subr.bf16.mxu0 0
      %3885 = vmatpush1.bf16.msra.mxu0 0
      %3886 = vmatprep.mubr.bf16.mxu0 0
      %3887 = vmatmul.mubr.bf16.gmra.mrb[0].mxu0 %v3807
      %v3888 = vpop.f32.mrb[0].mxu0
      %v3889 = vadd.f32 0.0, %v3888
      %v3890 = vpop.f32.mrb[0].mxu0
      %v3891 = vpop.f32.mrb[0].mxu0
      %v3892 = vadd.f32 0.0, %v3891
      %v3893 = vpop.f32.mrb[0].mxu0
      %3894 = vmatprep.mubr.bf16.mxu0 0
      %3895 = vmatmul.mubr.bf16.gmra.mrb[0].mxu0 %v3810
      %v3896 = vpop.f32.mrb[0].mxu0
      %v3897 = vadd.f32 0.0, %v3896
      %v3898 = vpop.f32.mrb[0].mxu0
      %v3899 = vpop.f32.mrb[0].mxu0
      %v3900 = vadd.f32 0.0, %v3899
      %v3901 = vpop.f32.mrb[0].mxu0
      %3902 = vmatprep.mubr.bf16.mxu0 0
      %3903 = vmatmul.mubr.bf16.gmra.mrb[0].mxu0 %v3813
      %v3904 = vpop.f32.mrb[0].mxu0
      %v3905 = vadd.f32 0.0, %v3904
      %v3906 = vpop.f32.mrb[0].mxu0
      %v3907 = vpop.f32.mrb[0].mxu0
      %v3908 = vadd.f32 0.0, %v3907
      %v3909 = vpop.f32.mrb[0].mxu0
      %3910 = vmatprep.mubr.bf16.mxu0 0
      %3911 = vmatmul.mubr.bf16.gmra.mrb[0].mxu0 %v3816
      %v3912 = vpop.f32.mrb[0].mxu0
      %v3913 = vadd.f32 0.0, %v3912
      %v3914 = vpop.f32.mrb[0].mxu0
      %v3915 = vpop.f32.mrb[0].mxu0
      %v3916 = vadd.f32 0.0, %v3915
      %v3917 = vpop.f32.mrb[0].mxu0
      %3918 = vmatprep.mubr.bf16.mxu0 0
      %3919 = vmatmul.mubr.bf16.gmra.mrb[0].mxu0 %v3819
      %v3920 = vpop.f32.mrb[0].mxu0
      %v3921 = vadd.f32 0.0, %v3920
      %v3922 = vpop.f32.mrb[0].mxu0
      %v3923 = vpop.f32.mrb[0].mxu0
      %v3924 = vadd.f32 0.0, %v3923
      %v3925 = vpop.f32.mrb[0].mxu0
      %3926 = vmatprep.mubr.bf16.mxu0 0
      %3927 = vmatmul.mubr.bf16.gmra.mrb[0].mxu0 %v3822
      %v3928 = vpop.f32.mrb[0].mxu0
      %v3929 = vadd.f32 0.0, %v3928
      %v3930 = vpop.f32.mrb[0].mxu0
      %v3931 = vpop.f32.mrb[0].mxu0
      %v3932 = vadd.f32 0.0, %v3931
      %v3933 = vpop.f32.mrb[0].mxu0
      %3934 = vmatprep.mubr.bf16.mxu0 0
      %3935 = vmatmul.mubr.bf16.gmra.mrb[0].mxu0 %v3825
      %v3936 = vpop.f32.mrb[0].mxu0
      %v3937 = vadd.f32 0.0, %v3936
      %v3938 = vpop.f32.mrb[0].mxu0
      %v3939 = vpop.f32.mrb[0].mxu0
      %v3940 = vadd.f32 0.0, %v3939
      %v3941 = vpop.f32.mrb[0].mxu0
      %3942 = vmatprep.mubr.bf16.mxu0 0
      %3943 = vmatmul.mubr.bf16.gmra.mrb[0].mxu0 %v3828
      %v3944 = vpop.f32.mrb[0].mxu0
      %v3945 = vadd.f32 0.0, %v3944
      %v3946 = vpop.f32.mrb[0].mxu0
      %v3947 = vpop.f32.mrb[0].mxu0
      %v3948 = vadd.f32 0.0, %v3947
      %v3949 = vpop.f32.mrb[0].mxu0
      %3950 = vmatprep.mubr.bf16.mxu0 0
      %3951 = vmatmul.mubr.bf16.gmra.mrb[0].mxu0 %v3831
      %v3952 = vpop.f32.mrb[0].mxu0
      %v3953 = vadd.f32 0.0, %v3952
      %v3954 = vpop.f32.mrb[0].mxu0
      %v3955 = vpop.f32.mrb[0].mxu0
      %v3956 = vadd.f32 0.0, %v3955
      %v3957 = vpop.f32.mrb[0].mxu0
      %3958 = vmatprep.mubr.bf16.mxu0 0
      %3959 = vmatmul.mubr.bf16.gmra.mrb[0].mxu0 %v3834
      %v3960 = vpop.f32.mrb[0].mxu0
      %v3961 = vadd.f32 0.0, %v3960
      %v3962 = vpop.f32.mrb[0].mxu0
      %v3963 = vpop.f32.mrb[0].mxu0
      %v3964 = vadd.f32 0.0, %v3963
      %v3965 = vpop.f32.mrb[0].mxu0
      %3966 = vmatprep.mubr.bf16.mxu0 0
      %3967 = vmatmul.mubr.bf16.gmra.mrb[0].mxu0 %v3837
      %v3968 = vpop.f32.mrb[0].mxu0
      %v3969 = vadd.f32 0.0, %v3968
      %v3970 = vpop.f32.mrb[0].mxu0
      %v3971 = vpop.f32.mrb[0].mxu0
      %v3972 = vadd.f32 0.0, %v3971
      %v3973 = vpop.f32.mrb[0].mxu0
      %3974 = vmatprep.mubr.bf16.mxu0 0
      %3975 = vmatmul.mubr.bf16.gmra.mrb[0].mxu0 %v3840
      %v3976 = vpop.f32.mrb[0].mxu0
      %v3977 = vadd.f32 0.0, %v3976
      %v3978 = vpop.f32.mrb[0].mxu0
      %v3979 = vpop.f32.mrb[0].mxu0
      %v3980 = vadd.f32 0.0, %v3979
      %v3981 = vpop.f32.mrb[0].mxu0
      %3982 = vmatprep.mubr.bf16.mxu0 0
      %3983 = vmatmul.mubr.bf16.gmra.mrb[0].mxu0 %v3843
      %v3984 = vpop.f32.mrb[0].mxu0
      %v3985 = vadd.f32 0.0, %v3984
      %v3986 = vpop.f32.mrb[0].mxu0
      %v3987 = vpop.f32.mrb[0].mxu0
      %v3988 = vadd.f32 0.0, %v3987
      %v3989 = vpop.f32.mrb[0].mxu0
      %3990 = vmatprep.mubr.bf16.mxu0 0
      %3991 = vmatmul.mubr.bf16.gmra.mrb[0].mxu0 %v3846
      %v3992 = vpop.f32.mrb[0].mxu0
      %v3993 = vadd.f32 0.0, %v3992
      %v3994 = vpop.f32.mrb[0].mxu0
      %v3995 = vpop.f32.mrb[0].mxu0
      %v3996 = vadd.f32 0.0, %v3995
      %v3997 = vpop.f32.mrb[0].mxu0
      %3998 = vmatprep.mubr.bf16.mxu0 0
      %3999 = vmatmul.mubr.bf16.gmra.mrb[0].mxu0 %v3849
      %v4000 = vpop.f32.mrb[0].mxu0
      %v4001 = vadd.f32 0.0, %v4000
      %v4002 = vpop.f32.mrb[0].mxu0
      %v4003 = vpop.f32.mrb[0].mxu0
      %v4004 = vadd.f32 0.0, %v4003
      %v4005 = vpop.f32.mrb[0].mxu0
      %4006 = vmatprep.mubr.bf16.mxu0 0
      %4007 = vmatmul.mubr.bf16.gmra.mrb[0].mxu0 %v3852
      %v4008 = vpop.f32.mrb[0].mxu0
      %v4009 = vadd.f32 0.0, %v4008
      %v4010 = vpop.f32.mrb[0].mxu0
      %v4011 = vpop.f32.mrb[0].mxu0
      %v4012 = vadd.f32 0.0, %v4011
      %v4013 = vpop.f32.mrb[0].mxu0
      %4014 = vdwg.mxu0
      %v4015 = vadd.f32 %v3694, %v3889
      %v4016 = vadd.f32 %v3695, %v3892
      %v4017 = vadd.f32 %v3696, %v3897
      %v4018 = vadd.f32 %v3697, %v3900
      %v4019 = vadd.f32 %v3698, %v3905
      %v4020 = vadd.f32 %v3699, %v3908
      %v4021 = vadd.f32 %v3700, %v3913
      %v4022 = vadd.f32 %v3701, %v3916
      %v4023 = vadd.f32 %v3702, %v3921
      %v4024 = vadd.f32 %v3703, %v3924
      %v4025 = vadd.f32 %v3704, %v3929
      %v4026 = vadd.f32 %v3705, %v3932
      %v4027 = vadd.f32 %v3706, %v3937
      %v4028 = vadd.f32 %v3707, %v3940
      %v4029 = vadd.f32 %v3708, %v3945
      %v4030 = vadd.f32 %v3709, %v3948
      %v4031 = vadd.f32 %v3710, %v3953
      %v4032 = vadd.f32 %v3711, %v3956
      %v4033 = vadd.f32 %v3712, %v3961
      %v4034 = vadd.f32 %v3713, %v3964
      %v4035 = vadd.f32 %v3714, %v3969
      %v4036 = vadd.f32 %v3715, %v3972
      %v4037 = vadd.f32 %v3716, %v3977
      %v4038 = vadd.f32 %v3717, %v3980
      %v4039 = vadd.f32 %v3718, %v3985
      %v4040 = vadd.f32 %v3719, %v3988
      %v4041 = vadd.f32 %v3720, %v3993
      %v4042 = vadd.f32 %v3721, %v3996
      %v4043 = vadd.f32 %v3722, %v4001
      %v4044 = vadd.f32 %v3723, %v4004
      %v4045 = vadd.f32 %v3724, %v4009
      %v4046 = vadd.f32 %v3725, %v4012
      %s4047 = scalar_lea.vmem [#allocation2], 24
      %v4048 = vld [vmem:[%s4047] sm:$0xf]
      %v4049 = vld [vmem:[%s4047 + $0x4] sm:$0xf]
      %v4050 = vld [vmem:[%s4047 + $0xc] sm:$0xf]
      %v4051 = vld [vmem:[%s4047 + $0x10] sm:$0xf]
      %v4052 = vld [vmem:[%s4047 + $0x18] sm:$0xf]
      %v4053 = vld [vmem:[%s4047 + $0x1c] sm:$0xf]
      %v4054 = vld [vmem:[%s4047 + $0x24] sm:$0xf]
      %v4055 = vld [vmem:[%s4047 + $0x28] sm:$0xf]
      %v4056 = vld [vmem:[%s4047 + $0x30] sm:$0xf]
      %v4057 = vld [vmem:[%s4047 + $0x34] sm:$0xf]
      %v4058 = vld [vmem:[%s4047 + $0x3c] sm:$0xf]
      %v4059 = vld [vmem:[%s4047 + $0x40] sm:$0xf]
      %v4060 = vld [vmem:[%s4047 + $0x48] sm:$0xf]
      %v4061 = vld [vmem:[%s4047 + $0x4c] sm:$0xf]
      %v4062 = vld [vmem:[%s4047 + $0x54] sm:$0xf]
      %v4063 = vld [vmem:[%s4047 + $0x58] sm:$0xf]
      %v4064 = vld [vmem:[%s4047 + $0x60] sm:$0xf]
      %v4065 = vld [vmem:[%s4047 + $0x64] sm:$0xf]
      %v4066 = vld [vmem:[%s4047 + $0x6c] sm:$0xf]
      %v4067 = vld [vmem:[%s4047 + $0x70] sm:$0xf]
      %v4068 = vld [vmem:[%s4047 + $0x78] sm:$0xf]
      %v4069 = vld [vmem:[%s4047 + $0x7c] sm:$0xf]
      %v4070 = vld [vmem:[%s4047 + $0x84] sm:$0xf]
      %v4071 = vld [vmem:[%s4047 + $0x88] sm:$0xf]
      %v4072 = vld [vmem:[%s4047 + $0x90] sm:$0xf]
      %v4073 = vld [vmem:[%s4047 + $0x94] sm:$0xf]
      %v4074 = vld [vmem:[%s4047 + $0x9c] sm:$0xf]
      %v4075 = vld [vmem:[%s4047 + $0xa0] sm:$0xf]
      %v4076 = vld [vmem:[%s4047 + $0xa8] sm:$0xf]
      %v4077 = vld [vmem:[%s4047 + $0xac] sm:$0xf]
      %v4078 = vld [vmem:[%s4047 + $0xb4] sm:$0xf]
      %v4079 = vld [vmem:[%s4047 + $0xb8] sm:$0xf]
      %v4080 = vld [vmem:[%s4047 + $0x8] sm:$0x1]
      %v4081 = vld [vmem:[%s4047 + $0x14] sm:$0x1]
      %v4082 = vld [vmem:[%s4047 + $0x20] sm:$0x1]
      %v4083 = vld [vmem:[%s4047 + $0x2c] sm:$0x1]
      %v4084 = vld [vmem:[%s4047 + $0x38] sm:$0x1]
      %v4085 = vld [vmem:[%s4047 + $0x44] sm:$0x1]
      %v4086 = vld [vmem:[%s4047 + $0x50] sm:$0x1]
      %v4087 = vld [vmem:[%s4047 + $0x5c] sm:$0x1]
      %v4088 = vld [vmem:[%s4047 + $0x68] sm:$0x1]
      %v4089 = vld [vmem:[%s4047 + $0x74] sm:$0x1]
      %v4090 = vld [vmem:[%s4047 + $0x80] sm:$0x1]
      %v4091 = vld [vmem:[%s4047 + $0x8c] sm:$0x1]
      %v4092 = vld [vmem:[%s4047 + $0x98] sm:$0x1]
      %v4093 = vld [vmem:[%s4047 + $0xa4] sm:$0x1]
      %v4094 = vld [vmem:[%s4047 + $0xb0] sm:$0x1]
      %v4095 = vld [vmem:[%s4047 + $0xbc] sm:$0x1]
      %v4097 = vshrl.u32 %v4048, 16
      %v4099 = vrot.slane %v4097, 4
      %v4100 = vshll.u32 %v4048, 16
      %v4102 = vrot.slane %v4100, 5
      %v4103 = vor.u32 %v4099, %v4102
      %v4104 = vrot.slane %v4103, 4
      %v4106 = vshll.u32 %v4049, 16
      %v4108 = vrot.slane %v4106, 5
      %v4109 = vsel %vm979, %v4104, %v4108
      %v4110 = vshrl.u32 %v4049, 16
      %v4112 = vrot.slane %v4110, 4
      %v4113 = vor.u32 %v4112, %v4108
      %v4114 = vrot.slane %v4113, 4
      %v4116 = vshll.u32 %v4080, 16
      %v4118 = vrot.slane %v4116, 5
      %v4119 = vsel %vm979, %v4114, %v4118
      %v4121 = vshrl.u32 %v4050, 16
      %v4123 = vrot.slane %v4121, 4
      %v4124 = vshll.u32 %v4050, 16
      %v4126 = vrot.slane %v4124, 5
      %v4127 = vor.u32 %v4123, %v4126
      %v4128 = vrot.slane %v4127, 4
      %v4130 = vshll.u32 %v4051, 16
      %v4132 = vrot.slane %v4130, 5
      %v4133 = vsel %vm979, %v4128, %v4132
      %v4134 = vshrl.u32 %v4051, 16
      %v4136 = vrot.slane %v4134, 4
      %v4137 = vor.u32 %v4136, %v4132
      %v4138 = vrot.slane %v4137, 4
      %v4140 = vshll.u32 %v4081, 16
      %v4142 = vrot.slane %v4140, 5
      %v4143 = vsel %vm979, %v4138, %v4142
      %v4145 = vshrl.u32 %v4052, 16
      %v4147 = vrot.slane %v4145, 4
      %v4148 = vshll.u32 %v4052, 16
      %v4150 = vrot.slane %v4148, 5
      %v4151 = vor.u32 %v4147, %v4150
      %v4152 = vrot.slane %v4151, 4
      %v4154 = vshll.u32 %v4053, 16
      %v4156 = vrot.slane %v4154, 5
      %v4157 = vsel %vm979, %v4152, %v4156
      %v4158 = vshrl.u32 %v4053, 16
      %v4160 = vrot.slane %v4158, 4
      %v4161 = vor.u32 %v4160, %v4156
      %v4162 = vrot.slane %v4161, 4
      %v4164 = vshll.u32 %v4082, 16
      %v4166 = vrot.slane %v4164, 5
      %v4167 = vsel %vm979, %v4162, %v4166
      %v4169 = vshrl.u32 %v4054, 16
      %v4171 = vrot.slane %v4169, 4
      %v4172 = vshll.u32 %v4054, 16
      %v4174 = vrot.slane %v4172, 5
      %v4175 = vor.u32 %v4171, %v4174
      %v4176 = vrot.slane %v4175, 4
      %v4178 = vshll.u32 %v4055, 16
      %v4180 = vrot.slane %v4178, 5
      %v4181 = vsel %vm979, %v4176, %v4180
      %v4182 = vshrl.u32 %v4055, 16
      %v4184 = vrot.slane %v4182, 4
      %v4185 = vor.u32 %v4184, %v4180
      %v4186 = vrot.slane %v4185, 4
      %v4188 = vshll.u32 %v4083, 16
      %v4190 = vrot.slane %v4188, 5
      %v4191 = vsel %vm979, %v4186, %v4190
      %v4193 = vshrl.u32 %v4056, 16
      %v4195 = vrot.slane %v4193, 4
      %v4196 = vshll.u32 %v4056, 16
      %v4198 = vrot.slane %v4196, 5
      %v4199 = vor.u32 %v4195, %v4198
      %v4200 = vrot.slane %v4199, 4
      %v4202 = vshll.u32 %v4057, 16
      %v4204 = vrot.slane %v4202, 5
      %v4205 = vsel %vm979, %v4200, %v4204
      %v4206 = vshrl.u32 %v4057, 16
      %v4208 = vrot.slane %v4206, 4
      %v4209 = vor.u32 %v4208, %v4204
      %v4210 = vrot.slane %v4209, 4
      %v4212 = vshll.u32 %v4084, 16
      %v4214 = vrot.slane %v4212, 5
      %v4215 = vsel %vm979, %v4210, %v4214
      %v4217 = vshrl.u32 %v4058, 16
      %v4219 = vrot.slane %v4217, 4
      %v4220 = vshll.u32 %v4058, 16
      %v4222 = vrot.slane %v4220, 5
      %v4223 = vor.u32 %v4219, %v4222
      %v4224 = vrot.slane %v4223, 4
      %v4226 = vshll.u32 %v4059, 16
      %v4228 = vrot.slane %v4226, 5
      %v4229 = vsel %vm979, %v4224, %v4228
      %v4230 = vshrl.u32 %v4059, 16
      %v4232 = vrot.slane %v4230, 4
      %v4233 = vor.u32 %v4232, %v4228
      %v4234 = vrot.slane %v4233, 4
      %v4236 = vshll.u32 %v4085, 16
      %v4238 = vrot.slane %v4236, 5
      %v4239 = vsel %vm979, %v4234, %v4238
      %v4241 = vshrl.u32 %v4060, 16
      %v4243 = vrot.slane %v4241, 4
      %v4244 = vshll.u32 %v4060, 16
      %v4246 = vrot.slane %v4244, 5
      %v4247 = vor.u32 %v4243, %v4246
      %v4248 = vrot.slane %v4247, 4
      %v4250 = vshll.u32 %v4061, 16
      %v4252 = vrot.slane %v4250, 5
      %v4253 = vsel %vm979, %v4248, %v4252
      %v4254 = vshrl.u32 %v4061, 16
      %v4256 = vrot.slane %v4254, 4
      %v4257 = vor.u32 %v4256, %v4252
      %v4258 = vrot.slane %v4257, 4
      %v4260 = vshll.u32 %v4086, 16
      %v4262 = vrot.slane %v4260, 5
      %v4263 = vsel %vm979, %v4258, %v4262
      %v4265 = vshrl.u32 %v4062, 16
      %v4267 = vrot.slane %v4265, 4
      %v4268 = vshll.u32 %v4062, 16
      %v4270 = vrot.slane %v4268, 5
      %v4271 = vor.u32 %v4267, %v4270
      %v4272 = vrot.slane %v4271, 4
      %v4274 = vshll.u32 %v4063, 16
      %v4276 = vrot.slane %v4274, 5
      %v4277 = vsel %vm979, %v4272, %v4276
      %v4278 = vshrl.u32 %v4063, 16
      %v4280 = vrot.slane %v4278, 4
      %v4281 = vor.u32 %v4280, %v4276
      %v4282 = vrot.slane %v4281, 4
      %v4284 = vshll.u32 %v4087, 16
      %v4286 = vrot.slane %v4284, 5
      %v4287 = vsel %vm979, %v4282, %v4286
      %v4289 = vshrl.u32 %v4064, 16
      %v4291 = vrot.slane %v4289, 4
      %v4292 = vshll.u32 %v4064, 16
      %v4294 = vrot.slane %v4292, 5
      %v4295 = vor.u32 %v4291, %v4294
      %v4296 = vrot.slane %v4295, 4
      %v4298 = vshll.u32 %v4065, 16
      %v4300 = vrot.slane %v4298, 5
      %v4301 = vsel %vm979, %v4296, %v4300
      %v4302 = vshrl.u32 %v4065, 16
      %v4304 = vrot.slane %v4302, 4
      %v4305 = vor.u32 %v4304, %v4300
      %v4306 = vrot.slane %v4305, 4
      %v4308 = vshll.u32 %v4088, 16
      %v4310 = vrot.slane %v4308, 5
      %v4311 = vsel %vm979, %v4306, %v4310
      %v4313 = vshrl.u32 %v4066, 16
      %v4315 = vrot.slane %v4313, 4
      %v4316 = vshll.u32 %v4066, 16
      %v4318 = vrot.slane %v4316, 5
      %v4319 = vor.u32 %v4315, %v4318
      %v4320 = vrot.slane %v4319, 4
      %v4322 = vshll.u32 %v4067, 16
      %v4324 = vrot.slane %v4322, 5
      %v4325 = vsel %vm979, %v4320, %v4324
      %v4326 = vshrl.u32 %v4067, 16
      %v4328 = vrot.slane %v4326, 4
      %v4329 = vor.u32 %v4328, %v4324
      %v4330 = vrot.slane %v4329, 4
      %v4332 = vshll.u32 %v4089, 16
      %v4334 = vrot.slane %v4332, 5
      %v4335 = vsel %vm979, %v4330, %v4334
      %v4337 = vshrl.u32 %v4068, 16
      %v4339 = vrot.slane %v4337, 4
      %v4340 = vshll.u32 %v4068, 16
      %v4342 = vrot.slane %v4340, 5
      %v4343 = vor.u32 %v4339, %v4342
      %v4344 = vrot.slane %v4343, 4
      %v4346 = vshll.u32 %v4069, 16
      %v4348 = vrot.slane %v4346, 5
      %v4349 = vsel %vm979, %v4344, %v4348
      %v4350 = vshrl.u32 %v4069, 16
      %v4352 = vrot.slane %v4350, 4
      %v4353 = vor.u32 %v4352, %v4348
      %v4354 = vrot.slane %v4353, 4
      %v4356 = vshll.u32 %v4090, 16
      %v4358 = vrot.slane %v4356, 5
      %v4359 = vsel %vm979, %v4354, %v4358
      %v4361 = vshrl.u32 %v4070, 16
      %v4363 = vrot.slane %v4361, 4
      %v4364 = vshll.u32 %v4070, 16
      %v4366 = vrot.slane %v4364, 5
      %v4367 = vor.u32 %v4363, %v4366
      %v4368 = vrot.slane %v4367, 4
      %v4370 = vshll.u32 %v4071, 16
      %v4372 = vrot.slane %v4370, 5
      %v4373 = vsel %vm979, %v4368, %v4372
      %v4374 = vshrl.u32 %v4071, 16
      %v4376 = vrot.slane %v4374, 4
      %v4377 = vor.u32 %v4376, %v4372
      %v4378 = vrot.slane %v4377, 4
      %v4380 = vshll.u32 %v4091, 16
      %v4382 = vrot.slane %v4380, 5
      %v4383 = vsel %vm979, %v4378, %v4382
      %v4385 = vshrl.u32 %v4072, 16
      %v4387 = vrot.slane %v4385, 4
      %v4388 = vshll.u32 %v4072, 16
      %v4390 = vrot.slane %v4388, 5
      %v4391 = vor.u32 %v4387, %v4390
      %v4392 = vrot.slane %v4391, 4
      %v4394 = vshll.u32 %v4073, 16
      %v4396 = vrot.slane %v4394, 5
      %v4397 = vsel %vm979, %v4392, %v4396
      %v4398 = vshrl.u32 %v4073, 16
      %v4400 = vrot.slane %v4398, 4
      %v4401 = vor.u32 %v4400, %v4396
      %v4402 = vrot.slane %v4401, 4
      %v4404 = vshll.u32 %v4092, 16
      %v4406 = vrot.slane %v4404, 5
      %v4407 = vsel %vm979, %v4402, %v4406
      %v4409 = vshrl.u32 %v4074, 16
      %v4411 = vrot.slane %v4409, 4
      %v4412 = vshll.u32 %v4074, 16
      %v4414 = vrot.slane %v4412, 5
      %v4415 = vor.u32 %v4411, %v4414
      %v4416 = vrot.slane %v4415, 4
      %v4418 = vshll.u32 %v4075, 16
      %v4420 = vrot.slane %v4418, 5
      %v4421 = vsel %vm979, %v4416, %v4420
      %v4422 = vshrl.u32 %v4075, 16
      %v4424 = vrot.slane %v4422, 4
      %v4425 = vor.u32 %v4424, %v4420
      %v4426 = vrot.slane %v4425, 4
      %v4428 = vshll.u32 %v4093, 16
      %v4430 = vrot.slane %v4428, 5
      %v4431 = vsel %vm979, %v4426, %v4430
      %v4433 = vshrl.u32 %v4076, 16
      %v4435 = vrot.slane %v4433, 4
      %v4436 = vshll.u32 %v4076, 16
      %v4438 = vrot.slane %v4436, 5
      %v4439 = vor.u32 %v4435, %v4438
      %v4440 = vrot.slane %v4439, 4
      %v4442 = vshll.u32 %v4077, 16
      %v4444 = vrot.slane %v4442, 5
      %v4445 = vsel %vm979, %v4440, %v4444
      %v4446 = vshrl.u32 %v4077, 16
      %v4448 = vrot.slane %v4446, 4
      %v4449 = vor.u32 %v4448, %v4444
      %v4450 = vrot.slane %v4449, 4
      %v4452 = vshll.u32 %v4094, 16
      %v4454 = vrot.slane %v4452, 5
      %v4455 = vsel %vm979, %v4450, %v4454
      %v4457 = vshrl.u32 %v4078, 16
      %v4459 = vrot.slane %v4457, 4
      %v4460 = vshll.u32 %v4078, 16
      %v4462 = vrot.slane %v4460, 5
      %v4463 = vor.u32 %v4459, %v4462
      %v4464 = vrot.slane %v4463, 4
      %v4466 = vshll.u32 %v4079, 16
      %v4468 = vrot.slane %v4466, 5
      %v4469 = vsel %vm979, %v4464, %v4468
      %v4470 = vshrl.u32 %v4079, 16
      %v4472 = vrot.slane %v4470, 4
      %v4473 = vor.u32 %v4472, %v4468
      %v4474 = vrot.slane %v4473, 4
      %v4476 = vshll.u32 %v4095, 16
      %v4478 = vrot.slane %v4476, 5
      %v4479 = vsel %vm979, %v4474, %v4478
      %v4480 = vld [vmem:[%s4047] sm:$0xe]
      %v4481 = vld [vmem:[%s4047 + $0xc] sm:$0xe]
      %v4482 = vld [vmem:[%s4047 + $0x18] sm:$0xe]
      %v4483 = vld [vmem:[%s4047 + $0x24] sm:$0xe]
      %v4484 = vld [vmem:[%s4047 + $0x30] sm:$0xe]
      %v4485 = vld [vmem:[%s4047 + $0x3c] sm:$0xe]
      %v4486 = vld [vmem:[%s4047 + $0x48] sm:$0xe]
      %v4487 = vld [vmem:[%s4047 + $0x54] sm:$0xe]
      %v4488 = vld [vmem:[%s4047 + $0x60] sm:$0xe]
      %v4489 = vld [vmem:[%s4047 + $0x6c] sm:$0xe]
      %v4490 = vld [vmem:[%s4047 + $0x78] sm:$0xe]
      %v4491 = vld [vmem:[%s4047 + $0x84] sm:$0xe]
      %v4492 = vld [vmem:[%s4047 + $0x90] sm:$0xe]
      %v4493 = vld [vmem:[%s4047 + $0x9c] sm:$0xe]
      %v4494 = vld [vmem:[%s4047 + $0xa8] sm:$0xe]
      %v4495 = vld [vmem:[%s4047 + $0xb4] sm:$0xe]
      %v4544 = vrot.slane %v4480, 5
      %v4545 = vrot.slane %v4544, 4
      %v4546 = vrot.slane %v4049, 5
      %v4547 = vsel %vm1430, %v4545, %v4546
      %v4548 = vrot.slane %v4546, 4
      %v4549 = vrot.slane %v4080, 5
      %v4550 = vsel %vm1430, %v4548, %v4549
      %v4551 = vrot.slane %v4481, 5
      %v4552 = vrot.slane %v4551, 4
      %v4553 = vrot.slane %v4051, 5
      %v4554 = vsel %vm1430, %v4552, %v4553
      %v4555 = vrot.slane %v4553, 4
      %v4556 = vrot.slane %v4081, 5
      %v4557 = vsel %vm1430, %v4555, %v4556
      %v4558 = vrot.slane %v4482, 5
      %v4559 = vrot.slane %v4558, 4
      %v4560 = vrot.slane %v4053, 5
      %v4561 = vsel %vm1430, %v4559, %v4560
      %v4562 = vrot.slane %v4560, 4
      %v4563 = vrot.slane %v4082, 5
      %v4564 = vsel %vm1430, %v4562, %v4563
      %v4565 = vrot.slane %v4483, 5
      %v4566 = vrot.slane %v4565, 4
      %v4567 = vrot.slane %v4055, 5
      %v4568 = vsel %vm1430, %v4566, %v4567
      %v4569 = vrot.slane %v4567, 4
      %v4570 = vrot.slane %v4083, 5
      %v4571 = vsel %vm1430, %v4569, %v4570
      %v4572 = vrot.slane %v4484, 5
      %v4573 = vrot.slane %v4572, 4
      %v4574 = vrot.slane %v4057, 5
      %v4575 = vsel %vm1430, %v4573, %v4574
      %v4576 = vrot.slane %v4574, 4
      %v4577 = vrot.slane %v4084, 5
      %v4578 = vsel %vm1430, %v4576, %v4577
      %v4579 = vrot.slane %v4485, 5
      %v4580 = vrot.slane %v4579, 4
      %v4581 = vrot.slane %v4059, 5
      %v4582 = vsel %vm1430, %v4580, %v4581
      %v4583 = vrot.slane %v4581, 4
      %v4584 = vrot.slane %v4085, 5
      %v4585 = vsel %vm1430, %v4583, %v4584
      %v4586 = vrot.slane %v4486, 5
      %v4587 = vrot.slane %v4586, 4
      %v4588 = vrot.slane %v4061, 5
      %v4589 = vsel %vm1430, %v4587, %v4588
      %v4590 = vrot.slane %v4588, 4
      %v4591 = vrot.slane %v4086, 5
      %v4592 = vsel %vm1430, %v4590, %v4591
      %v4593 = vrot.slane %v4487, 5
      %v4594 = vrot.slane %v4593, 4
      %v4595 = vrot.slane %v4063, 5
      %v4596 = vsel %vm1430, %v4594, %v4595
      %v4597 = vrot.slane %v4595, 4
      %v4598 = vrot.slane %v4087, 5
      %v4599 = vsel %vm1430, %v4597, %v4598
      %v4600 = vrot.slane %v4488, 5
      %v4601 = vrot.slane %v4600, 4
      %v4602 = vrot.slane %v4065, 5
      %v4603 = vsel %vm1430, %v4601, %v4602
      %v4604 = vrot.slane %v4602, 4
      %v4605 = vrot.slane %v4088, 5
      %v4606 = vsel %vm1430, %v4604, %v4605
      %v4607 = vrot.slane %v4489, 5
      %v4608 = vrot.slane %v4607, 4
      %v4609 = vrot.slane %v4067, 5
      %v4610 = vsel %vm1430, %v4608, %v4609
      %v4611 = vrot.slane %v4609, 4
      %v4612 = vrot.slane %v4089, 5
      %v4613 = vsel %vm1430, %v4611, %v4612
      %v4614 = vrot.slane %v4490, 5
      %v4615 = vrot.slane %v4614, 4
      %v4616 = vrot.slane %v4069, 5
      %v4617 = vsel %vm1430, %v4615, %v4616
      %v4618 = vrot.slane %v4616, 4
      %v4619 = vrot.slane %v4090, 5
      %v4620 = vsel %vm1430, %v4618, %v4619
      %v4621 = vrot.slane %v4491, 5
      %v4622 = vrot.slane %v4621, 4
      %v4623 = vrot.slane %v4071, 5
      %v4624 = vsel %vm1430, %v4622, %v4623
      %v4625 = vrot.slane %v4623, 4
      %v4626 = vrot.slane %v4091, 5
      %v4627 = vsel %vm1430, %v4625, %v4626
      %v4628 = vrot.slane %v4492, 5
      %v4629 = vrot.slane %v4628, 4
      %v4630 = vrot.slane %v4073, 5
      %v4631 = vsel %vm1430, %v4629, %v4630
      %v4632 = vrot.slane %v4630, 4
      %v4633 = vrot.slane %v4092, 5
      %v4634 = vsel %vm1430, %v4632, %v4633
      %v4635 = vrot.slane %v4493, 5
      %v4636 = vrot.slane %v4635, 4
      %v4637 = vrot.slane %v4075, 5
      %v4638 = vsel %vm1430, %v4636, %v4637
      %v4639 = vrot.slane %v4637, 4
      %v4640 = vrot.slane %v4093, 5
      %v4641 = vsel %vm1430, %v4639, %v4640
      %v4642 = vrot.slane %v4494, 5
      %v4643 = vrot.slane %v4642, 4
      %v4644 = vrot.slane %v4077, 5
      %v4645 = vsel %vm1430, %v4643, %v4644
      %v4646 = vrot.slane %v4644, 4
      %v4647 = vrot.slane %v4094, 5
      %v4648 = vsel %vm1430, %v4646, %v4647
      %v4649 = vrot.slane %v4495, 5
      %v4650 = vrot.slane %v4649, 4
      %v4651 = vrot.slane %v4079, 5
      %v4652 = vsel %vm1430, %v4650, %v4651
      %v4653 = vrot.slane %v4651, 4
      %v4654 = vrot.slane %v4095, 5
      %v4655 = vsel %vm1430, %v4653, %v4654
      %s4656 = scalar_lea.vmem %s3, 192
      %v4657 = vld [vmem:[%s4656] sm:$0xf]
      %v4658 = vld [vmem:[%s4656 + $0x4] sm:$0xf]
      %v4659 = vld [vmem:[%s4656 + $0x8] sm:$0xf]
      %v4660 = vld [vmem:[%s4656 + $0xc] sm:$0xf]
      %v4661 = vld [vmem:[%s4656 + $0x10] sm:$0xf]
      %v4662 = vld [vmem:[%s4656 + $0x14] sm:$0xf]
      %v4663 = vld [vmem:[%s4656 + $0x18] sm:$0xf]
      %v4664 = vld [vmem:[%s4656 + $0x1c] sm:$0xf]
      %v4681 = vunpack.c.l.b16 %v4048
      %v4682 = vunpack.c.l.b16 %v4049
      %v4683 = vunpack.c.l.b16 %v4050
      %v4684 = vunpack.c.l.b16 %v4051
      %v4685 = vunpack.c.l.b16 %v4052
      %v4686 = vunpack.c.l.b16 %v4053
      %v4687 = vunpack.c.l.b16 %v4054
      %v4688 = vunpack.c.l.b16 %v4055
      %v4689 = vunpack.c.l.b16 %v4056
      %v4690 = vunpack.c.l.b16 %v4057
      %v4691 = vunpack.c.l.b16 %v4058
      %v4692 = vunpack.c.l.b16 %v4059
      %v4693 = vunpack.c.l.b16 %v4060
      %v4694 = vunpack.c.l.b16 %v4061
      %v4695 = vunpack.c.l.b16 %v4062
      %v4696 = vunpack.c.l.b16 %v4063
      %v4697 = vunpack.c.l.b16 %v4064
      %v4698 = vunpack.c.l.b16 %v4065
      %v4699 = vunpack.c.l.b16 %v4066
      %v4700 = vunpack.c.l.b16 %v4067
      %v4701 = vunpack.c.l.b16 %v4068
      %v4702 = vunpack.c.l.b16 %v4069
      %v4703 = vunpack.c.l.b16 %v4070
      %v4704 = vunpack.c.l.b16 %v4071
      %v4705 = vunpack.c.l.b16 %v4072
      %v4706 = vunpack.c.l.b16 %v4073
      %v4707 = vunpack.c.l.b16 %v4074
      %v4708 = vunpack.c.l.b16 %v4075
      %v4709 = vunpack.c.l.b16 %v4076
      %v4710 = vunpack.c.l.b16 %v4077
      %v4711 = vunpack.c.l.b16 %v4078
      %v4712 = vunpack.c.l.b16 %v4079
      %v4713 = vpack.c.b16 %v4682, %v4681
      %v4714 = vpack.c.b16 %v4684, %v4683
      %v4715 = vpack.c.b16 %v4686, %v4685
      %v4716 = vpack.c.b16 %v4688, %v4687
      %v4717 = vpack.c.b16 %v4690, %v4689
      %v4718 = vpack.c.b16 %v4692, %v4691
      %v4719 = vpack.c.b16 %v4694, %v4693
      %v4720 = vpack.c.b16 %v4696, %v4695
      %v4721 = vpack.c.b16 %v4698, %v4697
      %v4722 = vpack.c.b16 %v4700, %v4699
      %v4723 = vpack.c.b16 %v4702, %v4701
      %v4724 = vpack.c.b16 %v4704, %v4703
      %v4725 = vpack.c.b16 %v4706, %v4705
      %v4726 = vpack.c.b16 %v4708, %v4707
      %v4727 = vpack.c.b16 %v4710, %v4709
      %v4728 = vpack.c.b16 %v4712, %v4711
      %v4737 = vunpack.c.l.b16 %v4657
      %v4738 = vunpack.c.l.b16 %v4658
      %v4739 = vunpack.c.l.b16 %v4659
      %v4740 = vunpack.c.l.b16 %v4660
      %v4741 = vunpack.c.l.b16 %v4661
      %v4742 = vunpack.c.l.b16 %v4662
      %v4743 = vunpack.c.l.b16 %v4663
      %v4744 = vunpack.c.l.b16 %v4664
      %v4745 = vpack.c.b16 %v4738, %v4737
      %v4746 = vpack.c.b16 %v4740, %v4739
      %v4747 = vpack.c.b16 %v4742, %v4741
      %v4748 = vpack.c.b16 %v4744, %v4743
      %v4754 = vsel %vm1631, %v4713, 0
      %v4757 = vsel %vm1631, %v4714, 0
      %v4760 = vsel %vm1631, %v4715, 0
      %v4763 = vsel %vm1631, %v4716, 0
      %v4766 = vsel %vm1631, %v4717, 0
      %v4769 = vsel %vm1631, %v4718, 0
      %v4772 = vsel %vm1631, %v4719, 0
      %v4775 = vsel %vm1631, %v4720, 0
      %v4778 = vsel %vm1631, %v4721, 0
      %v4781 = vsel %vm1631, %v4722, 0
      %v4784 = vsel %vm1631, %v4723, 0
      %v4787 = vsel %vm1631, %v4724, 0
      %v4790 = vsel %vm1631, %v4725, 0
      %v4793 = vsel %vm1631, %v4726, 0
      %v4796 = vsel %vm1631, %v4727, 0
      %v4799 = vsel %vm1631, %v4728, 0
      %4801 = vmatprep.subr.bf16.mxu0 0
      %4802 = vmatpush1.bf16.msra.mxu0 %v4745
      %4803 = vmatprep.subr.bf16.mxu0 0
      %4804 = vmatpush1.bf16.msra.mxu0 %v4746
      %4805 = vmatprep.subr.bf16.mxu0 0
      %4806 = vmatpush1.bf16.msra.mxu0 %v4747
      %4807 = vmatprep.subr.bf16.mxu0 0
      %4808 = vmatpush1.bf16.msra.mxu0 %v4748
      %4809 = vmatprep.subr.bf16.mxu0 0
      %4810 = vmatpush1.bf16.msra.mxu0 0
      %4811 = vmatprep.subr.bf16.mxu0 0
      %4812 = vmatpush1.bf16.msra.mxu0 0
      %4813 = vmatprep.subr.bf16.mxu0 0
      %4814 = vmatpush1.bf16.msra.mxu0 0
      %4815 = vmatprep.subr.bf16.mxu0 0
      %4816 = vmatpush1.bf16.msra.mxu0 0
      %4817 = vmatprep.subr.bf16.mxu0 0
      %4818 = vmatpush1.bf16.msra.mxu0 0
      %4819 = vmatprep.subr.bf16.mxu0 0
      %4820 = vmatpush1.bf16.msra.mxu0 0
      %4821 = vmatprep.subr.bf16.mxu0 0
      %4822 = vmatpush1.bf16.msra.mxu0 0
      %4823 = vmatprep.subr.bf16.mxu0 0
      %4824 = vmatpush1.bf16.msra.mxu0 0
      %4825 = vmatprep.subr.bf16.mxu0 0
      %4826 = vmatpush1.bf16.msra.mxu0 0
      %4827 = vmatprep.subr.bf16.mxu0 0
      %4828 = vmatpush1.bf16.msra.mxu0 0
      %4829 = vmatprep.subr.bf16.mxu0 0
      %4830 = vmatpush1.bf16.msra.mxu0 0
      %4831 = vmatprep.subr.bf16.mxu0 0
      %4832 = vmatpush1.bf16.msra.mxu0 0
      %4833 = vmatprep.mubr.bf16.mxu0 0
      %4834 = vmatmul.mubr.bf16.gmra.mrb[0].mxu0 %v4754
      %v4835 = vpop.f32.mrb[0].mxu0
      %v4836 = vadd.f32 0.0, %v4835
      %v4837 = vpop.f32.mrb[0].mxu0
      %v4838 = vpop.f32.mrb[0].mxu0
      %v4839 = vadd.f32 0.0, %v4838
      %v4840 = vpop.f32.mrb[0].mxu0
      %4841 = vmatprep.mubr.bf16.mxu0 0
      %4842 = vmatmul.mubr.bf16.gmra.mrb[0].mxu0 %v4757
      %v4843 = vpop.f32.mrb[0].mxu0
      %v4844 = vadd.f32 0.0, %v4843
      %v4845 = vpop.f32.mrb[0].mxu0
      %v4846 = vpop.f32.mrb[0].mxu0
      %v4847 = vadd.f32 0.0, %v4846
      %v4848 = vpop.f32.mrb[0].mxu0
      %4849 = vmatprep.mubr.bf16.mxu0 0
      %4850 = vmatmul.mubr.bf16.gmra.mrb[0].mxu0 %v4760
      %v4851 = vpop.f32.mrb[0].mxu0
      %v4852 = vadd.f32 0.0, %v4851
      %v4853 = vpop.f32.mrb[0].mxu0
      %v4854 = vpop.f32.mrb[0].mxu0
      %v4855 = vadd.f32 0.0, %v4854
      %v4856 = vpop.f32.mrb[0].mxu0
      %4857 = vmatprep.mubr.bf16.mxu0 0
      %4858 = vmatmul.mubr.bf16.gmra.mrb[0].mxu0 %v4763
      %v4859 = vpop.f32.mrb[0].mxu0
      %v4860 = vadd.f32 0.0, %v4859
      %v4861 = vpop.f32.mrb[0].mxu0
      %v4862 = vpop.f32.mrb[0].mxu0
      %v4863 = vadd.f32 0.0, %v4862
      %v4864 = vpop.f32.mrb[0].mxu0
      %4865 = vmatprep.mubr.bf16.mxu0 0
      %4866 = vmatmul.mubr.bf16.gmra.mrb[0].mxu0 %v4766
      %v4867 = vpop.f32.mrb[0].mxu0
      %v4868 = vadd.f32 0.0, %v4867
      %v4869 = vpop.f32.mrb[0].mxu0
      %v4870 = vpop.f32.mrb[0].mxu0
      %v4871 = vadd.f32 0.0, %v4870
      %v4872 = vpop.f32.mrb[0].mxu0
      %4873 = vmatprep.mubr.bf16.mxu0 0
      %4874 = vmatmul.mubr.bf16.gmra.mrb[0].mxu0 %v4769
      %v4875 = vpop.f32.mrb[0].mxu0
      %v4876 = vadd.f32 0.0, %v4875
      %v4877 = vpop.f32.mrb[0].mxu0
      %v4878 = vpop.f32.mrb[0].mxu0
      %v4879 = vadd.f32 0.0, %v4878
      %v4880 = vpop.f32.mrb[0].mxu0
      %4881 = vmatprep.mubr.bf16.mxu0 0
      %4882 = vmatmul.mubr.bf16.gmra.mrb[0].mxu0 %v4772
      %v4883 = vpop.f32.mrb[0].mxu0
      %v4884 = vadd.f32 0.0, %v4883
      %v4885 = vpop.f32.mrb[0].mxu0
      %v4886 = vpop.f32.mrb[0].mxu0
      %v4887 = vadd.f32 0.0, %v4886
      %v4888 = vpop.f32.mrb[0].mxu0
      %4889 = vmatprep.mubr.bf16.mxu0 0
      %4890 = vmatmul.mubr.bf16.gmra.mrb[0].mxu0 %v4775
      %v4891 = vpop.f32.mrb[0].mxu0
      %v4892 = vadd.f32 0.0, %v4891
      %v4893 = vpop.f32.mrb[0].mxu0
      %v4894 = vpop.f32.mrb[0].mxu0
      %v4895 = vadd.f32 0.0, %v4894
      %v4896 = vpop.f32.mrb[0].mxu0
      %4897 = vmatprep.mubr.bf16.mxu0 0
      %4898 = vmatmul.mubr.bf16.gmra.mrb[0].mxu0 %v4778
      %v4899 = vpop.f32.mrb[0].mxu0
      %v4900 = vadd.f32 0.0, %v4899
      %v4901 = vpop.f32.mrb[0].mxu0
      %v4902 = vpop.f32.mrb[0].mxu0
      %v4903 = vadd.f32 0.0, %v4902
      %v4904 = vpop.f32.mrb[0].mxu0
      %4905 = vmatprep.mubr.bf16.mxu0 0
      %4906 = vmatmul.mubr.bf16.gmra.mrb[0].mxu0 %v4781
      %v4907 = vpop.f32.mrb[0].mxu0
      %v4908 = vadd.f32 0.0, %v4907
      %v4909 = vpop.f32.mrb[0].mxu0
      %v4910 = vpop.f32.mrb[0].mxu0
      %v4911 = vadd.f32 0.0, %v4910
      %v4912 = vpop.f32.mrb[0].mxu0
      %4913 = vmatprep.mubr.bf16.mxu0 0
      %4914 = vmatmul.mubr.bf16.gmra.mrb[0].mxu0 %v4784
      %v4915 = vpop.f32.mrb[0].mxu0
      %v4916 = vadd.f32 0.0, %v4915
      %v4917 = vpop.f32.mrb[0].mxu0
      %v4918 = vpop.f32.mrb[0].mxu0
      %v4919 = vadd.f32 0.0, %v4918
      %v4920 = vpop.f32.mrb[0].mxu0
      %4921 = vmatprep.mubr.bf16.mxu0 0
      %4922 = vmatmul.mubr.bf16.gmra.mrb[0].mxu0 %v4787
      %v4923 = vpop.f32.mrb[0].mxu0
      %v4924 = vadd.f32 0.0, %v4923
      %v4925 = vpop.f32.mrb[0].mxu0
      %v4926 = vpop.f32.mrb[0].mxu0
      %v4927 = vadd.f32 0.0, %v4926
      %v4928 = vpop.f32.mrb[0].mxu0
      %4929 = vmatprep.mubr.bf16.mxu0 0
      %4930 = vmatmul.mubr.bf16.gmra.mrb[0].mxu0 %v4790
      %v4931 = vpop.f32.mrb[0].mxu0
      %v4932 = vadd.f32 0.0, %v4931
      %v4933 = vpop.f32.mrb[0].mxu0
      %v4934 = vpop.f32.mrb[0].mxu0
      %v4935 = vadd.f32 0.0, %v4934
      %v4936 = vpop.f32.mrb[0].mxu0
      %4937 = vmatprep.mubr.bf16.mxu0 0
      %4938 = vmatmul.mubr.bf16.gmra.mrb[0].mxu0 %v4793
      %v4939 = vpop.f32.mrb[0].mxu0
      %v4940 = vadd.f32 0.0, %v4939
      %v4941 = vpop.f32.mrb[0].mxu0
      %v4942 = vpop.f32.mrb[0].mxu0
      %v4943 = vadd.f32 0.0, %v4942
      %v4944 = vpop.f32.mrb[0].mxu0
      %4945 = vmatprep.mubr.bf16.mxu0 0
      %4946 = vmatmul.mubr.bf16.gmra.mrb[0].mxu0 %v4796
      %v4947 = vpop.f32.mrb[0].mxu0
      %v4948 = vadd.f32 0.0, %v4947
      %v4949 = vpop.f32.mrb[0].mxu0
      %v4950 = vpop.f32.mrb[0].mxu0
      %v4951 = vadd.f32 0.0, %v4950
      %v4952 = vpop.f32.mrb[0].mxu0
      %4953 = vmatprep.mubr.bf16.mxu0 0
      %4954 = vmatmul.mubr.bf16.gmra.mrb[0].mxu0 %v4799
      %v4955 = vpop.f32.mrb[0].mxu0
      %v4956 = vadd.f32 0.0, %v4955
      %v4957 = vpop.f32.mrb[0].mxu0
      %v4958 = vpop.f32.mrb[0].mxu0
      %v4959 = vadd.f32 0.0, %v4958
      %v4960 = vpop.f32.mrb[0].mxu0
      %4961 = vdwg.mxu0
      %v4962 = vadd.f32 %v4015, %v4836
      %v4963 = vadd.f32 %v4016, %v4839
      %v4964 = vadd.f32 %v4017, %v4844
      %v4965 = vadd.f32 %v4018, %v4847
      %v4966 = vadd.f32 %v4019, %v4852
      %v4967 = vadd.f32 %v4020, %v4855
      %v4968 = vadd.f32 %v4021, %v4860
      %v4969 = vadd.f32 %v4022, %v4863
      %v4970 = vadd.f32 %v4023, %v4868
      %v4971 = vadd.f32 %v4024, %v4871
      %v4972 = vadd.f32 %v4025, %v4876
      %v4973 = vadd.f32 %v4026, %v4879
      %v4974 = vadd.f32 %v4027, %v4884
      %v4975 = vadd.f32 %v4028, %v4887
      %v4976 = vadd.f32 %v4029, %v4892
      %v4977 = vadd.f32 %v4030, %v4895
      %v4978 = vadd.f32 %v4031, %v4900
      %v4979 = vadd.f32 %v4032, %v4903
      %v4980 = vadd.f32 %v4033, %v4908
      %v4981 = vadd.f32 %v4034, %v4911
      %v4982 = vadd.f32 %v4035, %v4916
      %v4983 = vadd.f32 %v4036, %v4919
      %v4984 = vadd.f32 %v4037, %v4924
      %v4985 = vadd.f32 %v4038, %v4927
      %v4986 = vadd.f32 %v4039, %v4932
      %v4987 = vadd.f32 %v4040, %v4935
      %v4988 = vadd.f32 %v4041, %v4940
      %v4989 = vadd.f32 %v4042, %v4943
      %v4990 = vadd.f32 %v4043, %v4948
      %v4991 = vadd.f32 %v4044, %v4951
      %v4992 = vadd.f32 %v4045, %v4956
      %v4993 = vadd.f32 %v4046, %v4959
      %v4994 = vld [vmem:[%s4656 + $0x20] sm:$0xf]
      %v4995 = vld [vmem:[%s4656 + $0x24] sm:$0xf]
      %v4996 = vld [vmem:[%s4656 + $0x28] sm:$0xf]
      %v4997 = vld [vmem:[%s4656 + $0x2c] sm:$0xf]
      %v4998 = vld [vmem:[%s4656 + $0x30] sm:$0xf]
      %v4999 = vld [vmem:[%s4656 + $0x34] sm:$0xf]
      %v5000 = vld [vmem:[%s4656 + $0x38] sm:$0xf]
      %v5001 = vld [vmem:[%s4656 + $0x3c] sm:$0xf]
      %v5002 = vunpack.c.l.b16 %v4109
      %v5003 = vunpack.c.l.b16 %v4119
      %v5004 = vunpack.c.l.b16 %v4133
      %v5005 = vunpack.c.l.b16 %v4143
      %v5006 = vunpack.c.l.b16 %v4157
      %v5007 = vunpack.c.l.b16 %v4167
      %v5008 = vunpack.c.l.b16 %v4181
      %v5009 = vunpack.c.l.b16 %v4191
      %v5010 = vunpack.c.l.b16 %v4205
      %v5011 = vunpack.c.l.b16 %v4215
      %v5012 = vunpack.c.l.b16 %v4229
      %v5013 = vunpack.c.l.b16 %v4239
      %v5014 = vunpack.c.l.b16 %v4253
      %v5015 = vunpack.c.l.b16 %v4263
      %v5016 = vunpack.c.l.b16 %v4277
      %v5017 = vunpack.c.l.b16 %v4287
      %v5018 = vunpack.c.l.b16 %v4301
      %v5019 = vunpack.c.l.b16 %v4311
      %v5020 = vunpack.c.l.b16 %v4325
      %v5021 = vunpack.c.l.b16 %v4335
      %v5022 = vunpack.c.l.b16 %v4349
      %v5023 = vunpack.c.l.b16 %v4359
      %v5024 = vunpack.c.l.b16 %v4373
      %v5025 = vunpack.c.l.b16 %v4383
      %v5026 = vunpack.c.l.b16 %v4397
      %v5027 = vunpack.c.l.b16 %v4407
      %v5028 = vunpack.c.l.b16 %v4421
      %v5029 = vunpack.c.l.b16 %v4431
      %v5030 = vunpack.c.l.b16 %v4445
      %v5031 = vunpack.c.l.b16 %v4455
      %v5032 = vunpack.c.l.b16 %v4469
      %v5033 = vunpack.c.l.b16 %v4479
      %v5034 = vpack.c.b16 %v5003, %v5002
      %v5035 = vpack.c.b16 %v5005, %v5004
      %v5036 = vpack.c.b16 %v5007, %v5006
      %v5037 = vpack.c.b16 %v5009, %v5008
      %v5038 = vpack.c.b16 %v5011, %v5010
      %v5039 = vpack.c.b16 %v5013, %v5012
      %v5040 = vpack.c.b16 %v5015, %v5014
      %v5041 = vpack.c.b16 %v5017, %v5016
      %v5042 = vpack.c.b16 %v5019, %v5018
      %v5043 = vpack.c.b16 %v5021, %v5020
      %v5044 = vpack.c.b16 %v5023, %v5022
      %v5045 = vpack.c.b16 %v5025, %v5024
      %v5046 = vpack.c.b16 %v5027, %v5026
      %v5047 = vpack.c.b16 %v5029, %v5028
      %v5048 = vpack.c.b16 %v5031, %v5030
      %v5049 = vpack.c.b16 %v5033, %v5032
      %v5058 = vunpack.c.l.b16 %v4994
      %v5059 = vunpack.c.l.b16 %v4995
      %v5060 = vunpack.c.l.b16 %v4996
      %v5061 = vunpack.c.l.b16 %v4997
      %v5062 = vunpack.c.l.b16 %v4998
      %v5063 = vunpack.c.l.b16 %v4999
      %v5064 = vunpack.c.l.b16 %v5000
      %v5065 = vunpack.c.l.b16 %v5001
      %v5066 = vpack.c.b16 %v5059, %v5058
      %v5067 = vpack.c.b16 %v5061, %v5060
      %v5068 = vpack.c.b16 %v5063, %v5062
      %v5069 = vpack.c.b16 %v5065, %v5064
      %v5075 = vsel %vm1631, %v5034, 0
      %v5078 = vsel %vm1631, %v5035, 0
      %v5081 = vsel %vm1631, %v5036, 0
      %v5084 = vsel %vm1631, %v5037, 0
      %v5087 = vsel %vm1631, %v5038, 0
      %v5090 = vsel %vm1631, %v5039, 0
      %v5093 = vsel %vm1631, %v5040, 0
      %v5096 = vsel %vm1631, %v5041, 0
      %v5099 = vsel %vm1631, %v5042, 0
      %v5102 = vsel %vm1631, %v5043, 0
      %v5105 = vsel %vm1631, %v5044, 0
      %v5108 = vsel %vm1631, %v5045, 0
      %v5111 = vsel %vm1631, %v5046, 0
      %v5114 = vsel %vm1631, %v5047, 0
      %v5117 = vsel %vm1631, %v5048, 0
      %v5120 = vsel %vm1631, %v5049, 0
      %5122 = vmatprep.subr.bf16.mxu0 0
      %5123 = vmatpush1.bf16.msra.mxu0 %v5066
      %5124 = vmatprep.subr.bf16.mxu0 0
      %5125 = vmatpush1.bf16.msra.mxu0 %v5067
      %5126 = vmatprep.subr.bf16.mxu0 0
      %5127 = vmatpush1.bf16.msra.mxu0 %v5068
      %5128 = vmatprep.subr.bf16.mxu0 0
      %5129 = vmatpush1.bf16.msra.mxu0 %v5069
      %5130 = vmatprep.subr.bf16.mxu0 0
      %5131 = vmatpush1.bf16.msra.mxu0 0
      %5132 = vmatprep.subr.bf16.mxu0 0
      %5133 = vmatpush1.bf16.msra.mxu0 0
      %5134 = vmatprep.subr.bf16.mxu0 0
      %5135 = vmatpush1.bf16.msra.mxu0 0
      %5136 = vmatprep.subr.bf16.mxu0 0
      %5137 = vmatpush1.bf16.msra.mxu0 0
      %5138 = vmatprep.subr.bf16.mxu0 0
      %5139 = vmatpush1.bf16.msra.mxu0 0
      %5140 = vmatprep.subr.bf16.mxu0 0
      %5141 = vmatpush1.bf16.msra.mxu0 0
      %5142 = vmatprep.subr.bf16.mxu0 0
      %5143 = vmatpush1.bf16.msra.mxu0 0
      %5144 = vmatprep.subr.bf16.mxu0 0
      %5145 = vmatpush1.bf16.msra.mxu0 0
      %5146 = vmatprep.subr.bf16.mxu0 0
      %5147 = vmatpush1.bf16.msra.mxu0 0
      %5148 = vmatprep.subr.bf16.mxu0 0
      %5149 = vmatpush1.bf16.msra.mxu0 0
      %5150 = vmatprep.subr.bf16.mxu0 0
      %5151 = vmatpush1.bf16.msra.mxu0 0
      %5152 = vmatprep.subr.bf16.mxu0 0
      %5153 = vmatpush1.bf16.msra.mxu0 0
      %5154 = vmatprep.mubr.bf16.mxu0 0
      %5155 = vmatmul.mubr.bf16.gmra.mrb[0].mxu0 %v5075
      %v5156 = vpop.f32.mrb[0].mxu0
      %v5157 = vadd.f32 0.0, %v5156
      %v5158 = vpop.f32.mrb[0].mxu0
      %v5159 = vpop.f32.mrb[0].mxu0
      %v5160 = vadd.f32 0.0, %v5159
      %v5161 = vpop.f32.mrb[0].mxu0
      %5162 = vmatprep.mubr.bf16.mxu0 0
      %5163 = vmatmul.mubr.bf16.gmra.mrb[0].mxu0 %v5078
      %v5164 = vpop.f32.mrb[0].mxu0
      %v5165 = vadd.f32 0.0, %v5164
      %v5166 = vpop.f32.mrb[0].mxu0
      %v5167 = vpop.f32.mrb[0].mxu0
      %v5168 = vadd.f32 0.0, %v5167
      %v5169 = vpop.f32.mrb[0].mxu0
      %5170 = vmatprep.mubr.bf16.mxu0 0
      %5171 = vmatmul.mubr.bf16.gmra.mrb[0].mxu0 %v5081
      %v5172 = vpop.f32.mrb[0].mxu0
      %v5173 = vadd.f32 0.0, %v5172
      %v5174 = vpop.f32.mrb[0].mxu0
      %v5175 = vpop.f32.mrb[0].mxu0
      %v5176 = vadd.f32 0.0, %v5175
      %v5177 = vpop.f32.mrb[0].mxu0
      %5178 = vmatprep.mubr.bf16.mxu0 0
      %5179 = vmatmul.mubr.bf16.gmra.mrb[0].mxu0 %v5084
      %v5180 = vpop.f32.mrb[0].mxu0
      %v5181 = vadd.f32 0.0, %v5180
      %v5182 = vpop.f32.mrb[0].mxu0
      %v5183 = vpop.f32.mrb[0].mxu0
      %v5184 = vadd.f32 0.0, %v5183
      %v5185 = vpop.f32.mrb[0].mxu0
      %5186 = vmatprep.mubr.bf16.mxu0 0
      %5187 = vmatmul.mubr.bf16.gmra.mrb[0].mxu0 %v5087
      %v5188 = vpop.f32.mrb[0].mxu0
      %v5189 = vadd.f32 0.0, %v5188
      %v5190 = vpop.f32.mrb[0].mxu0
      %v5191 = vpop.f32.mrb[0].mxu0
      %v5192 = vadd.f32 0.0, %v5191
      %v5193 = vpop.f32.mrb[0].mxu0
      %5194 = vmatprep.mubr.bf16.mxu0 0
      %5195 = vmatmul.mubr.bf16.gmra.mrb[0].mxu0 %v5090
      %v5196 = vpop.f32.mrb[0].mxu0
      %v5197 = vadd.f32 0.0, %v5196
      %v5198 = vpop.f32.mrb[0].mxu0
      %v5199 = vpop.f32.mrb[0].mxu0
      %v5200 = vadd.f32 0.0, %v5199
      %v5201 = vpop.f32.mrb[0].mxu0
      %5202 = vmatprep.mubr.bf16.mxu0 0
      %5203 = vmatmul.mubr.bf16.gmra.mrb[0].mxu0 %v5093
      %v5204 = vpop.f32.mrb[0].mxu0
      %v5205 = vadd.f32 0.0, %v5204
      %v5206 = vpop.f32.mrb[0].mxu0
      %v5207 = vpop.f32.mrb[0].mxu0
      %v5208 = vadd.f32 0.0, %v5207
      %v5209 = vpop.f32.mrb[0].mxu0
      %5210 = vmatprep.mubr.bf16.mxu0 0
      %5211 = vmatmul.mubr.bf16.gmra.mrb[0].mxu0 %v5096
      %v5212 = vpop.f32.mrb[0].mxu0
      %v5213 = vadd.f32 0.0, %v5212
      %v5214 = vpop.f32.mrb[0].mxu0
      %v5215 = vpop.f32.mrb[0].mxu0
      %v5216 = vadd.f32 0.0, %v5215
      %v5217 = vpop.f32.mrb[0].mxu0
      %5218 = vmatprep.mubr.bf16.mxu0 0
      %5219 = vmatmul.mubr.bf16.gmra.mrb[0].mxu0 %v5099
      %v5220 = vpop.f32.mrb[0].mxu0
      %v5221 = vadd.f32 0.0, %v5220
      %v5222 = vpop.f32.mrb[0].mxu0
      %v5223 = vpop.f32.mrb[0].mxu0
      %v5224 = vadd.f32 0.0, %v5223
      %v5225 = vpop.f32.mrb[0].mxu0
      %5226 = vmatprep.mubr.bf16.mxu0 0
      %5227 = vmatmul.mubr.bf16.gmra.mrb[0].mxu0 %v5102
      %v5228 = vpop.f32.mrb[0].mxu0
      %v5229 = vadd.f32 0.0, %v5228
      %v5230 = vpop.f32.mrb[0].mxu0
      %v5231 = vpop.f32.mrb[0].mxu0
      %v5232 = vadd.f32 0.0, %v5231
      %v5233 = vpop.f32.mrb[0].mxu0
      %5234 = vmatprep.mubr.bf16.mxu0 0
      %5235 = vmatmul.mubr.bf16.gmra.mrb[0].mxu0 %v5105
      %v5236 = vpop.f32.mrb[0].mxu0
      %v5237 = vadd.f32 0.0, %v5236
      %v5238 = vpop.f32.mrb[0].mxu0
      %v5239 = vpop.f32.mrb[0].mxu0
      %v5240 = vadd.f32 0.0, %v5239
      %v5241 = vpop.f32.mrb[0].mxu0
      %5242 = vmatprep.mubr.bf16.mxu0 0
      %5243 = vmatmul.mubr.bf16.gmra.mrb[0].mxu0 %v5108
      %v5244 = vpop.f32.mrb[0].mxu0
      %v5245 = vadd.f32 0.0, %v5244
      %v5246 = vpop.f32.mrb[0].mxu0
      %v5247 = vpop.f32.mrb[0].mxu0
      %v5248 = vadd.f32 0.0, %v5247
      %v5249 = vpop.f32.mrb[0].mxu0
      %5250 = vmatprep.mubr.bf16.mxu0 0
      %5251 = vmatmul.mubr.bf16.gmra.mrb[0].mxu0 %v5111
      %v5252 = vpop.f32.mrb[0].mxu0
      %v5253 = vadd.f32 0.0, %v5252
      %v5254 = vpop.f32.mrb[0].mxu0
      %v5255 = vpop.f32.mrb[0].mxu0
      %v5256 = vadd.f32 0.0, %v5255
      %v5257 = vpop.f32.mrb[0].mxu0
      %5258 = vmatprep.mubr.bf16.mxu0 0
      %5259 = vmatmul.mubr.bf16.gmra.mrb[0].mxu0 %v5114
      %v5260 = vpop.f32.mrb[0].mxu0
      %v5261 = vadd.f32 0.0, %v5260
      %v5262 = vpop.f32.mrb[0].mxu0
      %v5263 = vpop.f32.mrb[0].mxu0
      %v5264 = vadd.f32 0.0, %v5263
      %v5265 = vpop.f32.mrb[0].mxu0
      %5266 = vmatprep.mubr.bf16.mxu0 0
      %5267 = vmatmul.mubr.bf16.gmra.mrb[0].mxu0 %v5117
      %v5268 = vpop.f32.mrb[0].mxu0
      %v5269 = vadd.f32 0.0, %v5268
      %v5270 = vpop.f32.mrb[0].mxu0
      %v5271 = vpop.f32.mrb[0].mxu0
      %v5272 = vadd.f32 0.0, %v5271
      %v5273 = vpop.f32.mrb[0].mxu0
      %5274 = vmatprep.mubr.bf16.mxu0 0
      %5275 = vmatmul.mubr.bf16.gmra.mrb[0].mxu0 %v5120
      %v5276 = vpop.f32.mrb[0].mxu0
      %v5277 = vadd.f32 0.0, %v5276
      %v5278 = vpop.f32.mrb[0].mxu0
      %v5279 = vpop.f32.mrb[0].mxu0
      %v5280 = vadd.f32 0.0, %v5279
      %v5281 = vpop.f32.mrb[0].mxu0
      %5282 = vdwg.mxu0
      %v5283 = vadd.f32 %v4962, %v5157
      %v5284 = vadd.f32 %v4963, %v5160
      %v5285 = vadd.f32 %v4964, %v5165
      %v5286 = vadd.f32 %v4965, %v5168
      %v5287 = vadd.f32 %v4966, %v5173
      %v5288 = vadd.f32 %v4967, %v5176
      %v5289 = vadd.f32 %v4968, %v5181
      %v5290 = vadd.f32 %v4969, %v5184
      %v5291 = vadd.f32 %v4970, %v5189
      %v5292 = vadd.f32 %v4971, %v5192
      %v5293 = vadd.f32 %v4972, %v5197
      %v5294 = vadd.f32 %v4973, %v5200
      %v5295 = vadd.f32 %v4974, %v5205
      %v5296 = vadd.f32 %v4975, %v5208
      %v5297 = vadd.f32 %v4976, %v5213
      %v5298 = vadd.f32 %v4977, %v5216
      %v5299 = vadd.f32 %v4978, %v5221
      %v5300 = vadd.f32 %v4979, %v5224
      %v5301 = vadd.f32 %v4980, %v5229
      %v5302 = vadd.f32 %v4981, %v5232
      %v5303 = vadd.f32 %v4982, %v5237
      %v5304 = vadd.f32 %v4983, %v5240
      %v5305 = vadd.f32 %v4984, %v5245
      %v5306 = vadd.f32 %v4985, %v5248
      %v5307 = vadd.f32 %v4986, %v5253
      %v5308 = vadd.f32 %v4987, %v5256
      %v5309 = vadd.f32 %v4988, %v5261
      %v5310 = vadd.f32 %v4989, %v5264
      %v5311 = vadd.f32 %v4990, %v5269
      %v5312 = vadd.f32 %v4991, %v5272
      %v5313 = vadd.f32 %v4992, %v5277
      %v5314 = vadd.f32 %v4993, %v5280
      %v5315 = vld [vmem:[%s4656 + $0x40] sm:$0xf]
      %v5316 = vld [vmem:[%s4656 + $0x44] sm:$0xf]
      %v5317 = vld [vmem:[%s4656 + $0x48] sm:$0xf]
      %v5318 = vld [vmem:[%s4656 + $0x4c] sm:$0xf]
      %v5319 = vld [vmem:[%s4656 + $0x50] sm:$0xf]
      %v5320 = vld [vmem:[%s4656 + $0x54] sm:$0xf]
      %v5321 = vld [vmem:[%s4656 + $0x58] sm:$0xf]
      %v5322 = vld [vmem:[%s4656 + $0x5c] sm:$0xf]
      %v5323 = vunpack.c.l.b16 %v4547
      %v5324 = vunpack.c.l.b16 %v4550
      %v5325 = vunpack.c.l.b16 %v4554
      %v5326 = vunpack.c.l.b16 %v4557
      %v5327 = vunpack.c.l.b16 %v4561
      %v5328 = vunpack.c.l.b16 %v4564
      %v5329 = vunpack.c.l.b16 %v4568
      %v5330 = vunpack.c.l.b16 %v4571
      %v5331 = vunpack.c.l.b16 %v4575
      %v5332 = vunpack.c.l.b16 %v4578
      %v5333 = vunpack.c.l.b16 %v4582
      %v5334 = vunpack.c.l.b16 %v4585
      %v5335 = vunpack.c.l.b16 %v4589
      %v5336 = vunpack.c.l.b16 %v4592
      %v5337 = vunpack.c.l.b16 %v4596
      %v5338 = vunpack.c.l.b16 %v4599
      %v5339 = vunpack.c.l.b16 %v4603
      %v5340 = vunpack.c.l.b16 %v4606
      %v5341 = vunpack.c.l.b16 %v4610
      %v5342 = vunpack.c.l.b16 %v4613
      %v5343 = vunpack.c.l.b16 %v4617
      %v5344 = vunpack.c.l.b16 %v4620
      %v5345 = vunpack.c.l.b16 %v4624
      %v5346 = vunpack.c.l.b16 %v4627
      %v5347 = vunpack.c.l.b16 %v4631
      %v5348 = vunpack.c.l.b16 %v4634
      %v5349 = vunpack.c.l.b16 %v4638
      %v5350 = vunpack.c.l.b16 %v4641
      %v5351 = vunpack.c.l.b16 %v4645
      %v5352 = vunpack.c.l.b16 %v4648
      %v5353 = vunpack.c.l.b16 %v4652
      %v5354 = vunpack.c.l.b16 %v4655
      %v5355 = vpack.c.b16 %v5324, %v5323
      %v5356 = vpack.c.b16 %v5326, %v5325
      %v5357 = vpack.c.b16 %v5328, %v5327
      %v5358 = vpack.c.b16 %v5330, %v5329
      %v5359 = vpack.c.b16 %v5332, %v5331
      %v5360 = vpack.c.b16 %v5334, %v5333
      %v5361 = vpack.c.b16 %v5336, %v5335
      %v5362 = vpack.c.b16 %v5338, %v5337
      %v5363 = vpack.c.b16 %v5340, %v5339
      %v5364 = vpack.c.b16 %v5342, %v5341
      %v5365 = vpack.c.b16 %v5344, %v5343
      %v5366 = vpack.c.b16 %v5346, %v5345
      %v5367 = vpack.c.b16 %v5348, %v5347
      %v5368 = vpack.c.b16 %v5350, %v5349
      %v5369 = vpack.c.b16 %v5352, %v5351
      %v5370 = vpack.c.b16 %v5354, %v5353
      %v5379 = vunpack.c.l.b16 %v5315
      %v5380 = vunpack.c.l.b16 %v5316
      %v5381 = vunpack.c.l.b16 %v5317
      %v5382 = vunpack.c.l.b16 %v5318
      %v5383 = vunpack.c.l.b16 %v5319
      %v5384 = vunpack.c.l.b16 %v5320
      %v5385 = vunpack.c.l.b16 %v5321
      %v5386 = vunpack.c.l.b16 %v5322
      %v5387 = vpack.c.b16 %v5380, %v5379
      %v5388 = vpack.c.b16 %v5382, %v5381
      %v5389 = vpack.c.b16 %v5384, %v5383
      %v5390 = vpack.c.b16 %v5386, %v5385
      %v5396 = vsel %vm1631, %v5355, 0
      %v5399 = vsel %vm1631, %v5356, 0
      %v5402 = vsel %vm1631, %v5357, 0
      %v5405 = vsel %vm1631, %v5358, 0
      %v5408 = vsel %vm1631, %v5359, 0
      %v5411 = vsel %vm1631, %v5360, 0
      %v5414 = vsel %vm1631, %v5361, 0
      %v5417 = vsel %vm1631, %v5362, 0
      %v5420 = vsel %vm1631, %v5363, 0
      %v5423 = vsel %vm1631, %v5364, 0
      %v5426 = vsel %vm1631, %v5365, 0
      %v5429 = vsel %vm1631, %v5366, 0
      %v5432 = vsel %vm1631, %v5367, 0
      %v5435 = vsel %vm1631, %v5368, 0
      %v5438 = vsel %vm1631, %v5369, 0
      %v5441 = vsel %vm1631, %v5370, 0
      %5443 = vmatprep.subr.bf16.mxu0 0
      %5444 = vmatpush1.bf16.msra.mxu0 %v5387
      %5445 = vmatprep.subr.bf16.mxu0 0
      %5446 = vmatpush1.bf16.msra.mxu0 %v5388
      %5447 = vmatprep.subr.bf16.mxu0 0
      %5448 = vmatpush1.bf16.msra.mxu0 %v5389
      %5449 = vmatprep.subr.bf16.mxu0 0
      %5450 = vmatpush1.bf16.msra.mxu0 %v5390
      %5451 = vmatprep.subr.bf16.mxu0 0
      %5452 = vmatpush1.bf16.msra.mxu0 0
      %5453 = vmatprep.subr.bf16.mxu0 0
      %5454 = vmatpush1.bf16.msra.mxu0 0
      %5455 = vmatprep.subr.bf16.mxu0 0
      %5456 = vmatpush1.bf16.msra.mxu0 0
      %5457 = vmatprep.subr.bf16.mxu0 0
      %5458 = vmatpush1.bf16.msra.mxu0 0
      %5459 = vmatprep.subr.bf16.mxu0 0
      %5460 = vmatpush1.bf16.msra.mxu0 0
      %5461 = vmatprep.subr.bf16.mxu0 0
      %5462 = vmatpush1.bf16.msra.mxu0 0
      %5463 = vmatprep.subr.bf16.mxu0 0
      %5464 = vmatpush1.bf16.msra.mxu0 0
      %5465 = vmatprep.subr.bf16.mxu0 0
      %5466 = vmatpush1.bf16.msra.mxu0 0
      %5467 = vmatprep.subr.bf16.mxu0 0
      %5468 = vmatpush1.bf16.msra.mxu0 0
      %5469 = vmatprep.subr.bf16.mxu0 0
      %5470 = vmatpush1.bf16.msra.mxu0 0
      %5471 = vmatprep.subr.bf16.mxu0 0
      %5472 = vmatpush1.bf16.msra.mxu0 0
      %5473 = vmatprep.subr.bf16.mxu0 0
      %5474 = vmatpush1.bf16.msra.mxu0 0
      %5475 = vmatprep.mubr.bf16.mxu0 0
      %5476 = vmatmul.mubr.bf16.gmra.mrb[0].mxu0 %v5396
      %v5477 = vpop.f32.mrb[0].mxu0
      %v5478 = vadd.f32 0.0, %v5477
      %v5479 = vpop.f32.mrb[0].mxu0
      %v5480 = vpop.f32.mrb[0].mxu0
      %v5481 = vadd.f32 0.0, %v5480
      %v5482 = vpop.f32.mrb[0].mxu0
      %5483 = vmatprep.mubr.bf16.mxu0 0
      %5484 = vmatmul.mubr.bf16.gmra.mrb[0].mxu0 %v5399
      %v5485 = vpop.f32.mrb[0].mxu0
      %v5486 = vadd.f32 0.0, %v5485
      %v5487 = vpop.f32.mrb[0].mxu0
      %v5488 = vpop.f32.mrb[0].mxu0
      %v5489 = vadd.f32 0.0, %v5488
      %v5490 = vpop.f32.mrb[0].mxu0
      %5491 = vmatprep.mubr.bf16.mxu0 0
      %5492 = vmatmul.mubr.bf16.gmra.mrb[0].mxu0 %v5402
      %v5493 = vpop.f32.mrb[0].mxu0
      %v5494 = vadd.f32 0.0, %v5493
      %v5495 = vpop.f32.mrb[0].mxu0
      %v5496 = vpop.f32.mrb[0].mxu0
      %v5497 = vadd.f32 0.0, %v5496
      %v5498 = vpop.f32.mrb[0].mxu0
      %5499 = vmatprep.mubr.bf16.mxu0 0
      %5500 = vmatmul.mubr.bf16.gmra.mrb[0].mxu0 %v5405
      %v5501 = vpop.f32.mrb[0].mxu0
      %v5502 = vadd.f32 0.0, %v5501
      %v5503 = vpop.f32.mrb[0].mxu0
      %v5504 = vpop.f32.mrb[0].mxu0
      %v5505 = vadd.f32 0.0, %v5504
      %v5506 = vpop.f32.mrb[0].mxu0
      %5507 = vmatprep.mubr.bf16.mxu0 0
      %5508 = vmatmul.mubr.bf16.gmra.mrb[0].mxu0 %v5408
      %v5509 = vpop.f32.mrb[0].mxu0
      %v5510 = vadd.f32 0.0, %v5509
      %v5511 = vpop.f32.mrb[0].mxu0
      %v5512 = vpop.f32.mrb[0].mxu0
      %v5513 = vadd.f32 0.0, %v5512
      %v5514 = vpop.f32.mrb[0].mxu0
      %5515 = vmatprep.mubr.bf16.mxu0 0
      %5516 = vmatmul.mubr.bf16.gmra.mrb[0].mxu0 %v5411
      %v5517 = vpop.f32.mrb[0].mxu0
      %v5518 = vadd.f32 0.0, %v5517
      %v5519 = vpop.f32.mrb[0].mxu0
      %v5520 = vpop.f32.mrb[0].mxu0
      %v5521 = vadd.f32 0.0, %v5520
      %v5522 = vpop.f32.mrb[0].mxu0
      %5523 = vmatprep.mubr.bf16.mxu0 0
      %5524 = vmatmul.mubr.bf16.gmra.mrb[0].mxu0 %v5414
      %v5525 = vpop.f32.mrb[0].mxu0
      %v5526 = vadd.f32 0.0, %v5525
      %v5527 = vpop.f32.mrb[0].mxu0
      %v5528 = vpop.f32.mrb[0].mxu0
      %v5529 = vadd.f32 0.0, %v5528
      %v5530 = vpop.f32.mrb[0].mxu0
      %5531 = vmatprep.mubr.bf16.mxu0 0
      %5532 = vmatmul.mubr.bf16.gmra.mrb[0].mxu0 %v5417
      %v5533 = vpop.f32.mrb[0].mxu0
      %v5534 = vadd.f32 0.0, %v5533
      %v5535 = vpop.f32.mrb[0].mxu0
      %v5536 = vpop.f32.mrb[0].mxu0
      %v5537 = vadd.f32 0.0, %v5536
      %v5538 = vpop.f32.mrb[0].mxu0
      %5539 = vmatprep.mubr.bf16.mxu0 0
      %5540 = vmatmul.mubr.bf16.gmra.mrb[0].mxu0 %v5420
      %v5541 = vpop.f32.mrb[0].mxu0
      %v5542 = vadd.f32 0.0, %v5541
      %v5543 = vpop.f32.mrb[0].mxu0
      %v5544 = vpop.f32.mrb[0].mxu0
      %v5545 = vadd.f32 0.0, %v5544
      %v5546 = vpop.f32.mrb[0].mxu0
      %5547 = vmatprep.mubr.bf16.mxu0 0
      %5548 = vmatmul.mubr.bf16.gmra.mrb[0].mxu0 %v5423
      %v5549 = vpop.f32.mrb[0].mxu0
      %v5550 = vadd.f32 0.0, %v5549
      %v5551 = vpop.f32.mrb[0].mxu0
      %v5552 = vpop.f32.mrb[0].mxu0
      %v5553 = vadd.f32 0.0, %v5552
      %v5554 = vpop.f32.mrb[0].mxu0
      %5555 = vmatprep.mubr.bf16.mxu0 0
      %5556 = vmatmul.mubr.bf16.gmra.mrb[0].mxu0 %v5426
      %v5557 = vpop.f32.mrb[0].mxu0
      %v5558 = vadd.f32 0.0, %v5557
      %v5559 = vpop.f32.mrb[0].mxu0
      %v5560 = vpop.f32.mrb[0].mxu0
      %v5561 = vadd.f32 0.0, %v5560
      %v5562 = vpop.f32.mrb[0].mxu0
      %5563 = vmatprep.mubr.bf16.mxu0 0
      %5564 = vmatmul.mubr.bf16.gmra.mrb[0].mxu0 %v5429
      %v5565 = vpop.f32.mrb[0].mxu0
      %v5566 = vadd.f32 0.0, %v5565
      %v5567 = vpop.f32.mrb[0].mxu0
      %v5568 = vpop.f32.mrb[0].mxu0
      %v5569 = vadd.f32 0.0, %v5568
      %v5570 = vpop.f32.mrb[0].mxu0
      %5571 = vmatprep.mubr.bf16.mxu0 0
      %5572 = vmatmul.mubr.bf16.gmra.mrb[0].mxu0 %v5432
      %v5573 = vpop.f32.mrb[0].mxu0
      %v5574 = vadd.f32 0.0, %v5573
      %v5575 = vpop.f32.mrb[0].mxu0
      %v5576 = vpop.f32.mrb[0].mxu0
      %v5577 = vadd.f32 0.0, %v5576
      %v5578 = vpop.f32.mrb[0].mxu0
      %5579 = vmatprep.mubr.bf16.mxu0 0
      %5580 = vmatmul.mubr.bf16.gmra.mrb[0].mxu0 %v5435
      %v5581 = vpop.f32.mrb[0].mxu0
      %v5582 = vadd.f32 0.0, %v5581
      %v5583 = vpop.f32.mrb[0].mxu0
      %v5584 = vpop.f32.mrb[0].mxu0
      %v5585 = vadd.f32 0.0, %v5584
      %v5586 = vpop.f32.mrb[0].mxu0
      %5587 = vmatprep.mubr.bf16.mxu0 0
      %5588 = vmatmul.mubr.bf16.gmra.mrb[0].mxu0 %v5438
      %v5589 = vpop.f32.mrb[0].mxu0
      %v5590 = vadd.f32 0.0, %v5589
      %v5591 = vpop.f32.mrb[0].mxu0
      %v5592 = vpop.f32.mrb[0].mxu0
      %v5593 = vadd.f32 0.0, %v5592
      %v5594 = vpop.f32.mrb[0].mxu0
      %5595 = vmatprep.mubr.bf16.mxu0 0
      %5596 = vmatmul.mubr.bf16.gmra.mrb[0].mxu0 %v5441
      %v5597 = vpop.f32.mrb[0].mxu0
      %v5598 = vadd.f32 0.0, %v5597
      %v5599 = vpop.f32.mrb[0].mxu0
      %v5600 = vpop.f32.mrb[0].mxu0
      %v5601 = vadd.f32 0.0, %v5600
      %v5602 = vpop.f32.mrb[0].mxu0
      %5603 = vdwg.mxu0
      %v5604 = vadd.f32 %v5283, %v5478
      %v5605 = vadd.f32 %v5284, %v5481
      %v5606 = vadd.f32 %v5285, %v5486
      %v5607 = vadd.f32 %v5286, %v5489
      %v5608 = vadd.f32 %v5287, %v5494
      %v5609 = vadd.f32 %v5288, %v5497
      %v5610 = vadd.f32 %v5289, %v5502
      %v5611 = vadd.f32 %v5290, %v5505
      %v5612 = vadd.f32 %v5291, %v5510
      %v5613 = vadd.f32 %v5292, %v5513
      %v5614 = vadd.f32 %v5293, %v5518
      %v5615 = vadd.f32 %v5294, %v5521
      %v5616 = vadd.f32 %v5295, %v5526
      %v5617 = vadd.f32 %v5296, %v5529
      %v5618 = vadd.f32 %v5297, %v5534
      %v5619 = vadd.f32 %v5298, %v5537
      %v5620 = vadd.f32 %v5299, %v5542
      %v5621 = vadd.f32 %v5300, %v5545
      %v5622 = vadd.f32 %v5301, %v5550
      %v5623 = vadd.f32 %v5302, %v5553
      %v5624 = vadd.f32 %v5303, %v5558
      %v5625 = vadd.f32 %v5304, %v5561
      %v5626 = vadd.f32 %v5305, %v5566
      %v5627 = vadd.f32 %v5306, %v5569
      %v5628 = vadd.f32 %v5307, %v5574
      %v5629 = vadd.f32 %v5308, %v5577
      %v5630 = vadd.f32 %v5309, %v5582
      %v5631 = vadd.f32 %v5310, %v5585
      %v5632 = vadd.f32 %v5311, %v5590
      %v5633 = vadd.f32 %v5312, %v5593
      %v5634 = vadd.f32 %v5313, %v5598
      %v5635 = vadd.f32 %v5314, %v5601
      %vm5636 = vcmp.ge.f32.partialorder %v5604, 0.0
      %vm5637 = vcmp.ge.f32.partialorder %v5605, 0.0
      %vm5638 = vcmp.ge.f32.partialorder %v5606, 0.0
      %vm5639 = vcmp.ge.f32.partialorder %v5607, 0.0
      %vm5640 = vcmp.ge.f32.partialorder %v5608, 0.0
      %vm5641 = vcmp.ge.f32.partialorder %v5609, 0.0
      %vm5642 = vcmp.ge.f32.partialorder %v5610, 0.0
      %vm5643 = vcmp.ge.f32.partialorder %v5611, 0.0
      %vm5644 = vcmp.ge.f32.partialorder %v5612, 0.0
      %vm5645 = vcmp.ge.f32.partialorder %v5613, 0.0
      %vm5646 = vcmp.ge.f32.partialorder %v5614, 0.0
      %vm5647 = vcmp.ge.f32.partialorder %v5615, 0.0
      %vm5648 = vcmp.ge.f32.partialorder %v5616, 0.0
      %vm5649 = vcmp.ge.f32.partialorder %v5617, 0.0
      %vm5650 = vcmp.ge.f32.partialorder %v5618, 0.0
      %vm5651 = vcmp.ge.f32.partialorder %v5619, 0.0
      %vm5652 = vcmp.ge.f32.partialorder %v5620, 0.0
      %vm5653 = vcmp.ge.f32.partialorder %v5621, 0.0
      %vm5654 = vcmp.ge.f32.partialorder %v5622, 0.0
      %vm5655 = vcmp.ge.f32.partialorder %v5623, 0.0
      %vm5656 = vcmp.ge.f32.partialorder %v5624, 0.0
      %vm5657 = vcmp.ge.f32.partialorder %v5625, 0.0
      %vm5658 = vcmp.ge.f32.partialorder %v5626, 0.0
      %vm5659 = vcmp.ge.f32.partialorder %v5627, 0.0
      %vm5660 = vcmp.ge.f32.partialorder %v5628, 0.0
      %vm5661 = vcmp.ge.f32.partialorder %v5629, 0.0
      %vm5662 = vcmp.ge.f32.partialorder %v5630, 0.0
      %vm5663 = vcmp.ge.f32.partialorder %v5631, 0.0
      %vm5664 = vcmp.ge.f32.partialorder %v5632, 0.0
      %vm5665 = vcmp.ge.f32.partialorder %v5633, 0.0
      %vm5666 = vcmp.ge.f32.partialorder %v5634, 0.0
      %vm5667 = vcmp.ge.f32.partialorder %v5635, 0.0
      %v5668 = vld [vmem:[%s4] sm:$0x1]
      %v5670 = vlaneseq
      %v5671 = vshrl.u32 %v5670, 7
      %v5672 = vsub.s32 0, %v5671
      %v5673 = vrot.slane %v5668, %v5672
      %v5675 = vmul.f32 %v5604, %v5673
      %v5676 = vmul.f32 %v5605, %v5673
      %v5677 = vmul.f32 %v5606, %v5673
      %v5678 = vmul.f32 %v5607, %v5673
      %v5679 = vmul.f32 %v5608, %v5673
      %v5680 = vmul.f32 %v5609, %v5673
      %v5681 = vmul.f32 %v5610, %v5673
      %v5682 = vmul.f32 %v5611, %v5673
      %v5683 = vmul.f32 %v5612, %v5673
      %v5684 = vmul.f32 %v5613, %v5673
      %v5685 = vmul.f32 %v5614, %v5673
      %v5686 = vmul.f32 %v5615, %v5673
      %v5687 = vmul.f32 %v5616, %v5673
      %v5688 = vmul.f32 %v5617, %v5673
      %v5689 = vmul.f32 %v5618, %v5673
      %v5690 = vmul.f32 %v5619, %v5673
      %v5691 = vmul.f32 %v5620, %v5673
      %v5692 = vmul.f32 %v5621, %v5673
      %v5693 = vmul.f32 %v5622, %v5673
      %v5694 = vmul.f32 %v5623, %v5673
      %v5695 = vmul.f32 %v5624, %v5673
      %v5696 = vmul.f32 %v5625, %v5673
      %v5697 = vmul.f32 %v5626, %v5673
      %v5698 = vmul.f32 %v5627, %v5673
      %v5699 = vmul.f32 %v5628, %v5673
      %v5700 = vmul.f32 %v5629, %v5673
      %v5701 = vmul.f32 %v5630, %v5673
      %v5702 = vmul.f32 %v5631, %v5673
      %v5703 = vmul.f32 %v5632, %v5673
      %v5704 = vmul.f32 %v5633, %v5673
      %v5705 = vmul.f32 %v5634, %v5673
      %v5706 = vmul.f32 %v5635, %v5673
      %v5707 = vsel %vm5636, %v5604, %v5675
      %v5708 = vsel %vm5637, %v5605, %v5676
      %v5709 = vsel %vm5638, %v5606, %v5677
      %v5710 = vsel %vm5639, %v5607, %v5678
      %v5711 = vsel %vm5640, %v5608, %v5679
      %v5712 = vsel %vm5641, %v5609, %v5680
      %v5713 = vsel %vm5642, %v5610, %v5681
      %v5714 = vsel %vm5643, %v5611, %v5682
      %v5715 = vsel %vm5644, %v5612, %v5683
      %v5716 = vsel %vm5645, %v5613, %v5684
      %v5717 = vsel %vm5646, %v5614, %v5685
      %v5718 = vsel %vm5647, %v5615, %v5686
      %v5719 = vsel %vm5648, %v5616, %v5687
      %v5720 = vsel %vm5649, %v5617, %v5688
      %v5721 = vsel %vm5650, %v5618, %v5689
      %v5722 = vsel %vm5651, %v5619, %v5690
      %v5723 = vsel %vm5652, %v5620, %v5691
      %v5724 = vsel %vm5653, %v5621, %v5692
      %v5725 = vsel %vm5654, %v5622, %v5693
      %v5726 = vsel %vm5655, %v5623, %v5694
      %v5727 = vsel %vm5656, %v5624, %v5695
      %v5728 = vsel %vm5657, %v5625, %v5696
      %v5729 = vsel %vm5658, %v5626, %v5697
      %v5730 = vsel %vm5659, %v5627, %v5698
      %v5731 = vsel %vm5660, %v5628, %v5699
      %v5732 = vsel %vm5661, %v5629, %v5700
      %v5733 = vsel %vm5662, %v5630, %v5701
      %v5734 = vsel %vm5663, %v5631, %v5702
      %v5735 = vsel %vm5664, %v5632, %v5703
      %v5736 = vsel %vm5665, %v5633, %v5704
      %v5737 = vsel %vm5666, %v5634, %v5705
      %v5738 = vsel %vm5667, %v5635, %v5706
      %5739 = vst.msk [vmem:[%s224] sm:$0xf] %vm226, 0
      %5740 = vst.msk [vmem:[%s224 + $0x4] sm:$0xf] %vm226, 0
      %5741 = vst.msk [vmem:[%s224 + $0x8] sm:$0x1] %vm229, 0
      %5742 = vst.msk [vmem:[%s224 + $0xc] sm:$0xf] %vm226, 0
      %5743 = vst.msk [vmem:[%s224 + $0x10] sm:$0xf] %vm226, 0
      %5744 = vst.msk [vmem:[%s224 + $0x14] sm:$0x1] %vm229, 0
      %5745 = vst.msk [vmem:[%s224 + $0x18] sm:$0xf] %vm226, 0
      %5746 = vst.msk [vmem:[%s224 + $0x1c] sm:$0xf] %vm226, 0
      %5747 = vst.msk [vmem:[%s224 + $0x20] sm:$0x1] %vm229, 0
      %5748 = vst.msk [vmem:[%s224 + $0x24] sm:$0xf] %vm226, 0
      %5749 = vst.msk [vmem:[%s224 + $0x28] sm:$0xf] %vm226, 0
      %5750 = vst.msk [vmem:[%s224 + $0x2c] sm:$0x1] %vm229, 0
      %5751 = vst.msk [vmem:[%s224 + $0x30] sm:$0xf] %vm226, 0
      %5752 = vst.msk [vmem:[%s224 + $0x34] sm:$0xf] %vm226, 0
      %5753 = vst.msk [vmem:[%s224 + $0x38] sm:$0x1] %vm229, 0
      %5754 = vst.msk [vmem:[%s224 + $0x3c] sm:$0xf] %vm226, 0
      %5755 = vst.msk [vmem:[%s224 + $0x40] sm:$0xf] %vm226, 0
      %5756 = vst.msk [vmem:[%s224 + $0x44] sm:$0x1] %vm229, 0
      %5757 = vst.msk [vmem:[%s224 + $0x48] sm:$0xf] %vm226, 0
      %5758 = vst.msk [vmem:[%s224 + $0x4c] sm:$0xf] %vm226, 0
      %5759 = vst.msk [vmem:[%s224 + $0x50] sm:$0x1] %vm229, 0
      %5760 = vst.msk [vmem:[%s224 + $0x54] sm:$0xf] %vm226, 0
      %5761 = vst.msk [vmem:[%s224 + $0x58] sm:$0xf] %vm226, 0
      %5762 = vst.msk [vmem:[%s224 + $0x5c] sm:$0x1] %vm229, 0
      %5763 = vst.msk [vmem:[%s224 + $0x60] sm:$0xf] %vm226, 0
      %5764 = vst.msk [vmem:[%s224 + $0x64] sm:$0xf] %vm226, 0
      %5765 = vst.msk [vmem:[%s224 + $0x68] sm:$0x1] %vm229, 0
      %5766 = vst.msk [vmem:[%s224 + $0x6c] sm:$0xf] %vm226, 0
      %5767 = vst.msk [vmem:[%s224 + $0x70] sm:$0xf] %vm226, 0
      %5768 = vst.msk [vmem:[%s224 + $0x74] sm:$0x1] %vm229, 0
      %5769 = vst.msk [vmem:[%s224 + $0x78] sm:$0xf] %vm226, 0
      %5770 = vst.msk [vmem:[%s224 + $0x7c] sm:$0xf] %vm226, 0
      %5771 = vst.msk [vmem:[%s224 + $0x80] sm:$0x1] %vm229, 0
      %5772 = vst.msk [vmem:[%s224 + $0x84] sm:$0xf] %vm226, 0
      %5773 = vst.msk [vmem:[%s224 + $0x88] sm:$0xf] %vm226, 0
      %5774 = vst.msk [vmem:[%s224 + $0x8c] sm:$0x1] %vm229, 0
      %5775 = vst.msk [vmem:[%s224 + $0x90] sm:$0xf] %vm226, 0
      %5776 = vst.msk [vmem:[%s224 + $0x94] sm:$0xf] %vm226, 0
      %5777 = vst.msk [vmem:[%s224 + $0x98] sm:$0x1] %vm229, 0
      %5778 = vst.msk [vmem:[%s224 + $0x9c] sm:$0xf] %vm226, 0
      %5779 = vst.msk [vmem:[%s224 + $0xa0] sm:$0xf] %vm226, 0
      %5780 = vst.msk [vmem:[%s224 + $0xa4] sm:$0x1] %vm229, 0
      %5781 = vst.msk [vmem:[%s224 + $0xa8] sm:$0xf] %vm226, 0
      %5782 = vst.msk [vmem:[%s224 + $0xac] sm:$0xf] %vm226, 0
      %5783 = vst.msk [vmem:[%s224 + $0xb0] sm:$0x1] %vm229, 0
      %5784 = vst.msk [vmem:[%s224 + $0xb4] sm:$0xf] %vm226, 0
      %5785 = vst.msk [vmem:[%s224 + $0xb8] sm:$0xf] %vm226, 0
      %5786 = vst.msk [vmem:[%s224 + $0xbc] sm:$0x1] %vm229, 0
      %5787 = vst.msk [vmem:[%s224 + $0xc0] sm:$0xf] %vm226, 0
      %5788 = vst.msk [vmem:[%s224 + $0xc4] sm:$0xf] %vm226, 0
      %5789 = vst.msk [vmem:[%s224 + $0xc8] sm:$0x1] %vm229, 0
      %5790 = vst.msk [vmem:[%s224 + $0xcc] sm:$0xf] %vm226, 0
      %5791 = vst.msk [vmem:[%s224 + $0xd0] sm:$0xf] %vm226, 0
      %5792 = vst.msk [vmem:[%s224 + $0xd4] sm:$0x1] %vm229, 0
      %v5793 = vpack.c.bf16 %v5708, %v5707
      %v5794 = vpack.c.bf16 %v5710, %v5709
      %v5795 = vpack.c.bf16 %v5712, %v5711
      %v5796 = vpack.c.bf16 %v5714, %v5713
      %v5797 = vpack.c.bf16 %v5716, %v5715
      %v5798 = vpack.c.bf16 %v5718, %v5717
      %v5799 = vpack.c.bf16 %v5720, %v5719
      %v5800 = vpack.c.bf16 %v5722, %v5721
      %v5801 = vpack.c.bf16 %v5724, %v5723
      %v5802 = vpack.c.bf16 %v5726, %v5725
      %v5803 = vpack.c.bf16 %v5728, %v5727
      %v5804 = vpack.c.bf16 %v5730, %v5729
      %v5805 = vpack.c.bf16 %v5732, %v5731
      %v5806 = vpack.c.bf16 %v5734, %v5733
      %v5807 = vpack.c.bf16 %v5736, %v5735
      %v5808 = vpack.c.bf16 %v5738, %v5737
      %v5825 = vunpack.c.l.b16 %v5793
      %v5826 = vunpack.c.h.b16 %v5793
      %v5827 = vunpack.c.l.b16 %v5794
      %v5828 = vunpack.c.h.b16 %v5794
      %v5829 = vunpack.c.l.b16 %v5795
      %v5830 = vunpack.c.h.b16 %v5795
      %v5831 = vunpack.c.l.b16 %v5796
      %v5832 = vunpack.c.h.b16 %v5796
      %v5833 = vunpack.c.l.b16 %v5797
      %v5834 = vunpack.c.h.b16 %v5797
      %v5835 = vunpack.c.l.b16 %v5798
      %v5836 = vunpack.c.h.b16 %v5798
      %v5837 = vunpack.c.l.b16 %v5799
      %v5838 = vunpack.c.h.b16 %v5799
      %v5839 = vunpack.c.l.b16 %v5800
      %v5840 = vunpack.c.h.b16 %v5800
      %v5841 = vunpack.c.l.b16 %v5801
      %v5842 = vunpack.c.h.b16 %v5801
      %v5843 = vunpack.c.l.b16 %v5802
      %v5844 = vunpack.c.h.b16 %v5802
      %v5845 = vunpack.c.l.b16 %v5803
      %v5846 = vunpack.c.h.b16 %v5803
      %v5847 = vunpack.c.l.b16 %v5804
      %v5848 = vunpack.c.h.b16 %v5804
      %v5849 = vunpack.c.l.b16 %v5805
      %v5850 = vunpack.c.h.b16 %v5805
      %v5851 = vunpack.c.l.b16 %v5806
      %v5852 = vunpack.c.h.b16 %v5806
      %v5853 = vunpack.c.l.b16 %v5807
      %v5854 = vunpack.c.h.b16 %v5807
      %v5855 = vunpack.c.l.b16 %v5808
      %v5856 = vunpack.c.h.b16 %v5808
      %v5857 = vpack.c.b16 %v5825, %v5825
      %v5858 = vpack.c.b16 %v5826, %v5826
      %v5859 = vpack.c.b16 %v5827, %v5827
      %v5860 = vpack.c.b16 %v5828, %v5828
      %v5861 = vpack.c.b16 %v5829, %v5829
      %v5862 = vpack.c.b16 %v5830, %v5830
      %v5863 = vpack.c.b16 %v5831, %v5831
      %v5864 = vpack.c.b16 %v5832, %v5832
      %v5865 = vpack.c.b16 %v5833, %v5833
      %v5866 = vpack.c.b16 %v5834, %v5834
      %v5867 = vpack.c.b16 %v5835, %v5835
      %v5868 = vpack.c.b16 %v5836, %v5836
      %v5869 = vpack.c.b16 %v5837, %v5837
      %v5870 = vpack.c.b16 %v5838, %v5838
      %v5871 = vpack.c.b16 %v5839, %v5839
      %v5872 = vpack.c.b16 %v5840, %v5840
      %v5873 = vpack.c.b16 %v5841, %v5841
      %v5874 = vpack.c.b16 %v5842, %v5842
      %v5875 = vpack.c.b16 %v5843, %v5843
      %v5876 = vpack.c.b16 %v5844, %v5844
      %v5877 = vpack.c.b16 %v5845, %v5845
      %v5878 = vpack.c.b16 %v5846, %v5846
      %v5879 = vpack.c.b16 %v5847, %v5847
      %v5880 = vpack.c.b16 %v5848, %v5848
      %v5881 = vpack.c.b16 %v5849, %v5849
      %v5882 = vpack.c.b16 %v5850, %v5850
      %v5883 = vpack.c.b16 %v5851, %v5851
      %v5884 = vpack.c.b16 %v5852, %v5852
      %v5885 = vpack.c.b16 %v5853, %v5853
      %v5886 = vpack.c.b16 %v5854, %v5854
      %v5887 = vpack.c.b16 %v5855, %v5855
      %v5888 = vpack.c.b16 %v5856, %v5856
      %v5890 = vshrl.u32 %v5857, 16
      %v5892 = vrot.slane %v5890, 7
      %v5893 = vshll.u32 %v5857, 16
      %v5895 = vor.u32 %v5892, %v5893
      %v5896 = vrot.slane %v5892, 4
      %v5898 = vshrl.u32 %v5858, 16
      %v5900 = vrot.slane %v5898, 7
      %v5901 = vshll.u32 %v5858, 16
      %v5903 = vor.u32 %v5900, %v5901
      %v5904 = vsel %vm490, %v5896, %v5903
      %v5905 = vrot.slane %v5900, 4
      %v5907 = vshrl.u32 %v5859, 16
      %v5909 = vrot.slane %v5907, 7
      %v5910 = vshll.u32 %v5859, 16
      %v5912 = vor.u32 %v5909, %v5910
      %v5913 = vrot.slane %v5909, 4
      %v5915 = vshrl.u32 %v5860, 16
      %v5917 = vrot.slane %v5915, 7
      %v5918 = vshll.u32 %v5860, 16
      %v5920 = vor.u32 %v5917, %v5918
      %v5921 = vsel %vm490, %v5913, %v5920
      %v5922 = vrot.slane %v5917, 4
      %v5924 = vshrl.u32 %v5861, 16
      %v5926 = vrot.slane %v5924, 7
      %v5927 = vshll.u32 %v5861, 16
      %v5929 = vor.u32 %v5926, %v5927
      %v5930 = vrot.slane %v5926, 4
      %v5932 = vshrl.u32 %v5862, 16
      %v5934 = vrot.slane %v5932, 7
      %v5935 = vshll.u32 %v5862, 16
      %v5937 = vor.u32 %v5934, %v5935
      %v5938 = vsel %vm490, %v5930, %v5937
      %v5939 = vrot.slane %v5934, 4
      %v5941 = vshrl.u32 %v5863, 16
      %v5943 = vrot.slane %v5941, 7
      %v5944 = vshll.u32 %v5863, 16
      %v5946 = vor.u32 %v5943, %v5944
      %v5947 = vrot.slane %v5943, 4
      %v5949 = vshrl.u32 %v5864, 16
      %v5951 = vrot.slane %v5949, 7
      %v5952 = vshll.u32 %v5864, 16
      %v5954 = vor.u32 %v5951, %v5952
      %v5955 = vsel %vm490, %v5947, %v5954
      %v5956 = vrot.slane %v5951, 4
      %v5958 = vshrl.u32 %v5865, 16
      %v5960 = vrot.slane %v5958, 7
      %v5961 = vshll.u32 %v5865, 16
      %v5963 = vor.u32 %v5960, %v5961
      %v5964 = vrot.slane %v5960, 4
      %v5966 = vshrl.u32 %v5866, 16
      %v5968 = vrot.slane %v5966, 7
      %v5969 = vshll.u32 %v5866, 16
      %v5971 = vor.u32 %v5968, %v5969
      %v5972 = vsel %vm490, %v5964, %v5971
      %v5973 = vrot.slane %v5968, 4
      %v5975 = vshrl.u32 %v5867, 16
      %v5977 = vrot.slane %v5975, 7
      %v5978 = vshll.u32 %v5867, 16
      %v5980 = vor.u32 %v5977, %v5978
      %v5981 = vrot.slane %v5977, 4
      %v5983 = vshrl.u32 %v5868, 16
      %v5985 = vrot.slane %v5983, 7
      %v5986 = vshll.u32 %v5868, 16
      %v5988 = vor.u32 %v5985, %v5986
      %v5989 = vsel %vm490, %v5981, %v5988
      %v5990 = vrot.slane %v5985, 4
      %v5992 = vshrl.u32 %v5869, 16
      %v5994 = vrot.slane %v5992, 7
      %v5995 = vshll.u32 %v5869, 16
      %v5997 = vor.u32 %v5994, %v5995
      %v5998 = vrot.slane %v5994, 4
      %v6000 = vshrl.u32 %v5870, 16
      %v6002 = vrot.slane %v6000, 7
      %v6003 = vshll.u32 %v5870, 16
      %v6005 = vor.u32 %v6002, %v6003
      %v6006 = vsel %vm490, %v5998, %v6005
      %v6007 = vrot.slane %v6002, 4
      %v6009 = vshrl.u32 %v5871, 16
      %v6011 = vrot.slane %v6009, 7
      %v6012 = vshll.u32 %v5871, 16
      %v6014 = vor.u32 %v6011, %v6012
      %v6015 = vrot.slane %v6011, 4
      %v6017 = vshrl.u32 %v5872, 16
      %v6019 = vrot.slane %v6017, 7
      %v6020 = vshll.u32 %v5872, 16
      %v6022 = vor.u32 %v6019, %v6020
      %v6023 = vsel %vm490, %v6015, %v6022
      %v6024 = vrot.slane %v6019, 4
      %v6026 = vshrl.u32 %v5873, 16
      %v6028 = vrot.slane %v6026, 7
      %v6029 = vshll.u32 %v5873, 16
      %v6031 = vor.u32 %v6028, %v6029
      %v6032 = vrot.slane %v6028, 4
      %v6034 = vshrl.u32 %v5874, 16
      %v6036 = vrot.slane %v6034, 7
      %v6037 = vshll.u32 %v5874, 16
      %v6039 = vor.u32 %v6036, %v6037
      %v6040 = vsel %vm490, %v6032, %v6039
      %v6041 = vrot.slane %v6036, 4
      %v6043 = vshrl.u32 %v5875, 16
      %v6045 = vrot.slane %v6043, 7
      %v6046 = vshll.u32 %v5875, 16
      %v6048 = vor.u32 %v6045, %v6046
      %v6049 = vrot.slane %v6045, 4
      %v6051 = vshrl.u32 %v5876, 16
      %v6053 = vrot.slane %v6051, 7
      %v6054 = vshll.u32 %v5876, 16
      %v6056 = vor.u32 %v6053, %v6054
      %v6057 = vsel %vm490, %v6049, %v6056
      %v6058 = vrot.slane %v6053, 4
      %v6060 = vshrl.u32 %v5877, 16
      %v6062 = vrot.slane %v6060, 7
      %v6063 = vshll.u32 %v5877, 16
      %v6065 = vor.u32 %v6062, %v6063
      %v6066 = vrot.slane %v6062, 4
      %v6068 = vshrl.u32 %v5878, 16
      %v6070 = vrot.slane %v6068, 7
      %v6071 = vshll.u32 %v5878, 16
      %v6073 = vor.u32 %v6070, %v6071
      %v6074 = vsel %vm490, %v6066, %v6073
      %v6075 = vrot.slane %v6070, 4
      %v6077 = vshrl.u32 %v5879, 16
      %v6079 = vrot.slane %v6077, 7
      %v6080 = vshll.u32 %v5879, 16
      %v6082 = vor.u32 %v6079, %v6080
      %v6083 = vrot.slane %v6079, 4
      %v6085 = vshrl.u32 %v5880, 16
      %v6087 = vrot.slane %v6085, 7
      %v6088 = vshll.u32 %v5880, 16
      %v6090 = vor.u32 %v6087, %v6088
      %v6091 = vsel %vm490, %v6083, %v6090
      %v6092 = vrot.slane %v6087, 4
      %v6094 = vshrl.u32 %v5881, 16
      %v6096 = vrot.slane %v6094, 7
      %v6097 = vshll.u32 %v5881, 16
      %v6099 = vor.u32 %v6096, %v6097
      %v6100 = vrot.slane %v6096, 4
      %v6102 = vshrl.u32 %v5882, 16
      %v6104 = vrot.slane %v6102, 7
      %v6105 = vshll.u32 %v5882, 16
      %v6107 = vor.u32 %v6104, %v6105
      %v6108 = vsel %vm490, %v6100, %v6107
      %v6109 = vrot.slane %v6104, 4
      %v6111 = vshrl.u32 %v5883, 16
      %v6113 = vrot.slane %v6111, 7
      %v6114 = vshll.u32 %v5883, 16
      %v6116 = vor.u32 %v6113, %v6114
      %v6117 = vrot.slane %v6113, 4
      %v6119 = vshrl.u32 %v5884, 16
      %v6121 = vrot.slane %v6119, 7
      %v6122 = vshll.u32 %v5884, 16
      %v6124 = vor.u32 %v6121, %v6122
      %v6125 = vsel %vm490, %v6117, %v6124
      %v6126 = vrot.slane %v6121, 4
      %v6128 = vshrl.u32 %v5885, 16
      %v6130 = vrot.slane %v6128, 7
      %v6131 = vshll.u32 %v5885, 16
      %v6133 = vor.u32 %v6130, %v6131
      %v6134 = vrot.slane %v6130, 4
      %v6136 = vshrl.u32 %v5886, 16
      %v6138 = vrot.slane %v6136, 7
      %v6139 = vshll.u32 %v5886, 16
      %v6141 = vor.u32 %v6138, %v6139
      %v6142 = vsel %vm490, %v6134, %v6141
      %v6143 = vrot.slane %v6138, 4
      %v6145 = vshrl.u32 %v5887, 16
      %v6147 = vrot.slane %v6145, 7
      %v6148 = vshll.u32 %v5887, 16
      %v6150 = vor.u32 %v6147, %v6148
      %v6151 = vrot.slane %v6147, 4
      %v6153 = vshrl.u32 %v5888, 16
      %v6155 = vrot.slane %v6153, 7
      %v6156 = vshll.u32 %v5888, 16
      %v6158 = vor.u32 %v6155, %v6156
      %v6159 = vsel %vm490, %v6151, %v6158
      %v6160 = vrot.slane %v6155, 4
      %s6209 = scalar_lea.vmem %s224, 12
      %v6210 = vld [vmem:[%s6209] sm:$0xf]
      %v6211 = vsel %vm814, %v5895, %v6210
      %6212 = vst [vmem:[%s6209] sm:$0xf] %v6211
      %6213 = vst.msk [vmem:[%s6209 + $0x4] sm:$0xf] %vm226, %v5904
      %v6214 = vld [vmem:[%s6209 + $0x8] sm:$0x1]
      %v6215 = vsel %vm820, %v5905, %v6214
      %6216 = vst [vmem:[%s6209 + $0x8] sm:$0x1] %v6215
      %v6217 = vld [vmem:[%s6209 + $0xc] sm:$0xf]
      %v6218 = vsel %vm814, %v5912, %v6217
      %6219 = vst [vmem:[%s6209 + $0xc] sm:$0xf] %v6218
      %6220 = vst.msk [vmem:[%s6209 + $0x10] sm:$0xf] %vm226, %v5921
      %v6221 = vld [vmem:[%s6209 + $0x14] sm:$0x1]
      %v6222 = vsel %vm820, %v5922, %v6221
      %6223 = vst [vmem:[%s6209 + $0x14] sm:$0x1] %v6222
      %v6224 = vld [vmem:[%s6209 + $0x18] sm:$0xf]
      %v6225 = vsel %vm814, %v5929, %v6224
      %6226 = vst [vmem:[%s6209 + $0x18] sm:$0xf] %v6225
      %6227 = vst.msk [vmem:[%s6209 + $0x1c] sm:$0xf] %vm226, %v5938
      %v6228 = vld [vmem:[%s6209 + $0x20] sm:$0x1]
      %v6229 = vsel %vm820, %v5939, %v6228
      %6230 = vst [vmem:[%s6209 + $0x20] sm:$0x1] %v6229
      %v6231 = vld [vmem:[%s6209 + $0x24] sm:$0xf]
      %v6232 = vsel %vm814, %v5946, %v6231
      %6233 = vst [vmem:[%s6209 + $0x24] sm:$0xf] %v6232
      %6234 = vst.msk [vmem:[%s6209 + $0x28] sm:$0xf] %vm226, %v5955
      %v6235 = vld [vmem:[%s6209 + $0x2c] sm:$0x1]
      %v6236 = vsel %vm820, %v5956, %v6235
      %6237 = vst [vmem:[%s6209 + $0x2c] sm:$0x1] %v6236
      %v6238 = vld [vmem:[%s6209 + $0x30] sm:$0xf]
      %v6239 = vsel %vm814, %v5963, %v6238
      %6240 = vst [vmem:[%s6209 + $0x30] sm:$0xf] %v6239
      %6241 = vst.msk [vmem:[%s6209 + $0x34] sm:$0xf] %vm226, %v5972
      %v6242 = vld [vmem:[%s6209 + $0x38] sm:$0x1]
      %v6243 = vsel %vm820, %v5973, %v6242
      %6244 = vst [vmem:[%s6209 + $0x38] sm:$0x1] %v6243
      %v6245 = vld [vmem:[%s6209 + $0x3c] sm:$0xf]
      %v6246 = vsel %vm814, %v5980, %v6245
      %6247 = vst [vmem:[%s6209 + $0x3c] sm:$0xf] %v6246
      %6248 = vst.msk [vmem:[%s6209 + $0x40] sm:$0xf] %vm226, %v5989
      %v6249 = vld [vmem:[%s6209 + $0x44] sm:$0x1]
      %v6250 = vsel %vm820, %v5990, %v6249
      %6251 = vst [vmem:[%s6209 + $0x44] sm:$0x1] %v6250
      %v6252 = vld [vmem:[%s6209 + $0x48] sm:$0xf]
      %v6253 = vsel %vm814, %v5997, %v6252
      %6254 = vst [vmem:[%s6209 + $0x48] sm:$0xf] %v6253
      %6255 = vst.msk [vmem:[%s6209 + $0x4c] sm:$0xf] %vm226, %v6006
      %v6256 = vld [vmem:[%s6209 + $0x50] sm:$0x1]
      %v6257 = vsel %vm820, %v6007, %v6256
      %6258 = vst [vmem:[%s6209 + $0x50] sm:$0x1] %v6257
      %v6259 = vld [vmem:[%s6209 + $0x54] sm:$0xf]
      %v6260 = vsel %vm814, %v6014, %v6259
      %6261 = vst [vmem:[%s6209 + $0x54] sm:$0xf] %v6260
      %6262 = vst.msk [vmem:[%s6209 + $0x58] sm:$0xf] %vm226, %v6023
      %v6263 = vld [vmem:[%s6209 + $0x5c] sm:$0x1]
      %v6264 = vsel %vm820, %v6024, %v6263
      %6265 = vst [vmem:[%s6209 + $0x5c] sm:$0x1] %v6264
      %v6266 = vld [vmem:[%s6209 + $0x60] sm:$0xf]
      %v6267 = vsel %vm814, %v6031, %v6266
      %6268 = vst [vmem:[%s6209 + $0x60] sm:$0xf] %v6267
      %6269 = vst.msk [vmem:[%s6209 + $0x64] sm:$0xf] %vm226, %v6040
      %v6270 = vld [vmem:[%s6209 + $0x68] sm:$0x1]
      %v6271 = vsel %vm820, %v6041, %v6270
      %6272 = vst [vmem:[%s6209 + $0x68] sm:$0x1] %v6271
      %v6273 = vld [vmem:[%s6209 + $0x6c] sm:$0xf]
      %v6274 = vsel %vm814, %v6048, %v6273
      %6275 = vst [vmem:[%s6209 + $0x6c] sm:$0xf] %v6274
      %6276 = vst.msk [vmem:[%s6209 + $0x70] sm:$0xf] %vm226, %v6057
      %v6277 = vld [vmem:[%s6209 + $0x74] sm:$0x1]
      %v6278 = vsel %vm820, %v6058, %v6277
      %6279 = vst [vmem:[%s6209 + $0x74] sm:$0x1] %v6278
      %v6280 = vld [vmem:[%s6209 + $0x78] sm:$0xf]
      %v6281 = vsel %vm814, %v6065, %v6280
      %6282 = vst [vmem:[%s6209 + $0x78] sm:$0xf] %v6281
      %6283 = vst.msk [vmem:[%s6209 + $0x7c] sm:$0xf] %vm226, %v6074
      %v6284 = vld [vmem:[%s6209 + $0x80] sm:$0x1]
      %v6285 = vsel %vm820, %v6075, %v6284
      %6286 = vst [vmem:[%s6209 + $0x80] sm:$0x1] %v6285
      %v6287 = vld [vmem:[%s6209 + $0x84] sm:$0xf]
      %v6288 = vsel %vm814, %v6082, %v6287
      %6289 = vst [vmem:[%s6209 + $0x84] sm:$0xf] %v6288
      %6290 = vst.msk [vmem:[%s6209 + $0x88] sm:$0xf] %vm226, %v6091
      %v6291 = vld [vmem:[%s6209 + $0x8c] sm:$0x1]
      %v6292 = vsel %vm820, %v6092, %v6291
      %6293 = vst [vmem:[%s6209 + $0x8c] sm:$0x1] %v6292
      %v6294 = vld [vmem:[%s6209 + $0x90] sm:$0xf]
      %v6295 = vsel %vm814, %v6099, %v6294
      %6296 = vst [vmem:[%s6209 + $0x90] sm:$0xf] %v6295
      %6297 = vst.msk [vmem:[%s6209 + $0x94] sm:$0xf] %vm226, %v6108
      %v6298 = vld [vmem:[%s6209 + $0x98] sm:$0x1]
      %v6299 = vsel %vm820, %v6109, %v6298
      %6300 = vst [vmem:[%s6209 + $0x98] sm:$0x1] %v6299
      %v6301 = vld [vmem:[%s6209 + $0x9c] sm:$0xf]
      %v6302 = vsel %vm814, %v6116, %v6301
      %6303 = vst [vmem:[%s6209 + $0x9c] sm:$0xf] %v6302
      %6304 = vst.msk [vmem:[%s6209 + $0xa0] sm:$0xf] %vm226, %v6125
      %v6305 = vld [vmem:[%s6209 + $0xa4] sm:$0x1]
      %v6306 = vsel %vm820, %v6126, %v6305
      %6307 = vst [vmem:[%s6209 + $0xa4] sm:$0x1] %v6306
      %v6308 = vld [vmem:[%s6209 + $0xa8] sm:$0xf]
      %v6309 = vsel %vm814, %v6133, %v6308
      %6310 = vst [vmem:[%s6209 + $0xa8] sm:$0xf] %v6309
      %6311 = vst.msk [vmem:[%s6209 + $0xac] sm:$0xf] %vm226, %v6142
      %v6312 = vld [vmem:[%s6209 + $0xb0] sm:$0x1]
      %v6313 = vsel %vm820, %v6143, %v6312
      %6314 = vst [vmem:[%s6209 + $0xb0] sm:$0x1] %v6313
      %v6315 = vld [vmem:[%s6209 + $0xb4] sm:$0xf]
      %v6316 = vsel %vm814, %v6150, %v6315
      %6317 = vst [vmem:[%s6209 + $0xb4] sm:$0xf] %v6316
      %6318 = vst.msk [vmem:[%s6209 + $0xb8] sm:$0xf] %vm226, %v6159
      %v6319 = vld [vmem:[%s6209 + $0xbc] sm:$0x1]
      %v6320 = vsel %vm820, %v6160, %v6319
      %6321 = vst [vmem:[%s6209 + $0xbc] sm:$0x1] %v6320
      %p6322 = scmp.lt.s32.totalorder %s16, 1
      %s6323 = scalar_select %p6322, %s16, 1
      %s6324 = smul.addr %s6323, 54
      %s6325 = smul.addr %s6324, 4
      %s6326 = scalar_lea.vmem %s5, %s6325
      // Predicated region
      $region41: #{bottleneck_ir.2} parent=39 // pred_check
        %p6327 = pneg %p144
      $region42: #{bottleneck_ir.2} parent=39 // pred_check_branch
        %6329 = sbr.rel (%p6327) target = $region44
      $region43: #{bottleneck_ir.2} parent=39 // pred_region
        _
      $region44: #{bottleneck_ir.2} parent=39 // pred_fallthru
        _
    $region40: #{bottleneck_ir.2} parent=5 // pred_fallthru
      _
    %p6330 = scmp.le.s32.totalorder 2, %s11
    // Predicated region
    $region45: #{bottleneck_ir.2} parent=5 // pred_check
      %p6331 = pneg %p6330
    $region46: #{bottleneck_ir.2} parent=5 // pred_check_branch
      %6333 = sbr.rel (%p6331) target = $region48
    $region47: #{bottleneck_ir.2} parent=5 // pred_region
      %s6334 = ssub.s32 %s11, 2
      // Predicated region
      $region49: #{bottleneck_ir.2} parent=47 // pred_check
        %p6335 = pneg %p150
      $region50: #{bottleneck_ir.2} parent=47 // pred_check_branch
        %6337 = sbr.rel (%p6335) target = $region52
      $region51: #{bottleneck_ir.2} parent=47 // pred_region
        %p6338 = scmp.lt.s32.totalorder %s17, 1
        %s6339 = scalar_select %p6338, %s17, 1
        %s6340 = smul.addr %s6339, 54
        %s6341 = smul.addr %s6340, 4
        %s6342 = scalar_lea.vmem %s5, %s6341
      $region52: #{bottleneck_ir.2} parent=47 // pred_fallthru
        _
    $region48: #{bottleneck_ir.2} parent=5 // pred_fallthru
      _
  $region6: #{bottleneck_ir.2} parent=0 // loop_footer
    %s15 = sadd.s32 1, %s11
  $region7: #{bottleneck_ir.2} parent=0 // loop_footer_branch
    %10 = sbr.rel target = $region3
  $region8: #{bottleneck_ir.2} parent=0 // loop_exit
    _

</llo_original>
